<compile_context>
chip_gen: v7x
topology: tpu7x:2x2x1
jax: 0.10.0
libtpu: 0.0.40
codegen_flags: <defaults>
</compile_context>

<pallas_src>
import math
import functools

import jax
import jax.numpy as jnp
from jax.experimental import pallas as pl
from jax.experimental.pallas import tpu as pltpu


def _temporal_attn_kernel(*refs, num_heads, temporal_dim, num_time_steps):
    """One lane tile: all T time steps, all D embed channels, TILE sequences.

    refs = (w_in, b_in, w_out, b_out,     # SMEM, 1-D folded parameters
            x_0 ... x_{D-1},              # VMEM (T, TILE), embed channel d
            o)                            # VMEM (T, D, TILE), native channel order
    """
    D = temporal_dim
    T = num_time_steps
    hd = D // num_heads

    w_in_ref, b_in_ref, w_out_ref, b_out_ref = refs[0:4]
    x_refs = refs[4:4 + D]
    o_ref = refs[4 + D]

    xs = [x_refs[d][...].astype(jnp.float32) for d in range(D)]   # D x (T, TN)

    # ---- LayerNorm over D: reductions are plain VPU adds over the unrolled
    #      channel list (gamma/beta are folded into w_in/b_in on the host). ----
    tot = xs[0]
    for d in range(1, D):
        tot = tot + xs[d]
    mean = tot * (1.0 / D)
    xc = [xs[d] - mean for d in range(D)]
    sq = xc[0] * xc[0]
    for d in range(1, D):
        sq = sq + xc[d] * xc[d]
    inv_std = jax.lax.rsqrt(sq * (1.0 / D) + 1e-5)
    xn = [xc[d] * inv_std for d in range(D)]                       # D x (T, TN)

    # ---- QKV projection: per-output-channel accumulator, SMEM scalar weights.
    #      Query rows are pre-scaled by 1/sqrt(hd) on the host. ----
    qkv = []
    for e in range(3 * D):
        acc = xn[0] * w_in_ref[e * D]
        for d in range(1, D):
            acc = acc + xn[d] * w_in_ref[e * D + d]
        qkv.append(acc + b_in_ref[e])                              # (T, TN)

    # ---- Per-head attention.  Scores are (key s, query t, lane n): softmax
    #      max/sum and the context contraction reduce over the leading axis. ----
    ctx = [None] * D
    for h in range(num_heads):
        sc = None
        for c in range(hd):
            q = qkv[h * hd + c]                        # (T_t, TN), pre-scaled
            k = qkv[D + h * hd + c]                    # (T_s, TN)
            term = k[:, None, :] * q[None, :, :]       # (T_s, T_t, TN)
            sc = term if sc is None else sc + term
        sc = sc - jnp.max(sc, axis=0, keepdims=True)   # stable softmax over keys
        p = jnp.exp(sc)
        inv_l = pl.reciprocal(jnp.sum(p, axis=0), approx=True)    # (T_t, TN), EUP
        for c in range(hd):
            v = qkv[2 * D + h * hd + c]                # (T_s, TN)
            acc = p[0] * v[0:1, :]
            for s in range(1, T):
                acc = acc + p[s] * v[s:s + 1, :]
            ctx[h * hd + c] = acc * inv_l              # (T_t, TN)

    # ---- Output projection (per embed-channel accumulator, SMEM scalars)
    #      fused with the residual; one lane-dense store in (T, D, lane) order. ----
    ys = []
    for d in range(D):
        acc = ctx[0] * w_out_ref[d * D]
        for e in range(1, D):
            acc = acc + ctx[e] * w_out_ref[d * D + e]
        ys.append(xs[d] + acc + b_out_ref[d])
    o_ref[...] = jnp.stack(ys, axis=1).astype(o_ref.dtype)


def _choose_lane_tiling(hw, batch, cap_groups=16):
    """Pick (padded HW, lane tile) for the spatial axis.

    The tile is a multiple of 128 lanes that divides the padded spatial extent.
    Capped at 16 groups (2048 lanes) so block + kernel temporaries stay well
    inside v7x's 64 MiB VMEM.  Prefers an even total grid step count so both
    v7x TensorCores get work (harmless on single-TC v5e/v6e).
    """
    groups = pl.cdiv(hw, 128)
    hw_pad = groups * 128
    divisors = [g for g in range(1, groups + 1)
                if groups % g == 0 and g <= cap_groups]
    tile_g = max(divisors)
    total = batch * (groups // tile_g)
    if total % 2 == 1 and groups > 1:
        even = [g for g in divisors
                if (batch * (groups // g)) % 2 == 0 and 2 * g >= tile_g]
        if even:
            tile_g = max(even)
    return hw_pad, tile_g * 128


def temporal_transformer_pallas(x, params, *, num_time_steps, num_heads):
    """x: (B, C, H, W) float32 with C = num_time_steps * D.  Returns (B, C, H, W)."""
    B, C, H, W = x.shape
    T = num_time_steps
    D = C // T
    hd = D // num_heads
    HW = H * W

    hw_pad, tile = _choose_lane_tiling(HW, B)
    n_j = hw_pad // tile

    # (B, C, HW) view; pad the spatial axis to a multiple of the lane tile.
    x3 = x.reshape(B, C, HW)
    if hw_pad != HW:
        x3 = jnp.pad(x3, ((0, 0), (0, 0), (0, hw_pad - HW)))
    # Free reshape: channel c = t*D + d -> (B, T, D*hw_pad) with column
    # m = d*hw_pad + spatial.  One windowed BlockSpec per d then de-interleaves
    # the channels via DMA (no host transpose, no in-kernel gather).
    x3 = x3.reshape(B, T, D * hw_pad)

    # ---- Fold LayerNorm affine + 1/sqrt(hd) query scaling into the in-proj. ----
    gamma = params['gamma'].astype(jnp.float32)          # (D,)
    beta = params['beta'].astype(jnp.float32)            # (D,)
    w_in = params['w_in'].astype(jnp.float32)            # (3D, D)
    b_in = params['b_in'].astype(jnp.float32)            # (3D,)
    w_out = params['w_out'].astype(jnp.float32)          # (D, D)
    b_out = params['b_out'].astype(jnp.float32)          # (D,)

    q_scale = 1.0 / math.sqrt(hd)
    scale_vec = jnp.concatenate([jnp.full((D,), q_scale, jnp.float32),
                                 jnp.ones((2 * D,), jnp.float32)])
    w_in_f = (w_in * gamma[None, :]) * scale_vec[:, None]
    b_in_f = (b_in + w_in @ beta) * scale_vec

    w_in_flat = w_in_f.reshape(-1)                        # (3D*D,)
    w_out_flat = w_out.reshape(-1)                        # (D*D,)

    smem_spec = pl.BlockSpec(memory_space=pltpu.MemorySpace.SMEM)

    def x_spec(d):
        return pl.BlockSpec(
            (None, T, tile),
            lambda b, j, d=d, n_j=n_j: (b, 0, d * n_j + j))

    kernel = functools.partial(_temporal_attn_kernel, num_heads=num_heads,
                               temporal_dim=D, num_time_steps=T)

    y = pl.pallas_call(
        kernel,
        out_shape=jax.ShapeDtypeStruct((B, T, D, hw_pad), x.dtype),
        grid_spec=pltpu.PrefetchScalarGridSpec(
            num_scalar_prefetch=0,
            grid=(B, n_j),
            in_specs=[smem_spec, smem_spec, smem_spec, smem_spec]
                     + [x_spec(d) for d in range(D)],
            out_specs=pl.BlockSpec((None, T, D, tile),
                                   lambda b, j: (b, 0, 0, j)),
        ),
        compiler_params=pltpu.CompilerParams(
            dimension_semantics=("parallel", "parallel"),
            vmem_limit_bytes=32 * 1024 * 1024),
    )(w_in_flat, b_in_f, w_out_flat, b_out, *([x3] * D))

    # (B, T, D, hw_pad) -> (B, C, H, W); drop spatial padding lanes if any.
    if hw_pad != HW:
        y = y[..., :HW]
    return y.reshape(B, C, H, W)


def temporal_transformer_ref(x, params, *, num_time_steps, num_heads):
    """Pure-JAX reference of the PyTorch forward pass."""
    B, C, H, W = x.shape
    T = num_time_steps
    D = C // T
    hd = D // num_heads
    x_seq = x.reshape(B, T, D, H, W).transpose(0, 3, 4, 1, 2).reshape(B * H * W, T, D)

    mean = jnp.mean(x_seq, axis=-1, keepdims=True)
    var = jnp.mean((x_seq - mean) ** 2, axis=-1, keepdims=True)
    xn = (x_seq - mean) / jnp.sqrt(var + 1e-5)
    xn = xn * params['gamma'] + params['beta']

    qkv = jnp.einsum('ntd,ed->nte', xn, params['w_in']) + params['b_in']
    q, k, v = qkv[..., :D], qkv[..., D:2 * D], qkv[..., 2 * D:]
    N = q.shape[0]
    q = q.reshape(N, T, num_heads, hd).transpose(0, 2, 1, 3)
    k = k.reshape(N, T, num_heads, hd).transpose(0, 2, 1, 3)
    v = v.reshape(N, T, num_heads, hd).transpose(0, 2, 1, 3)
    s = jnp.einsum('nhtc,nhsc->nhts', q, k) / math.sqrt(hd)
    p = jax.nn.softmax(s, axis=-1)
    ctx = jnp.einsum('nhts,nhsc->nhtc', p, v).transpose(0, 2, 1, 3).reshape(N, T, D)
    out = jnp.einsum('ntd,ed->nte', ctx, params['w_out']) + params['b_out']
    y_seq = x_seq + out
    return y_seq.reshape(B, H, W, T, D).transpose(0, 3, 4, 1, 2).reshape(B, T * D, H, W)


if __name__ == "__main__":
    # Module config: channels=64, num_time_steps=8 -> temporal_dim D=8, num_heads=4.
    T = 8
    NUM_HEADS = 4
    C = 64
    D = C // T

    key = jax.random.PRNGKey(0)
    kx1, kx2, kx3, kg, kb, k1, k2, k3, k4 = jax.random.split(key, 9)

    # Deterministic synthetic parameters (shapes match the nn.Module's __init__).
    params = {
        'gamma': 1.0 + 0.1 * jax.random.normal(kg, (D,), jnp.float32),   # LN weight
        'beta': 0.1 * jax.random.normal(kb, (D,), jnp.float32),          # LN bias
        'w_in': 0.2 * jax.random.normal(k1, (3 * D, D), jnp.float32),    # in_proj_weight
        'b_in': 0.1 * jax.random.normal(k2, (3 * D,), jnp.float32),      # in_proj_bias
        'w_out': 0.2 * jax.random.normal(k3, (D, D), jnp.float32),       # out_proj.weight
        'b_out': 0.1 * jax.random.normal(k4, (D,), jnp.float32),         # out_proj.bias
    }

    def check(x):
        y = temporal_transformer_pallas(x, params, num_time_steps=T,
                                        num_heads=NUM_HEADS)
        y = jax.block_until_ready(y)
        y_ref = temporal_transformer_ref(x, params, num_time_steps=T,
                                         num_heads=NUM_HEADS)
        assert y.shape == x.shape
        err = float(jnp.max(jnp.abs(y - y_ref)))
        assert jnp.allclose(y, y_ref, atol=2e-3, rtol=2e-3), \
            f"mismatch (max abs err {err})"

    # Case 1: H*W = 256 (lane-aligned, no padding), grid (2, 1).
    check(jax.random.normal(kx1, (2, C, 16, 16), dtype=jnp.float32))
    # Case 2: H*W = 100 (exercises spatial padding to 128 lanes).
    check(jax.random.normal(kx2, (2, C, 10, 10), dtype=jnp.float32))
    # Case 3: H*W = 2304 -> 18 lane groups, tiled as 2 parallel steps of 1152 lanes.
    check(jax.random.normal(kx3, (1, C, 48, 48), dtype=jnp.float32))

    print("KERNEL_OK")
</pallas_src>

<mosaic_0001>
module attributes {stable_mosaic.version = 11 : i64} {
  func.func @_temporal_attn_kernel(%arg0: i32, %arg1: i32, %arg2: memref<192xf32, #tpu.memory_space<smem>>, %arg3: memref<24xf32, #tpu.memory_space<smem>>, %arg4: memref<64xf32, #tpu.memory_space<smem>>, %arg5: memref<8xf32, #tpu.memory_space<smem>>, %arg6: memref<1x8x256xf32, #tpu.memory_space<vmem>>, %arg7: memref<1x8x256xf32, #tpu.memory_space<vmem>>, %arg8: memref<1x8x256xf32, #tpu.memory_space<vmem>>, %arg9: memref<1x8x256xf32, #tpu.memory_space<vmem>>, %arg10: memref<1x8x256xf32, #tpu.memory_space<vmem>>, %arg11: memref<1x8x256xf32, #tpu.memory_space<vmem>>, %arg12: memref<1x8x256xf32, #tpu.memory_space<vmem>>, %arg13: memref<1x8x256xf32, #tpu.memory_space<vmem>>, %arg14: memref<1x8x8x256xf32, #tpu.memory_space<vmem>>) attributes {dimension_semantics = [#tpu.dimension_semantics<parallel>, #tpu.dimension_semantics<parallel>], iteration_bounds = array<i64: 2, 1>, scalar_prefetch = 0 : i64, scratch_operands = 0 : i64, tpu.core_type = #tpu.core_type<tc>, window_params = [{transform_indices = @transform_0, window_bounds = array<i64: 192>}, {transform_indices = @transform_1, window_bounds = array<i64: 24>}, {transform_indices = @transform_2, window_bounds = array<i64: 64>}, {transform_indices = @transform_3, window_bounds = array<i64: 8>}, {transform_indices = @transform_4, window_bounds = array<i64: 1, 8, 256>}, {transform_indices = @transform_5, window_bounds = array<i64: 1, 8, 256>}, {transform_indices = @transform_6, window_bounds = array<i64: 1, 8, 256>}, {transform_indices = @transform_7, window_bounds = array<i64: 1, 8, 256>}, {transform_indices = @transform_8, window_bounds = array<i64: 1, 8, 256>}, {transform_indices = @transform_9, window_bounds = array<i64: 1, 8, 256>}, {transform_indices = @transform_10, window_bounds = array<i64: 1, 8, 256>}, {transform_indices = @transform_11, window_bounds = array<i64: 1, 8, 256>}, {transform_indices = @transform_12, window_bounds = array<i64: 1, 8, 8, 256>}]} {
    %c0 = arith.constant 0 : index
    %c0_0 = arith.constant 0 : index
    %c0_1 = arith.constant 0 : index
    %0 = vector.load %arg6[%c0, %c0_0, %c0_1] : memref<1x8x256xf32, #tpu.memory_space<vmem>>, vector<1x8x256xf32>
    %1 = vector.shape_cast %0 : vector<1x8x256xf32> to vector<8x256xf32>
    %c0_2 = arith.constant 0 : index
    %c0_3 = arith.constant 0 : index
    %c0_4 = arith.constant 0 : index
    %2 = vector.load %arg7[%c0_2, %c0_3, %c0_4] : memref<1x8x256xf32, #tpu.memory_space<vmem>>, vector<1x8x256xf32>
    %3 = vector.shape_cast %2 : vector<1x8x256xf32> to vector<8x256xf32>
    %c0_5 = arith.constant 0 : index
    %c0_6 = arith.constant 0 : index
    %c0_7 = arith.constant 0 : index
    %4 = vector.load %arg8[%c0_5, %c0_6, %c0_7] : memref<1x8x256xf32, #tpu.memory_space<vmem>>, vector<1x8x256xf32>
    %5 = vector.shape_cast %4 : vector<1x8x256xf32> to vector<8x256xf32>
    %c0_8 = arith.constant 0 : index
    %c0_9 = arith.constant 0 : index
    %c0_10 = arith.constant 0 : index
    %6 = vector.load %arg9[%c0_8, %c0_9, %c0_10] : memref<1x8x256xf32, #tpu.memory_space<vmem>>, vector<1x8x256xf32>
    %7 = vector.shape_cast %6 : vector<1x8x256xf32> to vector<8x256xf32>
    %c0_11 = arith.constant 0 : index
    %c0_12 = arith.constant 0 : index
    %c0_13 = arith.constant 0 : index
    %8 = vector.load %arg10[%c0_11, %c0_12, %c0_13] : memref<1x8x256xf32, #tpu.memory_space<vmem>>, vector<1x8x256xf32>
    %9 = vector.shape_cast %8 : vector<1x8x256xf32> to vector<8x256xf32>
    %c0_14 = arith.constant 0 : index
    %c0_15 = arith.constant 0 : index
    %c0_16 = arith.constant 0 : index
    %10 = vector.load %arg11[%c0_14, %c0_15, %c0_16] : memref<1x8x256xf32, #tpu.memory_space<vmem>>, vector<1x8x256xf32>
    %11 = vector.shape_cast %10 : vector<1x8x256xf32> to vector<8x256xf32>
    %c0_17 = arith.constant 0 : index
    %c0_18 = arith.constant 0 : index
    %c0_19 = arith.constant 0 : index
    %12 = vector.load %arg12[%c0_17, %c0_18, %c0_19] : memref<1x8x256xf32, #tpu.memory_space<vmem>>, vector<1x8x256xf32>
    %13 = vector.shape_cast %12 : vector<1x8x256xf32> to vector<8x256xf32>
    %c0_20 = arith.constant 0 : index
    %c0_21 = arith.constant 0 : index
    %c0_22 = arith.constant 0 : index
    %14 = vector.load %arg13[%c0_20, %c0_21, %c0_22] : memref<1x8x256xf32, #tpu.memory_space<vmem>>, vector<1x8x256xf32>
    %15 = vector.shape_cast %14 : vector<1x8x256xf32> to vector<8x256xf32>
    %16 = arith.addf %1, %3 : vector<8x256xf32>
    %17 = arith.addf %16, %5 : vector<8x256xf32>
    %18 = arith.addf %17, %7 : vector<8x256xf32>
    %19 = arith.addf %18, %9 : vector<8x256xf32>
    %20 = arith.addf %19, %11 : vector<8x256xf32>
    %21 = arith.addf %20, %13 : vector<8x256xf32>
    %22 = arith.addf %21, %15 : vector<8x256xf32>
    %cst = arith.constant 1.250000e-01 : f32
    %23 = vector.broadcast %cst : f32 to vector<8x256xf32>
    %24 = arith.mulf %22, %23 : vector<8x256xf32>
    %25 = arith.subf %1, %24 : vector<8x256xf32>
    %26 = arith.subf %3, %24 : vector<8x256xf32>
    %27 = arith.subf %5, %24 : vector<8x256xf32>
    %28 = arith.subf %7, %24 : vector<8x256xf32>
    %29 = arith.subf %9, %24 : vector<8x256xf32>
    %30 = arith.subf %11, %24 : vector<8x256xf32>
    %31 = arith.subf %13, %24 : vector<8x256xf32>
    %32 = arith.subf %15, %24 : vector<8x256xf32>
    %33 = arith.mulf %25, %25 : vector<8x256xf32>
    %34 = arith.mulf %26, %26 : vector<8x256xf32>
    %35 = arith.addf %33, %34 : vector<8x256xf32>
    %36 = arith.mulf %27, %27 : vector<8x256xf32>
    %37 = arith.addf %35, %36 : vector<8x256xf32>
    %38 = arith.mulf %28, %28 : vector<8x256xf32>
    %39 = arith.addf %37, %38 : vector<8x256xf32>
    %40 = arith.mulf %29, %29 : vector<8x256xf32>
    %41 = arith.addf %39, %40 : vector<8x256xf32>
    %42 = arith.mulf %30, %30 : vector<8x256xf32>
    %43 = arith.addf %41, %42 : vector<8x256xf32>
    %44 = arith.mulf %31, %31 : vector<8x256xf32>
    %45 = arith.addf %43, %44 : vector<8x256xf32>
    %46 = arith.mulf %32, %32 : vector<8x256xf32>
    %47 = arith.addf %45, %46 : vector<8x256xf32>
    %cst_23 = arith.constant 1.250000e-01 : f32
    %48 = vector.broadcast %cst_23 : f32 to vector<8x256xf32>
    %49 = arith.mulf %47, %48 : vector<8x256xf32>
    %cst_24 = arith.constant 9.99999974E-6 : f32
    %50 = vector.broadcast %cst_24 : f32 to vector<8x256xf32>
    %51 = arith.addf %49, %50 : vector<8x256xf32>
    %52 = math.rsqrt %51 : vector<8x256xf32>
    %53 = arith.mulf %25, %52 : vector<8x256xf32>
    %54 = arith.mulf %26, %52 : vector<8x256xf32>
    %55 = arith.mulf %27, %52 : vector<8x256xf32>
    %56 = arith.mulf %28, %52 : vector<8x256xf32>
    %57 = arith.mulf %29, %52 : vector<8x256xf32>
    %58 = arith.mulf %30, %52 : vector<8x256xf32>
    %59 = arith.mulf %31, %52 : vector<8x256xf32>
    %60 = arith.mulf %32, %52 : vector<8x256xf32>
    %c0_25 = arith.constant 0 : index
    %61 = memref.load %arg2[%c0_25] : memref<192xf32, #tpu.memory_space<smem>>
    %62 = vector.broadcast %61 : f32 to vector<8x256xf32>
    %63 = arith.mulf %53, %62 : vector<8x256xf32>
    %c1 = arith.constant 1 : index
    %64 = memref.load %arg2[%c1] : memref<192xf32, #tpu.memory_space<smem>>
    %65 = vector.broadcast %64 : f32 to vector<8x256xf32>
    %66 = arith.mulf %54, %65 : vector<8x256xf32>
    %67 = arith.addf %63, %66 : vector<8x256xf32>
    %c2 = arith.constant 2 : index
    %68 = memref.load %arg2[%c2] : memref<192xf32, #tpu.memory_space<smem>>
    %69 = vector.broadcast %68 : f32 to vector<8x256xf32>
    %70 = arith.mulf %55, %69 : vector<8x256xf32>
    %71 = arith.addf %67, %70 : vector<8x256xf32>
    %c3 = arith.constant 3 : index
    %72 = memref.load %arg2[%c3] : memref<192xf32, #tpu.memory_space<smem>>
    %73 = vector.broadcast %72 : f32 to vector<8x256xf32>
    %74 = arith.mulf %56, %73 : vector<8x256xf32>
    %75 = arith.addf %71, %74 : vector<8x256xf32>
    %c4 = arith.constant 4 : index
    %76 = memref.load %arg2[%c4] : memref<192xf32, #tpu.memory_space<smem>>
    %77 = vector.broadcast %76 : f32 to vector<8x256xf32>
    %78 = arith.mulf %57, %77 : vector<8x256xf32>
    %79 = arith.addf %75, %78 : vector<8x256xf32>
    %c5 = arith.constant 5 : index
    %80 = memref.load %arg2[%c5] : memref<192xf32, #tpu.memory_space<smem>>
    %81 = vector.broadcast %80 : f32 to vector<8x256xf32>
    %82 = arith.mulf %58, %81 : vector<8x256xf32>
    %83 = arith.addf %79, %82 : vector<8x256xf32>
    %c6 = arith.constant 6 : index
    %84 = memref.load %arg2[%c6] : memref<192xf32, #tpu.memory_space<smem>>
    %85 = vector.broadcast %84 : f32 to vector<8x256xf32>
    %86 = arith.mulf %59, %85 : vector<8x256xf32>
    %87 = arith.addf %83, %86 : vector<8x256xf32>
    %c7 = arith.constant 7 : index
    %88 = memref.load %arg2[%c7] : memref<192xf32, #tpu.memory_space<smem>>
    %89 = vector.broadcast %88 : f32 to vector<8x256xf32>
    %90 = arith.mulf %60, %89 : vector<8x256xf32>
    %91 = arith.addf %87, %90 : vector<8x256xf32>
    %c0_26 = arith.constant 0 : index
    %92 = memref.load %arg3[%c0_26] : memref<24xf32, #tpu.memory_space<smem>>
    %93 = vector.broadcast %92 : f32 to vector<8x256xf32>
    %94 = arith.addf %91, %93 : vector<8x256xf32>
    %c8 = arith.constant 8 : index
    %95 = memref.load %arg2[%c8] : memref<192xf32, #tpu.memory_space<smem>>
    %96 = vector.broadcast %95 : f32 to vector<8x256xf32>
    %97 = arith.mulf %53, %96 : vector<8x256xf32>
    %c9 = arith.constant 9 : index
    %98 = memref.load %arg2[%c9] : memref<192xf32, #tpu.memory_space<smem>>
    %99 = vector.broadcast %98 : f32 to vector<8x256xf32>
    %100 = arith.mulf %54, %99 : vector<8x256xf32>
    %101 = arith.addf %97, %100 : vector<8x256xf32>
    %c10 = arith.constant 10 : index
    %102 = memref.load %arg2[%c10] : memref<192xf32, #tpu.memory_space<smem>>
    %103 = vector.broadcast %102 : f32 to vector<8x256xf32>
    %104 = arith.mulf %55, %103 : vector<8x256xf32>
    %105 = arith.addf %101, %104 : vector<8x256xf32>
    %c11 = arith.constant 11 : index
    %106 = memref.load %arg2[%c11] : memref<192xf32, #tpu.memory_space<smem>>
    %107 = vector.broadcast %106 : f32 to vector<8x256xf32>
    %108 = arith.mulf %56, %107 : vector<8x256xf32>
    %109 = arith.addf %105, %108 : vector<8x256xf32>
    %c12 = arith.constant 12 : index
    %110 = memref.load %arg2[%c12] : memref<192xf32, #tpu.memory_space<smem>>
    %111 = vector.broadcast %110 : f32 to vector<8x256xf32>
    %112 = arith.mulf %57, %111 : vector<8x256xf32>
    %113 = arith.addf %109, %112 : vector<8x256xf32>
    %c13 = arith.constant 13 : index
    %114 = memref.load %arg2[%c13] : memref<192xf32, #tpu.memory_space<smem>>
    %115 = vector.broadcast %114 : f32 to vector<8x256xf32>
    %116 = arith.mulf %58, %115 : vector<8x256xf32>
    %117 = arith.addf %113, %116 : vector<8x256xf32>
    %c14 = arith.constant 14 : index
    %118 = memref.load %arg2[%c14] : memref<192xf32, #tpu.memory_space<smem>>
    %119 = vector.broadcast %118 : f32 to vector<8x256xf32>
    %120 = arith.mulf %59, %119 : vector<8x256xf32>
    %121 = arith.addf %117, %120 : vector<8x256xf32>
    %c15 = arith.constant 15 : index
    %122 = memref.load %arg2[%c15] : memref<192xf32, #tpu.memory_space<smem>>
    %123 = vector.broadcast %122 : f32 to vector<8x256xf32>
    %124 = arith.mulf %60, %123 : vector<8x256xf32>
    %125 = arith.addf %121, %124 : vector<8x256xf32>
    %c1_27 = arith.constant 1 : index
    %126 = memref.load %arg3[%c1_27] : memref<24xf32, #tpu.memory_space<smem>>
    %127 = vector.broadcast %126 : f32 to vector<8x256xf32>
    %128 = arith.addf %125, %127 : vector<8x256xf32>
    %c16 = arith.constant 16 : index
    %129 = memref.load %arg2[%c16] : memref<192xf32, #tpu.memory_space<smem>>
    %130 = vector.broadcast %129 : f32 to vector<8x256xf32>
    %131 = arith.mulf %53, %130 : vector<8x256xf32>
    %c17 = arith.constant 17 : index
    %132 = memref.load %arg2[%c17] : memref<192xf32, #tpu.memory_space<smem>>
    %133 = vector.broadcast %132 : f32 to vector<8x256xf32>
    %134 = arith.mulf %54, %133 : vector<8x256xf32>
    %135 = arith.addf %131, %134 : vector<8x256xf32>
    %c18 = arith.constant 18 : index
    %136 = memref.load %arg2[%c18] : memref<192xf32, #tpu.memory_space<smem>>
    %137 = vector.broadcast %136 : f32 to vector<8x256xf32>
    %138 = arith.mulf %55, %137 : vector<8x256xf32>
    %139 = arith.addf %135, %138 : vector<8x256xf32>
    %c19 = arith.constant 19 : index
    %140 = memref.load %arg2[%c19] : memref<192xf32, #tpu.memory_space<smem>>
    %141 = vector.broadcast %140 : f32 to vector<8x256xf32>
    %142 = arith.mulf %56, %141 : vector<8x256xf32>
    %143 = arith.addf %139, %142 : vector<8x256xf32>
    %c20 = arith.constant 20 : index
    %144 = memref.load %arg2[%c20] : memref<192xf32, #tpu.memory_space<smem>>
    %145 = vector.broadcast %144 : f32 to vector<8x256xf32>
    %146 = arith.mulf %57, %145 : vector<8x256xf32>
    %147 = arith.addf %143, %146 : vector<8x256xf32>
    %c21 = arith.constant 21 : index
    %148 = memref.load %arg2[%c21] : memref<192xf32, #tpu.memory_space<smem>>
    %149 = vector.broadcast %148 : f32 to vector<8x256xf32>
    %150 = arith.mulf %58, %149 : vector<8x256xf32>
    %151 = arith.addf %147, %150 : vector<8x256xf32>
    %c22 = arith.constant 22 : index
    %152 = memref.load %arg2[%c22] : memref<192xf32, #tpu.memory_space<smem>>
    %153 = vector.broadcast %152 : f32 to vector<8x256xf32>
    %154 = arith.mulf %59, %153 : vector<8x256xf32>
    %155 = arith.addf %151, %154 : vector<8x256xf32>
    %c23 = arith.constant 23 : index
    %156 = memref.load %arg2[%c23] : memref<192xf32, #tpu.memory_space<smem>>
    %157 = vector.broadcast %156 : f32 to vector<8x256xf32>
    %158 = arith.mulf %60, %157 : vector<8x256xf32>
    %159 = arith.addf %155, %158 : vector<8x256xf32>
    %c2_28 = arith.constant 2 : index
    %160 = memref.load %arg3[%c2_28] : memref<24xf32, #tpu.memory_space<smem>>
    %161 = vector.broadcast %160 : f32 to vector<8x256xf32>
    %162 = arith.addf %159, %161 : vector<8x256xf32>
    %c24 = arith.constant 24 : index
    %163 = memref.load %arg2[%c24] : memref<192xf32, #tpu.memory_space<smem>>
    %164 = vector.broadcast %163 : f32 to vector<8x256xf32>
    %165 = arith.mulf %53, %164 : vector<8x256xf32>
    %c25 = arith.constant 25 : index
    %166 = memref.load %arg2[%c25] : memref<192xf32, #tpu.memory_space<smem>>
    %167 = vector.broadcast %166 : f32 to vector<8x256xf32>
    %168 = arith.mulf %54, %167 : vector<8x256xf32>
    %169 = arith.addf %165, %168 : vector<8x256xf32>
    %c26 = arith.constant 26 : index
    %170 = memref.load %arg2[%c26] : memref<192xf32, #tpu.memory_space<smem>>
    %171 = vector.broadcast %170 : f32 to vector<8x256xf32>
    %172 = arith.mulf %55, %171 : vector<8x256xf32>
    %173 = arith.addf %169, %172 : vector<8x256xf32>
    %c27 = arith.constant 27 : index
    %174 = memref.load %arg2[%c27] : memref<192xf32, #tpu.memory_space<smem>>
    %175 = vector.broadcast %174 : f32 to vector<8x256xf32>
    %176 = arith.mulf %56, %175 : vector<8x256xf32>
    %177 = arith.addf %173, %176 : vector<8x256xf32>
    %c28 = arith.constant 28 : index
    %178 = memref.load %arg2[%c28] : memref<192xf32, #tpu.memory_space<smem>>
    %179 = vector.broadcast %178 : f32 to vector<8x256xf32>
    %180 = arith.mulf %57, %179 : vector<8x256xf32>
    %181 = arith.addf %177, %180 : vector<8x256xf32>
    %c29 = arith.constant 29 : index
    %182 = memref.load %arg2[%c29] : memref<192xf32, #tpu.memory_space<smem>>
    %183 = vector.broadcast %182 : f32 to vector<8x256xf32>
    %184 = arith.mulf %58, %183 : vector<8x256xf32>
    %185 = arith.addf %181, %184 : vector<8x256xf32>
    %c30 = arith.constant 30 : index
    %186 = memref.load %arg2[%c30] : memref<192xf32, #tpu.memory_space<smem>>
    %187 = vector.broadcast %186 : f32 to vector<8x256xf32>
    %188 = arith.mulf %59, %187 : vector<8x256xf32>
    %189 = arith.addf %185, %188 : vector<8x256xf32>
    %c31 = arith.constant 31 : index
    %190 = memref.load %arg2[%c31] : memref<192xf32, #tpu.memory_space<smem>>
    %191 = vector.broadcast %190 : f32 to vector<8x256xf32>
    %192 = arith.mulf %60, %191 : vector<8x256xf32>
    %193 = arith.addf %189, %192 : vector<8x256xf32>
    %c3_29 = arith.constant 3 : index
    %194 = memref.load %arg3[%c3_29] : memref<24xf32, #tpu.memory_space<smem>>
    %195 = vector.broadcast %194 : f32 to vector<8x256xf32>
    %196 = arith.addf %193, %195 : vector<8x256xf32>
    %c32 = arith.constant 32 : index
    %197 = memref.load %arg2[%c32] : memref<192xf32, #tpu.memory_space<smem>>
    %198 = vector.broadcast %197 : f32 to vector<8x256xf32>
    %199 = arith.mulf %53, %198 : vector<8x256xf32>
    %c33 = arith.constant 33 : index
    %200 = memref.load %arg2[%c33] : memref<192xf32, #tpu.memory_space<smem>>
    %201 = vector.broadcast %200 : f32 to vector<8x256xf32>
    %202 = arith.mulf %54, %201 : vector<8x256xf32>
    %203 = arith.addf %199, %202 : vector<8x256xf32>
    %c34 = arith.constant 34 : index
    %204 = memref.load %arg2[%c34] : memref<192xf32, #tpu.memory_space<smem>>
    %205 = vector.broadcast %204 : f32 to vector<8x256xf32>
    %206 = arith.mulf %55, %205 : vector<8x256xf32>
    %207 = arith.addf %203, %206 : vector<8x256xf32>
    %c35 = arith.constant 35 : index
    %208 = memref.load %arg2[%c35] : memref<192xf32, #tpu.memory_space<smem>>
    %209 = vector.broadcast %208 : f32 to vector<8x256xf32>
    %210 = arith.mulf %56, %209 : vector<8x256xf32>
    %211 = arith.addf %207, %210 : vector<8x256xf32>
    %c36 = arith.constant 36 : index
    %212 = memref.load %arg2[%c36] : memref<192xf32, #tpu.memory_space<smem>>
    %213 = vector.broadcast %212 : f32 to vector<8x256xf32>
    %214 = arith.mulf %57, %213 : vector<8x256xf32>
    %215 = arith.addf %211, %214 : vector<8x256xf32>
    %c37 = arith.constant 37 : index
    %216 = memref.load %arg2[%c37] : memref<192xf32, #tpu.memory_space<smem>>
    %217 = vector.broadcast %216 : f32 to vector<8x256xf32>
    %218 = arith.mulf %58, %217 : vector<8x256xf32>
    %219 = arith.addf %215, %218 : vector<8x256xf32>
    %c38 = arith.constant 38 : index
    %220 = memref.load %arg2[%c38] : memref<192xf32, #tpu.memory_space<smem>>
    %221 = vector.broadcast %220 : f32 to vector<8x256xf32>
    %222 = arith.mulf %59, %221 : vector<8x256xf32>
    %223 = arith.addf %219, %222 : vector<8x256xf32>
    %c39 = arith.constant 39 : index
    %224 = memref.load %arg2[%c39] : memref<192xf32, #tpu.memory_space<smem>>
    %225 = vector.broadcast %224 : f32 to vector<8x256xf32>
    %226 = arith.mulf %60, %225 : vector<8x256xf32>
    %227 = arith.addf %223, %226 : vector<8x256xf32>
    %c4_30 = arith.constant 4 : index
    %228 = memref.load %arg3[%c4_30] : memref<24xf32, #tpu.memory_space<smem>>
    %229 = vector.broadcast %228 : f32 to vector<8x256xf32>
    %230 = arith.addf %227, %229 : vector<8x256xf32>
    %c40 = arith.constant 40 : index
    %231 = memref.load %arg2[%c40] : memref<192xf32, #tpu.memory_space<smem>>
    %232 = vector.broadcast %231 : f32 to vector<8x256xf32>
    %233 = arith.mulf %53, %232 : vector<8x256xf32>
    %c41 = arith.constant 41 : index
    %234 = memref.load %arg2[%c41] : memref<192xf32, #tpu.memory_space<smem>>
    %235 = vector.broadcast %234 : f32 to vector<8x256xf32>
    %236 = arith.mulf %54, %235 : vector<8x256xf32>
    %237 = arith.addf %233, %236 : vector<8x256xf32>
    %c42 = arith.constant 42 : index
    %238 = memref.load %arg2[%c42] : memref<192xf32, #tpu.memory_space<smem>>
    %239 = vector.broadcast %238 : f32 to vector<8x256xf32>
    %240 = arith.mulf %55, %239 : vector<8x256xf32>
    %241 = arith.addf %237, %240 : vector<8x256xf32>
    %c43 = arith.constant 43 : index
    %242 = memref.load %arg2[%c43] : memref<192xf32, #tpu.memory_space<smem>>
    %243 = vector.broadcast %242 : f32 to vector<8x256xf32>
    %244 = arith.mulf %56, %243 : vector<8x256xf32>
    %245 = arith.addf %241, %244 : vector<8x256xf32>
    %c44 = arith.constant 44 : index
    %246 = memref.load %arg2[%c44] : memref<192xf32, #tpu.memory_space<smem>>
    %247 = vector.broadcast %246 : f32 to vector<8x256xf32>
    %248 = arith.mulf %57, %247 : vector<8x256xf32>
    %249 = arith.addf %245, %248 : vector<8x256xf32>
    %c45 = arith.constant 45 : index
    %250 = memref.load %arg2[%c45] : memref<192xf32, #tpu.memory_space<smem>>
    %251 = vector.broadcast %250 : f32 to vector<8x256xf32>
    %252 = arith.mulf %58, %251 : vector<8x256xf32>
    %253 = arith.addf %249, %252 : vector<8x256xf32>
    %c46 = arith.constant 46 : index
    %254 = memref.load %arg2[%c46] : memref<192xf32, #tpu.memory_space<smem>>
    %255 = vector.broadcast %254 : f32 to vector<8x256xf32>
    %256 = arith.mulf %59, %255 : vector<8x256xf32>
    %257 = arith.addf %253, %256 : vector<8x256xf32>
    %c47 = arith.constant 47 : index
    %258 = memref.load %arg2[%c47] : memref<192xf32, #tpu.memory_space<smem>>
    %259 = vector.broadcast %258 : f32 to vector<8x256xf32>
    %260 = arith.mulf %60, %259 : vector<8x256xf32>
    %261 = arith.addf %257, %260 : vector<8x256xf32>
    %c5_31 = arith.constant 5 : index
    %262 = memref.load %arg3[%c5_31] : memref<24xf32, #tpu.memory_space<smem>>
    %263 = vector.broadcast %262 : f32 to vector<8x256xf32>
    %264 = arith.addf %261, %263 : vector<8x256xf32>
    %c48 = arith.constant 48 : index
    %265 = memref.load %arg2[%c48] : memref<192xf32, #tpu.memory_space<smem>>
    %266 = vector.broadcast %265 : f32 to vector<8x256xf32>
    %267 = arith.mulf %53, %266 : vector<8x256xf32>
    %c49 = arith.constant 49 : index
    %268 = memref.load %arg2[%c49] : memref<192xf32, #tpu.memory_space<smem>>
    %269 = vector.broadcast %268 : f32 to vector<8x256xf32>
    %270 = arith.mulf %54, %269 : vector<8x256xf32>
    %271 = arith.addf %267, %270 : vector<8x256xf32>
    %c50 = arith.constant 50 : index
    %272 = memref.load %arg2[%c50] : memref<192xf32, #tpu.memory_space<smem>>
    %273 = vector.broadcast %272 : f32 to vector<8x256xf32>
    %274 = arith.mulf %55, %273 : vector<8x256xf32>
    %275 = arith.addf %271, %274 : vector<8x256xf32>
    %c51 = arith.constant 51 : index
    %276 = memref.load %arg2[%c51] : memref<192xf32, #tpu.memory_space<smem>>
    %277 = vector.broadcast %276 : f32 to vector<8x256xf32>
    %278 = arith.mulf %56, %277 : vector<8x256xf32>
    %279 = arith.addf %275, %278 : vector<8x256xf32>
    %c52 = arith.constant 52 : index
    %280 = memref.load %arg2[%c52] : memref<192xf32, #tpu.memory_space<smem>>
    %281 = vector.broadcast %280 : f32 to vector<8x256xf32>
    %282 = arith.mulf %57, %281 : vector<8x256xf32>
    %283 = arith.addf %279, %282 : vector<8x256xf32>
    %c53 = arith.constant 53 : index
    %284 = memref.load %arg2[%c53] : memref<192xf32, #tpu.memory_space<smem>>
    %285 = vector.broadcast %284 : f32 to vector<8x256xf32>
    %286 = arith.mulf %58, %285 : vector<8x256xf32>
    %287 = arith.addf %283, %286 : vector<8x256xf32>
    %c54 = arith.constant 54 : index
    %288 = memref.load %arg2[%c54] : memref<192xf32, #tpu.memory_space<smem>>
    %289 = vector.broadcast %288 : f32 to vector<8x256xf32>
    %290 = arith.mulf %59, %289 : vector<8x256xf32>
    %291 = arith.addf %287, %290 : vector<8x256xf32>
    %c55 = arith.constant 55 : index
    %292 = memref.load %arg2[%c55] : memref<192xf32, #tpu.memory_space<smem>>
    %293 = vector.broadcast %292 : f32 to vector<8x256xf32>
    %294 = arith.mulf %60, %293 : vector<8x256xf32>
    %295 = arith.addf %291, %294 : vector<8x256xf32>
    %c6_32 = arith.constant 6 : index
    %296 = memref.load %arg3[%c6_32] : memref<24xf32, #tpu.memory_space<smem>>
    %297 = vector.broadcast %296 : f32 to vector<8x256xf32>
    %298 = arith.addf %295, %297 : vector<8x256xf32>
    %c56 = arith.constant 56 : index
    %299 = memref.load %arg2[%c56] : memref<192xf32, #tpu.memory_space<smem>>
    %300 = vector.broadcast %299 : f32 to vector<8x256xf32>
    %301 = arith.mulf %53, %300 : vector<8x256xf32>
    %c57 = arith.constant 57 : index
    %302 = memref.load %arg2[%c57] : memref<192xf32, #tpu.memory_space<smem>>
    %303 = vector.broadcast %302 : f32 to vector<8x256xf32>
    %304 = arith.mulf %54, %303 : vector<8x256xf32>
    %305 = arith.addf %301, %304 : vector<8x256xf32>
    %c58 = arith.constant 58 : index
    %306 = memref.load %arg2[%c58] : memref<192xf32, #tpu.memory_space<smem>>
    %307 = vector.broadcast %306 : f32 to vector<8x256xf32>
    %308 = arith.mulf %55, %307 : vector<8x256xf32>
    %309 = arith.addf %305, %308 : vector<8x256xf32>
    %c59 = arith.constant 59 : index
    %310 = memref.load %arg2[%c59] : memref<192xf32, #tpu.memory_space<smem>>
    %311 = vector.broadcast %310 : f32 to vector<8x256xf32>
    %312 = arith.mulf %56, %311 : vector<8x256xf32>
    %313 = arith.addf %309, %312 : vector<8x256xf32>
    %c60 = arith.constant 60 : index
    %314 = memref.load %arg2[%c60] : memref<192xf32, #tpu.memory_space<smem>>
    %315 = vector.broadcast %314 : f32 to vector<8x256xf32>
    %316 = arith.mulf %57, %315 : vector<8x256xf32>
    %317 = arith.addf %313, %316 : vector<8x256xf32>
    %c61 = arith.constant 61 : index
    %318 = memref.load %arg2[%c61] : memref<192xf32, #tpu.memory_space<smem>>
    %319 = vector.broadcast %318 : f32 to vector<8x256xf32>
    %320 = arith.mulf %58, %319 : vector<8x256xf32>
    %321 = arith.addf %317, %320 : vector<8x256xf32>
    %c62 = arith.constant 62 : index
    %322 = memref.load %arg2[%c62] : memref<192xf32, #tpu.memory_space<smem>>
    %323 = vector.broadcast %322 : f32 to vector<8x256xf32>
    %324 = arith.mulf %59, %323 : vector<8x256xf32>
    %325 = arith.addf %321, %324 : vector<8x256xf32>
    %c63 = arith.constant 63 : index
    %326 = memref.load %arg2[%c63] : memref<192xf32, #tpu.memory_space<smem>>
    %327 = vector.broadcast %326 : f32 to vector<8x256xf32>
    %328 = arith.mulf %60, %327 : vector<8x256xf32>
    %329 = arith.addf %325, %328 : vector<8x256xf32>
    %c7_33 = arith.constant 7 : index
    %330 = memref.load %arg3[%c7_33] : memref<24xf32, #tpu.memory_space<smem>>
    %331 = vector.broadcast %330 : f32 to vector<8x256xf32>
    %332 = arith.addf %329, %331 : vector<8x256xf32>
    %c64 = arith.constant 64 : index
    %333 = memref.load %arg2[%c64] : memref<192xf32, #tpu.memory_space<smem>>
    %334 = vector.broadcast %333 : f32 to vector<8x256xf32>
    %335 = arith.mulf %53, %334 : vector<8x256xf32>
    %c65 = arith.constant 65 : index
    %336 = memref.load %arg2[%c65] : memref<192xf32, #tpu.memory_space<smem>>
    %337 = vector.broadcast %336 : f32 to vector<8x256xf32>
    %338 = arith.mulf %54, %337 : vector<8x256xf32>
    %339 = arith.addf %335, %338 : vector<8x256xf32>
    %c66 = arith.constant 66 : index
    %340 = memref.load %arg2[%c66] : memref<192xf32, #tpu.memory_space<smem>>
    %341 = vector.broadcast %340 : f32 to vector<8x256xf32>
    %342 = arith.mulf %55, %341 : vector<8x256xf32>
    %343 = arith.addf %339, %342 : vector<8x256xf32>
    %c67 = arith.constant 67 : index
    %344 = memref.load %arg2[%c67] : memref<192xf32, #tpu.memory_space<smem>>
    %345 = vector.broadcast %344 : f32 to vector<8x256xf32>
    %346 = arith.mulf %56, %345 : vector<8x256xf32>
    %347 = arith.addf %343, %346 : vector<8x256xf32>
    %c68 = arith.constant 68 : index
    %348 = memref.load %arg2[%c68] : memref<192xf32, #tpu.memory_space<smem>>
    %349 = vector.broadcast %348 : f32 to vector<8x256xf32>
    %350 = arith.mulf %57, %349 : vector<8x256xf32>
    %351 = arith.addf %347, %350 : vector<8x256xf32>
    %c69 = arith.constant 69 : index
    %352 = memref.load %arg2[%c69] : memref<192xf32, #tpu.memory_space<smem>>
    %353 = vector.broadcast %352 : f32 to vector<8x256xf32>
    %354 = arith.mulf %58, %353 : vector<8x256xf32>
    %355 = arith.addf %351, %354 : vector<8x256xf32>
    %c70 = arith.constant 70 : index
    %356 = memref.load %arg2[%c70] : memref<192xf32, #tpu.memory_space<smem>>
    %357 = vector.broadcast %356 : f32 to vector<8x256xf32>
    %358 = arith.mulf %59, %357 : vector<8x256xf32>
    %359 = arith.addf %355, %358 : vector<8x256xf32>
    %c71 = arith.constant 71 : index
    %360 = memref.load %arg2[%c71] : memref<192xf32, #tpu.memory_space<smem>>
    %361 = vector.broadcast %360 : f32 to vector<8x256xf32>
    %362 = arith.mulf %60, %361 : vector<8x256xf32>
    %363 = arith.addf %359, %362 : vector<8x256xf32>
    %c8_34 = arith.constant 8 : index
    %364 = memref.load %arg3[%c8_34] : memref<24xf32, #tpu.memory_space<smem>>
    %365 = vector.broadcast %364 : f32 to vector<8x256xf32>
    %366 = arith.addf %363, %365 : vector<8x256xf32>
    %c72 = arith.constant 72 : index
    %367 = memref.load %arg2[%c72] : memref<192xf32, #tpu.memory_space<smem>>
    %368 = vector.broadcast %367 : f32 to vector<8x256xf32>
    %369 = arith.mulf %53, %368 : vector<8x256xf32>
    %c73 = arith.constant 73 : index
    %370 = memref.load %arg2[%c73] : memref<192xf32, #tpu.memory_space<smem>>
    %371 = vector.broadcast %370 : f32 to vector<8x256xf32>
    %372 = arith.mulf %54, %371 : vector<8x256xf32>
    %373 = arith.addf %369, %372 : vector<8x256xf32>
    %c74 = arith.constant 74 : index
    %374 = memref.load %arg2[%c74] : memref<192xf32, #tpu.memory_space<smem>>
    %375 = vector.broadcast %374 : f32 to vector<8x256xf32>
    %376 = arith.mulf %55, %375 : vector<8x256xf32>
    %377 = arith.addf %373, %376 : vector<8x256xf32>
    %c75 = arith.constant 75 : index
    %378 = memref.load %arg2[%c75] : memref<192xf32, #tpu.memory_space<smem>>
    %379 = vector.broadcast %378 : f32 to vector<8x256xf32>
    %380 = arith.mulf %56, %379 : vector<8x256xf32>
    %381 = arith.addf %377, %380 : vector<8x256xf32>
    %c76 = arith.constant 76 : index
    %382 = memref.load %arg2[%c76] : memref<192xf32, #tpu.memory_space<smem>>
    %383 = vector.broadcast %382 : f32 to vector<8x256xf32>
    %384 = arith.mulf %57, %383 : vector<8x256xf32>
    %385 = arith.addf %381, %384 : vector<8x256xf32>
    %c77 = arith.constant 77 : index
    %386 = memref.load %arg2[%c77] : memref<192xf32, #tpu.memory_space<smem>>
    %387 = vector.broadcast %386 : f32 to vector<8x256xf32>
    %388 = arith.mulf %58, %387 : vector<8x256xf32>
    %389 = arith.addf %385, %388 : vector<8x256xf32>
    %c78 = arith.constant 78 : index
    %390 = memref.load %arg2[%c78] : memref<192xf32, #tpu.memory_space<smem>>
    %391 = vector.broadcast %390 : f32 to vector<8x256xf32>
    %392 = arith.mulf %59, %391 : vector<8x256xf32>
    %393 = arith.addf %389, %392 : vector<8x256xf32>
    %c79 = arith.constant 79 : index
    %394 = memref.load %arg2[%c79] : memref<192xf32, #tpu.memory_space<smem>>
    %395 = vector.broadcast %394 : f32 to vector<8x256xf32>
    %396 = arith.mulf %60, %395 : vector<8x256xf32>
    %397 = arith.addf %393, %396 : vector<8x256xf32>
    %c9_35 = arith.constant 9 : index
    %398 = memref.load %arg3[%c9_35] : memref<24xf32, #tpu.memory_space<smem>>
    %399 = vector.broadcast %398 : f32 to vector<8x256xf32>
    %400 = arith.addf %397, %399 : vector<8x256xf32>
    %c80 = arith.constant 80 : index
    %401 = memref.load %arg2[%c80] : memref<192xf32, #tpu.memory_space<smem>>
    %402 = vector.broadcast %401 : f32 to vector<8x256xf32>
    %403 = arith.mulf %53, %402 : vector<8x256xf32>
    %c81 = arith.constant 81 : index
    %404 = memref.load %arg2[%c81] : memref<192xf32, #tpu.memory_space<smem>>
    %405 = vector.broadcast %404 : f32 to vector<8x256xf32>
    %406 = arith.mulf %54, %405 : vector<8x256xf32>
    %407 = arith.addf %403, %406 : vector<8x256xf32>
    %c82 = arith.constant 82 : index
    %408 = memref.load %arg2[%c82] : memref<192xf32, #tpu.memory_space<smem>>
    %409 = vector.broadcast %408 : f32 to vector<8x256xf32>
    %410 = arith.mulf %55, %409 : vector<8x256xf32>
    %411 = arith.addf %407, %410 : vector<8x256xf32>
    %c83 = arith.constant 83 : index
    %412 = memref.load %arg2[%c83] : memref<192xf32, #tpu.memory_space<smem>>
    %413 = vector.broadcast %412 : f32 to vector<8x256xf32>
    %414 = arith.mulf %56, %413 : vector<8x256xf32>
    %415 = arith.addf %411, %414 : vector<8x256xf32>
    %c84 = arith.constant 84 : index
    %416 = memref.load %arg2[%c84] : memref<192xf32, #tpu.memory_space<smem>>
    %417 = vector.broadcast %416 : f32 to vector<8x256xf32>
    %418 = arith.mulf %57, %417 : vector<8x256xf32>
    %419 = arith.addf %415, %418 : vector<8x256xf32>
    %c85 = arith.constant 85 : index
    %420 = memref.load %arg2[%c85] : memref<192xf32, #tpu.memory_space<smem>>
    %421 = vector.broadcast %420 : f32 to vector<8x256xf32>
    %422 = arith.mulf %58, %421 : vector<8x256xf32>
    %423 = arith.addf %419, %422 : vector<8x256xf32>
    %c86 = arith.constant 86 : index
    %424 = memref.load %arg2[%c86] : memref<192xf32, #tpu.memory_space<smem>>
    %425 = vector.broadcast %424 : f32 to vector<8x256xf32>
    %426 = arith.mulf %59, %425 : vector<8x256xf32>
    %427 = arith.addf %423, %426 : vector<8x256xf32>
    %c87 = arith.constant 87 : index
    %428 = memref.load %arg2[%c87] : memref<192xf32, #tpu.memory_space<smem>>
    %429 = vector.broadcast %428 : f32 to vector<8x256xf32>
    %430 = arith.mulf %60, %429 : vector<8x256xf32>
    %431 = arith.addf %427, %430 : vector<8x256xf32>
    %c10_36 = arith.constant 10 : index
    %432 = memref.load %arg3[%c10_36] : memref<24xf32, #tpu.memory_space<smem>>
    %433 = vector.broadcast %432 : f32 to vector<8x256xf32>
    %434 = arith.addf %431, %433 : vector<8x256xf32>
    %c88 = arith.constant 88 : index
    %435 = memref.load %arg2[%c88] : memref<192xf32, #tpu.memory_space<smem>>
    %436 = vector.broadcast %435 : f32 to vector<8x256xf32>
    %437 = arith.mulf %53, %436 : vector<8x256xf32>
    %c89 = arith.constant 89 : index
    %438 = memref.load %arg2[%c89] : memref<192xf32, #tpu.memory_space<smem>>
    %439 = vector.broadcast %438 : f32 to vector<8x256xf32>
    %440 = arith.mulf %54, %439 : vector<8x256xf32>
    %441 = arith.addf %437, %440 : vector<8x256xf32>
    %c90 = arith.constant 90 : index
    %442 = memref.load %arg2[%c90] : memref<192xf32, #tpu.memory_space<smem>>
    %443 = vector.broadcast %442 : f32 to vector<8x256xf32>
    %444 = arith.mulf %55, %443 : vector<8x256xf32>
    %445 = arith.addf %441, %444 : vector<8x256xf32>
    %c91 = arith.constant 91 : index
    %446 = memref.load %arg2[%c91] : memref<192xf32, #tpu.memory_space<smem>>
    %447 = vector.broadcast %446 : f32 to vector<8x256xf32>
    %448 = arith.mulf %56, %447 : vector<8x256xf32>
    %449 = arith.addf %445, %448 : vector<8x256xf32>
    %c92 = arith.constant 92 : index
    %450 = memref.load %arg2[%c92] : memref<192xf32, #tpu.memory_space<smem>>
    %451 = vector.broadcast %450 : f32 to vector<8x256xf32>
    %452 = arith.mulf %57, %451 : vector<8x256xf32>
    %453 = arith.addf %449, %452 : vector<8x256xf32>
    %c93 = arith.constant 93 : index
    %454 = memref.load %arg2[%c93] : memref<192xf32, #tpu.memory_space<smem>>
    %455 = vector.broadcast %454 : f32 to vector<8x256xf32>
    %456 = arith.mulf %58, %455 : vector<8x256xf32>
    %457 = arith.addf %453, %456 : vector<8x256xf32>
    %c94 = arith.constant 94 : index
    %458 = memref.load %arg2[%c94] : memref<192xf32, #tpu.memory_space<smem>>
    %459 = vector.broadcast %458 : f32 to vector<8x256xf32>
    %460 = arith.mulf %59, %459 : vector<8x256xf32>
    %461 = arith.addf %457, %460 : vector<8x256xf32>
    %c95 = arith.constant 95 : index
    %462 = memref.load %arg2[%c95] : memref<192xf32, #tpu.memory_space<smem>>
    %463 = vector.broadcast %462 : f32 to vector<8x256xf32>
    %464 = arith.mulf %60, %463 : vector<8x256xf32>
    %465 = arith.addf %461, %464 : vector<8x256xf32>
    %c11_37 = arith.constant 11 : index
    %466 = memref.load %arg3[%c11_37] : memref<24xf32, #tpu.memory_space<smem>>
    %467 = vector.broadcast %466 : f32 to vector<8x256xf32>
    %468 = arith.addf %465, %467 : vector<8x256xf32>
    %c96 = arith.constant 96 : index
    %469 = memref.load %arg2[%c96] : memref<192xf32, #tpu.memory_space<smem>>
    %470 = vector.broadcast %469 : f32 to vector<8x256xf32>
    %471 = arith.mulf %53, %470 : vector<8x256xf32>
    %c97 = arith.constant 97 : index
    %472 = memref.load %arg2[%c97] : memref<192xf32, #tpu.memory_space<smem>>
    %473 = vector.broadcast %472 : f32 to vector<8x256xf32>
    %474 = arith.mulf %54, %473 : vector<8x256xf32>
    %475 = arith.addf %471, %474 : vector<8x256xf32>
    %c98 = arith.constant 98 : index
    %476 = memref.load %arg2[%c98] : memref<192xf32, #tpu.memory_space<smem>>
    %477 = vector.broadcast %476 : f32 to vector<8x256xf32>
    %478 = arith.mulf %55, %477 : vector<8x256xf32>
    %479 = arith.addf %475, %478 : vector<8x256xf32>
    %c99 = arith.constant 99 : index
    %480 = memref.load %arg2[%c99] : memref<192xf32, #tpu.memory_space<smem>>
    %481 = vector.broadcast %480 : f32 to vector<8x256xf32>
    %482 = arith.mulf %56, %481 : vector<8x256xf32>
    %483 = arith.addf %479, %482 : vector<8x256xf32>
    %c100 = arith.constant 100 : index
    %484 = memref.load %arg2[%c100] : memref<192xf32, #tpu.memory_space<smem>>
    %485 = vector.broadcast %484 : f32 to vector<8x256xf32>
    %486 = arith.mulf %57, %485 : vector<8x256xf32>
    %487 = arith.addf %483, %486 : vector<8x256xf32>
    %c101 = arith.constant 101 : index
    %488 = memref.load %arg2[%c101] : memref<192xf32, #tpu.memory_space<smem>>
    %489 = vector.broadcast %488 : f32 to vector<8x256xf32>
    %490 = arith.mulf %58, %489 : vector<8x256xf32>
    %491 = arith.addf %487, %490 : vector<8x256xf32>
    %c102 = arith.constant 102 : index
    %492 = memref.load %arg2[%c102] : memref<192xf32, #tpu.memory_space<smem>>
    %493 = vector.broadcast %492 : f32 to vector<8x256xf32>
    %494 = arith.mulf %59, %493 : vector<8x256xf32>
    %495 = arith.addf %491, %494 : vector<8x256xf32>
    %c103 = arith.constant 103 : index
    %496 = memref.load %arg2[%c103] : memref<192xf32, #tpu.memory_space<smem>>
    %497 = vector.broadcast %496 : f32 to vector<8x256xf32>
    %498 = arith.mulf %60, %497 : vector<8x256xf32>
    %499 = arith.addf %495, %498 : vector<8x256xf32>
    %c12_38 = arith.constant 12 : index
    %500 = memref.load %arg3[%c12_38] : memref<24xf32, #tpu.memory_space<smem>>
    %501 = vector.broadcast %500 : f32 to vector<8x256xf32>
    %502 = arith.addf %499, %501 : vector<8x256xf32>
    %c104 = arith.constant 104 : index
    %503 = memref.load %arg2[%c104] : memref<192xf32, #tpu.memory_space<smem>>
    %504 = vector.broadcast %503 : f32 to vector<8x256xf32>
    %505 = arith.mulf %53, %504 : vector<8x256xf32>
    %c105 = arith.constant 105 : index
    %506 = memref.load %arg2[%c105] : memref<192xf32, #tpu.memory_space<smem>>
    %507 = vector.broadcast %506 : f32 to vector<8x256xf32>
    %508 = arith.mulf %54, %507 : vector<8x256xf32>
    %509 = arith.addf %505, %508 : vector<8x256xf32>
    %c106 = arith.constant 106 : index
    %510 = memref.load %arg2[%c106] : memref<192xf32, #tpu.memory_space<smem>>
    %511 = vector.broadcast %510 : f32 to vector<8x256xf32>
    %512 = arith.mulf %55, %511 : vector<8x256xf32>
    %513 = arith.addf %509, %512 : vector<8x256xf32>
    %c107 = arith.constant 107 : index
    %514 = memref.load %arg2[%c107] : memref<192xf32, #tpu.memory_space<smem>>
    %515 = vector.broadcast %514 : f32 to vector<8x256xf32>
    %516 = arith.mulf %56, %515 : vector<8x256xf32>
    %517 = arith.addf %513, %516 : vector<8x256xf32>
    %c108 = arith.constant 108 : index
    %518 = memref.load %arg2[%c108] : memref<192xf32, #tpu.memory_space<smem>>
    %519 = vector.broadcast %518 : f32 to vector<8x256xf32>
    %520 = arith.mulf %57, %519 : vector<8x256xf32>
    %521 = arith.addf %517, %520 : vector<8x256xf32>
    %c109 = arith.constant 109 : index
    %522 = memref.load %arg2[%c109] : memref<192xf32, #tpu.memory_space<smem>>
    %523 = vector.broadcast %522 : f32 to vector<8x256xf32>
    %524 = arith.mulf %58, %523 : vector<8x256xf32>
    %525 = arith.addf %521, %524 : vector<8x256xf32>
    %c110 = arith.constant 110 : index
    %526 = memref.load %arg2[%c110] : memref<192xf32, #tpu.memory_space<smem>>
    %527 = vector.broadcast %526 : f32 to vector<8x256xf32>
    %528 = arith.mulf %59, %527 : vector<8x256xf32>
    %529 = arith.addf %525, %528 : vector<8x256xf32>
    %c111 = arith.constant 111 : index
    %530 = memref.load %arg2[%c111] : memref<192xf32, #tpu.memory_space<smem>>
    %531 = vector.broadcast %530 : f32 to vector<8x256xf32>
    %532 = arith.mulf %60, %531 : vector<8x256xf32>
    %533 = arith.addf %529, %532 : vector<8x256xf32>
    %c13_39 = arith.constant 13 : index
    %534 = memref.load %arg3[%c13_39] : memref<24xf32, #tpu.memory_space<smem>>
    %535 = vector.broadcast %534 : f32 to vector<8x256xf32>
    %536 = arith.addf %533, %535 : vector<8x256xf32>
    %c112 = arith.constant 112 : index
    %537 = memref.load %arg2[%c112] : memref<192xf32, #tpu.memory_space<smem>>
    %538 = vector.broadcast %537 : f32 to vector<8x256xf32>
    %539 = arith.mulf %53, %538 : vector<8x256xf32>
    %c113 = arith.constant 113 : index
    %540 = memref.load %arg2[%c113] : memref<192xf32, #tpu.memory_space<smem>>
    %541 = vector.broadcast %540 : f32 to vector<8x256xf32>
    %542 = arith.mulf %54, %541 : vector<8x256xf32>
    %543 = arith.addf %539, %542 : vector<8x256xf32>
    %c114 = arith.constant 114 : index
    %544 = memref.load %arg2[%c114] : memref<192xf32, #tpu.memory_space<smem>>
    %545 = vector.broadcast %544 : f32 to vector<8x256xf32>
    %546 = arith.mulf %55, %545 : vector<8x256xf32>
    %547 = arith.addf %543, %546 : vector<8x256xf32>
    %c115 = arith.constant 115 : index
    %548 = memref.load %arg2[%c115] : memref<192xf32, #tpu.memory_space<smem>>
    %549 = vector.broadcast %548 : f32 to vector<8x256xf32>
    %550 = arith.mulf %56, %549 : vector<8x256xf32>
    %551 = arith.addf %547, %550 : vector<8x256xf32>
    %c116 = arith.constant 116 : index
    %552 = memref.load %arg2[%c116] : memref<192xf32, #tpu.memory_space<smem>>
    %553 = vector.broadcast %552 : f32 to vector<8x256xf32>
    %554 = arith.mulf %57, %553 : vector<8x256xf32>
    %555 = arith.addf %551, %554 : vector<8x256xf32>
    %c117 = arith.constant 117 : index
    %556 = memref.load %arg2[%c117] : memref<192xf32, #tpu.memory_space<smem>>
    %557 = vector.broadcast %556 : f32 to vector<8x256xf32>
    %558 = arith.mulf %58, %557 : vector<8x256xf32>
    %559 = arith.addf %555, %558 : vector<8x256xf32>
    %c118 = arith.constant 118 : index
    %560 = memref.load %arg2[%c118] : memref<192xf32, #tpu.memory_space<smem>>
    %561 = vector.broadcast %560 : f32 to vector<8x256xf32>
    %562 = arith.mulf %59, %561 : vector<8x256xf32>
    %563 = arith.addf %559, %562 : vector<8x256xf32>
    %c119 = arith.constant 119 : index
    %564 = memref.load %arg2[%c119] : memref<192xf32, #tpu.memory_space<smem>>
    %565 = vector.broadcast %564 : f32 to vector<8x256xf32>
    %566 = arith.mulf %60, %565 : vector<8x256xf32>
    %567 = arith.addf %563, %566 : vector<8x256xf32>
    %c14_40 = arith.constant 14 : index
    %568 = memref.load %arg3[%c14_40] : memref<24xf32, #tpu.memory_space<smem>>
    %569 = vector.broadcast %568 : f32 to vector<8x256xf32>
    %570 = arith.addf %567, %569 : vector<8x256xf32>
    %c120 = arith.constant 120 : index
    %571 = memref.load %arg2[%c120] : memref<192xf32, #tpu.memory_space<smem>>
    %572 = vector.broadcast %571 : f32 to vector<8x256xf32>
    %573 = arith.mulf %53, %572 : vector<8x256xf32>
    %c121 = arith.constant 121 : index
    %574 = memref.load %arg2[%c121] : memref<192xf32, #tpu.memory_space<smem>>
    %575 = vector.broadcast %574 : f32 to vector<8x256xf32>
    %576 = arith.mulf %54, %575 : vector<8x256xf32>
    %577 = arith.addf %573, %576 : vector<8x256xf32>
    %c122 = arith.constant 122 : index
    %578 = memref.load %arg2[%c122] : memref<192xf32, #tpu.memory_space<smem>>
    %579 = vector.broadcast %578 : f32 to vector<8x256xf32>
    %580 = arith.mulf %55, %579 : vector<8x256xf32>
    %581 = arith.addf %577, %580 : vector<8x256xf32>
    %c123 = arith.constant 123 : index
    %582 = memref.load %arg2[%c123] : memref<192xf32, #tpu.memory_space<smem>>
    %583 = vector.broadcast %582 : f32 to vector<8x256xf32>
    %584 = arith.mulf %56, %583 : vector<8x256xf32>
    %585 = arith.addf %581, %584 : vector<8x256xf32>
    %c124 = arith.constant 124 : index
    %586 = memref.load %arg2[%c124] : memref<192xf32, #tpu.memory_space<smem>>
    %587 = vector.broadcast %586 : f32 to vector<8x256xf32>
    %588 = arith.mulf %57, %587 : vector<8x256xf32>
    %589 = arith.addf %585, %588 : vector<8x256xf32>
    %c125 = arith.constant 125 : index
    %590 = memref.load %arg2[%c125] : memref<192xf32, #tpu.memory_space<smem>>
    %591 = vector.broadcast %590 : f32 to vector<8x256xf32>
    %592 = arith.mulf %58, %591 : vector<8x256xf32>
    %593 = arith.addf %589, %592 : vector<8x256xf32>
    %c126 = arith.constant 126 : index
    %594 = memref.load %arg2[%c126] : memref<192xf32, #tpu.memory_space<smem>>
    %595 = vector.broadcast %594 : f32 to vector<8x256xf32>
    %596 = arith.mulf %59, %595 : vector<8x256xf32>
    %597 = arith.addf %593, %596 : vector<8x256xf32>
    %c127 = arith.constant 127 : index
    %598 = memref.load %arg2[%c127] : memref<192xf32, #tpu.memory_space<smem>>
    %599 = vector.broadcast %598 : f32 to vector<8x256xf32>
    %600 = arith.mulf %60, %599 : vector<8x256xf32>
    %601 = arith.addf %597, %600 : vector<8x256xf32>
    %c15_41 = arith.constant 15 : index
    %602 = memref.load %arg3[%c15_41] : memref<24xf32, #tpu.memory_space<smem>>
    %603 = vector.broadcast %602 : f32 to vector<8x256xf32>
    %604 = arith.addf %601, %603 : vector<8x256xf32>
    %c128 = arith.constant 128 : index
    %605 = memref.load %arg2[%c128] : memref<192xf32, #tpu.memory_space<smem>>
    %606 = vector.broadcast %605 : f32 to vector<8x256xf32>
    %607 = arith.mulf %53, %606 : vector<8x256xf32>
    %c129 = arith.constant 129 : index
    %608 = memref.load %arg2[%c129] : memref<192xf32, #tpu.memory_space<smem>>
    %609 = vector.broadcast %608 : f32 to vector<8x256xf32>
    %610 = arith.mulf %54, %609 : vector<8x256xf32>
    %611 = arith.addf %607, %610 : vector<8x256xf32>
    %c130 = arith.constant 130 : index
    %612 = memref.load %arg2[%c130] : memref<192xf32, #tpu.memory_space<smem>>
    %613 = vector.broadcast %612 : f32 to vector<8x256xf32>
    %614 = arith.mulf %55, %613 : vector<8x256xf32>
    %615 = arith.addf %611, %614 : vector<8x256xf32>
    %c131 = arith.constant 131 : index
    %616 = memref.load %arg2[%c131] : memref<192xf32, #tpu.memory_space<smem>>
    %617 = vector.broadcast %616 : f32 to vector<8x256xf32>
    %618 = arith.mulf %56, %617 : vector<8x256xf32>
    %619 = arith.addf %615, %618 : vector<8x256xf32>
    %c132 = arith.constant 132 : index
    %620 = memref.load %arg2[%c132] : memref<192xf32, #tpu.memory_space<smem>>
    %621 = vector.broadcast %620 : f32 to vector<8x256xf32>
    %622 = arith.mulf %57, %621 : vector<8x256xf32>
    %623 = arith.addf %619, %622 : vector<8x256xf32>
    %c133 = arith.constant 133 : index
    %624 = memref.load %arg2[%c133] : memref<192xf32, #tpu.memory_space<smem>>
    %625 = vector.broadcast %624 : f32 to vector<8x256xf32>
    %626 = arith.mulf %58, %625 : vector<8x256xf32>
    %627 = arith.addf %623, %626 : vector<8x256xf32>
    %c134 = arith.constant 134 : index
    %628 = memref.load %arg2[%c134] : memref<192xf32, #tpu.memory_space<smem>>
    %629 = vector.broadcast %628 : f32 to vector<8x256xf32>
    %630 = arith.mulf %59, %629 : vector<8x256xf32>
    %631 = arith.addf %627, %630 : vector<8x256xf32>
    %c135 = arith.constant 135 : index
    %632 = memref.load %arg2[%c135] : memref<192xf32, #tpu.memory_space<smem>>
    %633 = vector.broadcast %632 : f32 to vector<8x256xf32>
    %634 = arith.mulf %60, %633 : vector<8x256xf32>
    %635 = arith.addf %631, %634 : vector<8x256xf32>
    %c16_42 = arith.constant 16 : index
    %636 = memref.load %arg3[%c16_42] : memref<24xf32, #tpu.memory_space<smem>>
    %637 = vector.broadcast %636 : f32 to vector<8x256xf32>
    %638 = arith.addf %635, %637 : vector<8x256xf32>
    %c136 = arith.constant 136 : index
    %639 = memref.load %arg2[%c136] : memref<192xf32, #tpu.memory_space<smem>>
    %640 = vector.broadcast %639 : f32 to vector<8x256xf32>
    %641 = arith.mulf %53, %640 : vector<8x256xf32>
    %c137 = arith.constant 137 : index
    %642 = memref.load %arg2[%c137] : memref<192xf32, #tpu.memory_space<smem>>
    %643 = vector.broadcast %642 : f32 to vector<8x256xf32>
    %644 = arith.mulf %54, %643 : vector<8x256xf32>
    %645 = arith.addf %641, %644 : vector<8x256xf32>
    %c138 = arith.constant 138 : index
    %646 = memref.load %arg2[%c138] : memref<192xf32, #tpu.memory_space<smem>>
    %647 = vector.broadcast %646 : f32 to vector<8x256xf32>
    %648 = arith.mulf %55, %647 : vector<8x256xf32>
    %649 = arith.addf %645, %648 : vector<8x256xf32>
    %c139 = arith.constant 139 : index
    %650 = memref.load %arg2[%c139] : memref<192xf32, #tpu.memory_space<smem>>
    %651 = vector.broadcast %650 : f32 to vector<8x256xf32>
    %652 = arith.mulf %56, %651 : vector<8x256xf32>
    %653 = arith.addf %649, %652 : vector<8x256xf32>
    %c140 = arith.constant 140 : index
    %654 = memref.load %arg2[%c140] : memref<192xf32, #tpu.memory_space<smem>>
    %655 = vector.broadcast %654 : f32 to vector<8x256xf32>
    %656 = arith.mulf %57, %655 : vector<8x256xf32>
    %657 = arith.addf %653, %656 : vector<8x256xf32>
    %c141 = arith.constant 141 : index
    %658 = memref.load %arg2[%c141] : memref<192xf32, #tpu.memory_space<smem>>
    %659 = vector.broadcast %658 : f32 to vector<8x256xf32>
    %660 = arith.mulf %58, %659 : vector<8x256xf32>
    %661 = arith.addf %657, %660 : vector<8x256xf32>
    %c142 = arith.constant 142 : index
    %662 = memref.load %arg2[%c142] : memref<192xf32, #tpu.memory_space<smem>>
    %663 = vector.broadcast %662 : f32 to vector<8x256xf32>
    %664 = arith.mulf %59, %663 : vector<8x256xf32>
    %665 = arith.addf %661, %664 : vector<8x256xf32>
    %c143 = arith.constant 143 : index
    %666 = memref.load %arg2[%c143] : memref<192xf32, #tpu.memory_space<smem>>
    %667 = vector.broadcast %666 : f32 to vector<8x256xf32>
    %668 = arith.mulf %60, %667 : vector<8x256xf32>
    %669 = arith.addf %665, %668 : vector<8x256xf32>
    %c17_43 = arith.constant 17 : index
    %670 = memref.load %arg3[%c17_43] : memref<24xf32, #tpu.memory_space<smem>>
    %671 = vector.broadcast %670 : f32 to vector<8x256xf32>
    %672 = arith.addf %669, %671 : vector<8x256xf32>
    %c144 = arith.constant 144 : index
    %673 = memref.load %arg2[%c144] : memref<192xf32, #tpu.memory_space<smem>>
    %674 = vector.broadcast %673 : f32 to vector<8x256xf32>
    %675 = arith.mulf %53, %674 : vector<8x256xf32>
    %c145 = arith.constant 145 : index
    %676 = memref.load %arg2[%c145] : memref<192xf32, #tpu.memory_space<smem>>
    %677 = vector.broadcast %676 : f32 to vector<8x256xf32>
    %678 = arith.mulf %54, %677 : vector<8x256xf32>
    %679 = arith.addf %675, %678 : vector<8x256xf32>
    %c146 = arith.constant 146 : index
    %680 = memref.load %arg2[%c146] : memref<192xf32, #tpu.memory_space<smem>>
    %681 = vector.broadcast %680 : f32 to vector<8x256xf32>
    %682 = arith.mulf %55, %681 : vector<8x256xf32>
    %683 = arith.addf %679, %682 : vector<8x256xf32>
    %c147 = arith.constant 147 : index
    %684 = memref.load %arg2[%c147] : memref<192xf32, #tpu.memory_space<smem>>
    %685 = vector.broadcast %684 : f32 to vector<8x256xf32>
    %686 = arith.mulf %56, %685 : vector<8x256xf32>
    %687 = arith.addf %683, %686 : vector<8x256xf32>
    %c148 = arith.constant 148 : index
    %688 = memref.load %arg2[%c148] : memref<192xf32, #tpu.memory_space<smem>>
    %689 = vector.broadcast %688 : f32 to vector<8x256xf32>
    %690 = arith.mulf %57, %689 : vector<8x256xf32>
    %691 = arith.addf %687, %690 : vector<8x256xf32>
    %c149 = arith.constant 149 : index
    %692 = memref.load %arg2[%c149] : memref<192xf32, #tpu.memory_space<smem>>
    %693 = vector.broadcast %692 : f32 to vector<8x256xf32>
    %694 = arith.mulf %58, %693 : vector<8x256xf32>
    %695 = arith.addf %691, %694 : vector<8x256xf32>
    %c150 = arith.constant 150 : index
    %696 = memref.load %arg2[%c150] : memref<192xf32, #tpu.memory_space<smem>>
    %697 = vector.broadcast %696 : f32 to vector<8x256xf32>
    %698 = arith.mulf %59, %697 : vector<8x256xf32>
    %699 = arith.addf %695, %698 : vector<8x256xf32>
    %c151 = arith.constant 151 : index
    %700 = memref.load %arg2[%c151] : memref<192xf32, #tpu.memory_space<smem>>
    %701 = vector.broadcast %700 : f32 to vector<8x256xf32>
    %702 = arith.mulf %60, %701 : vector<8x256xf32>
    %703 = arith.addf %699, %702 : vector<8x256xf32>
    %c18_44 = arith.constant 18 : index
    %704 = memref.load %arg3[%c18_44] : memref<24xf32, #tpu.memory_space<smem>>
    %705 = vector.broadcast %704 : f32 to vector<8x256xf32>
    %706 = arith.addf %703, %705 : vector<8x256xf32>
    %c152 = arith.constant 152 : index
    %707 = memref.load %arg2[%c152] : memref<192xf32, #tpu.memory_space<smem>>
    %708 = vector.broadcast %707 : f32 to vector<8x256xf32>
    %709 = arith.mulf %53, %708 : vector<8x256xf32>
    %c153 = arith.constant 153 : index
    %710 = memref.load %arg2[%c153] : memref<192xf32, #tpu.memory_space<smem>>
    %711 = vector.broadcast %710 : f32 to vector<8x256xf32>
    %712 = arith.mulf %54, %711 : vector<8x256xf32>
    %713 = arith.addf %709, %712 : vector<8x256xf32>
    %c154 = arith.constant 154 : index
    %714 = memref.load %arg2[%c154] : memref<192xf32, #tpu.memory_space<smem>>
    %715 = vector.broadcast %714 : f32 to vector<8x256xf32>
    %716 = arith.mulf %55, %715 : vector<8x256xf32>
    %717 = arith.addf %713, %716 : vector<8x256xf32>
    %c155 = arith.constant 155 : index
    %718 = memref.load %arg2[%c155] : memref<192xf32, #tpu.memory_space<smem>>
    %719 = vector.broadcast %718 : f32 to vector<8x256xf32>
    %720 = arith.mulf %56, %719 : vector<8x256xf32>
    %721 = arith.addf %717, %720 : vector<8x256xf32>
    %c156 = arith.constant 156 : index
    %722 = memref.load %arg2[%c156] : memref<192xf32, #tpu.memory_space<smem>>
    %723 = vector.broadcast %722 : f32 to vector<8x256xf32>
    %724 = arith.mulf %57, %723 : vector<8x256xf32>
    %725 = arith.addf %721, %724 : vector<8x256xf32>
    %c157 = arith.constant 157 : index
    %726 = memref.load %arg2[%c157] : memref<192xf32, #tpu.memory_space<smem>>
    %727 = vector.broadcast %726 : f32 to vector<8x256xf32>
    %728 = arith.mulf %58, %727 : vector<8x256xf32>
    %729 = arith.addf %725, %728 : vector<8x256xf32>
    %c158 = arith.constant 158 : index
    %730 = memref.load %arg2[%c158] : memref<192xf32, #tpu.memory_space<smem>>
    %731 = vector.broadcast %730 : f32 to vector<8x256xf32>
    %732 = arith.mulf %59, %731 : vector<8x256xf32>
    %733 = arith.addf %729, %732 : vector<8x256xf32>
    %c159 = arith.constant 159 : index
    %734 = memref.load %arg2[%c159] : memref<192xf32, #tpu.memory_space<smem>>
    %735 = vector.broadcast %734 : f32 to vector<8x256xf32>
    %736 = arith.mulf %60, %735 : vector<8x256xf32>
    %737 = arith.addf %733, %736 : vector<8x256xf32>
    %c19_45 = arith.constant 19 : index
    %738 = memref.load %arg3[%c19_45] : memref<24xf32, #tpu.memory_space<smem>>
    %739 = vector.broadcast %738 : f32 to vector<8x256xf32>
    %740 = arith.addf %737, %739 : vector<8x256xf32>
    %c160 = arith.constant 160 : index
    %741 = memref.load %arg2[%c160] : memref<192xf32, #tpu.memory_space<smem>>
    %742 = vector.broadcast %741 : f32 to vector<8x256xf32>
    %743 = arith.mulf %53, %742 : vector<8x256xf32>
    %c161 = arith.constant 161 : index
    %744 = memref.load %arg2[%c161] : memref<192xf32, #tpu.memory_space<smem>>
    %745 = vector.broadcast %744 : f32 to vector<8x256xf32>
    %746 = arith.mulf %54, %745 : vector<8x256xf32>
    %747 = arith.addf %743, %746 : vector<8x256xf32>
    %c162 = arith.constant 162 : index
    %748 = memref.load %arg2[%c162] : memref<192xf32, #tpu.memory_space<smem>>
    %749 = vector.broadcast %748 : f32 to vector<8x256xf32>
    %750 = arith.mulf %55, %749 : vector<8x256xf32>
    %751 = arith.addf %747, %750 : vector<8x256xf32>
    %c163 = arith.constant 163 : index
    %752 = memref.load %arg2[%c163] : memref<192xf32, #tpu.memory_space<smem>>
    %753 = vector.broadcast %752 : f32 to vector<8x256xf32>
    %754 = arith.mulf %56, %753 : vector<8x256xf32>
    %755 = arith.addf %751, %754 : vector<8x256xf32>
    %c164 = arith.constant 164 : index
    %756 = memref.load %arg2[%c164] : memref<192xf32, #tpu.memory_space<smem>>
    %757 = vector.broadcast %756 : f32 to vector<8x256xf32>
    %758 = arith.mulf %57, %757 : vector<8x256xf32>
    %759 = arith.addf %755, %758 : vector<8x256xf32>
    %c165 = arith.constant 165 : index
    %760 = memref.load %arg2[%c165] : memref<192xf32, #tpu.memory_space<smem>>
    %761 = vector.broadcast %760 : f32 to vector<8x256xf32>
    %762 = arith.mulf %58, %761 : vector<8x256xf32>
    %763 = arith.addf %759, %762 : vector<8x256xf32>
    %c166 = arith.constant 166 : index
    %764 = memref.load %arg2[%c166] : memref<192xf32, #tpu.memory_space<smem>>
    %765 = vector.broadcast %764 : f32 to vector<8x256xf32>
    %766 = arith.mulf %59, %765 : vector<8x256xf32>
    %767 = arith.addf %763, %766 : vector<8x256xf32>
    %c167 = arith.constant 167 : index
    %768 = memref.load %arg2[%c167] : memref<192xf32, #tpu.memory_space<smem>>
    %769 = vector.broadcast %768 : f32 to vector<8x256xf32>
    %770 = arith.mulf %60, %769 : vector<8x256xf32>
    %771 = arith.addf %767, %770 : vector<8x256xf32>
    %c20_46 = arith.constant 20 : index
    %772 = memref.load %arg3[%c20_46] : memref<24xf32, #tpu.memory_space<smem>>
    %773 = vector.broadcast %772 : f32 to vector<8x256xf32>
    %774 = arith.addf %771, %773 : vector<8x256xf32>
    %c168 = arith.constant 168 : index
    %775 = memref.load %arg2[%c168] : memref<192xf32, #tpu.memory_space<smem>>
    %776 = vector.broadcast %775 : f32 to vector<8x256xf32>
    %777 = arith.mulf %53, %776 : vector<8x256xf32>
    %c169 = arith.constant 169 : index
    %778 = memref.load %arg2[%c169] : memref<192xf32, #tpu.memory_space<smem>>
    %779 = vector.broadcast %778 : f32 to vector<8x256xf32>
    %780 = arith.mulf %54, %779 : vector<8x256xf32>
    %781 = arith.addf %777, %780 : vector<8x256xf32>
    %c170 = arith.constant 170 : index
    %782 = memref.load %arg2[%c170] : memref<192xf32, #tpu.memory_space<smem>>
    %783 = vector.broadcast %782 : f32 to vector<8x256xf32>
    %784 = arith.mulf %55, %783 : vector<8x256xf32>
    %785 = arith.addf %781, %784 : vector<8x256xf32>
    %c171 = arith.constant 171 : index
    %786 = memref.load %arg2[%c171] : memref<192xf32, #tpu.memory_space<smem>>
    %787 = vector.broadcast %786 : f32 to vector<8x256xf32>
    %788 = arith.mulf %56, %787 : vector<8x256xf32>
    %789 = arith.addf %785, %788 : vector<8x256xf32>
    %c172 = arith.constant 172 : index
    %790 = memref.load %arg2[%c172] : memref<192xf32, #tpu.memory_space<smem>>
    %791 = vector.broadcast %790 : f32 to vector<8x256xf32>
    %792 = arith.mulf %57, %791 : vector<8x256xf32>
    %793 = arith.addf %789, %792 : vector<8x256xf32>
    %c173 = arith.constant 173 : index
    %794 = memref.load %arg2[%c173] : memref<192xf32, #tpu.memory_space<smem>>
    %795 = vector.broadcast %794 : f32 to vector<8x256xf32>
    %796 = arith.mulf %58, %795 : vector<8x256xf32>
    %797 = arith.addf %793, %796 : vector<8x256xf32>
    %c174 = arith.constant 174 : index
    %798 = memref.load %arg2[%c174] : memref<192xf32, #tpu.memory_space<smem>>
    %799 = vector.broadcast %798 : f32 to vector<8x256xf32>
    %800 = arith.mulf %59, %799 : vector<8x256xf32>
    %801 = arith.addf %797, %800 : vector<8x256xf32>
    %c175 = arith.constant 175 : index
    %802 = memref.load %arg2[%c175] : memref<192xf32, #tpu.memory_space<smem>>
    %803 = vector.broadcast %802 : f32 to vector<8x256xf32>
    %804 = arith.mulf %60, %803 : vector<8x256xf32>
    %805 = arith.addf %801, %804 : vector<8x256xf32>
    %c21_47 = arith.constant 21 : index
    %806 = memref.load %arg3[%c21_47] : memref<24xf32, #tpu.memory_space<smem>>
    %807 = vector.broadcast %806 : f32 to vector<8x256xf32>
    %808 = arith.addf %805, %807 : vector<8x256xf32>
    %c176 = arith.constant 176 : index
    %809 = memref.load %arg2[%c176] : memref<192xf32, #tpu.memory_space<smem>>
    %810 = vector.broadcast %809 : f32 to vector<8x256xf32>
    %811 = arith.mulf %53, %810 : vector<8x256xf32>
    %c177 = arith.constant 177 : index
    %812 = memref.load %arg2[%c177] : memref<192xf32, #tpu.memory_space<smem>>
    %813 = vector.broadcast %812 : f32 to vector<8x256xf32>
    %814 = arith.mulf %54, %813 : vector<8x256xf32>
    %815 = arith.addf %811, %814 : vector<8x256xf32>
    %c178 = arith.constant 178 : index
    %816 = memref.load %arg2[%c178] : memref<192xf32, #tpu.memory_space<smem>>
    %817 = vector.broadcast %816 : f32 to vector<8x256xf32>
    %818 = arith.mulf %55, %817 : vector<8x256xf32>
    %819 = arith.addf %815, %818 : vector<8x256xf32>
    %c179 = arith.constant 179 : index
    %820 = memref.load %arg2[%c179] : memref<192xf32, #tpu.memory_space<smem>>
    %821 = vector.broadcast %820 : f32 to vector<8x256xf32>
    %822 = arith.mulf %56, %821 : vector<8x256xf32>
    %823 = arith.addf %819, %822 : vector<8x256xf32>
    %c180 = arith.constant 180 : index
    %824 = memref.load %arg2[%c180] : memref<192xf32, #tpu.memory_space<smem>>
    %825 = vector.broadcast %824 : f32 to vector<8x256xf32>
    %826 = arith.mulf %57, %825 : vector<8x256xf32>
    %827 = arith.addf %823, %826 : vector<8x256xf32>
    %c181 = arith.constant 181 : index
    %828 = memref.load %arg2[%c181] : memref<192xf32, #tpu.memory_space<smem>>
    %829 = vector.broadcast %828 : f32 to vector<8x256xf32>
    %830 = arith.mulf %58, %829 : vector<8x256xf32>
    %831 = arith.addf %827, %830 : vector<8x256xf32>
    %c182 = arith.constant 182 : index
    %832 = memref.load %arg2[%c182] : memref<192xf32, #tpu.memory_space<smem>>
    %833 = vector.broadcast %832 : f32 to vector<8x256xf32>
    %834 = arith.mulf %59, %833 : vector<8x256xf32>
    %835 = arith.addf %831, %834 : vector<8x256xf32>
    %c183 = arith.constant 183 : index
    %836 = memref.load %arg2[%c183] : memref<192xf32, #tpu.memory_space<smem>>
    %837 = vector.broadcast %836 : f32 to vector<8x256xf32>
    %838 = arith.mulf %60, %837 : vector<8x256xf32>
    %839 = arith.addf %835, %838 : vector<8x256xf32>
    %c22_48 = arith.constant 22 : index
    %840 = memref.load %arg3[%c22_48] : memref<24xf32, #tpu.memory_space<smem>>
    %841 = vector.broadcast %840 : f32 to vector<8x256xf32>
    %842 = arith.addf %839, %841 : vector<8x256xf32>
    %c184 = arith.constant 184 : index
    %843 = memref.load %arg2[%c184] : memref<192xf32, #tpu.memory_space<smem>>
    %844 = vector.broadcast %843 : f32 to vector<8x256xf32>
    %845 = arith.mulf %53, %844 : vector<8x256xf32>
    %c185 = arith.constant 185 : index
    %846 = memref.load %arg2[%c185] : memref<192xf32, #tpu.memory_space<smem>>
    %847 = vector.broadcast %846 : f32 to vector<8x256xf32>
    %848 = arith.mulf %54, %847 : vector<8x256xf32>
    %849 = arith.addf %845, %848 : vector<8x256xf32>
    %c186 = arith.constant 186 : index
    %850 = memref.load %arg2[%c186] : memref<192xf32, #tpu.memory_space<smem>>
    %851 = vector.broadcast %850 : f32 to vector<8x256xf32>
    %852 = arith.mulf %55, %851 : vector<8x256xf32>
    %853 = arith.addf %849, %852 : vector<8x256xf32>
    %c187 = arith.constant 187 : index
    %854 = memref.load %arg2[%c187] : memref<192xf32, #tpu.memory_space<smem>>
    %855 = vector.broadcast %854 : f32 to vector<8x256xf32>
    %856 = arith.mulf %56, %855 : vector<8x256xf32>
    %857 = arith.addf %853, %856 : vector<8x256xf32>
    %c188 = arith.constant 188 : index
    %858 = memref.load %arg2[%c188] : memref<192xf32, #tpu.memory_space<smem>>
    %859 = vector.broadcast %858 : f32 to vector<8x256xf32>
    %860 = arith.mulf %57, %859 : vector<8x256xf32>
    %861 = arith.addf %857, %860 : vector<8x256xf32>
    %c189 = arith.constant 189 : index
    %862 = memref.load %arg2[%c189] : memref<192xf32, #tpu.memory_space<smem>>
    %863 = vector.broadcast %862 : f32 to vector<8x256xf32>
    %864 = arith.mulf %58, %863 : vector<8x256xf32>
    %865 = arith.addf %861, %864 : vector<8x256xf32>
    %c190 = arith.constant 190 : index
    %866 = memref.load %arg2[%c190] : memref<192xf32, #tpu.memory_space<smem>>
    %867 = vector.broadcast %866 : f32 to vector<8x256xf32>
    %868 = arith.mulf %59, %867 : vector<8x256xf32>
    %869 = arith.addf %865, %868 : vector<8x256xf32>
    %c191 = arith.constant 191 : index
    %870 = memref.load %arg2[%c191] : memref<192xf32, #tpu.memory_space<smem>>
    %871 = vector.broadcast %870 : f32 to vector<8x256xf32>
    %872 = arith.mulf %60, %871 : vector<8x256xf32>
    %873 = arith.addf %869, %872 : vector<8x256xf32>
    %c23_49 = arith.constant 23 : index
    %874 = memref.load %arg3[%c23_49] : memref<24xf32, #tpu.memory_space<smem>>
    %875 = vector.broadcast %874 : f32 to vector<8x256xf32>
    %876 = arith.addf %873, %875 : vector<8x256xf32>
    %877 = vector.shape_cast %366 : vector<8x256xf32> to vector<8x1x256xf32>
    %878 = vector.shape_cast %94 : vector<8x256xf32> to vector<1x8x256xf32>
    %879 = vector.broadcast %877 : vector<8x1x256xf32> to vector<8x8x256xf32>
    %880 = vector.broadcast %878 : vector<1x8x256xf32> to vector<8x8x256xf32>
    %881 = arith.mulf %879, %880 : vector<8x8x256xf32>
    %882 = vector.shape_cast %400 : vector<8x256xf32> to vector<8x1x256xf32>
    %883 = vector.shape_cast %128 : vector<8x256xf32> to vector<1x8x256xf32>
    %884 = vector.broadcast %882 : vector<8x1x256xf32> to vector<8x8x256xf32>
    %885 = vector.broadcast %883 : vector<1x8x256xf32> to vector<8x8x256xf32>
    %886 = arith.mulf %884, %885 : vector<8x8x256xf32>
    %887 = arith.addf %881, %886 : vector<8x8x256xf32>
    %cst_50 = arith.constant dense<0xFF800000> : vector<8x256xf32>
    %888 = vector.multi_reduction <maximumf>, %887, %cst_50 [0] : vector<8x8x256xf32> to vector<8x256xf32>
    %889 = vector.shape_cast %888 : vector<8x256xf32> to vector<1x8x256xf32>
    %890 = vector.broadcast %889 : vector<1x8x256xf32> to vector<8x8x256xf32>
    %891 = arith.subf %887, %890 : vector<8x8x256xf32>
    %892 = math.exp %891 : vector<8x8x256xf32>
    %cst_51 = arith.constant dense<0.000000e+00> : vector<8x256xf32>
    %893 = vector.multi_reduction <add>, %892, %cst_51 [0] : vector<8x8x256xf32> to vector<8x256xf32>
    %894 = tpu.reciprocal %893 {approx = true} : vector<8x256xf32> -> vector<8x256xf32>
    %895 = vector.extract_strided_slice %892 {offsets = [0, 0, 0], sizes = [1, 8, 256], strides = [1, 1, 1]} : vector<8x8x256xf32> to vector<1x8x256xf32>
    %896 = vector.shape_cast %895 : vector<1x8x256xf32> to vector<8x256xf32>
    %897 = vector.extract_strided_slice %638 {offsets = [0, 0], sizes = [1, 256], strides = [1, 1]} : vector<8x256xf32> to vector<1x256xf32>
    %898 = vector.broadcast %897 : vector<1x256xf32> to vector<8x256xf32>
    %899 = arith.mulf %896, %898 : vector<8x256xf32>
    %900 = vector.extract_strided_slice %892 {offsets = [1, 0, 0], sizes = [1, 8, 256], strides = [1, 1, 1]} : vector<8x8x256xf32> to vector<1x8x256xf32>
    %901 = vector.shape_cast %900 : vector<1x8x256xf32> to vector<8x256xf32>
    %902 = vector.extract_strided_slice %638 {offsets = [1, 0], sizes = [1, 256], strides = [1, 1]} : vector<8x256xf32> to vector<1x256xf32>
    %903 = vector.broadcast %902 : vector<1x256xf32> to vector<8x256xf32>
    %904 = arith.mulf %901, %903 : vector<8x256xf32>
    %905 = arith.addf %899, %904 : vector<8x256xf32>
    %906 = vector.extract_strided_slice %892 {offsets = [2, 0, 0], sizes = [1, 8, 256], strides = [1, 1, 1]} : vector<8x8x256xf32> to vector<1x8x256xf32>
    %907 = vector.shape_cast %906 : vector<1x8x256xf32> to vector<8x256xf32>
    %908 = vector.extract_strided_slice %638 {offsets = [2, 0], sizes = [1, 256], strides = [1, 1]} : vector<8x256xf32> to vector<1x256xf32>
    %909 = vector.broadcast %908 : vector<1x256xf32> to vector<8x256xf32>
    %910 = arith.mulf %907, %909 : vector<8x256xf32>
    %911 = arith.addf %905, %910 : vector<8x256xf32>
    %912 = vector.extract_strided_slice %892 {offsets = [3, 0, 0], sizes = [1, 8, 256], strides = [1, 1, 1]} : vector<8x8x256xf32> to vector<1x8x256xf32>
    %913 = vector.shape_cast %912 : vector<1x8x256xf32> to vector<8x256xf32>
    %914 = vector.extract_strided_slice %638 {offsets = [3, 0], sizes = [1, 256], strides = [1, 1]} : vector<8x256xf32> to vector<1x256xf32>
    %915 = vector.broadcast %914 : vector<1x256xf32> to vector<8x256xf32>
    %916 = arith.mulf %913, %915 : vector<8x256xf32>
    %917 = arith.addf %911, %916 : vector<8x256xf32>
    %918 = vector.extract_strided_slice %892 {offsets = [4, 0, 0], sizes = [1, 8, 256], strides = [1, 1, 1]} : vector<8x8x256xf32> to vector<1x8x256xf32>
    %919 = vector.shape_cast %918 : vector<1x8x256xf32> to vector<8x256xf32>
    %920 = vector.extract_strided_slice %638 {offsets = [4, 0], sizes = [1, 256], strides = [1, 1]} : vector<8x256xf32> to vector<1x256xf32>
    %921 = vector.broadcast %920 : vector<1x256xf32> to vector<8x256xf32>
    %922 = arith.mulf %919, %921 : vector<8x256xf32>
    %923 = arith.addf %917, %922 : vector<8x256xf32>
    %924 = vector.extract_strided_slice %892 {offsets = [5, 0, 0], sizes = [1, 8, 256], strides = [1, 1, 1]} : vector<8x8x256xf32> to vector<1x8x256xf32>
    %925 = vector.shape_cast %924 : vector<1x8x256xf32> to vector<8x256xf32>
    %926 = vector.extract_strided_slice %638 {offsets = [5, 0], sizes = [1, 256], strides = [1, 1]} : vector<8x256xf32> to vector<1x256xf32>
    %927 = vector.broadcast %926 : vector<1x256xf32> to vector<8x256xf32>
    %928 = arith.mulf %925, %927 : vector<8x256xf32>
    %929 = arith.addf %923, %928 : vector<8x256xf32>
    %930 = vector.extract_strided_slice %892 {offsets = [6, 0, 0], sizes = [1, 8, 256], strides = [1, 1, 1]} : vector<8x8x256xf32> to vector<1x8x256xf32>
    %931 = vector.shape_cast %930 : vector<1x8x256xf32> to vector<8x256xf32>
    %932 = vector.extract_strided_slice %638 {offsets = [6, 0], sizes = [1, 256], strides = [1, 1]} : vector<8x256xf32> to vector<1x256xf32>
    %933 = vector.broadcast %932 : vector<1x256xf32> to vector<8x256xf32>
    %934 = arith.mulf %931, %933 : vector<8x256xf32>
    %935 = arith.addf %929, %934 : vector<8x256xf32>
    %936 = vector.extract_strided_slice %892 {offsets = [7, 0, 0], sizes = [1, 8, 256], strides = [1, 1, 1]} : vector<8x8x256xf32> to vector<1x8x256xf32>
    %937 = vector.shape_cast %936 : vector<1x8x256xf32> to vector<8x256xf32>
    %938 = vector.extract_strided_slice %638 {offsets = [7, 0], sizes = [1, 256], strides = [1, 1]} : vector<8x256xf32> to vector<1x256xf32>
    %939 = vector.broadcast %938 : vector<1x256xf32> to vector<8x256xf32>
    %940 = arith.mulf %937, %939 : vector<8x256xf32>
    %941 = arith.addf %935, %940 : vector<8x256xf32>
    %942 = arith.mulf %941, %894 : vector<8x256xf32>
    %943 = vector.extract_strided_slice %892 {offsets = [0, 0, 0], sizes = [1, 8, 256], strides = [1, 1, 1]} : vector<8x8x256xf32> to vector<1x8x256xf32>
    %944 = vector.shape_cast %943 : vector<1x8x256xf32> to vector<8x256xf32>
    %945 = vector.extract_strided_slice %672 {offsets = [0, 0], sizes = [1, 256], strides = [1, 1]} : vector<8x256xf32> to vector<1x256xf32>
    %946 = vector.broadcast %945 : vector<1x256xf32> to vector<8x256xf32>
    %947 = arith.mulf %944, %946 : vector<8x256xf32>
    %948 = vector.extract_strided_slice %892 {offsets = [1, 0, 0], sizes = [1, 8, 256], strides = [1, 1, 1]} : vector<8x8x256xf32> to vector<1x8x256xf32>
    %949 = vector.shape_cast %948 : vector<1x8x256xf32> to vector<8x256xf32>
    %950 = vector.extract_strided_slice %672 {offsets = [1, 0], sizes = [1, 256], strides = [1, 1]} : vector<8x256xf32> to vector<1x256xf32>
    %951 = vector.broadcast %950 : vector<1x256xf32> to vector<8x256xf32>
    %952 = arith.mulf %949, %951 : vector<8x256xf32>
    %953 = arith.addf %947, %952 : vector<8x256xf32>
    %954 = vector.extract_strided_slice %892 {offsets = [2, 0, 0], sizes = [1, 8, 256], strides = [1, 1, 1]} : vector<8x8x256xf32> to vector<1x8x256xf32>
    %955 = vector.shape_cast %954 : vector<1x8x256xf32> to vector<8x256xf32>
    %956 = vector.extract_strided_slice %672 {offsets = [2, 0], sizes = [1, 256], strides = [1, 1]} : vector<8x256xf32> to vector<1x256xf32>
    %957 = vector.broadcast %956 : vector<1x256xf32> to vector<8x256xf32>
    %958 = arith.mulf %955, %957 : vector<8x256xf32>
    %959 = arith.addf %953, %958 : vector<8x256xf32>
    %960 = vector.extract_strided_slice %892 {offsets = [3, 0, 0], sizes = [1, 8, 256], strides = [1, 1, 1]} : vector<8x8x256xf32> to vector<1x8x256xf32>
    %961 = vector.shape_cast %960 : vector<1x8x256xf32> to vector<8x256xf32>
    %962 = vector.extract_strided_slice %672 {offsets = [3, 0], sizes = [1, 256], strides = [1, 1]} : vector<8x256xf32> to vector<1x256xf32>
    %963 = vector.broadcast %962 : vector<1x256xf32> to vector<8x256xf32>
    %964 = arith.mulf %961, %963 : vector<8x256xf32>
    %965 = arith.addf %959, %964 : vector<8x256xf32>
    %966 = vector.extract_strided_slice %892 {offsets = [4, 0, 0], sizes = [1, 8, 256], strides = [1, 1, 1]} : vector<8x8x256xf32> to vector<1x8x256xf32>
    %967 = vector.shape_cast %966 : vector<1x8x256xf32> to vector<8x256xf32>
    %968 = vector.extract_strided_slice %672 {offsets = [4, 0], sizes = [1, 256], strides = [1, 1]} : vector<8x256xf32> to vector<1x256xf32>
    %969 = vector.broadcast %968 : vector<1x256xf32> to vector<8x256xf32>
    %970 = arith.mulf %967, %969 : vector<8x256xf32>
    %971 = arith.addf %965, %970 : vector<8x256xf32>
    %972 = vector.extract_strided_slice %892 {offsets = [5, 0, 0], sizes = [1, 8, 256], strides = [1, 1, 1]} : vector<8x8x256xf32> to vector<1x8x256xf32>
    %973 = vector.shape_cast %972 : vector<1x8x256xf32> to vector<8x256xf32>
    %974 = vector.extract_strided_slice %672 {offsets = [5, 0], sizes = [1, 256], strides = [1, 1]} : vector<8x256xf32> to vector<1x256xf32>
    %975 = vector.broadcast %974 : vector<1x256xf32> to vector<8x256xf32>
    %976 = arith.mulf %973, %975 : vector<8x256xf32>
    %977 = arith.addf %971, %976 : vector<8x256xf32>
    %978 = vector.extract_strided_slice %892 {offsets = [6, 0, 0], sizes = [1, 8, 256], strides = [1, 1, 1]} : vector<8x8x256xf32> to vector<1x8x256xf32>
    %979 = vector.shape_cast %978 : vector<1x8x256xf32> to vector<8x256xf32>
    %980 = vector.extract_strided_slice %672 {offsets = [6, 0], sizes = [1, 256], strides = [1, 1]} : vector<8x256xf32> to vector<1x256xf32>
    %981 = vector.broadcast %980 : vector<1x256xf32> to vector<8x256xf32>
    %982 = arith.mulf %979, %981 : vector<8x256xf32>
    %983 = arith.addf %977, %982 : vector<8x256xf32>
    %984 = vector.extract_strided_slice %892 {offsets = [7, 0, 0], sizes = [1, 8, 256], strides = [1, 1, 1]} : vector<8x8x256xf32> to vector<1x8x256xf32>
    %985 = vector.shape_cast %984 : vector<1x8x256xf32> to vector<8x256xf32>
    %986 = vector.extract_strided_slice %672 {offsets = [7, 0], sizes = [1, 256], strides = [1, 1]} : vector<8x256xf32> to vector<1x256xf32>
    %987 = vector.broadcast %986 : vector<1x256xf32> to vector<8x256xf32>
    %988 = arith.mulf %985, %987 : vector<8x256xf32>
    %989 = arith.addf %983, %988 : vector<8x256xf32>
    %990 = arith.mulf %989, %894 : vector<8x256xf32>
    %991 = vector.shape_cast %434 : vector<8x256xf32> to vector<8x1x256xf32>
    %992 = vector.shape_cast %162 : vector<8x256xf32> to vector<1x8x256xf32>
    %993 = vector.broadcast %991 : vector<8x1x256xf32> to vector<8x8x256xf32>
    %994 = vector.broadcast %992 : vector<1x8x256xf32> to vector<8x8x256xf32>
    %995 = arith.mulf %993, %994 : vector<8x8x256xf32>
    %996 = vector.shape_cast %468 : vector<8x256xf32> to vector<8x1x256xf32>
    %997 = vector.shape_cast %196 : vector<8x256xf32> to vector<1x8x256xf32>
    %998 = vector.broadcast %996 : vector<8x1x256xf32> to vector<8x8x256xf32>
    %999 = vector.broadcast %997 : vector<1x8x256xf32> to vector<8x8x256xf32>
    %1000 = arith.mulf %998, %999 : vector<8x8x256xf32>
    %1001 = arith.addf %995, %1000 : vector<8x8x256xf32>
    %cst_52 = arith.constant dense<0xFF800000> : vector<8x256xf32>
    %1002 = vector.multi_reduction <maximumf>, %1001, %cst_52 [0] : vector<8x8x256xf32> to vector<8x256xf32>
    %1003 = vector.shape_cast %1002 : vector<8x256xf32> to vector<1x8x256xf32>
    %1004 = vector.broadcast %1003 : vector<1x8x256xf32> to vector<8x8x256xf32>
    %1005 = arith.subf %1001, %1004 : vector<8x8x256xf32>
    %1006 = math.exp %1005 : vector<8x8x256xf32>
    %cst_53 = arith.constant dense<0.000000e+00> : vector<8x256xf32>
    %1007 = vector.multi_reduction <add>, %1006, %cst_53 [0] : vector<8x8x256xf32> to vector<8x256xf32>
    %1008 = tpu.reciprocal %1007 {approx = true} : vector<8x256xf32> -> vector<8x256xf32>
    %1009 = vector.extract_strided_slice %1006 {offsets = [0, 0, 0], sizes = [1, 8, 256], strides = [1, 1, 1]} : vector<8x8x256xf32> to vector<1x8x256xf32>
    %1010 = vector.shape_cast %1009 : vector<1x8x256xf32> to vector<8x256xf32>
    %1011 = vector.extract_strided_slice %706 {offsets = [0, 0], sizes = [1, 256], strides = [1, 1]} : vector<8x256xf32> to vector<1x256xf32>
    %1012 = vector.broadcast %1011 : vector<1x256xf32> to vector<8x256xf32>
    %1013 = arith.mulf %1010, %1012 : vector<8x256xf32>
    %1014 = vector.extract_strided_slice %1006 {offsets = [1, 0, 0], sizes = [1, 8, 256], strides = [1, 1, 1]} : vector<8x8x256xf32> to vector<1x8x256xf32>
    %1015 = vector.shape_cast %1014 : vector<1x8x256xf32> to vector<8x256xf32>
    %1016 = vector.extract_strided_slice %706 {offsets = [1, 0], sizes = [1, 256], strides = [1, 1]} : vector<8x256xf32> to vector<1x256xf32>
    %1017 = vector.broadcast %1016 : vector<1x256xf32> to vector<8x256xf32>
    %1018 = arith.mulf %1015, %1017 : vector<8x256xf32>
    %1019 = arith.addf %1013, %1018 : vector<8x256xf32>
    %1020 = vector.extract_strided_slice %1006 {offsets = [2, 0, 0], sizes = [1, 8, 256], strides = [1, 1, 1]} : vector<8x8x256xf32> to vector<1x8x256xf32>
    %1021 = vector.shape_cast %1020 : vector<1x8x256xf32> to vector<8x256xf32>
    %1022 = vector.extract_strided_slice %706 {offsets = [2, 0], sizes = [1, 256], strides = [1, 1]} : vector<8x256xf32> to vector<1x256xf32>
    %1023 = vector.broadcast %1022 : vector<1x256xf32> to vector<8x256xf32>
    %1024 = arith.mulf %1021, %1023 : vector<8x256xf32>
    %1025 = arith.addf %1019, %1024 : vector<8x256xf32>
    %1026 = vector.extract_strided_slice %1006 {offsets = [3, 0, 0], sizes = [1, 8, 256], strides = [1, 1, 1]} : vector<8x8x256xf32> to vector<1x8x256xf32>
    %1027 = vector.shape_cast %1026 : vector<1x8x256xf32> to vector<8x256xf32>
    %1028 = vector.extract_strided_slice %706 {offsets = [3, 0], sizes = [1, 256], strides = [1, 1]} : vector<8x256xf32> to vector<1x256xf32>
    %1029 = vector.broadcast %1028 : vector<1x256xf32> to vector<8x256xf32>
    %1030 = arith.mulf %1027, %1029 : vector<8x256xf32>
    %1031 = arith.addf %1025, %1030 : vector<8x256xf32>
    %1032 = vector.extract_strided_slice %1006 {offsets = [4, 0, 0], sizes = [1, 8, 256], strides = [1, 1, 1]} : vector<8x8x256xf32> to vector<1x8x256xf32>
    %1033 = vector.shape_cast %1032 : vector<1x8x256xf32> to vector<8x256xf32>
    %1034 = vector.extract_strided_slice %706 {offsets = [4, 0], sizes = [1, 256], strides = [1, 1]} : vector<8x256xf32> to vector<1x256xf32>
    %1035 = vector.broadcast %1034 : vector<1x256xf32> to vector<8x256xf32>
    %1036 = arith.mulf %1033, %1035 : vector<8x256xf32>
    %1037 = arith.addf %1031, %1036 : vector<8x256xf32>
    %1038 = vector.extract_strided_slice %1006 {offsets = [5, 0, 0], sizes = [1, 8, 256], strides = [1, 1, 1]} : vector<8x8x256xf32> to vector<1x8x256xf32>
    %1039 = vector.shape_cast %1038 : vector<1x8x256xf32> to vector<8x256xf32>
    %1040 = vector.extract_strided_slice %706 {offsets = [5, 0], sizes = [1, 256], strides = [1, 1]} : vector<8x256xf32> to vector<1x256xf32>
    %1041 = vector.broadcast %1040 : vector<1x256xf32> to vector<8x256xf32>
    %1042 = arith.mulf %1039, %1041 : vector<8x256xf32>
    %1043 = arith.addf %1037, %1042 : vector<8x256xf32>
    %1044 = vector.extract_strided_slice %1006 {offsets = [6, 0, 0], sizes = [1, 8, 256], strides = [1, 1, 1]} : vector<8x8x256xf32> to vector<1x8x256xf32>
    %1045 = vector.shape_cast %1044 : vector<1x8x256xf32> to vector<8x256xf32>
    %1046 = vector.extract_strided_slice %706 {offsets = [6, 0], sizes = [1, 256], strides = [1, 1]} : vector<8x256xf32> to vector<1x256xf32>
    %1047 = vector.broadcast %1046 : vector<1x256xf32> to vector<8x256xf32>
    %1048 = arith.mulf %1045, %1047 : vector<8x256xf32>
    %1049 = arith.addf %1043, %1048 : vector<8x256xf32>
    %1050 = vector.extract_strided_slice %1006 {offsets = [7, 0, 0], sizes = [1, 8, 256], strides = [1, 1, 1]} : vector<8x8x256xf32> to vector<1x8x256xf32>
    %1051 = vector.shape_cast %1050 : vector<1x8x256xf32> to vector<8x256xf32>
    %1052 = vector.extract_strided_slice %706 {offsets = [7, 0], sizes = [1, 256], strides = [1, 1]} : vector<8x256xf32> to vector<1x256xf32>
    %1053 = vector.broadcast %1052 : vector<1x256xf32> to vector<8x256xf32>
    %1054 = arith.mulf %1051, %1053 : vector<8x256xf32>
    %1055 = arith.addf %1049, %1054 : vector<8x256xf32>
    %1056 = arith.mulf %1055, %1008 : vector<8x256xf32>
    %1057 = vector.extract_strided_slice %1006 {offsets = [0, 0, 0], sizes = [1, 8, 256], strides = [1, 1, 1]} : vector<8x8x256xf32> to vector<1x8x256xf32>
    %1058 = vector.shape_cast %1057 : vector<1x8x256xf32> to vector<8x256xf32>
    %1059 = vector.extract_strided_slice %740 {offsets = [0, 0], sizes = [1, 256], strides = [1, 1]} : vector<8x256xf32> to vector<1x256xf32>
    %1060 = vector.broadcast %1059 : vector<1x256xf32> to vector<8x256xf32>
    %1061 = arith.mulf %1058, %1060 : vector<8x256xf32>
    %1062 = vector.extract_strided_slice %1006 {offsets = [1, 0, 0], sizes = [1, 8, 256], strides = [1, 1, 1]} : vector<8x8x256xf32> to vector<1x8x256xf32>
    %1063 = vector.shape_cast %1062 : vector<1x8x256xf32> to vector<8x256xf32>
    %1064 = vector.extract_strided_slice %740 {offsets = [1, 0], sizes = [1, 256], strides = [1, 1]} : vector<8x256xf32> to vector<1x256xf32>
    %1065 = vector.broadcast %1064 : vector<1x256xf32> to vector<8x256xf32>
    %1066 = arith.mulf %1063, %1065 : vector<8x256xf32>
    %1067 = arith.addf %1061, %1066 : vector<8x256xf32>
    %1068 = vector.extract_strided_slice %1006 {offsets = [2, 0, 0], sizes = [1, 8, 256], strides = [1, 1, 1]} : vector<8x8x256xf32> to vector<1x8x256xf32>
    %1069 = vector.shape_cast %1068 : vector<1x8x256xf32> to vector<8x256xf32>
    %1070 = vector.extract_strided_slice %740 {offsets = [2, 0], sizes = [1, 256], strides = [1, 1]} : vector<8x256xf32> to vector<1x256xf32>
    %1071 = vector.broadcast %1070 : vector<1x256xf32> to vector<8x256xf32>
    %1072 = arith.mulf %1069, %1071 : vector<8x256xf32>
    %1073 = arith.addf %1067, %1072 : vector<8x256xf32>
    %1074 = vector.extract_strided_slice %1006 {offsets = [3, 0, 0], sizes = [1, 8, 256], strides = [1, 1, 1]} : vector<8x8x256xf32> to vector<1x8x256xf32>
    %1075 = vector.shape_cast %1074 : vector<1x8x256xf32> to vector<8x256xf32>
    %1076 = vector.extract_strided_slice %740 {offsets = [3, 0], sizes = [1, 256], strides = [1, 1]} : vector<8x256xf32> to vector<1x256xf32>
    %1077 = vector.broadcast %1076 : vector<1x256xf32> to vector<8x256xf32>
    %1078 = arith.mulf %1075, %1077 : vector<8x256xf32>
    %1079 = arith.addf %1073, %1078 : vector<8x256xf32>
    %1080 = vector.extract_strided_slice %1006 {offsets = [4, 0, 0], sizes = [1, 8, 256], strides = [1, 1, 1]} : vector<8x8x256xf32> to vector<1x8x256xf32>
    %1081 = vector.shape_cast %1080 : vector<1x8x256xf32> to vector<8x256xf32>
    %1082 = vector.extract_strided_slice %740 {offsets = [4, 0], sizes = [1, 256], strides = [1, 1]} : vector<8x256xf32> to vector<1x256xf32>
    %1083 = vector.broadcast %1082 : vector<1x256xf32> to vector<8x256xf32>
    %1084 = arith.mulf %1081, %1083 : vector<8x256xf32>
    %1085 = arith.addf %1079, %1084 : vector<8x256xf32>
    %1086 = vector.extract_strided_slice %1006 {offsets = [5, 0, 0], sizes = [1, 8, 256], strides = [1, 1, 1]} : vector<8x8x256xf32> to vector<1x8x256xf32>
    %1087 = vector.shape_cast %1086 : vector<1x8x256xf32> to vector<8x256xf32>
    %1088 = vector.extract_strided_slice %740 {offsets = [5, 0], sizes = [1, 256], strides = [1, 1]} : vector<8x256xf32> to vector<1x256xf32>
    %1089 = vector.broadcast %1088 : vector<1x256xf32> to vector<8x256xf32>
    %1090 = arith.mulf %1087, %1089 : vector<8x256xf32>
    %1091 = arith.addf %1085, %1090 : vector<8x256xf32>
    %1092 = vector.extract_strided_slice %1006 {offsets = [6, 0, 0], sizes = [1, 8, 256], strides = [1, 1, 1]} : vector<8x8x256xf32> to vector<1x8x256xf32>
    %1093 = vector.shape_cast %1092 : vector<1x8x256xf32> to vector<8x256xf32>
    %1094 = vector.extract_strided_slice %740 {offsets = [6, 0], sizes = [1, 256], strides = [1, 1]} : vector<8x256xf32> to vector<1x256xf32>
    %1095 = vector.broadcast %1094 : vector<1x256xf32> to vector<8x256xf32>
    %1096 = arith.mulf %1093, %1095 : vector<8x256xf32>
    %1097 = arith.addf %1091, %1096 : vector<8x256xf32>
    %1098 = vector.extract_strided_slice %1006 {offsets = [7, 0, 0], sizes = [1, 8, 256], strides = [1, 1, 1]} : vector<8x8x256xf32> to vector<1x8x256xf32>
    %1099 = vector.shape_cast %1098 : vector<1x8x256xf32> to vector<8x256xf32>
    %1100 = vector.extract_strided_slice %740 {offsets = [7, 0], sizes = [1, 256], strides = [1, 1]} : vector<8x256xf32> to vector<1x256xf32>
    %1101 = vector.broadcast %1100 : vector<1x256xf32> to vector<8x256xf32>
    %1102 = arith.mulf %1099, %1101 : vector<8x256xf32>
    %1103 = arith.addf %1097, %1102 : vector<8x256xf32>
    %1104 = arith.mulf %1103, %1008 : vector<8x256xf32>
    %1105 = vector.shape_cast %502 : vector<8x256xf32> to vector<8x1x256xf32>
    %1106 = vector.shape_cast %230 : vector<8x256xf32> to vector<1x8x256xf32>
    %1107 = vector.broadcast %1105 : vector<8x1x256xf32> to vector<8x8x256xf32>
    %1108 = vector.broadcast %1106 : vector<1x8x256xf32> to vector<8x8x256xf32>
    %1109 = arith.mulf %1107, %1108 : vector<8x8x256xf32>
    %1110 = vector.shape_cast %536 : vector<8x256xf32> to vector<8x1x256xf32>
    %1111 = vector.shape_cast %264 : vector<8x256xf32> to vector<1x8x256xf32>
    %1112 = vector.broadcast %1110 : vector<8x1x256xf32> to vector<8x8x256xf32>
    %1113 = vector.broadcast %1111 : vector<1x8x256xf32> to vector<8x8x256xf32>
    %1114 = arith.mulf %1112, %1113 : vector<8x8x256xf32>
    %1115 = arith.addf %1109, %1114 : vector<8x8x256xf32>
    %cst_54 = arith.constant dense<0xFF800000> : vector<8x256xf32>
    %1116 = vector.multi_reduction <maximumf>, %1115, %cst_54 [0] : vector<8x8x256xf32> to vector<8x256xf32>
    %1117 = vector.shape_cast %1116 : vector<8x256xf32> to vector<1x8x256xf32>
    %1118 = vector.broadcast %1117 : vector<1x8x256xf32> to vector<8x8x256xf32>
    %1119 = arith.subf %1115, %1118 : vector<8x8x256xf32>
    %1120 = math.exp %1119 : vector<8x8x256xf32>
    %cst_55 = arith.constant dense<0.000000e+00> : vector<8x256xf32>
    %1121 = vector.multi_reduction <add>, %1120, %cst_55 [0] : vector<8x8x256xf32> to vector<8x256xf32>
    %1122 = tpu.reciprocal %1121 {approx = true} : vector<8x256xf32> -> vector<8x256xf32>
    %1123 = vector.extract_strided_slice %1120 {offsets = [0, 0, 0], sizes = [1, 8, 256], strides = [1, 1, 1]} : vector<8x8x256xf32> to vector<1x8x256xf32>
    %1124 = vector.shape_cast %1123 : vector<1x8x256xf32> to vector<8x256xf32>
    %1125 = vector.extract_strided_slice %774 {offsets = [0, 0], sizes = [1, 256], strides = [1, 1]} : vector<8x256xf32> to vector<1x256xf32>
    %1126 = vector.broadcast %1125 : vector<1x256xf32> to vector<8x256xf32>
    %1127 = arith.mulf %1124, %1126 : vector<8x256xf32>
    %1128 = vector.extract_strided_slice %1120 {offsets = [1, 0, 0], sizes = [1, 8, 256], strides = [1, 1, 1]} : vector<8x8x256xf32> to vector<1x8x256xf32>
    %1129 = vector.shape_cast %1128 : vector<1x8x256xf32> to vector<8x256xf32>
    %1130 = vector.extract_strided_slice %774 {offsets = [1, 0], sizes = [1, 256], strides = [1, 1]} : vector<8x256xf32> to vector<1x256xf32>
    %1131 = vector.broadcast %1130 : vector<1x256xf32> to vector<8x256xf32>
    %1132 = arith.mulf %1129, %1131 : vector<8x256xf32>
    %1133 = arith.addf %1127, %1132 : vector<8x256xf32>
    %1134 = vector.extract_strided_slice %1120 {offsets = [2, 0, 0], sizes = [1, 8, 256], strides = [1, 1, 1]} : vector<8x8x256xf32> to vector<1x8x256xf32>
    %1135 = vector.shape_cast %1134 : vector<1x8x256xf32> to vector<8x256xf32>
    %1136 = vector.extract_strided_slice %774 {offsets = [2, 0], sizes = [1, 256], strides = [1, 1]} : vector<8x256xf32> to vector<1x256xf32>
    %1137 = vector.broadcast %1136 : vector<1x256xf32> to vector<8x256xf32>
    %1138 = arith.mulf %1135, %1137 : vector<8x256xf32>
    %1139 = arith.addf %1133, %1138 : vector<8x256xf32>
    %1140 = vector.extract_strided_slice %1120 {offsets = [3, 0, 0], sizes = [1, 8, 256], strides = [1, 1, 1]} : vector<8x8x256xf32> to vector<1x8x256xf32>
    %1141 = vector.shape_cast %1140 : vector<1x8x256xf32> to vector<8x256xf32>
    %1142 = vector.extract_strided_slice %774 {offsets = [3, 0], sizes = [1, 256], strides = [1, 1]} : vector<8x256xf32> to vector<1x256xf32>
    %1143 = vector.broadcast %1142 : vector<1x256xf32> to vector<8x256xf32>
    %1144 = arith.mulf %1141, %1143 : vector<8x256xf32>
    %1145 = arith.addf %1139, %1144 : vector<8x256xf32>
    %1146 = vector.extract_strided_slice %1120 {offsets = [4, 0, 0], sizes = [1, 8, 256], strides = [1, 1, 1]} : vector<8x8x256xf32> to vector<1x8x256xf32>
    %1147 = vector.shape_cast %1146 : vector<1x8x256xf32> to vector<8x256xf32>
    %1148 = vector.extract_strided_slice %774 {offsets = [4, 0], sizes = [1, 256], strides = [1, 1]} : vector<8x256xf32> to vector<1x256xf32>
    %1149 = vector.broadcast %1148 : vector<1x256xf32> to vector<8x256xf32>
    %1150 = arith.mulf %1147, %1149 : vector<8x256xf32>
    %1151 = arith.addf %1145, %1150 : vector<8x256xf32>
    %1152 = vector.extract_strided_slice %1120 {offsets = [5, 0, 0], sizes = [1, 8, 256], strides = [1, 1, 1]} : vector<8x8x256xf32> to vector<1x8x256xf32>
    %1153 = vector.shape_cast %1152 : vector<1x8x256xf32> to vector<8x256xf32>
    %1154 = vector.extract_strided_slice %774 {offsets = [5, 0], sizes = [1, 256], strides = [1, 1]} : vector<8x256xf32> to vector<1x256xf32>
    %1155 = vector.broadcast %1154 : vector<1x256xf32> to vector<8x256xf32>
    %1156 = arith.mulf %1153, %1155 : vector<8x256xf32>
    %1157 = arith.addf %1151, %1156 : vector<8x256xf32>
    %1158 = vector.extract_strided_slice %1120 {offsets = [6, 0, 0], sizes = [1, 8, 256], strides = [1, 1, 1]} : vector<8x8x256xf32> to vector<1x8x256xf32>
    %1159 = vector.shape_cast %1158 : vector<1x8x256xf32> to vector<8x256xf32>
    %1160 = vector.extract_strided_slice %774 {offsets = [6, 0], sizes = [1, 256], strides = [1, 1]} : vector<8x256xf32> to vector<1x256xf32>
    %1161 = vector.broadcast %1160 : vector<1x256xf32> to vector<8x256xf32>
    %1162 = arith.mulf %1159, %1161 : vector<8x256xf32>
    %1163 = arith.addf %1157, %1162 : vector<8x256xf32>
    %1164 = vector.extract_strided_slice %1120 {offsets = [7, 0, 0], sizes = [1, 8, 256], strides = [1, 1, 1]} : vector<8x8x256xf32> to vector<1x8x256xf32>
    %1165 = vector.shape_cast %1164 : vector<1x8x256xf32> to vector<8x256xf32>
    %1166 = vector.extract_strided_slice %774 {offsets = [7, 0], sizes = [1, 256], strides = [1, 1]} : vector<8x256xf32> to vector<1x256xf32>
    %1167 = vector.broadcast %1166 : vector<1x256xf32> to vector<8x256xf32>
    %1168 = arith.mulf %1165, %1167 : vector<8x256xf32>
    %1169 = arith.addf %1163, %1168 : vector<8x256xf32>
    %1170 = arith.mulf %1169, %1122 : vector<8x256xf32>
    %1171 = vector.extract_strided_slice %1120 {offsets = [0, 0, 0], sizes = [1, 8, 256], strides = [1, 1, 1]} : vector<8x8x256xf32> to vector<1x8x256xf32>
    %1172 = vector.shape_cast %1171 : vector<1x8x256xf32> to vector<8x256xf32>
    %1173 = vector.extract_strided_slice %808 {offsets = [0, 0], sizes = [1, 256], strides = [1, 1]} : vector<8x256xf32> to vector<1x256xf32>
    %1174 = vector.broadcast %1173 : vector<1x256xf32> to vector<8x256xf32>
    %1175 = arith.mulf %1172, %1174 : vector<8x256xf32>
    %1176 = vector.extract_strided_slice %1120 {offsets = [1, 0, 0], sizes = [1, 8, 256], strides = [1, 1, 1]} : vector<8x8x256xf32> to vector<1x8x256xf32>
    %1177 = vector.shape_cast %1176 : vector<1x8x256xf32> to vector<8x256xf32>
    %1178 = vector.extract_strided_slice %808 {offsets = [1, 0], sizes = [1, 256], strides = [1, 1]} : vector<8x256xf32> to vector<1x256xf32>
    %1179 = vector.broadcast %1178 : vector<1x256xf32> to vector<8x256xf32>
    %1180 = arith.mulf %1177, %1179 : vector<8x256xf32>
    %1181 = arith.addf %1175, %1180 : vector<8x256xf32>
    %1182 = vector.extract_strided_slice %1120 {offsets = [2, 0, 0], sizes = [1, 8, 256], strides = [1, 1, 1]} : vector<8x8x256xf32> to vector<1x8x256xf32>
    %1183 = vector.shape_cast %1182 : vector<1x8x256xf32> to vector<8x256xf32>
    %1184 = vector.extract_strided_slice %808 {offsets = [2, 0], sizes = [1, 256], strides = [1, 1]} : vector<8x256xf32> to vector<1x256xf32>
    %1185 = vector.broadcast %1184 : vector<1x256xf32> to vector<8x256xf32>
    %1186 = arith.mulf %1183, %1185 : vector<8x256xf32>
    %1187 = arith.addf %1181, %1186 : vector<8x256xf32>
    %1188 = vector.extract_strided_slice %1120 {offsets = [3, 0, 0], sizes = [1, 8, 256], strides = [1, 1, 1]} : vector<8x8x256xf32> to vector<1x8x256xf32>
    %1189 = vector.shape_cast %1188 : vector<1x8x256xf32> to vector<8x256xf32>
    %1190 = vector.extract_strided_slice %808 {offsets = [3, 0], sizes = [1, 256], strides = [1, 1]} : vector<8x256xf32> to vector<1x256xf32>
    %1191 = vector.broadcast %1190 : vector<1x256xf32> to vector<8x256xf32>
    %1192 = arith.mulf %1189, %1191 : vector<8x256xf32>
    %1193 = arith.addf %1187, %1192 : vector<8x256xf32>
    %1194 = vector.extract_strided_slice %1120 {offsets = [4, 0, 0], sizes = [1, 8, 256], strides = [1, 1, 1]} : vector<8x8x256xf32> to vector<1x8x256xf32>
    %1195 = vector.shape_cast %1194 : vector<1x8x256xf32> to vector<8x256xf32>
    %1196 = vector.extract_strided_slice %808 {offsets = [4, 0], sizes = [1, 256], strides = [1, 1]} : vector<8x256xf32> to vector<1x256xf32>
    %1197 = vector.broadcast %1196 : vector<1x256xf32> to vector<8x256xf32>
    %1198 = arith.mulf %1195, %1197 : vector<8x256xf32>
    %1199 = arith.addf %1193, %1198 : vector<8x256xf32>
    %1200 = vector.extract_strided_slice %1120 {offsets = [5, 0, 0], sizes = [1, 8, 256], strides = [1, 1, 1]} : vector<8x8x256xf32> to vector<1x8x256xf32>
    %1201 = vector.shape_cast %1200 : vector<1x8x256xf32> to vector<8x256xf32>
    %1202 = vector.extract_strided_slice %808 {offsets = [5, 0], sizes = [1, 256], strides = [1, 1]} : vector<8x256xf32> to vector<1x256xf32>
    %1203 = vector.broadcast %1202 : vector<1x256xf32> to vector<8x256xf32>
    %1204 = arith.mulf %1201, %1203 : vector<8x256xf32>
    %1205 = arith.addf %1199, %1204 : vector<8x256xf32>
    %1206 = vector.extract_strided_slice %1120 {offsets = [6, 0, 0], sizes = [1, 8, 256], strides = [1, 1, 1]} : vector<8x8x256xf32> to vector<1x8x256xf32>
    %1207 = vector.shape_cast %1206 : vector<1x8x256xf32> to vector<8x256xf32>
    %1208 = vector.extract_strided_slice %808 {offsets = [6, 0], sizes = [1, 256], strides = [1, 1]} : vector<8x256xf32> to vector<1x256xf32>
    %1209 = vector.broadcast %1208 : vector<1x256xf32> to vector<8x256xf32>
    %1210 = arith.mulf %1207, %1209 : vector<8x256xf32>
    %1211 = arith.addf %1205, %1210 : vector<8x256xf32>
    %1212 = vector.extract_strided_slice %1120 {offsets = [7, 0, 0], sizes = [1, 8, 256], strides = [1, 1, 1]} : vector<8x8x256xf32> to vector<1x8x256xf32>
    %1213 = vector.shape_cast %1212 : vector<1x8x256xf32> to vector<8x256xf32>
    %1214 = vector.extract_strided_slice %808 {offsets = [7, 0], sizes = [1, 256], strides = [1, 1]} : vector<8x256xf32> to vector<1x256xf32>
    %1215 = vector.broadcast %1214 : vector<1x256xf32> to vector<8x256xf32>
    %1216 = arith.mulf %1213, %1215 : vector<8x256xf32>
    %1217 = arith.addf %1211, %1216 : vector<8x256xf32>
    %1218 = arith.mulf %1217, %1122 : vector<8x256xf32>
    %1219 = vector.shape_cast %570 : vector<8x256xf32> to vector<8x1x256xf32>
    %1220 = vector.shape_cast %298 : vector<8x256xf32> to vector<1x8x256xf32>
    %1221 = vector.broadcast %1219 : vector<8x1x256xf32> to vector<8x8x256xf32>
    %1222 = vector.broadcast %1220 : vector<1x8x256xf32> to vector<8x8x256xf32>
    %1223 = arith.mulf %1221, %1222 : vector<8x8x256xf32>
    %1224 = vector.shape_cast %604 : vector<8x256xf32> to vector<8x1x256xf32>
    %1225 = vector.shape_cast %332 : vector<8x256xf32> to vector<1x8x256xf32>
    %1226 = vector.broadcast %1224 : vector<8x1x256xf32> to vector<8x8x256xf32>
    %1227 = vector.broadcast %1225 : vector<1x8x256xf32> to vector<8x8x256xf32>
    %1228 = arith.mulf %1226, %1227 : vector<8x8x256xf32>
    %1229 = arith.addf %1223, %1228 : vector<8x8x256xf32>
    %cst_56 = arith.constant dense<0xFF800000> : vector<8x256xf32>
    %1230 = vector.multi_reduction <maximumf>, %1229, %cst_56 [0] : vector<8x8x256xf32> to vector<8x256xf32>
    %1231 = vector.shape_cast %1230 : vector<8x256xf32> to vector<1x8x256xf32>
    %1232 = vector.broadcast %1231 : vector<1x8x256xf32> to vector<8x8x256xf32>
    %1233 = arith.subf %1229, %1232 : vector<8x8x256xf32>
    %1234 = math.exp %1233 : vector<8x8x256xf32>
    %cst_57 = arith.constant dense<0.000000e+00> : vector<8x256xf32>
    %1235 = vector.multi_reduction <add>, %1234, %cst_57 [0] : vector<8x8x256xf32> to vector<8x256xf32>
    %1236 = tpu.reciprocal %1235 {approx = true} : vector<8x256xf32> -> vector<8x256xf32>
    %1237 = vector.extract_strided_slice %1234 {offsets = [0, 0, 0], sizes = [1, 8, 256], strides = [1, 1, 1]} : vector<8x8x256xf32> to vector<1x8x256xf32>
    %1238 = vector.shape_cast %1237 : vector<1x8x256xf32> to vector<8x256xf32>
    %1239 = vector.extract_strided_slice %842 {offsets = [0, 0], sizes = [1, 256], strides = [1, 1]} : vector<8x256xf32> to vector<1x256xf32>
    %1240 = vector.broadcast %1239 : vector<1x256xf32> to vector<8x256xf32>
    %1241 = arith.mulf %1238, %1240 : vector<8x256xf32>
    %1242 = vector.extract_strided_slice %1234 {offsets = [1, 0, 0], sizes = [1, 8, 256], strides = [1, 1, 1]} : vector<8x8x256xf32> to vector<1x8x256xf32>
    %1243 = vector.shape_cast %1242 : vector<1x8x256xf32> to vector<8x256xf32>
    %1244 = vector.extract_strided_slice %842 {offsets = [1, 0], sizes = [1, 256], strides = [1, 1]} : vector<8x256xf32> to vector<1x256xf32>
    %1245 = vector.broadcast %1244 : vector<1x256xf32> to vector<8x256xf32>
    %1246 = arith.mulf %1243, %1245 : vector<8x256xf32>
    %1247 = arith.addf %1241, %1246 : vector<8x256xf32>
    %1248 = vector.extract_strided_slice %1234 {offsets = [2, 0, 0], sizes = [1, 8, 256], strides = [1, 1, 1]} : vector<8x8x256xf32> to vector<1x8x256xf32>
    %1249 = vector.shape_cast %1248 : vector<1x8x256xf32> to vector<8x256xf32>
    %1250 = vector.extract_strided_slice %842 {offsets = [2, 0], sizes = [1, 256], strides = [1, 1]} : vector<8x256xf32> to vector<1x256xf32>
    %1251 = vector.broadcast %1250 : vector<1x256xf32> to vector<8x256xf32>
    %1252 = arith.mulf %1249, %1251 : vector<8x256xf32>
    %1253 = arith.addf %1247, %1252 : vector<8x256xf32>
    %1254 = vector.extract_strided_slice %1234 {offsets = [3, 0, 0], sizes = [1, 8, 256], strides = [1, 1, 1]} : vector<8x8x256xf32> to vector<1x8x256xf32>
    %1255 = vector.shape_cast %1254 : vector<1x8x256xf32> to vector<8x256xf32>
    %1256 = vector.extract_strided_slice %842 {offsets = [3, 0], sizes = [1, 256], strides = [1, 1]} : vector<8x256xf32> to vector<1x256xf32>
    %1257 = vector.broadcast %1256 : vector<1x256xf32> to vector<8x256xf32>
    %1258 = arith.mulf %1255, %1257 : vector<8x256xf32>
    %1259 = arith.addf %1253, %1258 : vector<8x256xf32>
    %1260 = vector.extract_strided_slice %1234 {offsets = [4, 0, 0], sizes = [1, 8, 256], strides = [1, 1, 1]} : vector<8x8x256xf32> to vector<1x8x256xf32>
    %1261 = vector.shape_cast %1260 : vector<1x8x256xf32> to vector<8x256xf32>
    %1262 = vector.extract_strided_slice %842 {offsets = [4, 0], sizes = [1, 256], strides = [1, 1]} : vector<8x256xf32> to vector<1x256xf32>
    %1263 = vector.broadcast %1262 : vector<1x256xf32> to vector<8x256xf32>
    %1264 = arith.mulf %1261, %1263 : vector<8x256xf32>
    %1265 = arith.addf %1259, %1264 : vector<8x256xf32>
    %1266 = vector.extract_strided_slice %1234 {offsets = [5, 0, 0], sizes = [1, 8, 256], strides = [1, 1, 1]} : vector<8x8x256xf32> to vector<1x8x256xf32>
    %1267 = vector.shape_cast %1266 : vector<1x8x256xf32> to vector<8x256xf32>
    %1268 = vector.extract_strided_slice %842 {offsets = [5, 0], sizes = [1, 256], strides = [1, 1]} : vector<8x256xf32> to vector<1x256xf32>
    %1269 = vector.broadcast %1268 : vector<1x256xf32> to vector<8x256xf32>
    %1270 = arith.mulf %1267, %1269 : vector<8x256xf32>
    %1271 = arith.addf %1265, %1270 : vector<8x256xf32>
    %1272 = vector.extract_strided_slice %1234 {offsets = [6, 0, 0], sizes = [1, 8, 256], strides = [1, 1, 1]} : vector<8x8x256xf32> to vector<1x8x256xf32>
    %1273 = vector.shape_cast %1272 : vector<1x8x256xf32> to vector<8x256xf32>
    %1274 = vector.extract_strided_slice %842 {offsets = [6, 0], sizes = [1, 256], strides = [1, 1]} : vector<8x256xf32> to vector<1x256xf32>
    %1275 = vector.broadcast %1274 : vector<1x256xf32> to vector<8x256xf32>
    %1276 = arith.mulf %1273, %1275 : vector<8x256xf32>
    %1277 = arith.addf %1271, %1276 : vector<8x256xf32>
    %1278 = vector.extract_strided_slice %1234 {offsets = [7, 0, 0], sizes = [1, 8, 256], strides = [1, 1, 1]} : vector<8x8x256xf32> to vector<1x8x256xf32>
    %1279 = vector.shape_cast %1278 : vector<1x8x256xf32> to vector<8x256xf32>
    %1280 = vector.extract_strided_slice %842 {offsets = [7, 0], sizes = [1, 256], strides = [1, 1]} : vector<8x256xf32> to vector<1x256xf32>
    %1281 = vector.broadcast %1280 : vector<1x256xf32> to vector<8x256xf32>
    %1282 = arith.mulf %1279, %1281 : vector<8x256xf32>
    %1283 = arith.addf %1277, %1282 : vector<8x256xf32>
    %1284 = arith.mulf %1283, %1236 : vector<8x256xf32>
    %1285 = vector.extract_strided_slice %1234 {offsets = [0, 0, 0], sizes = [1, 8, 256], strides = [1, 1, 1]} : vector<8x8x256xf32> to vector<1x8x256xf32>
    %1286 = vector.shape_cast %1285 : vector<1x8x256xf32> to vector<8x256xf32>
    %1287 = vector.extract_strided_slice %876 {offsets = [0, 0], sizes = [1, 256], strides = [1, 1]} : vector<8x256xf32> to vector<1x256xf32>
    %1288 = vector.broadcast %1287 : vector<1x256xf32> to vector<8x256xf32>
    %1289 = arith.mulf %1286, %1288 : vector<8x256xf32>
    %1290 = vector.extract_strided_slice %1234 {offsets = [1, 0, 0], sizes = [1, 8, 256], strides = [1, 1, 1]} : vector<8x8x256xf32> to vector<1x8x256xf32>
    %1291 = vector.shape_cast %1290 : vector<1x8x256xf32> to vector<8x256xf32>
    %1292 = vector.extract_strided_slice %876 {offsets = [1, 0], sizes = [1, 256], strides = [1, 1]} : vector<8x256xf32> to vector<1x256xf32>
    %1293 = vector.broadcast %1292 : vector<1x256xf32> to vector<8x256xf32>
    %1294 = arith.mulf %1291, %1293 : vector<8x256xf32>
    %1295 = arith.addf %1289, %1294 : vector<8x256xf32>
    %1296 = vector.extract_strided_slice %1234 {offsets = [2, 0, 0], sizes = [1, 8, 256], strides = [1, 1, 1]} : vector<8x8x256xf32> to vector<1x8x256xf32>
    %1297 = vector.shape_cast %1296 : vector<1x8x256xf32> to vector<8x256xf32>
    %1298 = vector.extract_strided_slice %876 {offsets = [2, 0], sizes = [1, 256], strides = [1, 1]} : vector<8x256xf32> to vector<1x256xf32>
    %1299 = vector.broadcast %1298 : vector<1x256xf32> to vector<8x256xf32>
    %1300 = arith.mulf %1297, %1299 : vector<8x256xf32>
    %1301 = arith.addf %1295, %1300 : vector<8x256xf32>
    %1302 = vector.extract_strided_slice %1234 {offsets = [3, 0, 0], sizes = [1, 8, 256], strides = [1, 1, 1]} : vector<8x8x256xf32> to vector<1x8x256xf32>
    %1303 = vector.shape_cast %1302 : vector<1x8x256xf32> to vector<8x256xf32>
    %1304 = vector.extract_strided_slice %876 {offsets = [3, 0], sizes = [1, 256], strides = [1, 1]} : vector<8x256xf32> to vector<1x256xf32>
    %1305 = vector.broadcast %1304 : vector<1x256xf32> to vector<8x256xf32>
    %1306 = arith.mulf %1303, %1305 : vector<8x256xf32>
    %1307 = arith.addf %1301, %1306 : vector<8x256xf32>
    %1308 = vector.extract_strided_slice %1234 {offsets = [4, 0, 0], sizes = [1, 8, 256], strides = [1, 1, 1]} : vector<8x8x256xf32> to vector<1x8x256xf32>
    %1309 = vector.shape_cast %1308 : vector<1x8x256xf32> to vector<8x256xf32>
    %1310 = vector.extract_strided_slice %876 {offsets = [4, 0], sizes = [1, 256], strides = [1, 1]} : vector<8x256xf32> to vector<1x256xf32>
    %1311 = vector.broadcast %1310 : vector<1x256xf32> to vector<8x256xf32>
    %1312 = arith.mulf %1309, %1311 : vector<8x256xf32>
    %1313 = arith.addf %1307, %1312 : vector<8x256xf32>
    %1314 = vector.extract_strided_slice %1234 {offsets = [5, 0, 0], sizes = [1, 8, 256], strides = [1, 1, 1]} : vector<8x8x256xf32> to vector<1x8x256xf32>
    %1315 = vector.shape_cast %1314 : vector<1x8x256xf32> to vector<8x256xf32>
    %1316 = vector.extract_strided_slice %876 {offsets = [5, 0], sizes = [1, 256], strides = [1, 1]} : vector<8x256xf32> to vector<1x256xf32>
    %1317 = vector.broadcast %1316 : vector<1x256xf32> to vector<8x256xf32>
    %1318 = arith.mulf %1315, %1317 : vector<8x256xf32>
    %1319 = arith.addf %1313, %1318 : vector<8x256xf32>
    %1320 = vector.extract_strided_slice %1234 {offsets = [6, 0, 0], sizes = [1, 8, 256], strides = [1, 1, 1]} : vector<8x8x256xf32> to vector<1x8x256xf32>
    %1321 = vector.shape_cast %1320 : vector<1x8x256xf32> to vector<8x256xf32>
    %1322 = vector.extract_strided_slice %876 {offsets = [6, 0], sizes = [1, 256], strides = [1, 1]} : vector<8x256xf32> to vector<1x256xf32>
    %1323 = vector.broadcast %1322 : vector<1x256xf32> to vector<8x256xf32>
    %1324 = arith.mulf %1321, %1323 : vector<8x256xf32>
    %1325 = arith.addf %1319, %1324 : vector<8x256xf32>
    %1326 = vector.extract_strided_slice %1234 {offsets = [7, 0, 0], sizes = [1, 8, 256], strides = [1, 1, 1]} : vector<8x8x256xf32> to vector<1x8x256xf32>
    %1327 = vector.shape_cast %1326 : vector<1x8x256xf32> to vector<8x256xf32>
    %1328 = vector.extract_strided_slice %876 {offsets = [7, 0], sizes = [1, 256], strides = [1, 1]} : vector<8x256xf32> to vector<1x256xf32>
    %1329 = vector.broadcast %1328 : vector<1x256xf32> to vector<8x256xf32>
    %1330 = arith.mulf %1327, %1329 : vector<8x256xf32>
    %1331 = arith.addf %1325, %1330 : vector<8x256xf32>
    %1332 = arith.mulf %1331, %1236 : vector<8x256xf32>
    %c0_58 = arith.constant 0 : index
    %1333 = memref.load %arg4[%c0_58] : memref<64xf32, #tpu.memory_space<smem>>
    %1334 = vector.broadcast %1333 : f32 to vector<8x256xf32>
    %1335 = arith.mulf %942, %1334 : vector<8x256xf32>
    %c1_59 = arith.constant 1 : index
    %1336 = memref.load %arg4[%c1_59] : memref<64xf32, #tpu.memory_space<smem>>
    %1337 = vector.broadcast %1336 : f32 to vector<8x256xf32>
    %1338 = arith.mulf %990, %1337 : vector<8x256xf32>
    %1339 = arith.addf %1335, %1338 : vector<8x256xf32>
    %c2_60 = arith.constant 2 : index
    %1340 = memref.load %arg4[%c2_60] : memref<64xf32, #tpu.memory_space<smem>>
    %1341 = vector.broadcast %1340 : f32 to vector<8x256xf32>
    %1342 = arith.mulf %1056, %1341 : vector<8x256xf32>
    %1343 = arith.addf %1339, %1342 : vector<8x256xf32>
    %c3_61 = arith.constant 3 : index
    %1344 = memref.load %arg4[%c3_61] : memref<64xf32, #tpu.memory_space<smem>>
    %1345 = vector.broadcast %1344 : f32 to vector<8x256xf32>
    %1346 = arith.mulf %1104, %1345 : vector<8x256xf32>
    %1347 = arith.addf %1343, %1346 : vector<8x256xf32>
    %c4_62 = arith.constant 4 : index
    %1348 = memref.load %arg4[%c4_62] : memref<64xf32, #tpu.memory_space<smem>>
    %1349 = vector.broadcast %1348 : f32 to vector<8x256xf32>
    %1350 = arith.mulf %1170, %1349 : vector<8x256xf32>
    %1351 = arith.addf %1347, %1350 : vector<8x256xf32>
    %c5_63 = arith.constant 5 : index
    %1352 = memref.load %arg4[%c5_63] : memref<64xf32, #tpu.memory_space<smem>>
    %1353 = vector.broadcast %1352 : f32 to vector<8x256xf32>
    %1354 = arith.mulf %1218, %1353 : vector<8x256xf32>
    %1355 = arith.addf %1351, %1354 : vector<8x256xf32>
    %c6_64 = arith.constant 6 : index
    %1356 = memref.load %arg4[%c6_64] : memref<64xf32, #tpu.memory_space<smem>>
    %1357 = vector.broadcast %1356 : f32 to vector<8x256xf32>
    %1358 = arith.mulf %1284, %1357 : vector<8x256xf32>
    %1359 = arith.addf %1355, %1358 : vector<8x256xf32>
    %c7_65 = arith.constant 7 : index
    %1360 = memref.load %arg4[%c7_65] : memref<64xf32, #tpu.memory_space<smem>>
    %1361 = vector.broadcast %1360 : f32 to vector<8x256xf32>
    %1362 = arith.mulf %1332, %1361 : vector<8x256xf32>
    %1363 = arith.addf %1359, %1362 : vector<8x256xf32>
    %1364 = arith.addf %1, %1363 : vector<8x256xf32>
    %c0_66 = arith.constant 0 : index
    %1365 = memref.load %arg5[%c0_66] : memref<8xf32, #tpu.memory_space<smem>>
    %1366 = vector.broadcast %1365 : f32 to vector<8x256xf32>
    %1367 = arith.addf %1364, %1366 : vector<8x256xf32>
    %c8_67 = arith.constant 8 : index
    %1368 = memref.load %arg4[%c8_67] : memref<64xf32, #tpu.memory_space<smem>>
    %1369 = vector.broadcast %1368 : f32 to vector<8x256xf32>
    %1370 = arith.mulf %942, %1369 : vector<8x256xf32>
    %c9_68 = arith.constant 9 : index
    %1371 = memref.load %arg4[%c9_68] : memref<64xf32, #tpu.memory_space<smem>>
    %1372 = vector.broadcast %1371 : f32 to vector<8x256xf32>
    %1373 = arith.mulf %990, %1372 : vector<8x256xf32>
    %1374 = arith.addf %1370, %1373 : vector<8x256xf32>
    %c10_69 = arith.constant 10 : index
    %1375 = memref.load %arg4[%c10_69] : memref<64xf32, #tpu.memory_space<smem>>
    %1376 = vector.broadcast %1375 : f32 to vector<8x256xf32>
    %1377 = arith.mulf %1056, %1376 : vector<8x256xf32>
    %1378 = arith.addf %1374, %1377 : vector<8x256xf32>
    %c11_70 = arith.constant 11 : index
    %1379 = memref.load %arg4[%c11_70] : memref<64xf32, #tpu.memory_space<smem>>
    %1380 = vector.broadcast %1379 : f32 to vector<8x256xf32>
    %1381 = arith.mulf %1104, %1380 : vector<8x256xf32>
    %1382 = arith.addf %1378, %1381 : vector<8x256xf32>
    %c12_71 = arith.constant 12 : index
    %1383 = memref.load %arg4[%c12_71] : memref<64xf32, #tpu.memory_space<smem>>
    %1384 = vector.broadcast %1383 : f32 to vector<8x256xf32>
    %1385 = arith.mulf %1170, %1384 : vector<8x256xf32>
    %1386 = arith.addf %1382, %1385 : vector<8x256xf32>
    %c13_72 = arith.constant 13 : index
    %1387 = memref.load %arg4[%c13_72] : memref<64xf32, #tpu.memory_space<smem>>
    %1388 = vector.broadcast %1387 : f32 to vector<8x256xf32>
    %1389 = arith.mulf %1218, %1388 : vector<8x256xf32>
    %1390 = arith.addf %1386, %1389 : vector<8x256xf32>
    %c14_73 = arith.constant 14 : index
    %1391 = memref.load %arg4[%c14_73] : memref<64xf32, #tpu.memory_space<smem>>
    %1392 = vector.broadcast %1391 : f32 to vector<8x256xf32>
    %1393 = arith.mulf %1284, %1392 : vector<8x256xf32>
    %1394 = arith.addf %1390, %1393 : vector<8x256xf32>
    %c15_74 = arith.constant 15 : index
    %1395 = memref.load %arg4[%c15_74] : memref<64xf32, #tpu.memory_space<smem>>
    %1396 = vector.broadcast %1395 : f32 to vector<8x256xf32>
    %1397 = arith.mulf %1332, %1396 : vector<8x256xf32>
    %1398 = arith.addf %1394, %1397 : vector<8x256xf32>
    %1399 = arith.addf %3, %1398 : vector<8x256xf32>
    %c1_75 = arith.constant 1 : index
    %1400 = memref.load %arg5[%c1_75] : memref<8xf32, #tpu.memory_space<smem>>
    %1401 = vector.broadcast %1400 : f32 to vector<8x256xf32>
    %1402 = arith.addf %1399, %1401 : vector<8x256xf32>
    %c16_76 = arith.constant 16 : index
    %1403 = memref.load %arg4[%c16_76] : memref<64xf32, #tpu.memory_space<smem>>
    %1404 = vector.broadcast %1403 : f32 to vector<8x256xf32>
    %1405 = arith.mulf %942, %1404 : vector<8x256xf32>
    %c17_77 = arith.constant 17 : index
    %1406 = memref.load %arg4[%c17_77] : memref<64xf32, #tpu.memory_space<smem>>
    %1407 = vector.broadcast %1406 : f32 to vector<8x256xf32>
    %1408 = arith.mulf %990, %1407 : vector<8x256xf32>
    %1409 = arith.addf %1405, %1408 : vector<8x256xf32>
    %c18_78 = arith.constant 18 : index
    %1410 = memref.load %arg4[%c18_78] : memref<64xf32, #tpu.memory_space<smem>>
    %1411 = vector.broadcast %1410 : f32 to vector<8x256xf32>
    %1412 = arith.mulf %1056, %1411 : vector<8x256xf32>
    %1413 = arith.addf %1409, %1412 : vector<8x256xf32>
    %c19_79 = arith.constant 19 : index
    %1414 = memref.load %arg4[%c19_79] : memref<64xf32, #tpu.memory_space<smem>>
    %1415 = vector.broadcast %1414 : f32 to vector<8x256xf32>
    %1416 = arith.mulf %1104, %1415 : vector<8x256xf32>
    %1417 = arith.addf %1413, %1416 : vector<8x256xf32>
    %c20_80 = arith.constant 20 : index
    %1418 = memref.load %arg4[%c20_80] : memref<64xf32, #tpu.memory_space<smem>>
    %1419 = vector.broadcast %1418 : f32 to vector<8x256xf32>
    %1420 = arith.mulf %1170, %1419 : vector<8x256xf32>
    %1421 = arith.addf %1417, %1420 : vector<8x256xf32>
    %c21_81 = arith.constant 21 : index
    %1422 = memref.load %arg4[%c21_81] : memref<64xf32, #tpu.memory_space<smem>>
    %1423 = vector.broadcast %1422 : f32 to vector<8x256xf32>
    %1424 = arith.mulf %1218, %1423 : vector<8x256xf32>
    %1425 = arith.addf %1421, %1424 : vector<8x256xf32>
    %c22_82 = arith.constant 22 : index
    %1426 = memref.load %arg4[%c22_82] : memref<64xf32, #tpu.memory_space<smem>>
    %1427 = vector.broadcast %1426 : f32 to vector<8x256xf32>
    %1428 = arith.mulf %1284, %1427 : vector<8x256xf32>
    %1429 = arith.addf %1425, %1428 : vector<8x256xf32>
    %c23_83 = arith.constant 23 : index
    %1430 = memref.load %arg4[%c23_83] : memref<64xf32, #tpu.memory_space<smem>>
    %1431 = vector.broadcast %1430 : f32 to vector<8x256xf32>
    %1432 = arith.mulf %1332, %1431 : vector<8x256xf32>
    %1433 = arith.addf %1429, %1432 : vector<8x256xf32>
    %1434 = arith.addf %5, %1433 : vector<8x256xf32>
    %c2_84 = arith.constant 2 : index
    %1435 = memref.load %arg5[%c2_84] : memref<8xf32, #tpu.memory_space<smem>>
    %1436 = vector.broadcast %1435 : f32 to vector<8x256xf32>
    %1437 = arith.addf %1434, %1436 : vector<8x256xf32>
    %c24_85 = arith.constant 24 : index
    %1438 = memref.load %arg4[%c24_85] : memref<64xf32, #tpu.memory_space<smem>>
    %1439 = vector.broadcast %1438 : f32 to vector<8x256xf32>
    %1440 = arith.mulf %942, %1439 : vector<8x256xf32>
    %c25_86 = arith.constant 25 : index
    %1441 = memref.load %arg4[%c25_86] : memref<64xf32, #tpu.memory_space<smem>>
    %1442 = vector.broadcast %1441 : f32 to vector<8x256xf32>
    %1443 = arith.mulf %990, %1442 : vector<8x256xf32>
    %1444 = arith.addf %1440, %1443 : vector<8x256xf32>
    %c26_87 = arith.constant 26 : index
    %1445 = memref.load %arg4[%c26_87] : memref<64xf32, #tpu.memory_space<smem>>
    %1446 = vector.broadcast %1445 : f32 to vector<8x256xf32>
    %1447 = arith.mulf %1056, %1446 : vector<8x256xf32>
    %1448 = arith.addf %1444, %1447 : vector<8x256xf32>
    %c27_88 = arith.constant 27 : index
    %1449 = memref.load %arg4[%c27_88] : memref<64xf32, #tpu.memory_space<smem>>
    %1450 = vector.broadcast %1449 : f32 to vector<8x256xf32>
    %1451 = arith.mulf %1104, %1450 : vector<8x256xf32>
    %1452 = arith.addf %1448, %1451 : vector<8x256xf32>
    %c28_89 = arith.constant 28 : index
    %1453 = memref.load %arg4[%c28_89] : memref<64xf32, #tpu.memory_space<smem>>
    %1454 = vector.broadcast %1453 : f32 to vector<8x256xf32>
    %1455 = arith.mulf %1170, %1454 : vector<8x256xf32>
    %1456 = arith.addf %1452, %1455 : vector<8x256xf32>
    %c29_90 = arith.constant 29 : index
    %1457 = memref.load %arg4[%c29_90] : memref<64xf32, #tpu.memory_space<smem>>
    %1458 = vector.broadcast %1457 : f32 to vector<8x256xf32>
    %1459 = arith.mulf %1218, %1458 : vector<8x256xf32>
    %1460 = arith.addf %1456, %1459 : vector<8x256xf32>
    %c30_91 = arith.constant 30 : index
    %1461 = memref.load %arg4[%c30_91] : memref<64xf32, #tpu.memory_space<smem>>
    %1462 = vector.broadcast %1461 : f32 to vector<8x256xf32>
    %1463 = arith.mulf %1284, %1462 : vector<8x256xf32>
    %1464 = arith.addf %1460, %1463 : vector<8x256xf32>
    %c31_92 = arith.constant 31 : index
    %1465 = memref.load %arg4[%c31_92] : memref<64xf32, #tpu.memory_space<smem>>
    %1466 = vector.broadcast %1465 : f32 to vector<8x256xf32>
    %1467 = arith.mulf %1332, %1466 : vector<8x256xf32>
    %1468 = arith.addf %1464, %1467 : vector<8x256xf32>
    %1469 = arith.addf %7, %1468 : vector<8x256xf32>
    %c3_93 = arith.constant 3 : index
    %1470 = memref.load %arg5[%c3_93] : memref<8xf32, #tpu.memory_space<smem>>
    %1471 = vector.broadcast %1470 : f32 to vector<8x256xf32>
    %1472 = arith.addf %1469, %1471 : vector<8x256xf32>
    %c32_94 = arith.constant 32 : index
    %1473 = memref.load %arg4[%c32_94] : memref<64xf32, #tpu.memory_space<smem>>
    %1474 = vector.broadcast %1473 : f32 to vector<8x256xf32>
    %1475 = arith.mulf %942, %1474 : vector<8x256xf32>
    %c33_95 = arith.constant 33 : index
    %1476 = memref.load %arg4[%c33_95] : memref<64xf32, #tpu.memory_space<smem>>
    %1477 = vector.broadcast %1476 : f32 to vector<8x256xf32>
    %1478 = arith.mulf %990, %1477 : vector<8x256xf32>
    %1479 = arith.addf %1475, %1478 : vector<8x256xf32>
    %c34_96 = arith.constant 34 : index
    %1480 = memref.load %arg4[%c34_96] : memref<64xf32, #tpu.memory_space<smem>>
    %1481 = vector.broadcast %1480 : f32 to vector<8x256xf32>
    %1482 = arith.mulf %1056, %1481 : vector<8x256xf32>
    %1483 = arith.addf %1479, %1482 : vector<8x256xf32>
    %c35_97 = arith.constant 35 : index
    %1484 = memref.load %arg4[%c35_97] : memref<64xf32, #tpu.memory_space<smem>>
    %1485 = vector.broadcast %1484 : f32 to vector<8x256xf32>
    %1486 = arith.mulf %1104, %1485 : vector<8x256xf32>
    %1487 = arith.addf %1483, %1486 : vector<8x256xf32>
    %c36_98 = arith.constant 36 : index
    %1488 = memref.load %arg4[%c36_98] : memref<64xf32, #tpu.memory_space<smem>>
    %1489 = vector.broadcast %1488 : f32 to vector<8x256xf32>
    %1490 = arith.mulf %1170, %1489 : vector<8x256xf32>
    %1491 = arith.addf %1487, %1490 : vector<8x256xf32>
    %c37_99 = arith.constant 37 : index
    %1492 = memref.load %arg4[%c37_99] : memref<64xf32, #tpu.memory_space<smem>>
    %1493 = vector.broadcast %1492 : f32 to vector<8x256xf32>
    %1494 = arith.mulf %1218, %1493 : vector<8x256xf32>
    %1495 = arith.addf %1491, %1494 : vector<8x256xf32>
    %c38_100 = arith.constant 38 : index
    %1496 = memref.load %arg4[%c38_100] : memref<64xf32, #tpu.memory_space<smem>>
    %1497 = vector.broadcast %1496 : f32 to vector<8x256xf32>
    %1498 = arith.mulf %1284, %1497 : vector<8x256xf32>
    %1499 = arith.addf %1495, %1498 : vector<8x256xf32>
    %c39_101 = arith.constant 39 : index
    %1500 = memref.load %arg4[%c39_101] : memref<64xf32, #tpu.memory_space<smem>>
    %1501 = vector.broadcast %1500 : f32 to vector<8x256xf32>
    %1502 = arith.mulf %1332, %1501 : vector<8x256xf32>
    %1503 = arith.addf %1499, %1502 : vector<8x256xf32>
    %1504 = arith.addf %9, %1503 : vector<8x256xf32>
    %c4_102 = arith.constant 4 : index
    %1505 = memref.load %arg5[%c4_102] : memref<8xf32, #tpu.memory_space<smem>>
    %1506 = vector.broadcast %1505 : f32 to vector<8x256xf32>
    %1507 = arith.addf %1504, %1506 : vector<8x256xf32>
    %c40_103 = arith.constant 40 : index
    %1508 = memref.load %arg4[%c40_103] : memref<64xf32, #tpu.memory_space<smem>>
    %1509 = vector.broadcast %1508 : f32 to vector<8x256xf32>
    %1510 = arith.mulf %942, %1509 : vector<8x256xf32>
    %c41_104 = arith.constant 41 : index
    %1511 = memref.load %arg4[%c41_104] : memref<64xf32, #tpu.memory_space<smem>>
    %1512 = vector.broadcast %1511 : f32 to vector<8x256xf32>
    %1513 = arith.mulf %990, %1512 : vector<8x256xf32>
    %1514 = arith.addf %1510, %1513 : vector<8x256xf32>
    %c42_105 = arith.constant 42 : index
    %1515 = memref.load %arg4[%c42_105] : memref<64xf32, #tpu.memory_space<smem>>
    %1516 = vector.broadcast %1515 : f32 to vector<8x256xf32>
    %1517 = arith.mulf %1056, %1516 : vector<8x256xf32>
    %1518 = arith.addf %1514, %1517 : vector<8x256xf32>
    %c43_106 = arith.constant 43 : index
    %1519 = memref.load %arg4[%c43_106] : memref<64xf32, #tpu.memory_space<smem>>
    %1520 = vector.broadcast %1519 : f32 to vector<8x256xf32>
    %1521 = arith.mulf %1104, %1520 : vector<8x256xf32>
    %1522 = arith.addf %1518, %1521 : vector<8x256xf32>
    %c44_107 = arith.constant 44 : index
    %1523 = memref.load %arg4[%c44_107] : memref<64xf32, #tpu.memory_space<smem>>
    %1524 = vector.broadcast %1523 : f32 to vector<8x256xf32>
    %1525 = arith.mulf %1170, %1524 : vector<8x256xf32>
    %1526 = arith.addf %1522, %1525 : vector<8x256xf32>
    %c45_108 = arith.constant 45 : index
    %1527 = memref.load %arg4[%c45_108] : memref<64xf32, #tpu.memory_space<smem>>
    %1528 = vector.broadcast %1527 : f32 to vector<8x256xf32>
    %1529 = arith.mulf %1218, %1528 : vector<8x256xf32>
    %1530 = arith.addf %1526, %1529 : vector<8x256xf32>
    %c46_109 = arith.constant 46 : index
    %1531 = memref.load %arg4[%c46_109] : memref<64xf32, #tpu.memory_space<smem>>
    %1532 = vector.broadcast %1531 : f32 to vector<8x256xf32>
    %1533 = arith.mulf %1284, %1532 : vector<8x256xf32>
    %1534 = arith.addf %1530, %1533 : vector<8x256xf32>
    %c47_110 = arith.constant 47 : index
    %1535 = memref.load %arg4[%c47_110] : memref<64xf32, #tpu.memory_space<smem>>
    %1536 = vector.broadcast %1535 : f32 to vector<8x256xf32>
    %1537 = arith.mulf %1332, %1536 : vector<8x256xf32>
    %1538 = arith.addf %1534, %1537 : vector<8x256xf32>
    %1539 = arith.addf %11, %1538 : vector<8x256xf32>
    %c5_111 = arith.constant 5 : index
    %1540 = memref.load %arg5[%c5_111] : memref<8xf32, #tpu.memory_space<smem>>
    %1541 = vector.broadcast %1540 : f32 to vector<8x256xf32>
    %1542 = arith.addf %1539, %1541 : vector<8x256xf32>
    %c48_112 = arith.constant 48 : index
    %1543 = memref.load %arg4[%c48_112] : memref<64xf32, #tpu.memory_space<smem>>
    %1544 = vector.broadcast %1543 : f32 to vector<8x256xf32>
    %1545 = arith.mulf %942, %1544 : vector<8x256xf32>
    %c49_113 = arith.constant 49 : index
    %1546 = memref.load %arg4[%c49_113] : memref<64xf32, #tpu.memory_space<smem>>
    %1547 = vector.broadcast %1546 : f32 to vector<8x256xf32>
    %1548 = arith.mulf %990, %1547 : vector<8x256xf32>
    %1549 = arith.addf %1545, %1548 : vector<8x256xf32>
    %c50_114 = arith.constant 50 : index
    %1550 = memref.load %arg4[%c50_114] : memref<64xf32, #tpu.memory_space<smem>>
    %1551 = vector.broadcast %1550 : f32 to vector<8x256xf32>
    %1552 = arith.mulf %1056, %1551 : vector<8x256xf32>
    %1553 = arith.addf %1549, %1552 : vector<8x256xf32>
    %c51_115 = arith.constant 51 : index
    %1554 = memref.load %arg4[%c51_115] : memref<64xf32, #tpu.memory_space<smem>>
    %1555 = vector.broadcast %1554 : f32 to vector<8x256xf32>
    %1556 = arith.mulf %1104, %1555 : vector<8x256xf32>
    %1557 = arith.addf %1553, %1556 : vector<8x256xf32>
    %c52_116 = arith.constant 52 : index
    %1558 = memref.load %arg4[%c52_116] : memref<64xf32, #tpu.memory_space<smem>>
    %1559 = vector.broadcast %1558 : f32 to vector<8x256xf32>
    %1560 = arith.mulf %1170, %1559 : vector<8x256xf32>
    %1561 = arith.addf %1557, %1560 : vector<8x256xf32>
    %c53_117 = arith.constant 53 : index
    %1562 = memref.load %arg4[%c53_117] : memref<64xf32, #tpu.memory_space<smem>>
    %1563 = vector.broadcast %1562 : f32 to vector<8x256xf32>
    %1564 = arith.mulf %1218, %1563 : vector<8x256xf32>
    %1565 = arith.addf %1561, %1564 : vector<8x256xf32>
    %c54_118 = arith.constant 54 : index
    %1566 = memref.load %arg4[%c54_118] : memref<64xf32, #tpu.memory_space<smem>>
    %1567 = vector.broadcast %1566 : f32 to vector<8x256xf32>
    %1568 = arith.mulf %1284, %1567 : vector<8x256xf32>
    %1569 = arith.addf %1565, %1568 : vector<8x256xf32>
    %c55_119 = arith.constant 55 : index
    %1570 = memref.load %arg4[%c55_119] : memref<64xf32, #tpu.memory_space<smem>>
    %1571 = vector.broadcast %1570 : f32 to vector<8x256xf32>
    %1572 = arith.mulf %1332, %1571 : vector<8x256xf32>
    %1573 = arith.addf %1569, %1572 : vector<8x256xf32>
    %1574 = arith.addf %13, %1573 : vector<8x256xf32>
    %c6_120 = arith.constant 6 : index
    %1575 = memref.load %arg5[%c6_120] : memref<8xf32, #tpu.memory_space<smem>>
    %1576 = vector.broadcast %1575 : f32 to vector<8x256xf32>
    %1577 = arith.addf %1574, %1576 : vector<8x256xf32>
    %c56_121 = arith.constant 56 : index
    %1578 = memref.load %arg4[%c56_121] : memref<64xf32, #tpu.memory_space<smem>>
    %1579 = vector.broadcast %1578 : f32 to vector<8x256xf32>
    %1580 = arith.mulf %942, %1579 : vector<8x256xf32>
    %c57_122 = arith.constant 57 : index
    %1581 = memref.load %arg4[%c57_122] : memref<64xf32, #tpu.memory_space<smem>>
    %1582 = vector.broadcast %1581 : f32 to vector<8x256xf32>
    %1583 = arith.mulf %990, %1582 : vector<8x256xf32>
    %1584 = arith.addf %1580, %1583 : vector<8x256xf32>
    %c58_123 = arith.constant 58 : index
    %1585 = memref.load %arg4[%c58_123] : memref<64xf32, #tpu.memory_space<smem>>
    %1586 = vector.broadcast %1585 : f32 to vector<8x256xf32>
    %1587 = arith.mulf %1056, %1586 : vector<8x256xf32>
    %1588 = arith.addf %1584, %1587 : vector<8x256xf32>
    %c59_124 = arith.constant 59 : index
    %1589 = memref.load %arg4[%c59_124] : memref<64xf32, #tpu.memory_space<smem>>
    %1590 = vector.broadcast %1589 : f32 to vector<8x256xf32>
    %1591 = arith.mulf %1104, %1590 : vector<8x256xf32>
    %1592 = arith.addf %1588, %1591 : vector<8x256xf32>
    %c60_125 = arith.constant 60 : index
    %1593 = memref.load %arg4[%c60_125] : memref<64xf32, #tpu.memory_space<smem>>
    %1594 = vector.broadcast %1593 : f32 to vector<8x256xf32>
    %1595 = arith.mulf %1170, %1594 : vector<8x256xf32>
    %1596 = arith.addf %1592, %1595 : vector<8x256xf32>
    %c61_126 = arith.constant 61 : index
    %1597 = memref.load %arg4[%c61_126] : memref<64xf32, #tpu.memory_space<smem>>
    %1598 = vector.broadcast %1597 : f32 to vector<8x256xf32>
    %1599 = arith.mulf %1218, %1598 : vector<8x256xf32>
    %1600 = arith.addf %1596, %1599 : vector<8x256xf32>
    %c62_127 = arith.constant 62 : index
    %1601 = memref.load %arg4[%c62_127] : memref<64xf32, #tpu.memory_space<smem>>
    %1602 = vector.broadcast %1601 : f32 to vector<8x256xf32>
    %1603 = arith.mulf %1284, %1602 : vector<8x256xf32>
    %1604 = arith.addf %1600, %1603 : vector<8x256xf32>
    %c63_128 = arith.constant 63 : index
    %1605 = memref.load %arg4[%c63_128] : memref<64xf32, #tpu.memory_space<smem>>
    %1606 = vector.broadcast %1605 : f32 to vector<8x256xf32>
    %1607 = arith.mulf %1332, %1606 : vector<8x256xf32>
    %1608 = arith.addf %1604, %1607 : vector<8x256xf32>
    %1609 = arith.addf %15, %1608 : vector<8x256xf32>
    %c7_129 = arith.constant 7 : index
    %1610 = memref.load %arg5[%c7_129] : memref<8xf32, #tpu.memory_space<smem>>
    %1611 = vector.broadcast %1610 : f32 to vector<8x256xf32>
    %1612 = arith.addf %1609, %1611 : vector<8x256xf32>
    %1613 = vector.shape_cast %1367 : vector<8x256xf32> to vector<8x1x256xf32>
    %1614 = vector.shape_cast %1402 : vector<8x256xf32> to vector<8x1x256xf32>
    %1615 = vector.shape_cast %1437 : vector<8x256xf32> to vector<8x1x256xf32>
    %1616 = vector.shape_cast %1472 : vector<8x256xf32> to vector<8x1x256xf32>
    %1617 = vector.shape_cast %1507 : vector<8x256xf32> to vector<8x1x256xf32>
    %1618 = vector.shape_cast %1542 : vector<8x256xf32> to vector<8x1x256xf32>
    %1619 = vector.shape_cast %1577 : vector<8x256xf32> to vector<8x1x256xf32>
    %1620 = vector.shape_cast %1612 : vector<8x256xf32> to vector<8x1x256xf32>
    %1621 = tpu.concatenate %1613, %1614, %1615, %1616, %1617, %1618, %1619, %1620 in 1 : vector<8x1x256xf32>, vector<8x1x256xf32>, vector<8x1x256xf32>, vector<8x1x256xf32>, vector<8x1x256xf32>, vector<8x1x256xf32>, vector<8x1x256xf32>, vector<8x1x256xf32> -> vector<8x8x256xf32>
    %c0_130 = arith.constant 0 : index
    %c0_131 = arith.constant 0 : index
    %c0_132 = arith.constant 0 : index
    %c0_133 = arith.constant 0 : index
    %1622 = vector.load %arg14[%c0_130, %c0_131, %c0_132, %c0_133] : memref<1x8x8x256xf32, #tpu.memory_space<vmem>>, vector<1x8x8x256xf32>
    %1623 = vector.shape_cast %1622 : vector<1x8x8x256xf32> to vector<8x8x256xf32>
    %1624 = vector.shape_cast %1621 : vector<8x8x256xf32> to vector<1x8x8x256xf32>
    tpu.vector_store %arg14[%c0_130, %c0_131, %c0_132, %c0_133], %1624 {strides = array<i32>} : memref<1x8x8x256xf32, #tpu.memory_space<vmem>>, vector<1x8x8x256xf32>,
    return
  }
  func.func @transform_0(%arg0: i32, %arg1: i32) -> i32 {
    %c0_i32 = arith.constant 0 : i32
    %c0_i32_0 = arith.constant 0 : i32
    return %c0_i32 : i32
  }
  func.func @transform_1(%arg0: i32, %arg1: i32) -> i32 {
    %c0_i32 = arith.constant 0 : i32
    %c0_i32_0 = arith.constant 0 : i32
    return %c0_i32 : i32
  }
  func.func @transform_2(%arg0: i32, %arg1: i32) -> i32 {
    %c0_i32 = arith.constant 0 : i32
    %c0_i32_0 = arith.constant 0 : i32
    return %c0_i32 : i32
  }
  func.func @transform_3(%arg0: i32, %arg1: i32) -> i32 {
    %c0_i32 = arith.constant 0 : i32
    %c0_i32_0 = arith.constant 0 : i32
    return %c0_i32 : i32
  }
  func.func @transform_4(%arg0: i32, %arg1: i32) -> (i32, i32, i32) {
    %c0_i32 = arith.constant 0 : i32
    %0 = arith.addi %c0_i32, %arg1 : i32
    %c0_i32_0 = arith.constant 0 : i32
    %c0_i32_1 = arith.constant 0 : i32
    return %arg0, %c0_i32_0, %0 : i32, i32, i32
  }
  func.func @transform_5(%arg0: i32, %arg1: i32) -> (i32, i32, i32) {
    %c1_i32 = arith.constant 1 : i32
    %0 = arith.addi %c1_i32, %arg1 : i32
    %c0_i32 = arith.constant 0 : i32
    %c0_i32_0 = arith.constant 0 : i32
    return %arg0, %c0_i32, %0 : i32, i32, i32
  }
  func.func @transform_6(%arg0: i32, %arg1: i32) -> (i32, i32, i32) {
    %c2_i32 = arith.constant 2 : i32
    %0 = arith.addi %c2_i32, %arg1 : i32
    %c0_i32 = arith.constant 0 : i32
    %c0_i32_0 = arith.constant 0 : i32
    return %arg0, %c0_i32, %0 : i32, i32, i32
  }
  func.func @transform_7(%arg0: i32, %arg1: i32) -> (i32, i32, i32) {
    %c3_i32 = arith.constant 3 : i32
    %0 = arith.addi %c3_i32, %arg1 : i32
    %c0_i32 = arith.constant 0 : i32
    %c0_i32_0 = arith.constant 0 : i32
    return %arg0, %c0_i32, %0 : i32, i32, i32
  }
  func.func @transform_8(%arg0: i32, %arg1: i32) -> (i32, i32, i32) {
    %c4_i32 = arith.constant 4 : i32
    %0 = arith.addi %c4_i32, %arg1 : i32
    %c0_i32 = arith.constant 0 : i32
    %c0_i32_0 = arith.constant 0 : i32
    return %arg0, %c0_i32, %0 : i32, i32, i32
  }
  func.func @transform_9(%arg0: i32, %arg1: i32) -> (i32, i32, i32) {
    %c5_i32 = arith.constant 5 : i32
    %0 = arith.addi %c5_i32, %arg1 : i32
    %c0_i32 = arith.constant 0 : i32
    %c0_i32_0 = arith.constant 0 : i32
    return %arg0, %c0_i32, %0 : i32, i32, i32
  }
  func.func @transform_10(%arg0: i32, %arg1: i32) -> (i32, i32, i32) {
    %c6_i32 = arith.constant 6 : i32
    %0 = arith.addi %c6_i32, %arg1 : i32
    %c0_i32 = arith.constant 0 : i32
    %c0_i32_0 = arith.constant 0 : i32
    return %arg0, %c0_i32, %0 : i32, i32, i32
  }
  func.func @transform_11(%arg0: i32, %arg1: i32) -> (i32, i32, i32) {
    %c7_i32 = arith.constant 7 : i32
    %0 = arith.addi %c7_i32, %arg1 : i32
    %c0_i32 = arith.constant 0 : i32
    %c0_i32_0 = arith.constant 0 : i32
    return %arg0, %c0_i32, %0 : i32, i32, i32
  }
  func.func @transform_12(%arg0: i32, %arg1: i32) -> (i32, i32, i32, i32) {
    %c0_i32 = arith.constant 0 : i32
    %c0_i32_0 = arith.constant 0 : i32
    %c0_i32_1 = arith.constant 0 : i32
    return %arg0, %c0_i32, %c0_i32_0, %arg1 : i32, i32, i32, i32
  }
}

</mosaic_0001>

<llo_original>
// kernel: tpu_custom_call.1
$region0: #{tpu_custom_call.1}
  #allocation0 [shape = 'u32[]', space=smem, size = 0x4, offset = 0x4, fixed_abs, tag = 'smem constant byte address 0x4 - core index']
  #allocation1 [shape = 'u32[144,128]{1,0:T(1,128)}', space=vmem, size = 0x12000, scoped, tag = 'internal scratch']
  %s0 = inlined_call_operand.hbm [shape: f32[192], index: 0, kind: input, shape index: {}]
  %s1 = inlined_call_operand.vmem [shape: f32[24], index: 1, kind: input, shape index: {}]
  %s2 = inlined_call_operand.vmem [shape: f32[64], index: 2, kind: input, shape index: {}]
  %s3 = inlined_call_operand.vmem [shape: f32[8], index: 3, kind: input, shape index: {}]
  %s4 = inlined_call_operand.hbm [shape: f32[2,8,2048], index: 4, kind: input, shape index: {}]
  %s5 = inlined_call_operand.hbm [shape: f32[2,8,2048], index: 5, kind: input, shape index: {}]
  %s6 = inlined_call_operand.hbm [shape: f32[2,8,2048], index: 6, kind: input, shape index: {}]
  %s7 = inlined_call_operand.hbm [shape: f32[2,8,2048], index: 7, kind: input, shape index: {}]
  %s8 = inlined_call_operand.hbm [shape: f32[2,8,2048], index: 8, kind: input, shape index: {}]
  %s9 = inlined_call_operand.hbm [shape: f32[2,8,2048], index: 9, kind: input, shape index: {}]
  %s10 = inlined_call_operand.hbm [shape: f32[2,8,2048], index: 10, kind: input, shape index: {}]
  %s11 = inlined_call_operand.hbm [shape: f32[2,8,2048], index: 11, kind: input, shape index: {}]
  %s12 = inlined_call_operand.hbm [shape: f32[2,8,8,256], index: 12, kind: output, shape index: {}]
  %s13 = sld [smem:[#allocation0]]
  $region129: #{tpu_custom_call.1} parent=0
    _
  %s15 = ssub.s32 1, %s13
  %s16 = scalar_select 0, %s15, %s13
  $region1: #{tpu_custom_call.1} parent=0
    #allocation2 [shape = 'u8[1024]{0}', space=smem, size = 0x400, scoped, tag = 'input window, operand 0, single buffered']
    #allocation3 [shape = 's32[2]{0}', space=sflag, size = 0x8, scoped, tag = 'scoped memory for tpu_custom_call.1']
    #allocation4 [shape = 's32[2]{0}', space=sflag, size = 0x8, scoped, tag = 'scoped memory for tpu_custom_call.1']
    #allocation5 [shape = 's32[2]{0}', space=sflag, size = 0x8, scoped, tag = 'scoped memory for tpu_custom_call.1']
    #allocation6 [shape = 's32[2]{0}', space=sflag, size = 0x8, scoped, tag = 'scoped memory for tpu_custom_call.1']
    #allocation7 [shape = 'u8[512]{0}', space=smem, size = 0x200, scoped, tag = 'input window, operand 1, single buffered']
    #allocation8 [shape = 'u8[512]{0}', space=smem, size = 0x200, scoped, tag = 'input window, operand 2, single buffered']
    #allocation9 [shape = 's32[1]{0}', space=sflag, size = 0x4, scoped, tag = 'scoped memory for tpu_custom_call.1']
    #allocation10 [shape = 'u8[512]{0}', space=smem, size = 0x200, scoped, tag = 'input window, operand 3, single buffered']
    #allocation11 [shape = 'u8[16384]{0}', space=vmem, size = 0x4000, scoped, tag = 'input window, operand 4']
    #allocation12 [shape = 'u8[16384]{0}', space=vmem, size = 0x4000, scoped, tag = 'input window, operand 5']
    #allocation13 [shape = 's32[2]{0}', space=sflag, size = 0x8, scoped, tag = 'scoped memory for tpu_custom_call.1']
    #allocation14 [shape = 'u8[16384]{0}', space=vmem, size = 0x4000, scoped, tag = 'input window, operand 6']
    #allocation15 [shape = 'u8[16384]{0}', space=vmem, size = 0x4000, scoped, tag = 'input window, operand 7']
    #allocation16 [shape = 's32[2]{0}', space=sflag, size = 0x8, scoped, tag = 'scoped memory for tpu_custom_call.1']
    #allocation17 [shape = 'u8[16384]{0}', space=vmem, size = 0x4000, scoped, tag = 'input window, operand 8']
    #allocation18 [shape = 'u8[16384]{0}', space=vmem, size = 0x4000, scoped, tag = 'input window, operand 9']
    #allocation19 [shape = 's32[2]{0}', space=sflag, size = 0x8, scoped, tag = 'scoped memory for tpu_custom_call.1']
    #allocation20 [shape = 'u8[16384]{0}', space=vmem, size = 0x4000, scoped, tag = 'input window, operand 10']
    #allocation21 [shape = 'u8[16384]{0}', space=vmem, size = 0x4000, scoped, tag = 'input window, operand 11']
    #allocation22 [shape = 's32[2]{0}', space=sflag, size = 0x8, scoped, tag = 'scoped memory for tpu_custom_call.1']
    #allocation23 [shape = 'u8[131072]{0}', space=vmem, size = 0x20000, scoped, tag = 'output window, operand 0']
    %17 = vsyncpa [#allocation5], 0
    %18 = vsyncpa [#allocation6], 0
    %19 = vsyncpa [#allocation9], 0
    %20 = vsyncpa [#allocation3], 0
    %s21 = scalar_lea.sflag [#allocation3], 1
    %22 = vsyncpa %s21, 0
    %23 = vsyncpa [#allocation13], 0
    %s24 = scalar_lea.sflag [#allocation13], 1
    %25 = vsyncpa %s24, 0
    %26 = vsyncpa [#allocation16], 0
    %s27 = scalar_lea.sflag [#allocation16], 1
    %28 = vsyncpa %s27, 0
    %29 = vsyncpa [#allocation19], 0
    %s30 = scalar_lea.sflag [#allocation19], 1
    %31 = vsyncpa %s30, 0
    %32 = vsyncpa [#allocation22], 0
    %s33 = scalar_lea.sflag [#allocation22], 1
    %34 = vsyncpa %s33, 0
    %35 = vsyncpa [#allocation4], 0
    %s36 = scalar_lea.sflag [#allocation4], 1
    %37 = vsyncpa %s36, 0
    loop: start=0, step=1, limit=4
    $region2: #{tpu_custom_call.1} parent=1 // loop_pre_header
      _
    $region3: #{tpu_custom_call.1} parent=1 // loop_header
      %s39 = sphi 0, %s43
      %p40 = scmp.ge.s32.totalorder %s39, 4
      %s46 = sphi 0, %s58
      %s47 = sphi 0, %s54
      %s48 = sphi 0, %s46
      %s49 = sphi 0, %s47
      %s50 = sphi 0, %s48
      %s51 = sphi 0, %s49
      %s59 = sphi 0, %s59
      %s61 = sphi 0, %s59
      %s62 = sphi 0, %s61
      %s76 = sphi 0, %s62
      %s80 = sphi 0, %s80
      %s82 = sphi 0, %s80
      %s83 = sphi 0, %s82
      %s97 = sphi 0, %s83
      %s101 = sphi 0, %s101
      %s103 = sphi 0, %s101
      %s104 = sphi 0, %s103
      %s118 = sphi 0, %s104
      %s122 = sphi 0, %s122
      %s124 = sphi 0, %s122
      %s125 = sphi 0, %s124
      %s139 = sphi 0, %s125
      %s147 = sphi 0, %s149
      %s150 = sphi 0, %s147
      %s151 = sphi 0, %s150
      %s167 = sphi 0, %s151
      %s177 = sphi 0, %s179
      %s180 = sphi 0, %s177
      %s181 = sphi 0, %s180
      %s197 = sphi 0, %s181
      %s207 = sphi 0, %s209
      %s210 = sphi 0, %s207
      %s211 = sphi 0, %s210
      %s227 = sphi 0, %s211
      %s237 = sphi 0, %s239
      %s240 = sphi 0, %s237
      %s241 = sphi 0, %s240
      %s257 = sphi 0, %s241
      %s267 = sphi 0, %s269
      %s270 = sphi 0, %s267
      %s271 = sphi 0, %s270
      %s287 = sphi 0, %s271
      %s297 = sphi 0, %s299
      %s300 = sphi 0, %s297
      %s301 = sphi 0, %s300
      %s317 = sphi 0, %s301
      %s327 = sphi 0, %s329
      %s330 = sphi 0, %s327
      %s331 = sphi 0, %s330
      %s347 = sphi 0, %s331
      %s357 = sphi 0, %s359
      %s360 = sphi 0, %s357
      %s361 = sphi 0, %s360
      %s377 = sphi 0, %s361
      %s385 = sphi 0, %s387
      %s388 = sphi 0, %s385
      %s389 = sphi 0, %s388
      %s405 = sphi 0, %s389
    $region4: #{tpu_custom_call.1} parent=1 // loop_header_branch
      %42 = sbr.rel (%p40) target = $region8
    $region5: #{tpu_custom_call.1} parent=1 // loop_body
      %s44 = ssub.s32 %s39, 1
      %s45 = ssub.s32 %s39, 2
      %s52 = sadd.s32 1, %s47
      %p53 = scmp.ge.s32.totalorder %s52, 1
      %s54 = scalar_select %p53, 0, %s52
      %s55 = sadd.s32 1, %s46
      %s56 = scalar_select %p53, %s55, %s46
      %p57 = scmp.ge.s32.totalorder %s56, 2
      %s58 = scalar_select %p57, 0, %s56
      %s60 = sadd.s32 %s59, 1
      %p63 = scmp.eq.s32.totalorder %s39, 1
      %p64 = scmp.ne.s32.totalorder %s59, %s61
      %p65 = scmp.eq.s32.totalorder %s39, 0
      %p66 = por %p64, %p65
      %p67 = scmp.ne.s32.totalorder %s59, %s61
      %p68 = scmp.eq.s32.totalorder %s44, 1
      %p69 = por %p67, %p68
      %p70 = scmp.ne.s32.totalorder %s61, %s62
      %p71 = scmp.eq.s32.totalorder %s44, 0
      %p72 = por %p70, %p71
      %p73 = scmp.ne.s32.totalorder %s61, %s62
      %p74 = scmp.eq.s32.totalorder %s45, 1
      %p75 = por %p73, %p74
      %p77 = scmp.ne.s32.totalorder %s62, %s76
      %p78 = scmp.eq.s32.totalorder %s45, 0
      %p79 = por %p77, %p78
      %s81 = sadd.s32 %s80, 1
      %p84 = scmp.eq.s32.totalorder %s39, 1
      %p85 = scmp.ne.s32.totalorder %s80, %s82
      %p86 = scmp.eq.s32.totalorder %s39, 0
      %p87 = por %p85, %p86
      %p88 = scmp.ne.s32.totalorder %s80, %s82
      %p89 = scmp.eq.s32.totalorder %s44, 1
      %p90 = por %p88, %p89
      %p91 = scmp.ne.s32.totalorder %s82, %s83
      %p92 = scmp.eq.s32.totalorder %s44, 0
      %p93 = por %p91, %p92
      %p94 = scmp.ne.s32.totalorder %s82, %s83
      %p95 = scmp.eq.s32.totalorder %s45, 1
      %p96 = por %p94, %p95
      %p98 = scmp.ne.s32.totalorder %s83, %s97
      %p99 = scmp.eq.s32.totalorder %s45, 0
      %p100 = por %p98, %p99
      %s102 = sadd.s32 %s101, 1
      %p105 = scmp.eq.s32.totalorder %s39, 1
      %p106 = scmp.ne.s32.totalorder %s101, %s103
      %p107 = scmp.eq.s32.totalorder %s39, 0
      %p108 = por %p106, %p107
      %p109 = scmp.ne.s32.totalorder %s101, %s103
      %p110 = scmp.eq.s32.totalorder %s44, 1
      %p111 = por %p109, %p110
      %p112 = scmp.ne.s32.totalorder %s103, %s104
      %p113 = scmp.eq.s32.totalorder %s44, 0
      %p114 = por %p112, %p113
      %p115 = scmp.ne.s32.totalorder %s103, %s104
      %p116 = scmp.eq.s32.totalorder %s45, 1
      %p117 = por %p115, %p116
      %p119 = scmp.ne.s32.totalorder %s104, %s118
      %p120 = scmp.eq.s32.totalorder %s45, 0
      %p121 = por %p119, %p120
      %s123 = sadd.s32 %s122, 1
      %p126 = scmp.eq.s32.totalorder %s39, 1
      %p127 = scmp.ne.s32.totalorder %s122, %s124
      %p128 = scmp.eq.s32.totalorder %s39, 0
      %p129 = por %p127, %p128
      %p130 = scmp.ne.s32.totalorder %s122, %s124
      %p131 = scmp.eq.s32.totalorder %s44, 1
      %p132 = por %p130, %p131
      %p133 = scmp.ne.s32.totalorder %s124, %s125
      %p134 = scmp.eq.s32.totalorder %s44, 0
      %p135 = por %p133, %p134
      %p136 = scmp.ne.s32.totalorder %s124, %s125
      %p137 = scmp.eq.s32.totalorder %s45, 1
      %p138 = por %p136, %p137
      %p140 = scmp.ne.s32.totalorder %s125, %s139
      %p141 = scmp.eq.s32.totalorder %s45, 0
      %p142 = por %p140, %p141
      %s143 = ssub.s32 %s46, %s58
      %s144 = ssub.s32 %s47, %s54
      %s145 = sor.u32 %s143, %s144
      %p146 = scmp.eq.s32.totalorder %s145, 0
      %s148 = sadd.s32 %s147, 1
      %s149 = scalar_select %p146, %s147, %s148
      %p152 = pneg %p146
      %p153 = scmp.eq.s32.totalorder %s39, 1
      %p154 = por %p152, %p153
      %p155 = scmp.ne.s32.totalorder %s147, %s150
      %p156 = scmp.eq.s32.totalorder %s39, 0
      %p157 = por %p155, %p156
      %p158 = scmp.ne.s32.totalorder %s147, %s150
      %p159 = scmp.eq.s32.totalorder %s44, 1
      %p160 = por %p158, %p159
      %p161 = scmp.ne.s32.totalorder %s150, %s151
      %p162 = scmp.eq.s32.totalorder %s44, 0
      %p163 = por %p161, %p162
      %p164 = scmp.ne.s32.totalorder %s150, %s151
      %p165 = scmp.eq.s32.totalorder %s45, 1
      %p166 = por %p164, %p165
      %p168 = scmp.ne.s32.totalorder %s151, %s167
      %p169 = scmp.eq.s32.totalorder %s45, 0
      %p170 = por %p168, %p169
      %s171 = sadd.s32 %s47, 1
      %s172 = sadd.s32 %s54, 1
      %s173 = ssub.s32 %s46, %s58
      %s174 = ssub.s32 %s171, %s172
      %s175 = sor.u32 %s173, %s174
      %p176 = scmp.eq.s32.totalorder %s175, 0
      %s178 = sadd.s32 %s177, 1
      %s179 = scalar_select %p176, %s177, %s178
      %p182 = pneg %p176
      %p183 = scmp.eq.s32.totalorder %s39, 1
      %p184 = por %p182, %p183
      %p185 = scmp.ne.s32.totalorder %s177, %s180
      %p186 = scmp.eq.s32.totalorder %s39, 0
      %p187 = por %p185, %p186
      %p188 = scmp.ne.s32.totalorder %s177, %s180
      %p189 = scmp.eq.s32.totalorder %s44, 1
      %p190 = por %p188, %p189
      %p191 = scmp.ne.s32.totalorder %s180, %s181
      %p192 = scmp.eq.s32.totalorder %s44, 0
      %p193 = por %p191, %p192
      %p194 = scmp.ne.s32.totalorder %s180, %s181
      %p195 = scmp.eq.s32.totalorder %s45, 1
      %p196 = por %p194, %p195
      %p198 = scmp.ne.s32.totalorder %s181, %s197
      %p199 = scmp.eq.s32.totalorder %s45, 0
      %p200 = por %p198, %p199
      %s201 = sadd.s32 %s47, 2
      %s202 = sadd.s32 %s54, 2
      %s203 = ssub.s32 %s46, %s58
      %s204 = ssub.s32 %s201, %s202
      %s205 = sor.u32 %s203, %s204
      %p206 = scmp.eq.s32.totalorder %s205, 0
      %s208 = sadd.s32 %s207, 1
      %s209 = scalar_select %p206, %s207, %s208
      %p212 = pneg %p206
      %p213 = scmp.eq.s32.totalorder %s39, 1
      %p214 = por %p212, %p213
      %p215 = scmp.ne.s32.totalorder %s207, %s210
      %p216 = scmp.eq.s32.totalorder %s39, 0
      %p217 = por %p215, %p216
      %p218 = scmp.ne.s32.totalorder %s207, %s210
      %p219 = scmp.eq.s32.totalorder %s44, 1
      %p220 = por %p218, %p219
      %p221 = scmp.ne.s32.totalorder %s210, %s211
      %p222 = scmp.eq.s32.totalorder %s44, 0
      %p223 = por %p221, %p222
      %p224 = scmp.ne.s32.totalorder %s210, %s211
      %p225 = scmp.eq.s32.totalorder %s45, 1
      %p226 = por %p224, %p225
      %p228 = scmp.ne.s32.totalorder %s211, %s227
      %p229 = scmp.eq.s32.totalorder %s45, 0
      %p230 = por %p228, %p229
      %s231 = sadd.s32 %s47, 3
      %s232 = sadd.s32 %s54, 3
      %s233 = ssub.s32 %s46, %s58
      %s234 = ssub.s32 %s231, %s232
      %s235 = sor.u32 %s233, %s234
      %p236 = scmp.eq.s32.totalorder %s235, 0
      %s238 = sadd.s32 %s237, 1
      %s239 = scalar_select %p236, %s237, %s238
      %p242 = pneg %p236
      %p243 = scmp.eq.s32.totalorder %s39, 1
      %p244 = por %p242, %p243
      %p245 = scmp.ne.s32.totalorder %s237, %s240
      %p246 = scmp.eq.s32.totalorder %s39, 0
      %p247 = por %p245, %p246
      %p248 = scmp.ne.s32.totalorder %s237, %s240
      %p249 = scmp.eq.s32.totalorder %s44, 1
      %p250 = por %p248, %p249
      %p251 = scmp.ne.s32.totalorder %s240, %s241
      %p252 = scmp.eq.s32.totalorder %s44, 0
      %p253 = por %p251, %p252
      %p254 = scmp.ne.s32.totalorder %s240, %s241
      %p255 = scmp.eq.s32.totalorder %s45, 1
      %p256 = por %p254, %p255
      %p258 = scmp.ne.s32.totalorder %s241, %s257
      %p259 = scmp.eq.s32.totalorder %s45, 0
      %p260 = por %p258, %p259
      %s261 = sadd.s32 %s47, 4
      %s262 = sadd.s32 %s54, 4
      %s263 = ssub.s32 %s46, %s58
      %s264 = ssub.s32 %s261, %s262
      %s265 = sor.u32 %s263, %s264
      %p266 = scmp.eq.s32.totalorder %s265, 0
      %s268 = sadd.s32 %s267, 1
      %s269 = scalar_select %p266, %s267, %s268
      %p272 = pneg %p266
      %p273 = scmp.eq.s32.totalorder %s39, 1
      %p274 = por %p272, %p273
      %p275 = scmp.ne.s32.totalorder %s267, %s270
      %p276 = scmp.eq.s32.totalorder %s39, 0
      %p277 = por %p275, %p276
      %p278 = scmp.ne.s32.totalorder %s267, %s270
      %p279 = scmp.eq.s32.totalorder %s44, 1
      %p280 = por %p278, %p279
      %p281 = scmp.ne.s32.totalorder %s270, %s271
      %p282 = scmp.eq.s32.totalorder %s44, 0
      %p283 = por %p281, %p282
      %p284 = scmp.ne.s32.totalorder %s270, %s271
      %p285 = scmp.eq.s32.totalorder %s45, 1
      %p286 = por %p284, %p285
      %p288 = scmp.ne.s32.totalorder %s271, %s287
      %p289 = scmp.eq.s32.totalorder %s45, 0
      %p290 = por %p288, %p289
      %s291 = sadd.s32 %s47, 5
      %s292 = sadd.s32 %s54, 5
      %s293 = ssub.s32 %s46, %s58
      %s294 = ssub.s32 %s291, %s292
      %s295 = sor.u32 %s293, %s294
      %p296 = scmp.eq.s32.totalorder %s295, 0
      %s298 = sadd.s32 %s297, 1
      %s299 = scalar_select %p296, %s297, %s298
      %p302 = pneg %p296
      %p303 = scmp.eq.s32.totalorder %s39, 1
      %p304 = por %p302, %p303
      %p305 = scmp.ne.s32.totalorder %s297, %s300
      %p306 = scmp.eq.s32.totalorder %s39, 0
      %p307 = por %p305, %p306
      %p308 = scmp.ne.s32.totalorder %s297, %s300
      %p309 = scmp.eq.s32.totalorder %s44, 1
      %p310 = por %p308, %p309
      %p311 = scmp.ne.s32.totalorder %s300, %s301
      %p312 = scmp.eq.s32.totalorder %s44, 0
      %p313 = por %p311, %p312
      %p314 = scmp.ne.s32.totalorder %s300, %s301
      %p315 = scmp.eq.s32.totalorder %s45, 1
      %p316 = por %p314, %p315
      %p318 = scmp.ne.s32.totalorder %s301, %s317
      %p319 = scmp.eq.s32.totalorder %s45, 0
      %p320 = por %p318, %p319
      %s321 = sadd.s32 %s47, 6
      %s322 = sadd.s32 %s54, 6
      %s323 = ssub.s32 %s46, %s58
      %s324 = ssub.s32 %s321, %s322
      %s325 = sor.u32 %s323, %s324
      %p326 = scmp.eq.s32.totalorder %s325, 0
      %s328 = sadd.s32 %s327, 1
      %s329 = scalar_select %p326, %s327, %s328
      %p332 = pneg %p326
      %p333 = scmp.eq.s32.totalorder %s39, 1
      %p334 = por %p332, %p333
      %p335 = scmp.ne.s32.totalorder %s327, %s330
      %p336 = scmp.eq.s32.totalorder %s39, 0
      %p337 = por %p335, %p336
      %p338 = scmp.ne.s32.totalorder %s327, %s330
      %p339 = scmp.eq.s32.totalorder %s44, 1
      %p340 = por %p338, %p339
      %p341 = scmp.ne.s32.totalorder %s330, %s331
      %p342 = scmp.eq.s32.totalorder %s44, 0
      %p343 = por %p341, %p342
      %p344 = scmp.ne.s32.totalorder %s330, %s331
      %p345 = scmp.eq.s32.totalorder %s45, 1
      %p346 = por %p344, %p345
      %p348 = scmp.ne.s32.totalorder %s331, %s347
      %p349 = scmp.eq.s32.totalorder %s45, 0
      %p350 = por %p348, %p349
      %s351 = sadd.s32 %s47, 7
      %s352 = sadd.s32 %s54, 7
      %s353 = ssub.s32 %s46, %s58
      %s354 = ssub.s32 %s351, %s352
      %s355 = sor.u32 %s353, %s354
      %p356 = scmp.eq.s32.totalorder %s355, 0
      %s358 = sadd.s32 %s357, 1
      %s359 = scalar_select %p356, %s357, %s358
      %p362 = pneg %p356
      %p363 = scmp.eq.s32.totalorder %s39, 1
      %p364 = por %p362, %p363
      %p365 = scmp.ne.s32.totalorder %s357, %s360
      %p366 = scmp.eq.s32.totalorder %s39, 0
      %p367 = por %p365, %p366
      %p368 = scmp.ne.s32.totalorder %s357, %s360
      %p369 = scmp.eq.s32.totalorder %s44, 1
      %p370 = por %p368, %p369
      %p371 = scmp.ne.s32.totalorder %s360, %s361
      %p372 = scmp.eq.s32.totalorder %s44, 0
      %p373 = por %p371, %p372
      %p374 = scmp.ne.s32.totalorder %s360, %s361
      %p375 = scmp.eq.s32.totalorder %s45, 1
      %p376 = por %p374, %p375
      %p378 = scmp.ne.s32.totalorder %s361, %s377
      %p379 = scmp.eq.s32.totalorder %s45, 0
      %p380 = por %p378, %p379
      %s381 = ssub.s32 %s46, %s58
      %s382 = ssub.s32 %s47, %s54
      %s383 = sor.u32 %s381, %s382
      %p384 = scmp.eq.s32.totalorder %s383, 0
      %s386 = sadd.s32 %s385, 1
      %s387 = scalar_select %p384, %s385, %s386
      %p390 = pneg %p384
      %p391 = scmp.eq.s32.totalorder %s39, 1
      %p392 = por %p390, %p391
      %p393 = scmp.ne.s32.totalorder %s385, %s388
      %p394 = scmp.eq.s32.totalorder %s39, 0
      %p395 = por %p393, %p394
      %p396 = scmp.ne.s32.totalorder %s385, %s388
      %p397 = scmp.eq.s32.totalorder %s44, 1
      %p398 = por %p396, %p397
      %p399 = scmp.ne.s32.totalorder %s388, %s389
      %p400 = scmp.eq.s32.totalorder %s44, 0
      %p401 = por %p399, %p400
      %p402 = scmp.ne.s32.totalorder %s388, %s389
      %p403 = scmp.eq.s32.totalorder %s45, 1
      %p404 = por %p402, %p403
      %p406 = scmp.ne.s32.totalorder %s389, %s405
      %p407 = scmp.eq.s32.totalorder %s45, 0
      %p408 = por %p406, %p407
      %p409 = scmp.le.s32.totalorder 1, %s39
      %p410 = scmp.lt.s32.totalorder %s39, 3
      %p411 = pnand %p409, %p410
      %p412 = pneg %p411
      // Predicated region
      $region9: #{tpu_custom_call.1} parent=5 // pred_check
        _
      $region10: #{tpu_custom_call.1} parent=5 // pred_check_branch
        %414 = sbr.rel (%p411) target = $region12
      $region11: #{tpu_custom_call.1} parent=5 // pred_region
        %s415 = ssub.s32 %s39, 1
        // Predicated region
        $region13: #{tpu_custom_call.1} parent=11 // pred_check
          %p416 = pneg %p72
        $region14: #{tpu_custom_call.1} parent=11 // pred_check_branch
          %418 = sbr.rel (%p416) target = $region16
        $region15: #{tpu_custom_call.1} parent=11 // pred_region
          %s420 = ssub.s32 32, 32
          %421 = vsyncadd [#allocation5], %s420
          %424 = dma.hbm_to_smem %s0, 32, [#allocation2], [#allocation5]
        $region16: #{tpu_custom_call.1} parent=11 // pred_fallthru
          _
        // Predicated region
        $region17: #{tpu_custom_call.1} parent=11 // pred_check
          %p425 = pneg %p93
        $region18: #{tpu_custom_call.1} parent=11 // pred_check_branch
          %427 = sbr.rel (%p425) target = $region20
        $region19: #{tpu_custom_call.1} parent=11 // pred_region
          %s429 = ssub.s32 16, 16
          %430 = vsyncadd [#allocation6], %s429
          %s432 = sshll.u32 %s1, 4
          %s433 = int_to_ptr.vmem [resolvable:$true] %s432
          %435 = dma.vmem_to_smem %s433, 16, [#allocation7], [#allocation6]
        $region20: #{tpu_custom_call.1} parent=11 // pred_fallthru
          _
        // Predicated region
        $region21: #{tpu_custom_call.1} parent=11 // pred_check
          %p436 = pneg %p114
        $region22: #{tpu_custom_call.1} parent=11 // pred_check_branch
          %438 = sbr.rel (%p436) target = $region24
        $region23: #{tpu_custom_call.1} parent=11 // pred_region
          %s440 = ssub.s32 16, 16
          %441 = vsyncadd [#allocation9], %s440
          %s443 = sshll.u32 %s2, 4
          %s444 = int_to_ptr.vmem [resolvable:$true] %s443
          %446 = dma.vmem_to_smem %s444, 16, [#allocation8], [#allocation9]
        $region24: #{tpu_custom_call.1} parent=11 // pred_fallthru
          _
        // Predicated region
        $region25: #{tpu_custom_call.1} parent=11 // pred_check
          %p447 = pneg %p135
        $region26: #{tpu_custom_call.1} parent=11 // pred_check_branch
          %449 = sbr.rel (%p447) target = $region28
        $region27: #{tpu_custom_call.1} parent=11 // pred_region
          %s451 = ssub.s32 16, 16
          %452 = vsyncadd [#allocation9], %s451
          %s454 = sshll.u32 %s3, 4
          %s455 = int_to_ptr.vmem [resolvable:$true] %s454
          %457 = dma.vmem_to_smem %s455, 16, [#allocation10], [#allocation9]
        $region28: #{tpu_custom_call.1} parent=11 // pred_fallthru
          _
      $region12: #{tpu_custom_call.1} parent=5 // pred_fallthru
        _
      %p458 = scmp.lt.s32.totalorder %s39, 2
      // Predicated region
      $region29: #{tpu_custom_call.1} parent=5 // pred_check
        %p459 = pneg %p458
      $region30: #{tpu_custom_call.1} parent=5 // pred_check_branch
        %461 = sbr.rel (%p459) target = $region32
      $region31: #{tpu_custom_call.1} parent=5 // pred_region
        // Predicated region
        $region33: #{tpu_custom_call.1} parent=31 // pred_check
          %p462 = pneg %p157
        $region34: #{tpu_custom_call.1} parent=31 // pred_check_branch
          %464 = sbr.rel (%p462) target = $region36
        $region35: #{tpu_custom_call.1} parent=31 // pred_region
          %s465 = sand.u32 %s147, 1
          %s466 = scalar_lea.sflag [#allocation3], %s465
          %s467 = sand.u32 %s147, 1
          %s468 = smul.addr %s467, 16
          %s469 = scalar_lea.vmem [#allocation11], %s468
          %s470 = smul.u32 2, %s47
          %s472 = ssub.s32 256, 256
          %473 = vsyncadd %s466, %s472
          %s474 = smul.addr %s46, 16
          %s475 = sadd.s32 %s470, %s474
          %s476 = smul.addr %s475, 128
          %s477 = scalar_lea.hbm %s4, %s476
          %s479 = sshll.u32 %s469, 4
          %s480 = int_to_ptr.vmem [resolvable:$true] %s479
          %482 = dma.hbm_to_vmem [thread:$0]  %s477, 256, %s480, %s466
        $region36: #{tpu_custom_call.1} parent=31 // pred_fallthru
          _
        // Predicated region
        $region37: #{tpu_custom_call.1} parent=31 // pred_check
          %p483 = pneg %p187
        $region38: #{tpu_custom_call.1} parent=31 // pred_check_branch
          %485 = sbr.rel (%p483) target = $region40
        $region39: #{tpu_custom_call.1} parent=31 // pred_region
          %s486 = sand.u32 %s39, 1
          %s487 = scalar_lea.sflag [#allocation13], %s486
          %s488 = sand.u32 %s177, 1
          %s489 = smul.addr %s488, 16
          %s490 = scalar_lea.vmem [#allocation12], %s489
          %s491 = sadd.s32 %s47, 1
          %s492 = smul.u32 2, %s491
          %s494 = ssub.s32 256, 256
          %495 = vsyncadd %s487, %s494
          %s496 = smul.addr %s46, 16
          %s497 = sadd.s32 %s492, %s496
          %s498 = smul.addr %s497, 128
          %s499 = scalar_lea.hbm %s5, %s498
          %s501 = sshll.u32 %s490, 4
          %s502 = int_to_ptr.vmem [resolvable:$true] %s501
          %504 = dma.hbm_to_vmem [thread:$0]  %s499, 256, %s502, %s487
        $region40: #{tpu_custom_call.1} parent=31 // pred_fallthru
          _
        // Predicated region
        $region41: #{tpu_custom_call.1} parent=31 // pred_check
          %p505 = pneg %p217
        $region42: #{tpu_custom_call.1} parent=31 // pred_check_branch
          %507 = sbr.rel (%p505) target = $region44
        $region43: #{tpu_custom_call.1} parent=31 // pred_region
          %s508 = sand.u32 %s39, 1
          %s509 = scalar_lea.sflag [#allocation13], %s508
          %s510 = sand.u32 %s207, 1
          %s511 = smul.addr %s510, 16
          %s512 = scalar_lea.vmem [#allocation14], %s511
          %s513 = sadd.s32 %s47, 2
          %s514 = smul.u32 2, %s513
          %s516 = ssub.s32 256, 256
          %517 = vsyncadd %s509, %s516
          %s518 = smul.addr %s46, 16
          %s519 = sadd.s32 %s514, %s518
          %s520 = smul.addr %s519, 128
          %s521 = scalar_lea.hbm %s6, %s520
          %s523 = sshll.u32 %s512, 4
          %s524 = int_to_ptr.vmem [resolvable:$true] %s523
          %526 = dma.hbm_to_vmem [thread:$0]  %s521, 256, %s524, %s509
        $region44: #{tpu_custom_call.1} parent=31 // pred_fallthru
          _
        // Predicated region
        $region45: #{tpu_custom_call.1} parent=31 // pred_check
          %p527 = pneg %p247
        $region46: #{tpu_custom_call.1} parent=31 // pred_check_branch
          %529 = sbr.rel (%p527) target = $region48
        $region47: #{tpu_custom_call.1} parent=31 // pred_region
          %s530 = sand.u32 %s39, 1
          %s531 = scalar_lea.sflag [#allocation16], %s530
          %s532 = sand.u32 %s237, 1
          %s533 = smul.addr %s532, 16
          %s534 = scalar_lea.vmem [#allocation15], %s533
          %s535 = sadd.s32 %s47, 3
          %s536 = smul.u32 2, %s535
          %s538 = ssub.s32 256, 256
          %539 = vsyncadd %s531, %s538
          %s540 = smul.addr %s46, 16
          %s541 = sadd.s32 %s536, %s540
          %s542 = smul.addr %s541, 128
          %s543 = scalar_lea.hbm %s7, %s542
          %s545 = sshll.u32 %s534, 4
          %s546 = int_to_ptr.vmem [resolvable:$true] %s545
          %548 = dma.hbm_to_vmem [thread:$0]  %s543, 256, %s546, %s531
        $region48: #{tpu_custom_call.1} parent=31 // pred_fallthru
          _
        // Predicated region
        $region49: #{tpu_custom_call.1} parent=31 // pred_check
          %p549 = pneg %p277
        $region50: #{tpu_custom_call.1} parent=31 // pred_check_branch
          %551 = sbr.rel (%p549) target = $region52
        $region51: #{tpu_custom_call.1} parent=31 // pred_region
          %s552 = sand.u32 %s39, 1
          %s553 = scalar_lea.sflag [#allocation16], %s552
          %s554 = sand.u32 %s267, 1
          %s555 = smul.addr %s554, 16
          %s556 = scalar_lea.vmem [#allocation17], %s555
          %s557 = sadd.s32 %s47, 4
          %s558 = smul.u32 2, %s557
          %s560 = ssub.s32 256, 256
          %561 = vsyncadd %s553, %s560
          %s562 = smul.addr %s46, 16
          %s563 = sadd.s32 %s558, %s562
          %s564 = smul.addr %s563, 128
          %s565 = scalar_lea.hbm %s8, %s564
          %s567 = sshll.u32 %s556, 4
          %s568 = int_to_ptr.vmem [resolvable:$true] %s567
          %570 = dma.hbm_to_vmem [thread:$0]  %s565, 256, %s568, %s553
        $region52: #{tpu_custom_call.1} parent=31 // pred_fallthru
          _
        // Predicated region
        $region53: #{tpu_custom_call.1} parent=31 // pred_check
          %p571 = pneg %p307
        $region54: #{tpu_custom_call.1} parent=31 // pred_check_branch
          %573 = sbr.rel (%p571) target = $region56
        $region55: #{tpu_custom_call.1} parent=31 // pred_region
          %s574 = sand.u32 %s39, 1
          %s575 = scalar_lea.sflag [#allocation19], %s574
          %s576 = sand.u32 %s297, 1
          %s577 = smul.addr %s576, 16
          %s578 = scalar_lea.vmem [#allocation18], %s577
          %s579 = sadd.s32 %s47, 5
          %s580 = smul.u32 2, %s579
          %s582 = ssub.s32 256, 256
          %583 = vsyncadd %s575, %s582
          %s584 = smul.addr %s46, 16
          %s585 = sadd.s32 %s580, %s584
          %s586 = smul.addr %s585, 128
          %s587 = scalar_lea.hbm %s9, %s586
          %s589 = sshll.u32 %s578, 4
          %s590 = int_to_ptr.vmem [resolvable:$true] %s589
          %592 = dma.hbm_to_vmem [thread:$0]  %s587, 256, %s590, %s575
        $region56: #{tpu_custom_call.1} parent=31 // pred_fallthru
          _
        // Predicated region
        $region57: #{tpu_custom_call.1} parent=31 // pred_check
          %p593 = pneg %p337
        $region58: #{tpu_custom_call.1} parent=31 // pred_check_branch
          %595 = sbr.rel (%p593) target = $region60
        $region59: #{tpu_custom_call.1} parent=31 // pred_region
          %s596 = sand.u32 %s39, 1
          %s597 = scalar_lea.sflag [#allocation19], %s596
          %s598 = sand.u32 %s327, 1
          %s599 = smul.addr %s598, 16
          %s600 = scalar_lea.vmem [#allocation20], %s599
          %s601 = sadd.s32 %s47, 6
          %s602 = smul.u32 2, %s601
          %s604 = ssub.s32 256, 256
          %605 = vsyncadd %s597, %s604
          %s606 = smul.addr %s46, 16
          %s607 = sadd.s32 %s602, %s606
          %s608 = smul.addr %s607, 128
          %s609 = scalar_lea.hbm %s10, %s608
          %s611 = sshll.u32 %s600, 4
          %s612 = int_to_ptr.vmem [resolvable:$true] %s611
          %614 = dma.hbm_to_vmem [thread:$0]  %s609, 256, %s612, %s597
        $region60: #{tpu_custom_call.1} parent=31 // pred_fallthru
          _
        // Predicated region
        $region61: #{tpu_custom_call.1} parent=31 // pred_check
          %p615 = pneg %p367
        $region62: #{tpu_custom_call.1} parent=31 // pred_check_branch
          %617 = sbr.rel (%p615) target = $region64
        $region63: #{tpu_custom_call.1} parent=31 // pred_region
          %s618 = sand.u32 %s357, 1
          %s619 = scalar_lea.sflag [#allocation22], %s618
          %s620 = sand.u32 %s357, 1
          %s621 = smul.addr %s620, 16
          %s622 = scalar_lea.vmem [#allocation21], %s621
          %s623 = sadd.s32 %s47, 7
          %s624 = smul.u32 2, %s623
          %s626 = ssub.s32 256, 256
          %627 = vsyncadd %s619, %s626
          %s628 = smul.addr %s46, 16
          %s629 = sadd.s32 %s624, %s628
          %s630 = smul.addr %s629, 128
          %s631 = scalar_lea.hbm %s11, %s630
          %s633 = sshll.u32 %s622, 4
          %s634 = int_to_ptr.vmem [resolvable:$true] %s633
          %636 = dma.hbm_to_vmem [thread:$0]  %s631, 256, %s634, %s619
        $region64: #{tpu_custom_call.1} parent=31 // pred_fallthru
          _
      $region32: #{tpu_custom_call.1} parent=5 // pred_fallthru
        _
      %p637 = scmp.le.s32.totalorder 1, %s39
      %p638 = scmp.lt.s32.totalorder %s39, 3
      %p639 = pnand %p637, %p638
      %p640 = pneg %p639
      // Predicated region
      $region65: #{tpu_custom_call.1} parent=5 // pred_check
        _
      $region66: #{tpu_custom_call.1} parent=5 // pred_check_branch
        %642 = sbr.rel (%p639) target = $region68
      $region67: #{tpu_custom_call.1} parent=5 // pred_region
        %s643 = ssub.s32 %s39, 1
        // Predicated region
        $region69: #{tpu_custom_call.1} parent=67 // pred_check
          %p644 = pneg %p72
        $region70: #{tpu_custom_call.1} parent=67 // pred_check_branch
          %646 = sbr.rel (%p644) target = $region72
        $region71: #{tpu_custom_call.1} parent=67 // pred_region
          %647 = dma.done [#allocation5], 32
        $region72: #{tpu_custom_call.1} parent=67 // pred_fallthru
          _
        // Predicated region
        $region73: #{tpu_custom_call.1} parent=67 // pred_check
          %p648 = pneg %p93
        $region74: #{tpu_custom_call.1} parent=67 // pred_check_branch
          %650 = sbr.rel (%p648) target = $region76
        $region75: #{tpu_custom_call.1} parent=67 // pred_region
          %651 = dma.done [#allocation6], 16
        $region76: #{tpu_custom_call.1} parent=67 // pred_fallthru
          _
        // Predicated region
        $region77: #{tpu_custom_call.1} parent=67 // pred_check
          %p652 = pneg %p114
        $region78: #{tpu_custom_call.1} parent=67 // pred_check_branch
          %654 = sbr.rel (%p652) target = $region80
        $region79: #{tpu_custom_call.1} parent=67 // pred_region
          %655 = dma.done [#allocation9], 16
        $region80: #{tpu_custom_call.1} parent=67 // pred_fallthru
          _
        // Predicated region
        $region81: #{tpu_custom_call.1} parent=67 // pred_check
          %p656 = pneg %p135
        $region82: #{tpu_custom_call.1} parent=67 // pred_check_branch
          %658 = sbr.rel (%p656) target = $region84
        $region83: #{tpu_custom_call.1} parent=67 // pred_region
          %659 = dma.done [#allocation9], 16
        $region84: #{tpu_custom_call.1} parent=67 // pred_fallthru
          _
        %s660 = sand.u32 %s150, 1
        %s661 = scalar_lea.sflag [#allocation3], %s660
        %s662 = sand.u32 %s150, 1
        %s663 = smul.addr %s662, 16
        %s664 = scalar_lea.vmem [#allocation11], %s663
        // Predicated region
        $region85: #{tpu_custom_call.1} parent=67 // pred_check
          %p665 = pneg %p163
        $region86: #{tpu_custom_call.1} parent=67 // pred_check_branch
          %667 = sbr.rel (%p665) target = $region88
        $region87: #{tpu_custom_call.1} parent=67 // pred_region
          %668 = dma.done %s661, 256
        $region88: #{tpu_custom_call.1} parent=67 // pred_fallthru
          _
        %s669 = sand.u32 %s44, 1
        %s670 = scalar_lea.sflag [#allocation13], %s669
        %s671 = sand.u32 %s180, 1
        %s672 = smul.addr %s671, 16
        %s673 = scalar_lea.vmem [#allocation12], %s672
        // Predicated region
        $region89: #{tpu_custom_call.1} parent=67 // pred_check
          %p674 = pneg %p193
        $region90: #{tpu_custom_call.1} parent=67 // pred_check_branch
          %676 = sbr.rel (%p674) target = $region92
        $region91: #{tpu_custom_call.1} parent=67 // pred_region
          %677 = dma.done %s670, 256
        $region92: #{tpu_custom_call.1} parent=67 // pred_fallthru
          _
        %s678 = sand.u32 %s44, 1
        %s679 = scalar_lea.sflag [#allocation13], %s678
        %s680 = sand.u32 %s210, 1
        %s681 = smul.addr %s680, 16
        %s682 = scalar_lea.vmem [#allocation14], %s681
        // Predicated region
        $region93: #{tpu_custom_call.1} parent=67 // pred_check
          %p683 = pneg %p223
        $region94: #{tpu_custom_call.1} parent=67 // pred_check_branch
          %685 = sbr.rel (%p683) target = $region96
        $region95: #{tpu_custom_call.1} parent=67 // pred_region
          %686 = dma.done %s679, 256
        $region96: #{tpu_custom_call.1} parent=67 // pred_fallthru
          _
        %s687 = sand.u32 %s44, 1
        %s688 = scalar_lea.sflag [#allocation16], %s687
        %s689 = sand.u32 %s240, 1
        %s690 = smul.addr %s689, 16
        %s691 = scalar_lea.vmem [#allocation15], %s690
        // Predicated region
        $region97: #{tpu_custom_call.1} parent=67 // pred_check
          %p692 = pneg %p253
        $region98: #{tpu_custom_call.1} parent=67 // pred_check_branch
          %694 = sbr.rel (%p692) target = $region100
        $region99: #{tpu_custom_call.1} parent=67 // pred_region
          %695 = dma.done %s688, 256
        $region100: #{tpu_custom_call.1} parent=67 // pred_fallthru
          _
        %s696 = sand.u32 %s44, 1
        %s697 = scalar_lea.sflag [#allocation16], %s696
        %s698 = sand.u32 %s270, 1
        %s699 = smul.addr %s698, 16
        %s700 = scalar_lea.vmem [#allocation17], %s699
        // Predicated region
        $region101: #{tpu_custom_call.1} parent=67 // pred_check
          %p701 = pneg %p283
        $region102: #{tpu_custom_call.1} parent=67 // pred_check_branch
          %703 = sbr.rel (%p701) target = $region104
        $region103: #{tpu_custom_call.1} parent=67 // pred_region
          %704 = dma.done %s697, 256
        $region104: #{tpu_custom_call.1} parent=67 // pred_fallthru
          _
        %s705 = sand.u32 %s44, 1
        %s706 = scalar_lea.sflag [#allocation19], %s705
        %s707 = sand.u32 %s300, 1
        %s708 = smul.addr %s707, 16
        %s709 = scalar_lea.vmem [#allocation18], %s708
        // Predicated region
        $region105: #{tpu_custom_call.1} parent=67 // pred_check
          %p710 = pneg %p313
        $region106: #{tpu_custom_call.1} parent=67 // pred_check_branch
          %712 = sbr.rel (%p710) target = $region108
        $region107: #{tpu_custom_call.1} parent=67 // pred_region
          %713 = dma.done %s706, 256
        $region108: #{tpu_custom_call.1} parent=67 // pred_fallthru
          _
        %s714 = sand.u32 %s44, 1
        %s715 = scalar_lea.sflag [#allocation19], %s714
        %s716 = sand.u32 %s330, 1
        %s717 = smul.addr %s716, 16
        %s718 = scalar_lea.vmem [#allocation20], %s717
        // Predicated region
        $region109: #{tpu_custom_call.1} parent=67 // pred_check
          %p719 = pneg %p343
        $region110: #{tpu_custom_call.1} parent=67 // pred_check_branch
          %721 = sbr.rel (%p719) target = $region112
        $region111: #{tpu_custom_call.1} parent=67 // pred_region
          %722 = dma.done %s715, 256
        $region112: #{tpu_custom_call.1} parent=67 // pred_fallthru
          _
        %s723 = sand.u32 %s360, 1
        %s724 = scalar_lea.sflag [#allocation22], %s723
        %s725 = sand.u32 %s360, 1
        %s726 = smul.addr %s725, 16
        %s727 = scalar_lea.vmem [#allocation21], %s726
        // Predicated region
        $region113: #{tpu_custom_call.1} parent=67 // pred_check
          %p728 = pneg %p373
        $region114: #{tpu_custom_call.1} parent=67 // pred_check_branch
          %730 = sbr.rel (%p728) target = $region116
        $region115: #{tpu_custom_call.1} parent=67 // pred_region
          %731 = dma.done %s724, 256
        $region116: #{tpu_custom_call.1} parent=67 // pred_fallthru
          _
        %732 = sfence
        %p733 = pneg %p72
        %p734 = pneg %p69
        %p735 = pneg %p93
        %p736 = pneg %p90
        %p737 = pneg %p114
        %p738 = pneg %p111
        %p739 = pneg %p135
        %p740 = pneg %p132
        %s741 = sand.u32 %s150, 1
        %s742 = scalar_lea.sflag [#allocation3], %s741
        %s743 = sand.u32 %s150, 1
        %s744 = smul.addr %s743, 16
        %s745 = scalar_lea.vmem [#allocation11], %s744
        %p746 = pneg %p163
        %p747 = pneg %p160
        %s748 = sand.u32 %s44, 1
        %s749 = scalar_lea.sflag [#allocation13], %s748
        %s750 = sand.u32 %s180, 1
        %s751 = smul.addr %s750, 16
        %s752 = scalar_lea.vmem [#allocation12], %s751
        %p753 = pneg %p193
        %p754 = pneg %p190
        %s755 = sand.u32 %s44, 1
        %s756 = scalar_lea.sflag [#allocation13], %s755
        %s757 = sand.u32 %s210, 1
        %s758 = smul.addr %s757, 16
        %s759 = scalar_lea.vmem [#allocation14], %s758
        %p760 = pneg %p223
        %p761 = pneg %p220
        %s762 = sand.u32 %s44, 1
        %s763 = scalar_lea.sflag [#allocation16], %s762
        %s764 = sand.u32 %s240, 1
        %s765 = smul.addr %s764, 16
        %s766 = scalar_lea.vmem [#allocation15], %s765
        %p767 = pneg %p253
        %p768 = pneg %p250
        %s769 = sand.u32 %s44, 1
        %s770 = scalar_lea.sflag [#allocation16], %s769
        %s771 = sand.u32 %s270, 1
        %s772 = smul.addr %s771, 16
        %s773 = scalar_lea.vmem [#allocation17], %s772
        %p774 = pneg %p283
        %p775 = pneg %p280
        %s776 = sand.u32 %s44, 1
        %s777 = scalar_lea.sflag [#allocation19], %s776
        %s778 = sand.u32 %s300, 1
        %s779 = smul.addr %s778, 16
        %s780 = scalar_lea.vmem [#allocation18], %s779
        %p781 = pneg %p313
        %p782 = pneg %p310
        %s783 = sand.u32 %s44, 1
        %s784 = scalar_lea.sflag [#allocation19], %s783
        %s785 = sand.u32 %s330, 1
        %s786 = smul.addr %s785, 16
        %s787 = scalar_lea.vmem [#allocation20], %s786
        %p788 = pneg %p343
        %p789 = pneg %p340
        %s790 = sand.u32 %s360, 1
        %s791 = scalar_lea.sflag [#allocation22], %s790
        %s792 = sand.u32 %s360, 1
        %s793 = smul.addr %s792, 16
        %s794 = scalar_lea.vmem [#allocation21], %s793
        %p795 = pneg %p373
        %p796 = pneg %p370
        %p797 = pneg %p401
        %p798 = pneg %p398
        %s799 = sand.u32 %s388, 1
        %s800 = scalar_lea.sflag [#allocation4], %s799
        %s801 = sand.u32 %s388, 1
        %s802 = smul.addr %s801, 128
        %s803 = scalar_lea.vmem [#allocation23], %s802
        %s804 = smul.u32 2, %s49
        %s805 = sadd.s32 %s49, 1
        %s806 = smul.u32 2, %s805
        %s807 = sadd.s32 %s49, 2
        %s808 = smul.u32 2, %s807
        %s809 = sadd.s32 %s49, 3
        %s810 = smul.u32 2, %s809
        %s811 = sadd.s32 %s49, 4
        %s812 = smul.u32 2, %s811
        %s813 = sadd.s32 %s49, 5
        %s814 = smul.u32 2, %s813
        %s815 = sadd.s32 %s49, 6
        %s816 = smul.u32 2, %s815
        %s817 = sadd.s32 %s49, 7
        %s818 = smul.u32 2, %s817
        %s819 = smul.u32 2, %s49
        %v820 = vld [vmem:[%s664] sm:$0xff]
        %v821 = vld [vmem:[%s664 + $0x8] sm:$0xff]
        %v822 = vld [vmem:[%s673] sm:$0xff]
        %v823 = vld [vmem:[%s673 + $0x8] sm:$0xff]
        %v824 = vld [vmem:[%s682] sm:$0xff]
        %v825 = vld [vmem:[%s682 + $0x8] sm:$0xff]
        %v826 = vld [vmem:[%s691] sm:$0xff]
        %v827 = vld [vmem:[%s691 + $0x8] sm:$0xff]
        %v828 = vld [vmem:[%s700] sm:$0xff]
        %v829 = vld [vmem:[%s700 + $0x8] sm:$0xff]
        %v830 = vld [vmem:[%s709] sm:$0xff]
        %v831 = vld [vmem:[%s709 + $0x8] sm:$0xff]
        %v832 = vld [vmem:[%s718] sm:$0xff]
        %v833 = vld [vmem:[%s718 + $0x8] sm:$0xff]
        %v834 = vld [vmem:[%s727] sm:$0xff]
        %v835 = vld [vmem:[%s727 + $0x8] sm:$0xff]
        %v836 = vadd.f32 %v820, %v822
        %v837 = vadd.f32 %v821, %v823
        %v838 = vadd.f32 %v836, %v824
        %v839 = vadd.f32 %v837, %v825
        %v840 = vadd.f32 %v838, %v826
        %v841 = vadd.f32 %v839, %v827
        %v842 = vadd.f32 %v840, %v828
        %v843 = vadd.f32 %v841, %v829
        %v844 = vadd.f32 %v842, %v830
        %v845 = vadd.f32 %v843, %v831
        %v846 = vadd.f32 %v844, %v832
        %v847 = vadd.f32 %v845, %v833
        %v848 = vadd.f32 %v846, %v834
        %v849 = vadd.f32 %v847, %v835
        %v850 = vmul.f32 %v848, 0.125
        %v851 = vmul.f32 %v849, 0.125
        %v852 = vsub.f32 %v820, %v850
        %v853 = vsub.f32 %v821, %v851
        %v854 = vsub.f32 %v822, %v850
        %v855 = vsub.f32 %v823, %v851
        %v856 = vsub.f32 %v824, %v850
        %v857 = vsub.f32 %v825, %v851
        %v858 = vsub.f32 %v826, %v850
        %v859 = vsub.f32 %v827, %v851
        %v860 = vsub.f32 %v828, %v850
        %v861 = vsub.f32 %v829, %v851
        %v862 = vsub.f32 %v830, %v850
        %v863 = vsub.f32 %v831, %v851
        %v864 = vsub.f32 %v832, %v850
        %v865 = vsub.f32 %v833, %v851
        %v866 = vsub.f32 %v834, %v850
        %v867 = vsub.f32 %v835, %v851
        %v868 = vmul.f32 %v852, %v852
        %v869 = vmul.f32 %v853, %v853
        %v870 = vmul.f32 %v854, %v854
        %v871 = vmul.f32 %v855, %v855
        %v872 = vadd.f32 %v868, %v870
        %v873 = vadd.f32 %v869, %v871
        %v874 = vmul.f32 %v856, %v856
        %v875 = vmul.f32 %v857, %v857
        %v876 = vadd.f32 %v872, %v874
        %v877 = vadd.f32 %v873, %v875
        %v878 = vmul.f32 %v858, %v858
        %v879 = vmul.f32 %v859, %v859
        %v880 = vadd.f32 %v876, %v878
        %v881 = vadd.f32 %v877, %v879
        %v882 = vmul.f32 %v860, %v860
        %v883 = vmul.f32 %v861, %v861
        %v884 = vadd.f32 %v880, %v882
        %v885 = vadd.f32 %v881, %v883
        %v886 = vmul.f32 %v862, %v862
        %v887 = vmul.f32 %v863, %v863
        %v888 = vadd.f32 %v884, %v886
        %v889 = vadd.f32 %v885, %v887
        %v890 = vmul.f32 %v864, %v864
        %v891 = vmul.f32 %v865, %v865
        %v892 = vadd.f32 %v888, %v890
        %v893 = vadd.f32 %v889, %v891
        %v894 = vmul.f32 %v866, %v866
        %v895 = vmul.f32 %v867, %v867
        %v896 = vadd.f32 %v892, %v894
        %v897 = vadd.f32 %v893, %v895
        %v898 = vmul.f32 %v896, 0.125
        %v899 = vmul.f32 %v897, 0.125
        %v900 = vadd.f32 %v898, 1e-05
        %v901 = vadd.f32 %v899, 1e-05
        %v902 = vrsqrt.pop %v900
        %v903 = vrsqrt.pop %v901
        %v904 = vmul.f32 %v852, %v902
        %v905 = vmul.f32 %v853, %v903
        %v906 = vmul.f32 %v854, %v902
        %v907 = vmul.f32 %v855, %v903
        %v908 = vmul.f32 %v856, %v902
        %v909 = vmul.f32 %v857, %v903
        %v910 = vmul.f32 %v858, %v902
        %v911 = vmul.f32 %v859, %v903
        %v912 = vmul.f32 %v860, %v902
        %v913 = vmul.f32 %v861, %v903
        %v914 = vmul.f32 %v862, %v902
        %v915 = vmul.f32 %v863, %v903
        %v916 = vmul.f32 %v864, %v902
        %v917 = vmul.f32 %v865, %v903
        %v918 = vmul.f32 %v866, %v902
        %v919 = vmul.f32 %v867, %v903
        %s920 = sld [smem:[#allocation2]]
        %v921 = vstv %s920
        %v922 = vmul.f32 %v904, %v921
        %v923 = vmul.f32 %v905, %v921
        %s924 = sld [smem:[#allocation2 + $0x1]]
        %v925 = vstv %s924
        %v926 = vmul.f32 %v906, %v925
        %v927 = vmul.f32 %v907, %v925
        %v928 = vadd.f32 %v922, %v926
        %v929 = vadd.f32 %v923, %v927
        %s930 = sld [smem:[#allocation2 + $0x2]]
        %v931 = vstv %s930
        %v932 = vmul.f32 %v908, %v931
        %v933 = vmul.f32 %v909, %v931
        %v934 = vadd.f32 %v928, %v932
        %v935 = vadd.f32 %v929, %v933
        %s936 = sld [smem:[#allocation2 + $0x3]]
        %v937 = vstv %s936
        %v938 = vmul.f32 %v910, %v937
        %v939 = vmul.f32 %v911, %v937
        %v940 = vadd.f32 %v934, %v938
        %v941 = vadd.f32 %v935, %v939
        %s942 = sld [smem:[#allocation2 + $0x4]]
        %v943 = vstv %s942
        %v944 = vmul.f32 %v912, %v943
        %v945 = vmul.f32 %v913, %v943
        %v946 = vadd.f32 %v940, %v944
        %v947 = vadd.f32 %v941, %v945
        %s948 = sld [smem:[#allocation2 + $0x5]]
        %v949 = vstv %s948
        %v950 = vmul.f32 %v914, %v949
        %v951 = vmul.f32 %v915, %v949
        %v952 = vadd.f32 %v946, %v950
        %v953 = vadd.f32 %v947, %v951
        %s954 = sld [smem:[#allocation2 + $0x6]]
        %v955 = vstv %s954
        %v956 = vmul.f32 %v916, %v955
        %v957 = vmul.f32 %v917, %v955
        %v958 = vadd.f32 %v952, %v956
        %v959 = vadd.f32 %v953, %v957
        %s960 = sld [smem:[#allocation2 + $0x7]]
        %v961 = vstv %s960
        %v962 = vmul.f32 %v918, %v961
        %v963 = vmul.f32 %v919, %v961
        %v964 = vadd.f32 %v958, %v962
        %v965 = vadd.f32 %v959, %v963
        %s966 = sld [smem:[#allocation7]]
        %v967 = vstv %s966
        %v968 = vadd.f32 %v964, %v967
        %v969 = vadd.f32 %v965, %v967
        %s970 = sld [smem:[#allocation2 + $0x8]]
        %v971 = vstv %s970
        %v972 = vmul.f32 %v904, %v971
        %v973 = vmul.f32 %v905, %v971
        %s974 = sld [smem:[#allocation2 + $0x9]]
        %v975 = vstv %s974
        %v976 = vmul.f32 %v906, %v975
        %v977 = vmul.f32 %v907, %v975
        %v978 = vadd.f32 %v972, %v976
        %v979 = vadd.f32 %v973, %v977
        %s980 = sld [smem:[#allocation2 + $0xa]]
        %v981 = vstv %s980
        %v982 = vmul.f32 %v908, %v981
        %v983 = vmul.f32 %v909, %v981
        %v984 = vadd.f32 %v978, %v982
        %v985 = vadd.f32 %v979, %v983
        %s986 = sld [smem:[#allocation2 + $0xb]]
        %v987 = vstv %s986
        %v988 = vmul.f32 %v910, %v987
        %v989 = vmul.f32 %v911, %v987
        %v990 = vadd.f32 %v984, %v988
        %v991 = vadd.f32 %v985, %v989
        %s992 = sld [smem:[#allocation2 + $0xc]]
        %v993 = vstv %s992
        %v994 = vmul.f32 %v912, %v993
        %v995 = vmul.f32 %v913, %v993
        %v996 = vadd.f32 %v990, %v994
        %v997 = vadd.f32 %v991, %v995
        %s998 = sld [smem:[#allocation2 + $0xd]]
        %v999 = vstv %s998
        %v1000 = vmul.f32 %v914, %v999
        %v1001 = vmul.f32 %v915, %v999
        %v1002 = vadd.f32 %v996, %v1000
        %v1003 = vadd.f32 %v997, %v1001
        %s1004 = sld [smem:[#allocation2 + $0xe]]
        %v1005 = vstv %s1004
        %v1006 = vmul.f32 %v916, %v1005
        %v1007 = vmul.f32 %v917, %v1005
        %v1008 = vadd.f32 %v1002, %v1006
        %v1009 = vadd.f32 %v1003, %v1007
        %s1010 = sld [smem:[#allocation2 + $0xf]]
        %v1011 = vstv %s1010
        %v1012 = vmul.f32 %v918, %v1011
        %v1013 = vmul.f32 %v919, %v1011
        %v1014 = vadd.f32 %v1008, %v1012
        %v1015 = vadd.f32 %v1009, %v1013
        %s1016 = sld [smem:[#allocation7 + $0x1]]
        %v1017 = vstv %s1016
        %v1018 = vadd.f32 %v1014, %v1017
        %v1019 = vadd.f32 %v1015, %v1017
        %s1020 = sld [smem:[#allocation2 + $0x10]]
        %v1021 = vstv %s1020
        %v1022 = vmul.f32 %v904, %v1021
        %v1023 = vmul.f32 %v905, %v1021
        %s1024 = sld [smem:[#allocation2 + $0x11]]
        %v1025 = vstv %s1024
        %v1026 = vmul.f32 %v906, %v1025
        %v1027 = vmul.f32 %v907, %v1025
        %v1028 = vadd.f32 %v1022, %v1026
        %v1029 = vadd.f32 %v1023, %v1027
        %s1030 = sld [smem:[#allocation2 + $0x12]]
        %v1031 = vstv %s1030
        %v1032 = vmul.f32 %v908, %v1031
        %v1033 = vmul.f32 %v909, %v1031
        %v1034 = vadd.f32 %v1028, %v1032
        %v1035 = vadd.f32 %v1029, %v1033
        %s1036 = sld [smem:[#allocation2 + $0x13]]
        %v1037 = vstv %s1036
        %v1038 = vmul.f32 %v910, %v1037
        %v1039 = vmul.f32 %v911, %v1037
        %v1040 = vadd.f32 %v1034, %v1038
        %v1041 = vadd.f32 %v1035, %v1039
        %s1042 = sld [smem:[#allocation2 + $0x14]]
        %v1043 = vstv %s1042
        %v1044 = vmul.f32 %v912, %v1043
        %v1045 = vmul.f32 %v913, %v1043
        %v1046 = vadd.f32 %v1040, %v1044
        %v1047 = vadd.f32 %v1041, %v1045
        %s1048 = sld [smem:[#allocation2 + $0x15]]
        %v1049 = vstv %s1048
        %v1050 = vmul.f32 %v914, %v1049
        %v1051 = vmul.f32 %v915, %v1049
        %v1052 = vadd.f32 %v1046, %v1050
        %v1053 = vadd.f32 %v1047, %v1051
        %s1054 = sld [smem:[#allocation2 + $0x16]]
        %v1055 = vstv %s1054
        %v1056 = vmul.f32 %v916, %v1055
        %v1057 = vmul.f32 %v917, %v1055
        %v1058 = vadd.f32 %v1052, %v1056
        %v1059 = vadd.f32 %v1053, %v1057
        %s1060 = sld [smem:[#allocation2 + $0x17]]
        %v1061 = vstv %s1060
        %v1062 = vmul.f32 %v918, %v1061
        %v1063 = vmul.f32 %v919, %v1061
        %v1064 = vadd.f32 %v1058, %v1062
        %v1065 = vadd.f32 %v1059, %v1063
        %s1066 = sld [smem:[#allocation7 + $0x2]]
        %v1067 = vstv %s1066
        %v1068 = vadd.f32 %v1064, %v1067
        %v1069 = vadd.f32 %v1065, %v1067
        %s1070 = sld [smem:[#allocation2 + $0x18]]
        %v1071 = vstv %s1070
        %v1072 = vmul.f32 %v904, %v1071
        %v1073 = vmul.f32 %v905, %v1071
        %s1074 = sld [smem:[#allocation2 + $0x19]]
        %v1075 = vstv %s1074
        %v1076 = vmul.f32 %v906, %v1075
        %v1077 = vmul.f32 %v907, %v1075
        %v1078 = vadd.f32 %v1072, %v1076
        %v1079 = vadd.f32 %v1073, %v1077
        %s1080 = sld [smem:[#allocation2 + $0x1a]]
        %v1081 = vstv %s1080
        %v1082 = vmul.f32 %v908, %v1081
        %v1083 = vmul.f32 %v909, %v1081
        %v1084 = vadd.f32 %v1078, %v1082
        %v1085 = vadd.f32 %v1079, %v1083
        %s1086 = sld [smem:[#allocation2 + $0x1b]]
        %v1087 = vstv %s1086
        %v1088 = vmul.f32 %v910, %v1087
        %v1089 = vmul.f32 %v911, %v1087
        %v1090 = vadd.f32 %v1084, %v1088
        %v1091 = vadd.f32 %v1085, %v1089
        %s1092 = sld [smem:[#allocation2 + $0x1c]]
        %v1093 = vstv %s1092
        %v1094 = vmul.f32 %v912, %v1093
        %v1095 = vmul.f32 %v913, %v1093
        %v1096 = vadd.f32 %v1090, %v1094
        %v1097 = vadd.f32 %v1091, %v1095
        %s1098 = sld [smem:[#allocation2 + $0x1d]]
        %v1099 = vstv %s1098
        %v1100 = vmul.f32 %v914, %v1099
        %v1101 = vmul.f32 %v915, %v1099
        %v1102 = vadd.f32 %v1096, %v1100
        %v1103 = vadd.f32 %v1097, %v1101
        %s1104 = sld [smem:[#allocation2 + $0x1e]]
        %v1105 = vstv %s1104
        %v1106 = vmul.f32 %v916, %v1105
        %v1107 = vmul.f32 %v917, %v1105
        %v1108 = vadd.f32 %v1102, %v1106
        %v1109 = vadd.f32 %v1103, %v1107
        %s1110 = sld [smem:[#allocation2 + $0x1f]]
        %v1111 = vstv %s1110
        %v1112 = vmul.f32 %v918, %v1111
        %v1113 = vmul.f32 %v919, %v1111
        %v1114 = vadd.f32 %v1108, %v1112
        %v1115 = vadd.f32 %v1109, %v1113
        %s1116 = sld [smem:[#allocation7 + $0x3]]
        %v1117 = vstv %s1116
        %v1118 = vadd.f32 %v1114, %v1117
        %v1119 = vadd.f32 %v1115, %v1117
        %s1120 = sld [smem:[#allocation2 + $0x20]]
        %v1121 = vstv %s1120
        %v1122 = vmul.f32 %v904, %v1121
        %v1123 = vmul.f32 %v905, %v1121
        %s1124 = sld [smem:[#allocation2 + $0x21]]
        %v1125 = vstv %s1124
        %v1126 = vmul.f32 %v906, %v1125
        %v1127 = vmul.f32 %v907, %v1125
        %v1128 = vadd.f32 %v1122, %v1126
        %v1129 = vadd.f32 %v1123, %v1127
        %s1130 = sld [smem:[#allocation2 + $0x22]]
        %v1131 = vstv %s1130
        %v1132 = vmul.f32 %v908, %v1131
        %v1133 = vmul.f32 %v909, %v1131
        %v1134 = vadd.f32 %v1128, %v1132
        %v1135 = vadd.f32 %v1129, %v1133
        %s1136 = sld [smem:[#allocation2 + $0x23]]
        %v1137 = vstv %s1136
        %v1138 = vmul.f32 %v910, %v1137
        %v1139 = vmul.f32 %v911, %v1137
        %v1140 = vadd.f32 %v1134, %v1138
        %v1141 = vadd.f32 %v1135, %v1139
        %s1142 = sld [smem:[#allocation2 + $0x24]]
        %v1143 = vstv %s1142
        %v1144 = vmul.f32 %v912, %v1143
        %v1145 = vmul.f32 %v913, %v1143
        %v1146 = vadd.f32 %v1140, %v1144
        %v1147 = vadd.f32 %v1141, %v1145
        %s1148 = sld [smem:[#allocation2 + $0x25]]
        %v1149 = vstv %s1148
        %v1150 = vmul.f32 %v914, %v1149
        %v1151 = vmul.f32 %v915, %v1149
        %v1152 = vadd.f32 %v1146, %v1150
        %v1153 = vadd.f32 %v1147, %v1151
        %s1154 = sld [smem:[#allocation2 + $0x26]]
        %v1155 = vstv %s1154
        %v1156 = vmul.f32 %v916, %v1155
        %v1157 = vmul.f32 %v917, %v1155
        %v1158 = vadd.f32 %v1152, %v1156
        %v1159 = vadd.f32 %v1153, %v1157
        %s1160 = sld [smem:[#allocation2 + $0x27]]
        %v1161 = vstv %s1160
        %v1162 = vmul.f32 %v918, %v1161
        %v1163 = vmul.f32 %v919, %v1161
        %v1164 = vadd.f32 %v1158, %v1162
        %v1165 = vadd.f32 %v1159, %v1163
        %s1166 = sld [smem:[#allocation7 + $0x4]]
        %v1167 = vstv %s1166
        %v1168 = vadd.f32 %v1164, %v1167
        %v1169 = vadd.f32 %v1165, %v1167
        %s1170 = sld [smem:[#allocation2 + $0x28]]
        %v1171 = vstv %s1170
        %v1172 = vmul.f32 %v904, %v1171
        %v1173 = vmul.f32 %v905, %v1171
        %s1174 = sld [smem:[#allocation2 + $0x29]]
        %v1175 = vstv %s1174
        %v1176 = vmul.f32 %v906, %v1175
        %v1177 = vmul.f32 %v907, %v1175
        %v1178 = vadd.f32 %v1172, %v1176
        %v1179 = vadd.f32 %v1173, %v1177
        %s1180 = sld [smem:[#allocation2 + $0x2a]]
        %v1181 = vstv %s1180
        %v1182 = vmul.f32 %v908, %v1181
        %v1183 = vmul.f32 %v909, %v1181
        %v1184 = vadd.f32 %v1178, %v1182
        %v1185 = vadd.f32 %v1179, %v1183
        %s1186 = sld [smem:[#allocation2 + $0x2b]]
        %v1187 = vstv %s1186
        %v1188 = vmul.f32 %v910, %v1187
        %v1189 = vmul.f32 %v911, %v1187
        %v1190 = vadd.f32 %v1184, %v1188
        %v1191 = vadd.f32 %v1185, %v1189
        %s1192 = sld [smem:[#allocation2 + $0x2c]]
        %v1193 = vstv %s1192
        %v1194 = vmul.f32 %v912, %v1193
        %v1195 = vmul.f32 %v913, %v1193
        %v1196 = vadd.f32 %v1190, %v1194
        %v1197 = vadd.f32 %v1191, %v1195
        %s1198 = sld [smem:[#allocation2 + $0x2d]]
        %v1199 = vstv %s1198
        %v1200 = vmul.f32 %v914, %v1199
        %v1201 = vmul.f32 %v915, %v1199
        %v1202 = vadd.f32 %v1196, %v1200
        %v1203 = vadd.f32 %v1197, %v1201
        %s1204 = sld [smem:[#allocation2 + $0x2e]]
        %v1205 = vstv %s1204
        %v1206 = vmul.f32 %v916, %v1205
        %v1207 = vmul.f32 %v917, %v1205
        %v1208 = vadd.f32 %v1202, %v1206
        %v1209 = vadd.f32 %v1203, %v1207
        %s1210 = sld [smem:[#allocation2 + $0x2f]]
        %v1211 = vstv %s1210
        %v1212 = vmul.f32 %v918, %v1211
        %v1213 = vmul.f32 %v919, %v1211
        %v1214 = vadd.f32 %v1208, %v1212
        %v1215 = vadd.f32 %v1209, %v1213
        %s1216 = sld [smem:[#allocation7 + $0x5]]
        %v1217 = vstv %s1216
        %v1218 = vadd.f32 %v1214, %v1217
        %v1219 = vadd.f32 %v1215, %v1217
        %s1220 = sld [smem:[#allocation2 + $0x30]]
        %v1221 = vstv %s1220
        %v1222 = vmul.f32 %v904, %v1221
        %v1223 = vmul.f32 %v905, %v1221
        %s1224 = sld [smem:[#allocation2 + $0x31]]
        %v1225 = vstv %s1224
        %v1226 = vmul.f32 %v906, %v1225
        %v1227 = vmul.f32 %v907, %v1225
        %v1228 = vadd.f32 %v1222, %v1226
        %v1229 = vadd.f32 %v1223, %v1227
        %s1230 = sld [smem:[#allocation2 + $0x32]]
        %v1231 = vstv %s1230
        %v1232 = vmul.f32 %v908, %v1231
        %v1233 = vmul.f32 %v909, %v1231
        %v1234 = vadd.f32 %v1228, %v1232
        %v1235 = vadd.f32 %v1229, %v1233
        %s1236 = sld [smem:[#allocation2 + $0x33]]
        %v1237 = vstv %s1236
        %v1238 = vmul.f32 %v910, %v1237
        %v1239 = vmul.f32 %v911, %v1237
        %v1240 = vadd.f32 %v1234, %v1238
        %v1241 = vadd.f32 %v1235, %v1239
        %s1242 = sld [smem:[#allocation2 + $0x34]]
        %v1243 = vstv %s1242
        %v1244 = vmul.f32 %v912, %v1243
        %v1245 = vmul.f32 %v913, %v1243
        %v1246 = vadd.f32 %v1240, %v1244
        %v1247 = vadd.f32 %v1241, %v1245
        %s1248 = sld [smem:[#allocation2 + $0x35]]
        %v1249 = vstv %s1248
        %v1250 = vmul.f32 %v914, %v1249
        %v1251 = vmul.f32 %v915, %v1249
        %v1252 = vadd.f32 %v1246, %v1250
        %v1253 = vadd.f32 %v1247, %v1251
        %s1254 = sld [smem:[#allocation2 + $0x36]]
        %v1255 = vstv %s1254
        %v1256 = vmul.f32 %v916, %v1255
        %v1257 = vmul.f32 %v917, %v1255
        %v1258 = vadd.f32 %v1252, %v1256
        %v1259 = vadd.f32 %v1253, %v1257
        %s1260 = sld [smem:[#allocation2 + $0x37]]
        %v1261 = vstv %s1260
        %v1262 = vmul.f32 %v918, %v1261
        %v1263 = vmul.f32 %v919, %v1261
        %v1264 = vadd.f32 %v1258, %v1262
        %v1265 = vadd.f32 %v1259, %v1263
        %s1266 = sld [smem:[#allocation7 + $0x6]]
        %v1267 = vstv %s1266
        %v1268 = vadd.f32 %v1264, %v1267
        %v1269 = vadd.f32 %v1265, %v1267
        %s1270 = sld [smem:[#allocation2 + $0x38]]
        %v1271 = vstv %s1270
        %v1272 = vmul.f32 %v904, %v1271
        %v1273 = vmul.f32 %v905, %v1271
        %s1274 = sld [smem:[#allocation2 + $0x39]]
        %v1275 = vstv %s1274
        %v1276 = vmul.f32 %v906, %v1275
        %v1277 = vmul.f32 %v907, %v1275
        %v1278 = vadd.f32 %v1272, %v1276
        %v1279 = vadd.f32 %v1273, %v1277
        %s1280 = sld [smem:[#allocation2 + $0x3a]]
        %v1281 = vstv %s1280
        %v1282 = vmul.f32 %v908, %v1281
        %v1283 = vmul.f32 %v909, %v1281
        %v1284 = vadd.f32 %v1278, %v1282
        %v1285 = vadd.f32 %v1279, %v1283
        %s1286 = sld [smem:[#allocation2 + $0x3b]]
        %v1287 = vstv %s1286
        %v1288 = vmul.f32 %v910, %v1287
        %v1289 = vmul.f32 %v911, %v1287
        %v1290 = vadd.f32 %v1284, %v1288
        %v1291 = vadd.f32 %v1285, %v1289
        %s1292 = sld [smem:[#allocation2 + $0x3c]]
        %v1293 = vstv %s1292
        %v1294 = vmul.f32 %v912, %v1293
        %v1295 = vmul.f32 %v913, %v1293
        %v1296 = vadd.f32 %v1290, %v1294
        %v1297 = vadd.f32 %v1291, %v1295
        %s1298 = sld [smem:[#allocation2 + $0x3d]]
        %v1299 = vstv %s1298
        %v1300 = vmul.f32 %v914, %v1299
        %v1301 = vmul.f32 %v915, %v1299
        %v1302 = vadd.f32 %v1296, %v1300
        %v1303 = vadd.f32 %v1297, %v1301
        %s1304 = sld [smem:[#allocation2 + $0x3e]]
        %v1305 = vstv %s1304
        %v1306 = vmul.f32 %v916, %v1305
        %v1307 = vmul.f32 %v917, %v1305
        %v1308 = vadd.f32 %v1302, %v1306
        %v1309 = vadd.f32 %v1303, %v1307
        %s1310 = sld [smem:[#allocation2 + $0x3f]]
        %v1311 = vstv %s1310
        %v1312 = vmul.f32 %v918, %v1311
        %v1313 = vmul.f32 %v919, %v1311
        %v1314 = vadd.f32 %v1308, %v1312
        %v1315 = vadd.f32 %v1309, %v1313
        %s1316 = sld [smem:[#allocation7 + $0x7]]
        %v1317 = vstv %s1316
        %v1318 = vadd.f32 %v1314, %v1317
        %v1319 = vadd.f32 %v1315, %v1317
        %s1320 = sld [smem:[#allocation2 + $0x40]]
        %v1321 = vstv %s1320
        %v1322 = vmul.f32 %v904, %v1321
        %v1323 = vmul.f32 %v905, %v1321
        %s1324 = sld [smem:[#allocation2 + $0x41]]
        %v1325 = vstv %s1324
        %v1326 = vmul.f32 %v906, %v1325
        %v1327 = vmul.f32 %v907, %v1325
        %v1328 = vadd.f32 %v1322, %v1326
        %v1329 = vadd.f32 %v1323, %v1327
        %s1330 = sld [smem:[#allocation2 + $0x42]]
        %v1331 = vstv %s1330
        %v1332 = vmul.f32 %v908, %v1331
        %v1333 = vmul.f32 %v909, %v1331
        %v1334 = vadd.f32 %v1328, %v1332
        %v1335 = vadd.f32 %v1329, %v1333
        %s1336 = sld [smem:[#allocation2 + $0x43]]
        %v1337 = vstv %s1336
        %v1338 = vmul.f32 %v910, %v1337
        %v1339 = vmul.f32 %v911, %v1337
        %v1340 = vadd.f32 %v1334, %v1338
        %v1341 = vadd.f32 %v1335, %v1339
        %s1342 = sld [smem:[#allocation2 + $0x44]]
        %v1343 = vstv %s1342
        %v1344 = vmul.f32 %v912, %v1343
        %v1345 = vmul.f32 %v913, %v1343
        %v1346 = vadd.f32 %v1340, %v1344
        %v1347 = vadd.f32 %v1341, %v1345
        %s1348 = sld [smem:[#allocation2 + $0x45]]
        %v1349 = vstv %s1348
        %v1350 = vmul.f32 %v914, %v1349
        %v1351 = vmul.f32 %v915, %v1349
        %v1352 = vadd.f32 %v1346, %v1350
        %v1353 = vadd.f32 %v1347, %v1351
        %s1354 = sld [smem:[#allocation2 + $0x46]]
        %v1355 = vstv %s1354
        %v1356 = vmul.f32 %v916, %v1355
        %v1357 = vmul.f32 %v917, %v1355
        %v1358 = vadd.f32 %v1352, %v1356
        %v1359 = vadd.f32 %v1353, %v1357
        %s1360 = sld [smem:[#allocation2 + $0x47]]
        %v1361 = vstv %s1360
        %v1362 = vmul.f32 %v918, %v1361
        %v1363 = vmul.f32 %v919, %v1361
        %v1364 = vadd.f32 %v1358, %v1362
        %v1365 = vadd.f32 %v1359, %v1363
        %s1366 = sld [smem:[#allocation7 + $0x8]]
        %v1367 = vstv %s1366
        %v1368 = vadd.f32 %v1364, %v1367
        %v1369 = vadd.f32 %v1365, %v1367
        %s1370 = sld [smem:[#allocation2 + $0x48]]
        %v1371 = vstv %s1370
        %v1372 = vmul.f32 %v904, %v1371
        %v1373 = vmul.f32 %v905, %v1371
        %s1374 = sld [smem:[#allocation2 + $0x49]]
        %v1375 = vstv %s1374
        %v1376 = vmul.f32 %v906, %v1375
        %v1377 = vmul.f32 %v907, %v1375
        %v1378 = vadd.f32 %v1372, %v1376
        %v1379 = vadd.f32 %v1373, %v1377
        %s1380 = sld [smem:[#allocation2 + $0x4a]]
        %v1381 = vstv %s1380
        %v1382 = vmul.f32 %v908, %v1381
        %v1383 = vmul.f32 %v909, %v1381
        %v1384 = vadd.f32 %v1378, %v1382
        %v1385 = vadd.f32 %v1379, %v1383
        %s1386 = sld [smem:[#allocation2 + $0x4b]]
        %v1387 = vstv %s1386
        %v1388 = vmul.f32 %v910, %v1387
        %v1389 = vmul.f32 %v911, %v1387
        %v1390 = vadd.f32 %v1384, %v1388
        %v1391 = vadd.f32 %v1385, %v1389
        %s1392 = sld [smem:[#allocation2 + $0x4c]]
        %v1393 = vstv %s1392
        %v1394 = vmul.f32 %v912, %v1393
        %v1395 = vmul.f32 %v913, %v1393
        %v1396 = vadd.f32 %v1390, %v1394
        %v1397 = vadd.f32 %v1391, %v1395
        %s1398 = sld [smem:[#allocation2 + $0x4d]]
        %v1399 = vstv %s1398
        %v1400 = vmul.f32 %v914, %v1399
        %v1401 = vmul.f32 %v915, %v1399
        %v1402 = vadd.f32 %v1396, %v1400
        %v1403 = vadd.f32 %v1397, %v1401
        %s1404 = sld [smem:[#allocation2 + $0x4e]]
        %v1405 = vstv %s1404
        %v1406 = vmul.f32 %v916, %v1405
        %v1407 = vmul.f32 %v917, %v1405
        %v1408 = vadd.f32 %v1402, %v1406
        %v1409 = vadd.f32 %v1403, %v1407
        %s1410 = sld [smem:[#allocation2 + $0x4f]]
        %v1411 = vstv %s1410
        %v1412 = vmul.f32 %v918, %v1411
        %v1413 = vmul.f32 %v919, %v1411
        %v1414 = vadd.f32 %v1408, %v1412
        %v1415 = vadd.f32 %v1409, %v1413
        %s1416 = sld [smem:[#allocation7 + $0x9]]
        %v1417 = vstv %s1416
        %v1418 = vadd.f32 %v1414, %v1417
        %v1419 = vadd.f32 %v1415, %v1417
        %s1420 = sld [smem:[#allocation2 + $0x50]]
        %v1421 = vstv %s1420
        %v1422 = vmul.f32 %v904, %v1421
        %v1423 = vmul.f32 %v905, %v1421
        %s1424 = sld [smem:[#allocation2 + $0x51]]
        %v1425 = vstv %s1424
        %v1426 = vmul.f32 %v906, %v1425
        %v1427 = vmul.f32 %v907, %v1425
        %v1428 = vadd.f32 %v1422, %v1426
        %v1429 = vadd.f32 %v1423, %v1427
        %s1430 = sld [smem:[#allocation2 + $0x52]]
        %v1431 = vstv %s1430
        %v1432 = vmul.f32 %v908, %v1431
        %v1433 = vmul.f32 %v909, %v1431
        %v1434 = vadd.f32 %v1428, %v1432
        %v1435 = vadd.f32 %v1429, %v1433
        %s1436 = sld [smem:[#allocation2 + $0x53]]
        %v1437 = vstv %s1436
        %v1438 = vmul.f32 %v910, %v1437
        %v1439 = vmul.f32 %v911, %v1437
        %v1440 = vadd.f32 %v1434, %v1438
        %v1441 = vadd.f32 %v1435, %v1439
        %s1442 = sld [smem:[#allocation2 + $0x54]]
        %v1443 = vstv %s1442
        %v1444 = vmul.f32 %v912, %v1443
        %v1445 = vmul.f32 %v913, %v1443
        %v1446 = vadd.f32 %v1440, %v1444
        %v1447 = vadd.f32 %v1441, %v1445
        %s1448 = sld [smem:[#allocation2 + $0x55]]
        %v1449 = vstv %s1448
        %v1450 = vmul.f32 %v914, %v1449
        %v1451 = vmul.f32 %v915, %v1449
        %v1452 = vadd.f32 %v1446, %v1450
        %v1453 = vadd.f32 %v1447, %v1451
        %s1454 = sld [smem:[#allocation2 + $0x56]]
        %v1455 = vstv %s1454
        %v1456 = vmul.f32 %v916, %v1455
        %v1457 = vmul.f32 %v917, %v1455
        %v1458 = vadd.f32 %v1452, %v1456
        %v1459 = vadd.f32 %v1453, %v1457
        %s1460 = sld [smem:[#allocation2 + $0x57]]
        %v1461 = vstv %s1460
        %v1462 = vmul.f32 %v918, %v1461
        %v1463 = vmul.f32 %v919, %v1461
        %v1464 = vadd.f32 %v1458, %v1462
        %v1465 = vadd.f32 %v1459, %v1463
        %s1466 = sld [smem:[#allocation7 + $0xa]]
        %v1467 = vstv %s1466
        %v1468 = vadd.f32 %v1464, %v1467
        %v1469 = vadd.f32 %v1465, %v1467
        %s1470 = sld [smem:[#allocation2 + $0x58]]
        %v1471 = vstv %s1470
        %v1472 = vmul.f32 %v904, %v1471
        %v1473 = vmul.f32 %v905, %v1471
        %s1474 = sld [smem:[#allocation2 + $0x59]]
        %v1475 = vstv %s1474
        %v1476 = vmul.f32 %v906, %v1475
        %v1477 = vmul.f32 %v907, %v1475
        %v1478 = vadd.f32 %v1472, %v1476
        %v1479 = vadd.f32 %v1473, %v1477
        %s1480 = sld [smem:[#allocation2 + $0x5a]]
        %v1481 = vstv %s1480
        %v1482 = vmul.f32 %v908, %v1481
        %v1483 = vmul.f32 %v909, %v1481
        %v1484 = vadd.f32 %v1478, %v1482
        %v1485 = vadd.f32 %v1479, %v1483
        %s1486 = sld [smem:[#allocation2 + $0x5b]]
        %v1487 = vstv %s1486
        %v1488 = vmul.f32 %v910, %v1487
        %v1489 = vmul.f32 %v911, %v1487
        %v1490 = vadd.f32 %v1484, %v1488
        %v1491 = vadd.f32 %v1485, %v1489
        %s1492 = sld [smem:[#allocation2 + $0x5c]]
        %v1493 = vstv %s1492
        %v1494 = vmul.f32 %v912, %v1493
        %v1495 = vmul.f32 %v913, %v1493
        %v1496 = vadd.f32 %v1490, %v1494
        %v1497 = vadd.f32 %v1491, %v1495
        %s1498 = sld [smem:[#allocation2 + $0x5d]]
        %v1499 = vstv %s1498
        %v1500 = vmul.f32 %v914, %v1499
        %v1501 = vmul.f32 %v915, %v1499
        %v1502 = vadd.f32 %v1496, %v1500
        %v1503 = vadd.f32 %v1497, %v1501
        %s1504 = sld [smem:[#allocation2 + $0x5e]]
        %v1505 = vstv %s1504
        %v1506 = vmul.f32 %v916, %v1505
        %v1507 = vmul.f32 %v917, %v1505
        %v1508 = vadd.f32 %v1502, %v1506
        %v1509 = vadd.f32 %v1503, %v1507
        %s1510 = sld [smem:[#allocation2 + $0x5f]]
        %v1511 = vstv %s1510
        %v1512 = vmul.f32 %v918, %v1511
        %v1513 = vmul.f32 %v919, %v1511
        %v1514 = vadd.f32 %v1508, %v1512
        %v1515 = vadd.f32 %v1509, %v1513
        %s1516 = sld [smem:[#allocation7 + $0xb]]
        %v1517 = vstv %s1516
        %v1518 = vadd.f32 %v1514, %v1517
        %v1519 = vadd.f32 %v1515, %v1517
        %s1520 = sld [smem:[#allocation2 + $0x60]]
        %v1521 = vstv %s1520
        %v1522 = vmul.f32 %v904, %v1521
        %v1523 = vmul.f32 %v905, %v1521
        %s1524 = sld [smem:[#allocation2 + $0x61]]
        %v1525 = vstv %s1524
        %v1526 = vmul.f32 %v906, %v1525
        %v1527 = vmul.f32 %v907, %v1525
        %v1528 = vadd.f32 %v1522, %v1526
        %v1529 = vadd.f32 %v1523, %v1527
        %s1530 = sld [smem:[#allocation2 + $0x62]]
        %v1531 = vstv %s1530
        %v1532 = vmul.f32 %v908, %v1531
        %v1533 = vmul.f32 %v909, %v1531
        %v1534 = vadd.f32 %v1528, %v1532
        %v1535 = vadd.f32 %v1529, %v1533
        %s1536 = sld [smem:[#allocation2 + $0x63]]
        %v1537 = vstv %s1536
        %v1538 = vmul.f32 %v910, %v1537
        %v1539 = vmul.f32 %v911, %v1537
        %v1540 = vadd.f32 %v1534, %v1538
        %v1541 = vadd.f32 %v1535, %v1539
        %s1542 = sld [smem:[#allocation2 + $0x64]]
        %v1543 = vstv %s1542
        %v1544 = vmul.f32 %v912, %v1543
        %v1545 = vmul.f32 %v913, %v1543
        %v1546 = vadd.f32 %v1540, %v1544
        %v1547 = vadd.f32 %v1541, %v1545
        %s1548 = sld [smem:[#allocation2 + $0x65]]
        %v1549 = vstv %s1548
        %v1550 = vmul.f32 %v914, %v1549
        %v1551 = vmul.f32 %v915, %v1549
        %v1552 = vadd.f32 %v1546, %v1550
        %v1553 = vadd.f32 %v1547, %v1551
        %s1554 = sld [smem:[#allocation2 + $0x66]]
        %v1555 = vstv %s1554
        %v1556 = vmul.f32 %v916, %v1555
        %v1557 = vmul.f32 %v917, %v1555
        %v1558 = vadd.f32 %v1552, %v1556
        %v1559 = vadd.f32 %v1553, %v1557
        %s1560 = sld [smem:[#allocation2 + $0x67]]
        %v1561 = vstv %s1560
        %v1562 = vmul.f32 %v918, %v1561
        %v1563 = vmul.f32 %v919, %v1561
        %v1564 = vadd.f32 %v1558, %v1562
        %v1565 = vadd.f32 %v1559, %v1563
        %s1566 = sld [smem:[#allocation7 + $0xc]]
        %v1567 = vstv %s1566
        %v1568 = vadd.f32 %v1564, %v1567
        %v1569 = vadd.f32 %v1565, %v1567
        %s1570 = sld [smem:[#allocation2 + $0x68]]
        %v1571 = vstv %s1570
        %v1572 = vmul.f32 %v904, %v1571
        %v1573 = vmul.f32 %v905, %v1571
        %s1574 = sld [smem:[#allocation2 + $0x69]]
        %v1575 = vstv %s1574
        %v1576 = vmul.f32 %v906, %v1575
        %v1577 = vmul.f32 %v907, %v1575
        %v1578 = vadd.f32 %v1572, %v1576
        %v1579 = vadd.f32 %v1573, %v1577
        %s1580 = sld [smem:[#allocation2 + $0x6a]]
        %v1581 = vstv %s1580
        %v1582 = vmul.f32 %v908, %v1581
        %v1583 = vmul.f32 %v909, %v1581
        %v1584 = vadd.f32 %v1578, %v1582
        %v1585 = vadd.f32 %v1579, %v1583
        %s1586 = sld [smem:[#allocation2 + $0x6b]]
        %v1587 = vstv %s1586
        %v1588 = vmul.f32 %v910, %v1587
        %v1589 = vmul.f32 %v911, %v1587
        %v1590 = vadd.f32 %v1584, %v1588
        %v1591 = vadd.f32 %v1585, %v1589
        %s1592 = sld [smem:[#allocation2 + $0x6c]]
        %v1593 = vstv %s1592
        %v1594 = vmul.f32 %v912, %v1593
        %v1595 = vmul.f32 %v913, %v1593
        %v1596 = vadd.f32 %v1590, %v1594
        %v1597 = vadd.f32 %v1591, %v1595
        %s1598 = sld [smem:[#allocation2 + $0x6d]]
        %v1599 = vstv %s1598
        %v1600 = vmul.f32 %v914, %v1599
        %v1601 = vmul.f32 %v915, %v1599
        %v1602 = vadd.f32 %v1596, %v1600
        %v1603 = vadd.f32 %v1597, %v1601
        %s1604 = sld [smem:[#allocation2 + $0x6e]]
        %v1605 = vstv %s1604
        %v1606 = vmul.f32 %v916, %v1605
        %v1607 = vmul.f32 %v917, %v1605
        %v1608 = vadd.f32 %v1602, %v1606
        %v1609 = vadd.f32 %v1603, %v1607
        %s1610 = sld [smem:[#allocation2 + $0x6f]]
        %v1611 = vstv %s1610
        %v1612 = vmul.f32 %v918, %v1611
        %v1613 = vmul.f32 %v919, %v1611
        %v1614 = vadd.f32 %v1608, %v1612
        %v1615 = vadd.f32 %v1609, %v1613
        %s1616 = sld [smem:[#allocation7 + $0xd]]
        %v1617 = vstv %s1616
        %v1618 = vadd.f32 %v1614, %v1617
        %v1619 = vadd.f32 %v1615, %v1617
        %s1620 = sld [smem:[#allocation2 + $0x70]]
        %v1621 = vstv %s1620
        %v1622 = vmul.f32 %v904, %v1621
        %v1623 = vmul.f32 %v905, %v1621
        %s1624 = sld [smem:[#allocation2 + $0x71]]
        %v1625 = vstv %s1624
        %v1626 = vmul.f32 %v906, %v1625
        %v1627 = vmul.f32 %v907, %v1625
        %v1628 = vadd.f32 %v1622, %v1626
        %v1629 = vadd.f32 %v1623, %v1627
        %s1630 = sld [smem:[#allocation2 + $0x72]]
        %v1631 = vstv %s1630
        %v1632 = vmul.f32 %v908, %v1631
        %v1633 = vmul.f32 %v909, %v1631
        %v1634 = vadd.f32 %v1628, %v1632
        %v1635 = vadd.f32 %v1629, %v1633
        %s1636 = sld [smem:[#allocation2 + $0x73]]
        %v1637 = vstv %s1636
        %v1638 = vmul.f32 %v910, %v1637
        %v1639 = vmul.f32 %v911, %v1637
        %v1640 = vadd.f32 %v1634, %v1638
        %v1641 = vadd.f32 %v1635, %v1639
        %s1642 = sld [smem:[#allocation2 + $0x74]]
        %v1643 = vstv %s1642
        %v1644 = vmul.f32 %v912, %v1643
        %v1645 = vmul.f32 %v913, %v1643
        %v1646 = vadd.f32 %v1640, %v1644
        %v1647 = vadd.f32 %v1641, %v1645
        %s1648 = sld [smem:[#allocation2 + $0x75]]
        %v1649 = vstv %s1648
        %v1650 = vmul.f32 %v914, %v1649
        %v1651 = vmul.f32 %v915, %v1649
        %v1652 = vadd.f32 %v1646, %v1650
        %v1653 = vadd.f32 %v1647, %v1651
        %s1654 = sld [smem:[#allocation2 + $0x76]]
        %v1655 = vstv %s1654
        %v1656 = vmul.f32 %v916, %v1655
        %v1657 = vmul.f32 %v917, %v1655
        %v1658 = vadd.f32 %v1652, %v1656
        %v1659 = vadd.f32 %v1653, %v1657
        %s1660 = sld [smem:[#allocation2 + $0x77]]
        %v1661 = vstv %s1660
        %v1662 = vmul.f32 %v918, %v1661
        %v1663 = vmul.f32 %v919, %v1661
        %v1664 = vadd.f32 %v1658, %v1662
        %v1665 = vadd.f32 %v1659, %v1663
        %s1666 = sld [smem:[#allocation7 + $0xe]]
        %v1667 = vstv %s1666
        %v1668 = vadd.f32 %v1664, %v1667
        %v1669 = vadd.f32 %v1665, %v1667
        %s1670 = sld [smem:[#allocation2 + $0x78]]
        %v1671 = vstv %s1670
        %v1672 = vmul.f32 %v904, %v1671
        %v1673 = vmul.f32 %v905, %v1671
        %s1674 = sld [smem:[#allocation2 + $0x79]]
        %v1675 = vstv %s1674
        %v1676 = vmul.f32 %v906, %v1675
        %v1677 = vmul.f32 %v907, %v1675
        %v1678 = vadd.f32 %v1672, %v1676
        %v1679 = vadd.f32 %v1673, %v1677
        %s1680 = sld [smem:[#allocation2 + $0x7a]]
        %v1681 = vstv %s1680
        %v1682 = vmul.f32 %v908, %v1681
        %v1683 = vmul.f32 %v909, %v1681
        %v1684 = vadd.f32 %v1678, %v1682
        %v1685 = vadd.f32 %v1679, %v1683
        %s1686 = sld [smem:[#allocation2 + $0x7b]]
        %v1687 = vstv %s1686
        %v1688 = vmul.f32 %v910, %v1687
        %v1689 = vmul.f32 %v911, %v1687
        %v1690 = vadd.f32 %v1684, %v1688
        %v1691 = vadd.f32 %v1685, %v1689
        %s1692 = sld [smem:[#allocation2 + $0x7c]]
        %v1693 = vstv %s1692
        %v1694 = vmul.f32 %v912, %v1693
        %v1695 = vmul.f32 %v913, %v1693
        %v1696 = vadd.f32 %v1690, %v1694
        %v1697 = vadd.f32 %v1691, %v1695
        %s1698 = sld [smem:[#allocation2 + $0x7d]]
        %v1699 = vstv %s1698
        %v1700 = vmul.f32 %v914, %v1699
        %v1701 = vmul.f32 %v915, %v1699
        %v1702 = vadd.f32 %v1696, %v1700
        %v1703 = vadd.f32 %v1697, %v1701
        %s1704 = sld [smem:[#allocation2 + $0x7e]]
        %v1705 = vstv %s1704
        %v1706 = vmul.f32 %v916, %v1705
        %v1707 = vmul.f32 %v917, %v1705
        %v1708 = vadd.f32 %v1702, %v1706
        %v1709 = vadd.f32 %v1703, %v1707
        %s1710 = sld [smem:[#allocation2 + $0x7f]]
        %v1711 = vstv %s1710
        %v1712 = vmul.f32 %v918, %v1711
        %v1713 = vmul.f32 %v919, %v1711
        %v1714 = vadd.f32 %v1708, %v1712
        %v1715 = vadd.f32 %v1709, %v1713
        %s1716 = sld [smem:[#allocation7 + $0xf]]
        %v1717 = vstv %s1716
        %v1718 = vadd.f32 %v1714, %v1717
        %v1719 = vadd.f32 %v1715, %v1717
        %s1720 = sld [smem:[#allocation2 + $0x80]]
        %v1721 = vstv %s1720
        %v1722 = vmul.f32 %v904, %v1721
        %v1723 = vmul.f32 %v905, %v1721
        %s1724 = sld [smem:[#allocation2 + $0x81]]
        %v1725 = vstv %s1724
        %v1726 = vmul.f32 %v906, %v1725
        %v1727 = vmul.f32 %v907, %v1725
        %v1728 = vadd.f32 %v1722, %v1726
        %v1729 = vadd.f32 %v1723, %v1727
        %s1730 = sld [smem:[#allocation2 + $0x82]]
        %v1731 = vstv %s1730
        %v1732 = vmul.f32 %v908, %v1731
        %v1733 = vmul.f32 %v909, %v1731
        %v1734 = vadd.f32 %v1728, %v1732
        %v1735 = vadd.f32 %v1729, %v1733
        %s1736 = sld [smem:[#allocation2 + $0x83]]
        %v1737 = vstv %s1736
        %v1738 = vmul.f32 %v910, %v1737
        %v1739 = vmul.f32 %v911, %v1737
        %v1740 = vadd.f32 %v1734, %v1738
        %v1741 = vadd.f32 %v1735, %v1739
        %s1742 = sld [smem:[#allocation2 + $0x84]]
        %v1743 = vstv %s1742
        %v1744 = vmul.f32 %v912, %v1743
        %v1745 = vmul.f32 %v913, %v1743
        %v1746 = vadd.f32 %v1740, %v1744
        %v1747 = vadd.f32 %v1741, %v1745
        %s1748 = sld [smem:[#allocation2 + $0x85]]
        %v1749 = vstv %s1748
        %v1750 = vmul.f32 %v914, %v1749
        %v1751 = vmul.f32 %v915, %v1749
        %v1752 = vadd.f32 %v1746, %v1750
        %v1753 = vadd.f32 %v1747, %v1751
        %s1754 = sld [smem:[#allocation2 + $0x86]]
        %v1755 = vstv %s1754
        %v1756 = vmul.f32 %v916, %v1755
        %v1757 = vmul.f32 %v917, %v1755
        %v1758 = vadd.f32 %v1752, %v1756
        %v1759 = vadd.f32 %v1753, %v1757
        %s1760 = sld [smem:[#allocation2 + $0x87]]
        %v1761 = vstv %s1760
        %v1762 = vmul.f32 %v918, %v1761
        %v1763 = vmul.f32 %v919, %v1761
        %v1764 = vadd.f32 %v1758, %v1762
        %v1765 = vadd.f32 %v1759, %v1763
        %s1766 = sld [smem:[#allocation7 + $0x10]]
        %v1767 = vstv %s1766
        %v1768 = vadd.f32 %v1764, %v1767
        %v1769 = vadd.f32 %v1765, %v1767
        %s1770 = sld [smem:[#allocation2 + $0x88]]
        %v1771 = vstv %s1770
        %v1772 = vmul.f32 %v904, %v1771
        %v1773 = vmul.f32 %v905, %v1771
        %s1774 = sld [smem:[#allocation2 + $0x89]]
        %v1775 = vstv %s1774
        %v1776 = vmul.f32 %v906, %v1775
        %v1777 = vmul.f32 %v907, %v1775
        %v1778 = vadd.f32 %v1772, %v1776
        %v1779 = vadd.f32 %v1773, %v1777
        %s1780 = sld [smem:[#allocation2 + $0x8a]]
        %v1781 = vstv %s1780
        %v1782 = vmul.f32 %v908, %v1781
        %v1783 = vmul.f32 %v909, %v1781
        %v1784 = vadd.f32 %v1778, %v1782
        %v1785 = vadd.f32 %v1779, %v1783
        %s1786 = sld [smem:[#allocation2 + $0x8b]]
        %v1787 = vstv %s1786
        %v1788 = vmul.f32 %v910, %v1787
        %v1789 = vmul.f32 %v911, %v1787
        %v1790 = vadd.f32 %v1784, %v1788
        %v1791 = vadd.f32 %v1785, %v1789
        %s1792 = sld [smem:[#allocation2 + $0x8c]]
        %v1793 = vstv %s1792
        %v1794 = vmul.f32 %v912, %v1793
        %v1795 = vmul.f32 %v913, %v1793
        %v1796 = vadd.f32 %v1790, %v1794
        %v1797 = vadd.f32 %v1791, %v1795
        %s1798 = sld [smem:[#allocation2 + $0x8d]]
        %v1799 = vstv %s1798
        %v1800 = vmul.f32 %v914, %v1799
        %v1801 = vmul.f32 %v915, %v1799
        %v1802 = vadd.f32 %v1796, %v1800
        %v1803 = vadd.f32 %v1797, %v1801
        %s1804 = sld [smem:[#allocation2 + $0x8e]]
        %v1805 = vstv %s1804
        %v1806 = vmul.f32 %v916, %v1805
        %v1807 = vmul.f32 %v917, %v1805
        %v1808 = vadd.f32 %v1802, %v1806
        %v1809 = vadd.f32 %v1803, %v1807
        %s1810 = sld [smem:[#allocation2 + $0x8f]]
        %v1811 = vstv %s1810
        %v1812 = vmul.f32 %v918, %v1811
        %v1813 = vmul.f32 %v919, %v1811
        %v1814 = vadd.f32 %v1808, %v1812
        %v1815 = vadd.f32 %v1809, %v1813
        %s1816 = sld [smem:[#allocation7 + $0x11]]
        %v1817 = vstv %s1816
        %v1818 = vadd.f32 %v1814, %v1817
        %v1819 = vadd.f32 %v1815, %v1817
        %s1820 = sld [smem:[#allocation2 + $0x90]]
        %v1821 = vstv %s1820
        %v1822 = vmul.f32 %v904, %v1821
        %v1823 = vmul.f32 %v905, %v1821
        %s1824 = sld [smem:[#allocation2 + $0x91]]
        %v1825 = vstv %s1824
        %v1826 = vmul.f32 %v906, %v1825
        %v1827 = vmul.f32 %v907, %v1825
        %v1828 = vadd.f32 %v1822, %v1826
        %v1829 = vadd.f32 %v1823, %v1827
        %s1830 = sld [smem:[#allocation2 + $0x92]]
        %v1831 = vstv %s1830
        %v1832 = vmul.f32 %v908, %v1831
        %v1833 = vmul.f32 %v909, %v1831
        %v1834 = vadd.f32 %v1828, %v1832
        %v1835 = vadd.f32 %v1829, %v1833
        %s1836 = sld [smem:[#allocation2 + $0x93]]
        %v1837 = vstv %s1836
        %v1838 = vmul.f32 %v910, %v1837
        %v1839 = vmul.f32 %v911, %v1837
        %v1840 = vadd.f32 %v1834, %v1838
        %v1841 = vadd.f32 %v1835, %v1839
        %s1842 = sld [smem:[#allocation2 + $0x94]]
        %v1843 = vstv %s1842
        %v1844 = vmul.f32 %v912, %v1843
        %v1845 = vmul.f32 %v913, %v1843
        %v1846 = vadd.f32 %v1840, %v1844
        %v1847 = vadd.f32 %v1841, %v1845
        %s1848 = sld [smem:[#allocation2 + $0x95]]
        %v1849 = vstv %s1848
        %v1850 = vmul.f32 %v914, %v1849
        %v1851 = vmul.f32 %v915, %v1849
        %v1852 = vadd.f32 %v1846, %v1850
        %v1853 = vadd.f32 %v1847, %v1851
        %s1854 = sld [smem:[#allocation2 + $0x96]]
        %v1855 = vstv %s1854
        %v1856 = vmul.f32 %v916, %v1855
        %v1857 = vmul.f32 %v917, %v1855
        %v1858 = vadd.f32 %v1852, %v1856
        %v1859 = vadd.f32 %v1853, %v1857
        %s1860 = sld [smem:[#allocation2 + $0x97]]
        %v1861 = vstv %s1860
        %v1862 = vmul.f32 %v918, %v1861
        %v1863 = vmul.f32 %v919, %v1861
        %v1864 = vadd.f32 %v1858, %v1862
        %v1865 = vadd.f32 %v1859, %v1863
        %s1866 = sld [smem:[#allocation7 + $0x12]]
        %v1867 = vstv %s1866
        %v1868 = vadd.f32 %v1864, %v1867
        %v1869 = vadd.f32 %v1865, %v1867
        %s1870 = sld [smem:[#allocation2 + $0x98]]
        %v1871 = vstv %s1870
        %v1872 = vmul.f32 %v904, %v1871
        %v1873 = vmul.f32 %v905, %v1871
        %s1874 = sld [smem:[#allocation2 + $0x99]]
        %v1875 = vstv %s1874
        %v1876 = vmul.f32 %v906, %v1875
        %v1877 = vmul.f32 %v907, %v1875
        %v1878 = vadd.f32 %v1872, %v1876
        %v1879 = vadd.f32 %v1873, %v1877
        %s1880 = sld [smem:[#allocation2 + $0x9a]]
        %v1881 = vstv %s1880
        %v1882 = vmul.f32 %v908, %v1881
        %v1883 = vmul.f32 %v909, %v1881
        %v1884 = vadd.f32 %v1878, %v1882
        %v1885 = vadd.f32 %v1879, %v1883
        %s1886 = sld [smem:[#allocation2 + $0x9b]]
        %v1887 = vstv %s1886
        %v1888 = vmul.f32 %v910, %v1887
        %v1889 = vmul.f32 %v911, %v1887
        %v1890 = vadd.f32 %v1884, %v1888
        %v1891 = vadd.f32 %v1885, %v1889
        %s1892 = sld [smem:[#allocation2 + $0x9c]]
        %v1893 = vstv %s1892
        %v1894 = vmul.f32 %v912, %v1893
        %v1895 = vmul.f32 %v913, %v1893
        %v1896 = vadd.f32 %v1890, %v1894
        %v1897 = vadd.f32 %v1891, %v1895
        %s1898 = sld [smem:[#allocation2 + $0x9d]]
        %v1899 = vstv %s1898
        %v1900 = vmul.f32 %v914, %v1899
        %v1901 = vmul.f32 %v915, %v1899
        %v1902 = vadd.f32 %v1896, %v1900
        %v1903 = vadd.f32 %v1897, %v1901
        %s1904 = sld [smem:[#allocation2 + $0x9e]]
        %v1905 = vstv %s1904
        %v1906 = vmul.f32 %v916, %v1905
        %v1907 = vmul.f32 %v917, %v1905
        %v1908 = vadd.f32 %v1902, %v1906
        %v1909 = vadd.f32 %v1903, %v1907
        %s1910 = sld [smem:[#allocation2 + $0x9f]]
        %v1911 = vstv %s1910
        %v1912 = vmul.f32 %v918, %v1911
        %v1913 = vmul.f32 %v919, %v1911
        %v1914 = vadd.f32 %v1908, %v1912
        %v1915 = vadd.f32 %v1909, %v1913
        %s1916 = sld [smem:[#allocation7 + $0x13]]
        %v1917 = vstv %s1916
        %v1918 = vadd.f32 %v1914, %v1917
        %v1919 = vadd.f32 %v1915, %v1917
        %s1920 = sld [smem:[#allocation2 + $0xa0]]
        %v1921 = vstv %s1920
        %v1922 = vmul.f32 %v904, %v1921
        %v1923 = vmul.f32 %v905, %v1921
        %s1924 = sld [smem:[#allocation2 + $0xa1]]
        %v1925 = vstv %s1924
        %v1926 = vmul.f32 %v906, %v1925
        %v1927 = vmul.f32 %v907, %v1925
        %v1928 = vadd.f32 %v1922, %v1926
        %v1929 = vadd.f32 %v1923, %v1927
        %s1930 = sld [smem:[#allocation2 + $0xa2]]
        %v1931 = vstv %s1930
        %v1932 = vmul.f32 %v908, %v1931
        %v1933 = vmul.f32 %v909, %v1931
        %v1934 = vadd.f32 %v1928, %v1932
        %v1935 = vadd.f32 %v1929, %v1933
        %s1936 = sld [smem:[#allocation2 + $0xa3]]
        %v1937 = vstv %s1936
        %v1938 = vmul.f32 %v910, %v1937
        %v1939 = vmul.f32 %v911, %v1937
        %v1940 = vadd.f32 %v1934, %v1938
        %v1941 = vadd.f32 %v1935, %v1939
        %s1942 = sld [smem:[#allocation2 + $0xa4]]
        %v1943 = vstv %s1942
        %v1944 = vmul.f32 %v912, %v1943
        %v1945 = vmul.f32 %v913, %v1943
        %v1946 = vadd.f32 %v1940, %v1944
        %v1947 = vadd.f32 %v1941, %v1945
        %s1948 = sld [smem:[#allocation2 + $0xa5]]
        %v1949 = vstv %s1948
        %v1950 = vmul.f32 %v914, %v1949
        %v1951 = vmul.f32 %v915, %v1949
        %v1952 = vadd.f32 %v1946, %v1950
        %v1953 = vadd.f32 %v1947, %v1951
        %s1954 = sld [smem:[#allocation2 + $0xa6]]
        %v1955 = vstv %s1954
        %v1956 = vmul.f32 %v916, %v1955
        %v1957 = vmul.f32 %v917, %v1955
        %v1958 = vadd.f32 %v1952, %v1956
        %v1959 = vadd.f32 %v1953, %v1957
        %s1960 = sld [smem:[#allocation2 + $0xa7]]
        %v1961 = vstv %s1960
        %v1962 = vmul.f32 %v918, %v1961
        %v1963 = vmul.f32 %v919, %v1961
        %v1964 = vadd.f32 %v1958, %v1962
        %v1965 = vadd.f32 %v1959, %v1963
        %s1966 = sld [smem:[#allocation7 + $0x14]]
        %v1967 = vstv %s1966
        %v1968 = vadd.f32 %v1964, %v1967
        %v1969 = vadd.f32 %v1965, %v1967
        %s1970 = sld [smem:[#allocation2 + $0xa8]]
        %v1971 = vstv %s1970
        %v1972 = vmul.f32 %v904, %v1971
        %v1973 = vmul.f32 %v905, %v1971
        %s1974 = sld [smem:[#allocation2 + $0xa9]]
        %v1975 = vstv %s1974
        %v1976 = vmul.f32 %v906, %v1975
        %v1977 = vmul.f32 %v907, %v1975
        %v1978 = vadd.f32 %v1972, %v1976
        %v1979 = vadd.f32 %v1973, %v1977
        %s1980 = sld [smem:[#allocation2 + $0xaa]]
        %v1981 = vstv %s1980
        %v1982 = vmul.f32 %v908, %v1981
        %v1983 = vmul.f32 %v909, %v1981
        %v1984 = vadd.f32 %v1978, %v1982
        %v1985 = vadd.f32 %v1979, %v1983
        %s1986 = sld [smem:[#allocation2 + $0xab]]
        %v1987 = vstv %s1986
        %v1988 = vmul.f32 %v910, %v1987
        %v1989 = vmul.f32 %v911, %v1987
        %v1990 = vadd.f32 %v1984, %v1988
        %v1991 = vadd.f32 %v1985, %v1989
        %s1992 = sld [smem:[#allocation2 + $0xac]]
        %v1993 = vstv %s1992
        %v1994 = vmul.f32 %v912, %v1993
        %v1995 = vmul.f32 %v913, %v1993
        %v1996 = vadd.f32 %v1990, %v1994
        %v1997 = vadd.f32 %v1991, %v1995
        %s1998 = sld [smem:[#allocation2 + $0xad]]
        %v1999 = vstv %s1998
        %v2000 = vmul.f32 %v914, %v1999
        %v2001 = vmul.f32 %v915, %v1999
        %v2002 = vadd.f32 %v1996, %v2000
        %v2003 = vadd.f32 %v1997, %v2001
        %s2004 = sld [smem:[#allocation2 + $0xae]]
        %v2005 = vstv %s2004
        %v2006 = vmul.f32 %v916, %v2005
        %v2007 = vmul.f32 %v917, %v2005
        %v2008 = vadd.f32 %v2002, %v2006
        %v2009 = vadd.f32 %v2003, %v2007
        %s2010 = sld [smem:[#allocation2 + $0xaf]]
        %v2011 = vstv %s2010
        %v2012 = vmul.f32 %v918, %v2011
        %v2013 = vmul.f32 %v919, %v2011
        %v2014 = vadd.f32 %v2008, %v2012
        %v2015 = vadd.f32 %v2009, %v2013
        %s2016 = sld [smem:[#allocation7 + $0x15]]
        %v2017 = vstv %s2016
        %v2018 = vadd.f32 %v2014, %v2017
        %v2019 = vadd.f32 %v2015, %v2017
        %s2020 = sld [smem:[#allocation2 + $0xb0]]
        %v2021 = vstv %s2020
        %v2022 = vmul.f32 %v904, %v2021
        %v2023 = vmul.f32 %v905, %v2021
        %s2024 = sld [smem:[#allocation2 + $0xb1]]
        %v2025 = vstv %s2024
        %v2026 = vmul.f32 %v906, %v2025
        %v2027 = vmul.f32 %v907, %v2025
        %v2028 = vadd.f32 %v2022, %v2026
        %v2029 = vadd.f32 %v2023, %v2027
        %s2030 = sld [smem:[#allocation2 + $0xb2]]
        %v2031 = vstv %s2030
        %v2032 = vmul.f32 %v908, %v2031
        %v2033 = vmul.f32 %v909, %v2031
        %v2034 = vadd.f32 %v2028, %v2032
        %v2035 = vadd.f32 %v2029, %v2033
        %s2036 = sld [smem:[#allocation2 + $0xb3]]
        %v2037 = vstv %s2036
        %v2038 = vmul.f32 %v910, %v2037
        %v2039 = vmul.f32 %v911, %v2037
        %v2040 = vadd.f32 %v2034, %v2038
        %v2041 = vadd.f32 %v2035, %v2039
        %s2042 = sld [smem:[#allocation2 + $0xb4]]
        %v2043 = vstv %s2042
        %v2044 = vmul.f32 %v912, %v2043
        %v2045 = vmul.f32 %v913, %v2043
        %v2046 = vadd.f32 %v2040, %v2044
        %v2047 = vadd.f32 %v2041, %v2045
        %s2048 = sld [smem:[#allocation2 + $0xb5]]
        %v2049 = vstv %s2048
        %v2050 = vmul.f32 %v914, %v2049
        %v2051 = vmul.f32 %v915, %v2049
        %v2052 = vadd.f32 %v2046, %v2050
        %v2053 = vadd.f32 %v2047, %v2051
        %s2054 = sld [smem:[#allocation2 + $0xb6]]
        %v2055 = vstv %s2054
        %v2056 = vmul.f32 %v916, %v2055
        %v2057 = vmul.f32 %v917, %v2055
        %v2058 = vadd.f32 %v2052, %v2056
        %v2059 = vadd.f32 %v2053, %v2057
        %s2060 = sld [smem:[#allocation2 + $0xb7]]
        %v2061 = vstv %s2060
        %v2062 = vmul.f32 %v918, %v2061
        %v2063 = vmul.f32 %v919, %v2061
        %v2064 = vadd.f32 %v2058, %v2062
        %v2065 = vadd.f32 %v2059, %v2063
        %s2066 = sld [smem:[#allocation7 + $0x16]]
        %v2067 = vstv %s2066
        %v2068 = vadd.f32 %v2064, %v2067
        %v2069 = vadd.f32 %v2065, %v2067
        %s2070 = sld [smem:[#allocation2 + $0xb8]]
        %v2071 = vstv %s2070
        %v2072 = vmul.f32 %v904, %v2071
        %v2073 = vmul.f32 %v905, %v2071
        %s2074 = sld [smem:[#allocation2 + $0xb9]]
        %v2075 = vstv %s2074
        %v2076 = vmul.f32 %v906, %v2075
        %v2077 = vmul.f32 %v907, %v2075
        %v2078 = vadd.f32 %v2072, %v2076
        %v2079 = vadd.f32 %v2073, %v2077
        %s2080 = sld [smem:[#allocation2 + $0xba]]
        %v2081 = vstv %s2080
        %v2082 = vmul.f32 %v908, %v2081
        %v2083 = vmul.f32 %v909, %v2081
        %v2084 = vadd.f32 %v2078, %v2082
        %v2085 = vadd.f32 %v2079, %v2083
        %s2086 = sld [smem:[#allocation2 + $0xbb]]
        %v2087 = vstv %s2086
        %v2088 = vmul.f32 %v910, %v2087
        %v2089 = vmul.f32 %v911, %v2087
        %v2090 = vadd.f32 %v2084, %v2088
        %v2091 = vadd.f32 %v2085, %v2089
        %s2092 = sld [smem:[#allocation2 + $0xbc]]
        %v2093 = vstv %s2092
        %v2094 = vmul.f32 %v912, %v2093
        %v2095 = vmul.f32 %v913, %v2093
        %v2096 = vadd.f32 %v2090, %v2094
        %v2097 = vadd.f32 %v2091, %v2095
        %s2098 = sld [smem:[#allocation2 + $0xbd]]
        %v2099 = vstv %s2098
        %v2100 = vmul.f32 %v914, %v2099
        %v2101 = vmul.f32 %v915, %v2099
        %v2102 = vadd.f32 %v2096, %v2100
        %v2103 = vadd.f32 %v2097, %v2101
        %s2104 = sld [smem:[#allocation2 + $0xbe]]
        %v2105 = vstv %s2104
        %v2106 = vmul.f32 %v916, %v2105
        %v2107 = vmul.f32 %v917, %v2105
        %v2108 = vadd.f32 %v2102, %v2106
        %v2109 = vadd.f32 %v2103, %v2107
        %s2110 = sld [smem:[#allocation2 + $0xbf]]
        %v2111 = vstv %s2110
        %v2112 = vmul.f32 %v918, %v2111
        %v2113 = vmul.f32 %v919, %v2111
        %v2114 = vadd.f32 %v2108, %v2112
        %v2115 = vadd.f32 %v2109, %v2113
        %s2116 = sld [smem:[#allocation7 + $0x17]]
        %v2117 = vstv %s2116
        %v2118 = vadd.f32 %v2114, %v2117
        %v2119 = vadd.f32 %v2115, %v2117
        %v2122 = vcombine.low %v1368, %v1369
        %v2123 = vcombine.high %v1368, %v1369
        %v2125 = vunpack.c.l.s4 1966171168
        %v2126 = vunpack.c.0.s8 %v2125
        %v2127 = vlaneseq
        %v2128 = vshrl.u32 %v2127, 7
        %v2129 = vsub.s32 %v2126, %v2128
        %v2130 = vrot.slane %v2122, %v2129
        %v2132 = vunpack.c.l.s4 1966171168
        %v2133 = vunpack.c.0.s8 %v2132
        %v2134 = vlaneseq
        %v2135 = vshrl.u32 %v2134, 7
        %v2136 = vsub.s32 %v2133, %v2135
        %v2137 = vrot.slane %v2123, %v2136
        %v2138 = vcombine.high %v2130, %v2130
        %v2139 = vcombine.high %v2137, %v2137
        %v2141 = vunpack.c.l.s4 1966171168
        %v2142 = vunpack.c.0.s8 %v2141
        %v2143 = vlaneseq
        %v2144 = vshrl.u32 %v2143, 7
        %v2145 = vsub.s32 %v2142, %v2144
        %v2146 = vrot.slane %v2130, %v2145
        %v2148 = vunpack.c.l.s4 1966171168
        %v2149 = vunpack.c.0.s8 %v2148
        %v2150 = vlaneseq
        %v2151 = vshrl.u32 %v2150, 7
        %v2152 = vsub.s32 %v2149, %v2151
        %v2153 = vrot.slane %v2137, %v2152
        %v2155 = vunpack.c.l.s4 1966171168
        %v2156 = vunpack.c.0.s8 %v2155
        %v2157 = vlaneseq
        %v2158 = vshrl.u32 %v2157, 7
        %v2159 = vsub.s32 %v2156, %v2158
        %v2160 = vrot.slane %v2138, %v2159
        %v2162 = vunpack.c.l.s4 1966171168
        %v2163 = vunpack.c.0.s8 %v2162
        %v2164 = vlaneseq
        %v2165 = vshrl.u32 %v2164, 7
        %v2166 = vsub.s32 %v2163, %v2165
        %v2167 = vrot.slane %v2139, %v2166
        %v2168 = vcombine.high %v2146, %v2146
        %v2169 = vcombine.high %v2153, %v2153
        %v2170 = vcombine.high %v2160, %v2160
        %v2171 = vcombine.high %v2167, %v2167
        %v2172 = vlaneseq
        %v2173 = vshrl.u32 %v2172, 7
        %v2174 = vsub.s32 0, %v2173
        %v2175 = vrot.slane %v2146, %v2174
        %v2176 = vlaneseq
        %v2177 = vshrl.u32 %v2176, 7
        %v2178 = vsub.s32 1, %v2177
        %v2179 = vrot.slane %v2146, %v2178
        %v2180 = vlaneseq
        %v2181 = vshrl.u32 %v2180, 7
        %v2182 = vsub.s32 0, %v2181
        %v2183 = vrot.slane %v2160, %v2182
        %v2184 = vlaneseq
        %v2185 = vshrl.u32 %v2184, 7
        %v2186 = vsub.s32 1, %v2185
        %v2187 = vrot.slane %v2160, %v2186
        %v2188 = vlaneseq
        %v2189 = vshrl.u32 %v2188, 7
        %v2190 = vsub.s32 0, %v2189
        %v2191 = vrot.slane %v2168, %v2190
        %v2192 = vlaneseq
        %v2193 = vshrl.u32 %v2192, 7
        %v2194 = vsub.s32 1, %v2193
        %v2195 = vrot.slane %v2168, %v2194
        %v2196 = vlaneseq
        %v2197 = vshrl.u32 %v2196, 7
        %v2198 = vsub.s32 0, %v2197
        %v2199 = vrot.slane %v2170, %v2198
        %v2200 = vlaneseq
        %v2201 = vshrl.u32 %v2200, 7
        %v2202 = vsub.s32 1, %v2201
        %v2203 = vrot.slane %v2170, %v2202
        %v2204 = vlaneseq
        %v2205 = vshrl.u32 %v2204, 7
        %v2206 = vsub.s32 0, %v2205
        %v2207 = vrot.slane %v2153, %v2206
        %v2208 = vlaneseq
        %v2209 = vshrl.u32 %v2208, 7
        %v2210 = vsub.s32 1, %v2209
        %v2211 = vrot.slane %v2153, %v2210
        %v2212 = vlaneseq
        %v2213 = vshrl.u32 %v2212, 7
        %v2214 = vsub.s32 0, %v2213
        %v2215 = vrot.slane %v2167, %v2214
        %v2216 = vlaneseq
        %v2217 = vshrl.u32 %v2216, 7
        %v2218 = vsub.s32 1, %v2217
        %v2219 = vrot.slane %v2167, %v2218
        %v2220 = vlaneseq
        %v2221 = vshrl.u32 %v2220, 7
        %v2222 = vsub.s32 0, %v2221
        %v2223 = vrot.slane %v2169, %v2222
        %v2224 = vlaneseq
        %v2225 = vshrl.u32 %v2224, 7
        %v2226 = vsub.s32 1, %v2225
        %v2227 = vrot.slane %v2169, %v2226
        %v2228 = vlaneseq
        %v2229 = vshrl.u32 %v2228, 7
        %v2230 = vsub.s32 0, %v2229
        %v2231 = vrot.slane %v2171, %v2230
        %v2232 = vlaneseq
        %v2233 = vshrl.u32 %v2232, 7
        %v2234 = vsub.s32 1, %v2233
        %v2235 = vrot.slane %v2171, %v2234
        %v2252 = vmul.f32 %v2175, %v968
        %v2253 = vmul.f32 %v2179, %v969
        %v2254 = vmul.f32 %v2183, %v968
        %v2255 = vmul.f32 %v2187, %v969
        %v2256 = vmul.f32 %v2191, %v968
        %v2257 = vmul.f32 %v2195, %v969
        %v2258 = vmul.f32 %v2199, %v968
        %v2259 = vmul.f32 %v2203, %v969
        %v2260 = vmul.f32 %v2207, %v968
        %v2261 = vmul.f32 %v2211, %v969
        %v2262 = vmul.f32 %v2215, %v968
        %v2263 = vmul.f32 %v2219, %v969
        %v2264 = vmul.f32 %v2223, %v968
        %v2265 = vmul.f32 %v2227, %v969
        %v2266 = vmul.f32 %v2231, %v968
        %v2267 = vmul.f32 %v2235, %v969
        %v2270 = vcombine.low %v1418, %v1419
        %v2271 = vcombine.high %v1418, %v1419
        %v2273 = vunpack.c.l.s4 1966171168
        %v2274 = vunpack.c.0.s8 %v2273
        %v2275 = vlaneseq
        %v2276 = vshrl.u32 %v2275, 7
        %v2277 = vsub.s32 %v2274, %v2276
        %v2278 = vrot.slane %v2270, %v2277
        %v2280 = vunpack.c.l.s4 1966171168
        %v2281 = vunpack.c.0.s8 %v2280
        %v2282 = vlaneseq
        %v2283 = vshrl.u32 %v2282, 7
        %v2284 = vsub.s32 %v2281, %v2283
        %v2285 = vrot.slane %v2271, %v2284
        %v2286 = vcombine.high %v2278, %v2278
        %v2287 = vcombine.high %v2285, %v2285
        %v2289 = vunpack.c.l.s4 1966171168
        %v2290 = vunpack.c.0.s8 %v2289
        %v2291 = vlaneseq
        %v2292 = vshrl.u32 %v2291, 7
        %v2293 = vsub.s32 %v2290, %v2292
        %v2294 = vrot.slane %v2278, %v2293
        %v2296 = vunpack.c.l.s4 1966171168
        %v2297 = vunpack.c.0.s8 %v2296
        %v2298 = vlaneseq
        %v2299 = vshrl.u32 %v2298, 7
        %v2300 = vsub.s32 %v2297, %v2299
        %v2301 = vrot.slane %v2285, %v2300
        %v2303 = vunpack.c.l.s4 1966171168
        %v2304 = vunpack.c.0.s8 %v2303
        %v2305 = vlaneseq
        %v2306 = vshrl.u32 %v2305, 7
        %v2307 = vsub.s32 %v2304, %v2306
        %v2308 = vrot.slane %v2286, %v2307
        %v2310 = vunpack.c.l.s4 1966171168
        %v2311 = vunpack.c.0.s8 %v2310
        %v2312 = vlaneseq
        %v2313 = vshrl.u32 %v2312, 7
        %v2314 = vsub.s32 %v2311, %v2313
        %v2315 = vrot.slane %v2287, %v2314
        %v2316 = vcombine.high %v2294, %v2294
        %v2317 = vcombine.high %v2301, %v2301
        %v2318 = vcombine.high %v2308, %v2308
        %v2319 = vcombine.high %v2315, %v2315
        %v2320 = vlaneseq
        %v2321 = vshrl.u32 %v2320, 7
        %v2322 = vsub.s32 0, %v2321
        %v2323 = vrot.slane %v2294, %v2322
        %v2324 = vlaneseq
        %v2325 = vshrl.u32 %v2324, 7
        %v2326 = vsub.s32 1, %v2325
        %v2327 = vrot.slane %v2294, %v2326
        %v2328 = vlaneseq
        %v2329 = vshrl.u32 %v2328, 7
        %v2330 = vsub.s32 0, %v2329
        %v2331 = vrot.slane %v2308, %v2330
        %v2332 = vlaneseq
        %v2333 = vshrl.u32 %v2332, 7
        %v2334 = vsub.s32 1, %v2333
        %v2335 = vrot.slane %v2308, %v2334
        %v2336 = vlaneseq
        %v2337 = vshrl.u32 %v2336, 7
        %v2338 = vsub.s32 0, %v2337
        %v2339 = vrot.slane %v2316, %v2338
        %v2340 = vlaneseq
        %v2341 = vshrl.u32 %v2340, 7
        %v2342 = vsub.s32 1, %v2341
        %v2343 = vrot.slane %v2316, %v2342
        %v2344 = vlaneseq
        %v2345 = vshrl.u32 %v2344, 7
        %v2346 = vsub.s32 0, %v2345
        %v2347 = vrot.slane %v2318, %v2346
        %v2348 = vlaneseq
        %v2349 = vshrl.u32 %v2348, 7
        %v2350 = vsub.s32 1, %v2349
        %v2351 = vrot.slane %v2318, %v2350
        %v2352 = vlaneseq
        %v2353 = vshrl.u32 %v2352, 7
        %v2354 = vsub.s32 0, %v2353
        %v2355 = vrot.slane %v2301, %v2354
        %v2356 = vlaneseq
        %v2357 = vshrl.u32 %v2356, 7
        %v2358 = vsub.s32 1, %v2357
        %v2359 = vrot.slane %v2301, %v2358
        %v2360 = vlaneseq
        %v2361 = vshrl.u32 %v2360, 7
        %v2362 = vsub.s32 0, %v2361
        %v2363 = vrot.slane %v2315, %v2362
        %v2364 = vlaneseq
        %v2365 = vshrl.u32 %v2364, 7
        %v2366 = vsub.s32 1, %v2365
        %v2367 = vrot.slane %v2315, %v2366
        %v2368 = vlaneseq
        %v2369 = vshrl.u32 %v2368, 7
        %v2370 = vsub.s32 0, %v2369
        %v2371 = vrot.slane %v2317, %v2370
        %v2372 = vlaneseq
        %v2373 = vshrl.u32 %v2372, 7
        %v2374 = vsub.s32 1, %v2373
        %v2375 = vrot.slane %v2317, %v2374
        %v2376 = vlaneseq
        %v2377 = vshrl.u32 %v2376, 7
        %v2378 = vsub.s32 0, %v2377
        %v2379 = vrot.slane %v2319, %v2378
        %v2380 = vlaneseq
        %v2381 = vshrl.u32 %v2380, 7
        %v2382 = vsub.s32 1, %v2381
        %v2383 = vrot.slane %v2319, %v2382
        %v2400 = vmul.f32 %v2323, %v1018
        %v2401 = vmul.f32 %v2327, %v1019
        %v2402 = vmul.f32 %v2331, %v1018
        %v2403 = vmul.f32 %v2335, %v1019
        %v2404 = vmul.f32 %v2339, %v1018
        %v2405 = vmul.f32 %v2343, %v1019
        %v2406 = vmul.f32 %v2347, %v1018
        %v2407 = vmul.f32 %v2351, %v1019
        %v2408 = vmul.f32 %v2355, %v1018
        %v2409 = vmul.f32 %v2359, %v1019
        %v2410 = vmul.f32 %v2363, %v1018
        %v2411 = vmul.f32 %v2367, %v1019
        %v2412 = vmul.f32 %v2371, %v1018
        %v2413 = vmul.f32 %v2375, %v1019
        %v2414 = vmul.f32 %v2379, %v1018
        %v2415 = vmul.f32 %v2383, %v1019
        %v2416 = vadd.f32 %v2252, %v2400
        %v2417 = vadd.f32 %v2253, %v2401
        %v2418 = vadd.f32 %v2254, %v2402
        %v2419 = vadd.f32 %v2255, %v2403
        %v2420 = vadd.f32 %v2256, %v2404
        %v2421 = vadd.f32 %v2257, %v2405
        %v2422 = vadd.f32 %v2258, %v2406
        %v2423 = vadd.f32 %v2259, %v2407
        %v2424 = vadd.f32 %v2260, %v2408
        %v2425 = vadd.f32 %v2261, %v2409
        %v2426 = vadd.f32 %v2262, %v2410
        %v2427 = vadd.f32 %v2263, %v2411
        %v2428 = vadd.f32 %v2264, %v2412
        %v2429 = vadd.f32 %v2265, %v2413
        %v2430 = vadd.f32 %v2266, %v2414
        %v2431 = vadd.f32 %v2267, %v2415
        %v2432 = vmax.f32 %v2416, %v2420
        %v2433 = vmax.f32 %v2418, %v2422
        %v2434 = vmax.f32 %v2432, %v2424
        %v2435 = vmax.f32 %v2433, %v2426
        %v2436 = vmax.f32 %v2434, %v2428
        %v2437 = vmax.f32 %v2435, %v2430
        %v2438 = vmax.f32 %v2436, %v2437
        %v2439 = vmax.f32 %v2417, %v2421
        %v2440 = vmax.f32 %v2419, %v2423
        %v2441 = vmax.f32 %v2439, %v2425
        %v2442 = vmax.f32 %v2440, %v2427
        %v2443 = vmax.f32 %v2441, %v2429
        %v2444 = vmax.f32 %v2442, %v2431
        %v2445 = vmax.f32 %v2443, %v2444
        %v2446 = vsub.f32 %v2416, %v2438
        %v2447 = vsub.f32 %v2417, %v2445
        %v2448 = vsub.f32 %v2418, %v2438
        %v2449 = vsub.f32 %v2419, %v2445
        %v2450 = vsub.f32 %v2420, %v2438
        %v2451 = vsub.f32 %v2421, %v2445
        %v2452 = vsub.f32 %v2422, %v2438
        %v2453 = vsub.f32 %v2423, %v2445
        %v2454 = vsub.f32 %v2424, %v2438
        %v2455 = vsub.f32 %v2425, %v2445
        %v2456 = vsub.f32 %v2426, %v2438
        %v2457 = vsub.f32 %v2427, %v2445
        %v2458 = vsub.f32 %v2428, %v2438
        %v2459 = vsub.f32 %v2429, %v2445
        %v2460 = vsub.f32 %v2430, %v2438
        %v2461 = vsub.f32 %v2431, %v2445
        %v2462 = vmul.f32 %v2446, 1.442695
        %v2463 = vpow.pop %v2462
        %v2464 = vmul.f32 %v2447, 1.442695
        %v2465 = vpow.pop %v2464
        %v2466 = vmul.f32 %v2448, 1.442695
        %v2467 = vpow.pop %v2466
        %v2468 = vmul.f32 %v2449, 1.442695
        %v2469 = vpow.pop %v2468
        %v2470 = vmul.f32 %v2450, 1.442695
        %v2471 = vpow.pop %v2470
        %v2472 = vmul.f32 %v2451, 1.442695
        %v2473 = vpow.pop %v2472
        %v2474 = vmul.f32 %v2452, 1.442695
        %v2475 = vpow.pop %v2474
        %v2476 = vmul.f32 %v2453, 1.442695
        %v2477 = vpow.pop %v2476
        %v2478 = vmul.f32 %v2454, 1.442695
        %v2479 = vpow.pop %v2478
        %v2480 = vmul.f32 %v2455, 1.442695
        %v2481 = vpow.pop %v2480
        %v2482 = vmul.f32 %v2456, 1.442695
        %v2483 = vpow.pop %v2482
        %v2484 = vmul.f32 %v2457, 1.442695
        %v2485 = vpow.pop %v2484
        %v2486 = vmul.f32 %v2458, 1.442695
        %v2487 = vpow.pop %v2486
        %v2488 = vmul.f32 %v2459, 1.442695
        %v2489 = vpow.pop %v2488
        %v2490 = vmul.f32 %v2460, 1.442695
        %v2491 = vpow.pop %v2490
        %v2492 = vmul.f32 %v2461, 1.442695
        %v2493 = vpow.pop %v2492
        %v2494 = vadd.f32 %v2463, %v2467
        %v2495 = vadd.f32 %v2494, %v2471
        %v2496 = vadd.f32 %v2495, %v2475
        %v2497 = vadd.f32 %v2496, %v2479
        %v2498 = vadd.f32 %v2497, %v2483
        %v2499 = vadd.f32 %v2498, %v2487
        %v2500 = vadd.f32 %v2499, %v2491
        %v2501 = vadd.f32 %v2465, %v2469
        %v2502 = vadd.f32 %v2501, %v2473
        %v2503 = vadd.f32 %v2502, %v2477
        %v2504 = vadd.f32 %v2503, %v2481
        %v2505 = vadd.f32 %v2504, %v2485
        %v2506 = vadd.f32 %v2505, %v2489
        %v2507 = vadd.f32 %v2506, %v2493
        %v2508 = vrcp.pop %v2500
        %v2509 = vrcp.pop %v2507
        %v2510 = vlaneseq
        %v2511 = vshrl.u32 %v2510, 7
        %v2512 = vsub.s32 0, %v2511
        %v2513 = vrot.slane %v1768, %v2512
        %v2514 = vlaneseq
        %v2515 = vshrl.u32 %v2514, 7
        %v2516 = vsub.s32 0, %v2515
        %v2517 = vrot.slane %v1769, %v2516
        %v2518 = vmul.f32 %v2463, %v2513
        %v2519 = vmul.f32 %v2465, %v2517
        %v2520 = vlaneseq
        %v2521 = vshrl.u32 %v2520, 7
        %v2522 = vsub.s32 1, %v2521
        %v2523 = vrot.slane %v1768, %v2522
        %v2524 = vlaneseq
        %v2525 = vshrl.u32 %v2524, 7
        %v2526 = vsub.s32 1, %v2525
        %v2527 = vrot.slane %v1769, %v2526
        %v2528 = vmul.f32 %v2467, %v2523
        %v2529 = vmul.f32 %v2469, %v2527
        %v2530 = vadd.f32 %v2518, %v2528
        %v2531 = vadd.f32 %v2519, %v2529
        %v2532 = vlaneseq
        %v2533 = vshrl.u32 %v2532, 7
        %v2534 = vsub.s32 2, %v2533
        %v2535 = vrot.slane %v1768, %v2534
        %v2536 = vlaneseq
        %v2537 = vshrl.u32 %v2536, 7
        %v2538 = vsub.s32 2, %v2537
        %v2539 = vrot.slane %v1769, %v2538
        %v2540 = vmul.f32 %v2471, %v2535
        %v2541 = vmul.f32 %v2473, %v2539
        %v2542 = vadd.f32 %v2530, %v2540
        %v2543 = vadd.f32 %v2531, %v2541
        %v2544 = vlaneseq
        %v2545 = vshrl.u32 %v2544, 7
        %v2546 = vsub.s32 3, %v2545
        %v2547 = vrot.slane %v1768, %v2546
        %v2548 = vlaneseq
        %v2549 = vshrl.u32 %v2548, 7
        %v2550 = vsub.s32 3, %v2549
        %v2551 = vrot.slane %v1769, %v2550
        %v2552 = vmul.f32 %v2475, %v2547
        %v2553 = vmul.f32 %v2477, %v2551
        %v2554 = vadd.f32 %v2542, %v2552
        %v2555 = vadd.f32 %v2543, %v2553
        %v2556 = vlaneseq
        %v2557 = vshrl.u32 %v2556, 7
        %v2558 = vsub.s32 4, %v2557
        %v2559 = vrot.slane %v1768, %v2558
        %v2560 = vlaneseq
        %v2561 = vshrl.u32 %v2560, 7
        %v2562 = vsub.s32 4, %v2561
        %v2563 = vrot.slane %v1769, %v2562
        %v2564 = vmul.f32 %v2479, %v2559
        %v2565 = vmul.f32 %v2481, %v2563
        %v2566 = vadd.f32 %v2554, %v2564
        %v2567 = vadd.f32 %v2555, %v2565
        %v2568 = vlaneseq
        %v2569 = vshrl.u32 %v2568, 7
        %v2570 = vsub.s32 5, %v2569
        %v2571 = vrot.slane %v1768, %v2570
        %v2572 = vlaneseq
        %v2573 = vshrl.u32 %v2572, 7
        %v2574 = vsub.s32 5, %v2573
        %v2575 = vrot.slane %v1769, %v2574
        %v2576 = vmul.f32 %v2483, %v2571
        %v2577 = vmul.f32 %v2485, %v2575
        %v2578 = vadd.f32 %v2566, %v2576
        %v2579 = vadd.f32 %v2567, %v2577
        %v2580 = vlaneseq
        %v2581 = vshrl.u32 %v2580, 7
        %v2582 = vsub.s32 6, %v2581
        %v2583 = vrot.slane %v1768, %v2582
        %v2584 = vlaneseq
        %v2585 = vshrl.u32 %v2584, 7
        %v2586 = vsub.s32 6, %v2585
        %v2587 = vrot.slane %v1769, %v2586
        %v2588 = vmul.f32 %v2487, %v2583
        %v2589 = vmul.f32 %v2489, %v2587
        %v2590 = vadd.f32 %v2578, %v2588
        %v2591 = vadd.f32 %v2579, %v2589
        %v2592 = vlaneseq
        %v2593 = vshrl.u32 %v2592, 7
        %v2594 = vsub.s32 7, %v2593
        %v2595 = vrot.slane %v1768, %v2594
        %v2596 = vlaneseq
        %v2597 = vshrl.u32 %v2596, 7
        %v2598 = vsub.s32 7, %v2597
        %v2599 = vrot.slane %v1769, %v2598
        %v2600 = vmul.f32 %v2491, %v2595
        %v2601 = vmul.f32 %v2493, %v2599
        %v2602 = vadd.f32 %v2590, %v2600
        %v2603 = vadd.f32 %v2591, %v2601
        %v2604 = vmul.f32 %v2602, %v2508
        %v2605 = vmul.f32 %v2603, %v2509
        %v2606 = vlaneseq
        %v2607 = vshrl.u32 %v2606, 7
        %v2608 = vsub.s32 0, %v2607
        %v2609 = vrot.slane %v1818, %v2608
        %v2610 = vlaneseq
        %v2611 = vshrl.u32 %v2610, 7
        %v2612 = vsub.s32 0, %v2611
        %v2613 = vrot.slane %v1819, %v2612
        %v2614 = vmul.f32 %v2463, %v2609
        %v2615 = vmul.f32 %v2465, %v2613
        %v2616 = vlaneseq
        %v2617 = vshrl.u32 %v2616, 7
        %v2618 = vsub.s32 1, %v2617
        %v2619 = vrot.slane %v1818, %v2618
        %v2620 = vlaneseq
        %v2621 = vshrl.u32 %v2620, 7
        %v2622 = vsub.s32 1, %v2621
        %v2623 = vrot.slane %v1819, %v2622
        %v2624 = vmul.f32 %v2467, %v2619
        %v2625 = vmul.f32 %v2469, %v2623
        %v2626 = vadd.f32 %v2614, %v2624
        %v2627 = vadd.f32 %v2615, %v2625
        %v2628 = vlaneseq
        %v2629 = vshrl.u32 %v2628, 7
        %v2630 = vsub.s32 2, %v2629
        %v2631 = vrot.slane %v1818, %v2630
        %v2632 = vlaneseq
        %v2633 = vshrl.u32 %v2632, 7
        %v2634 = vsub.s32 2, %v2633
        %v2635 = vrot.slane %v1819, %v2634
        %v2636 = vmul.f32 %v2471, %v2631
        %v2637 = vmul.f32 %v2473, %v2635
        %v2638 = vadd.f32 %v2626, %v2636
        %v2639 = vadd.f32 %v2627, %v2637
        %v2640 = vlaneseq
        %v2641 = vshrl.u32 %v2640, 7
        %v2642 = vsub.s32 3, %v2641
        %v2643 = vrot.slane %v1818, %v2642
        %v2644 = vlaneseq
        %v2645 = vshrl.u32 %v2644, 7
        %v2646 = vsub.s32 3, %v2645
        %v2647 = vrot.slane %v1819, %v2646
        %v2648 = vmul.f32 %v2475, %v2643
        %v2649 = vmul.f32 %v2477, %v2647
        %v2650 = vadd.f32 %v2638, %v2648
        %v2651 = vadd.f32 %v2639, %v2649
        %v2652 = vlaneseq
        %v2653 = vshrl.u32 %v2652, 7
        %v2654 = vsub.s32 4, %v2653
        %v2655 = vrot.slane %v1818, %v2654
        %v2656 = vlaneseq
        %v2657 = vshrl.u32 %v2656, 7
        %v2658 = vsub.s32 4, %v2657
        %v2659 = vrot.slane %v1819, %v2658
        %v2660 = vmul.f32 %v2479, %v2655
        %v2661 = vmul.f32 %v2481, %v2659
        %v2662 = vadd.f32 %v2650, %v2660
        %v2663 = vadd.f32 %v2651, %v2661
        %v2664 = vlaneseq
        %v2665 = vshrl.u32 %v2664, 7
        %v2666 = vsub.s32 5, %v2665
        %v2667 = vrot.slane %v1818, %v2666
        %v2668 = vlaneseq
        %v2669 = vshrl.u32 %v2668, 7
        %v2670 = vsub.s32 5, %v2669
        %v2671 = vrot.slane %v1819, %v2670
        %v2672 = vmul.f32 %v2483, %v2667
        %v2673 = vmul.f32 %v2485, %v2671
        %v2674 = vadd.f32 %v2662, %v2672
        %v2675 = vadd.f32 %v2663, %v2673
        %v2676 = vlaneseq
        %v2677 = vshrl.u32 %v2676, 7
        %v2678 = vsub.s32 6, %v2677
        %v2679 = vrot.slane %v1818, %v2678
        %v2680 = vlaneseq
        %v2681 = vshrl.u32 %v2680, 7
        %v2682 = vsub.s32 6, %v2681
        %v2683 = vrot.slane %v1819, %v2682
        %v2684 = vmul.f32 %v2487, %v2679
        %v2685 = vmul.f32 %v2489, %v2683
        %v2686 = vadd.f32 %v2674, %v2684
        %v2687 = vadd.f32 %v2675, %v2685
        %v2688 = vlaneseq
        %v2689 = vshrl.u32 %v2688, 7
        %v2690 = vsub.s32 7, %v2689
        %v2691 = vrot.slane %v1818, %v2690
        %v2692 = vlaneseq
        %v2693 = vshrl.u32 %v2692, 7
        %v2694 = vsub.s32 7, %v2693
        %v2695 = vrot.slane %v1819, %v2694
        %v2696 = vmul.f32 %v2491, %v2691
        %v2697 = vmul.f32 %v2493, %v2695
        %v2698 = vadd.f32 %v2686, %v2696
        %v2699 = vadd.f32 %v2687, %v2697
        %v2700 = vmul.f32 %v2698, %v2508
        %v2701 = vmul.f32 %v2699, %v2509
        %v2704 = vcombine.low %v1468, %v1469
        %v2705 = vcombine.high %v1468, %v1469
        %v2707 = vunpack.c.l.s4 1966171168
        %v2708 = vunpack.c.0.s8 %v2707
        %v2709 = vlaneseq
        %v2710 = vshrl.u32 %v2709, 7
        %v2711 = vsub.s32 %v2708, %v2710
        %v2712 = vrot.slane %v2704, %v2711
        %v2714 = vunpack.c.l.s4 1966171168
        %v2715 = vunpack.c.0.s8 %v2714
        %v2716 = vlaneseq
        %v2717 = vshrl.u32 %v2716, 7
        %v2718 = vsub.s32 %v2715, %v2717
        %v2719 = vrot.slane %v2705, %v2718
        %v2720 = vcombine.high %v2712, %v2712
        %v2721 = vcombine.high %v2719, %v2719
        %v2723 = vunpack.c.l.s4 1966171168
        %v2724 = vunpack.c.0.s8 %v2723
        %v2725 = vlaneseq
        %v2726 = vshrl.u32 %v2725, 7
        %v2727 = vsub.s32 %v2724, %v2726
        %v2728 = vrot.slane %v2712, %v2727
        %v2730 = vunpack.c.l.s4 1966171168
        %v2731 = vunpack.c.0.s8 %v2730
        %v2732 = vlaneseq
        %v2733 = vshrl.u32 %v2732, 7
        %v2734 = vsub.s32 %v2731, %v2733
        %v2735 = vrot.slane %v2719, %v2734
        %v2737 = vunpack.c.l.s4 1966171168
        %v2738 = vunpack.c.0.s8 %v2737
        %v2739 = vlaneseq
        %v2740 = vshrl.u32 %v2739, 7
        %v2741 = vsub.s32 %v2738, %v2740
        %v2742 = vrot.slane %v2720, %v2741
        %v2744 = vunpack.c.l.s4 1966171168
        %v2745 = vunpack.c.0.s8 %v2744
        %v2746 = vlaneseq
        %v2747 = vshrl.u32 %v2746, 7
        %v2748 = vsub.s32 %v2745, %v2747
        %v2749 = vrot.slane %v2721, %v2748
        %v2750 = vcombine.high %v2728, %v2728
        %v2751 = vcombine.high %v2735, %v2735
        %v2752 = vcombine.high %v2742, %v2742
        %v2753 = vcombine.high %v2749, %v2749
        %v2754 = vlaneseq
        %v2755 = vshrl.u32 %v2754, 7
        %v2756 = vsub.s32 0, %v2755
        %v2757 = vrot.slane %v2728, %v2756
        %v2758 = vlaneseq
        %v2759 = vshrl.u32 %v2758, 7
        %v2760 = vsub.s32 1, %v2759
        %v2761 = vrot.slane %v2728, %v2760
        %v2762 = vlaneseq
        %v2763 = vshrl.u32 %v2762, 7
        %v2764 = vsub.s32 0, %v2763
        %v2765 = vrot.slane %v2742, %v2764
        %v2766 = vlaneseq
        %v2767 = vshrl.u32 %v2766, 7
        %v2768 = vsub.s32 1, %v2767
        %v2769 = vrot.slane %v2742, %v2768
        %v2770 = vlaneseq
        %v2771 = vshrl.u32 %v2770, 7
        %v2772 = vsub.s32 0, %v2771
        %v2773 = vrot.slane %v2750, %v2772
        %v2774 = vlaneseq
        %v2775 = vshrl.u32 %v2774, 7
        %v2776 = vsub.s32 1, %v2775
        %v2777 = vrot.slane %v2750, %v2776
        %v2778 = vlaneseq
        %v2779 = vshrl.u32 %v2778, 7
        %v2780 = vsub.s32 0, %v2779
        %v2781 = vrot.slane %v2752, %v2780
        %v2782 = vlaneseq
        %v2783 = vshrl.u32 %v2782, 7
        %v2784 = vsub.s32 1, %v2783
        %v2785 = vrot.slane %v2752, %v2784
        %v2786 = vlaneseq
        %v2787 = vshrl.u32 %v2786, 7
        %v2788 = vsub.s32 0, %v2787
        %v2789 = vrot.slane %v2735, %v2788
        %v2790 = vlaneseq
        %v2791 = vshrl.u32 %v2790, 7
        %v2792 = vsub.s32 1, %v2791
        %v2793 = vrot.slane %v2735, %v2792
        %v2794 = vlaneseq
        %v2795 = vshrl.u32 %v2794, 7
        %v2796 = vsub.s32 0, %v2795
        %v2797 = vrot.slane %v2749, %v2796
        %v2798 = vlaneseq
        %v2799 = vshrl.u32 %v2798, 7
        %v2800 = vsub.s32 1, %v2799
        %v2801 = vrot.slane %v2749, %v2800
        %v2802 = vlaneseq
        %v2803 = vshrl.u32 %v2802, 7
        %v2804 = vsub.s32 0, %v2803
        %v2805 = vrot.slane %v2751, %v2804
        %v2806 = vlaneseq
        %v2807 = vshrl.u32 %v2806, 7
        %v2808 = vsub.s32 1, %v2807
        %v2809 = vrot.slane %v2751, %v2808
        %v2810 = vlaneseq
        %v2811 = vshrl.u32 %v2810, 7
        %v2812 = vsub.s32 0, %v2811
        %v2813 = vrot.slane %v2753, %v2812
        %v2814 = vlaneseq
        %v2815 = vshrl.u32 %v2814, 7
        %v2816 = vsub.s32 1, %v2815
        %v2817 = vrot.slane %v2753, %v2816
        %v2834 = vmul.f32 %v2757, %v1068
        %v2835 = vmul.f32 %v2761, %v1069
        %v2836 = vmul.f32 %v2765, %v1068
        %v2837 = vmul.f32 %v2769, %v1069
        %v2838 = vmul.f32 %v2773, %v1068
        %v2839 = vmul.f32 %v2777, %v1069
        %v2840 = vmul.f32 %v2781, %v1068
        %v2841 = vmul.f32 %v2785, %v1069
        %v2842 = vmul.f32 %v2789, %v1068
        %v2843 = vmul.f32 %v2793, %v1069
        %v2844 = vmul.f32 %v2797, %v1068
        %v2845 = vmul.f32 %v2801, %v1069
        %v2846 = vmul.f32 %v2805, %v1068
        %v2847 = vmul.f32 %v2809, %v1069
        %v2848 = vmul.f32 %v2813, %v1068
        %v2849 = vmul.f32 %v2817, %v1069
        %v2852 = vcombine.low %v1518, %v1519
        %v2853 = vcombine.high %v1518, %v1519
        %v2855 = vunpack.c.l.s4 1966171168
        %v2856 = vunpack.c.0.s8 %v2855
        %v2857 = vlaneseq
        %v2858 = vshrl.u32 %v2857, 7
        %v2859 = vsub.s32 %v2856, %v2858
        %v2860 = vrot.slane %v2852, %v2859
        %v2862 = vunpack.c.l.s4 1966171168
        %v2863 = vunpack.c.0.s8 %v2862
        %v2864 = vlaneseq
        %v2865 = vshrl.u32 %v2864, 7
        %v2866 = vsub.s32 %v2863, %v2865
        %v2867 = vrot.slane %v2853, %v2866
        %v2868 = vcombine.high %v2860, %v2860
        %v2869 = vcombine.high %v2867, %v2867
        %v2871 = vunpack.c.l.s4 1966171168
        %v2872 = vunpack.c.0.s8 %v2871
        %v2873 = vlaneseq
        %v2874 = vshrl.u32 %v2873, 7
        %v2875 = vsub.s32 %v2872, %v2874
        %v2876 = vrot.slane %v2860, %v2875
        %v2878 = vunpack.c.l.s4 1966171168
        %v2879 = vunpack.c.0.s8 %v2878
        %v2880 = vlaneseq
        %v2881 = vshrl.u32 %v2880, 7
        %v2882 = vsub.s32 %v2879, %v2881
        %v2883 = vrot.slane %v2867, %v2882
        %v2885 = vunpack.c.l.s4 1966171168
        %v2886 = vunpack.c.0.s8 %v2885
        %v2887 = vlaneseq
        %v2888 = vshrl.u32 %v2887, 7
        %v2889 = vsub.s32 %v2886, %v2888
        %v2890 = vrot.slane %v2868, %v2889
        %v2892 = vunpack.c.l.s4 1966171168
        %v2893 = vunpack.c.0.s8 %v2892
        %v2894 = vlaneseq
        %v2895 = vshrl.u32 %v2894, 7
        %v2896 = vsub.s32 %v2893, %v2895
        %v2897 = vrot.slane %v2869, %v2896
        %v2898 = vcombine.high %v2876, %v2876
        %v2899 = vcombine.high %v2883, %v2883
        %v2900 = vcombine.high %v2890, %v2890
        %v2901 = vcombine.high %v2897, %v2897
        %v2902 = vlaneseq
        %v2903 = vshrl.u32 %v2902, 7
        %v2904 = vsub.s32 0, %v2903
        %v2905 = vrot.slane %v2876, %v2904
        %v2906 = vlaneseq
        %v2907 = vshrl.u32 %v2906, 7
        %v2908 = vsub.s32 1, %v2907
        %v2909 = vrot.slane %v2876, %v2908
        %v2910 = vlaneseq
        %v2911 = vshrl.u32 %v2910, 7
        %v2912 = vsub.s32 0, %v2911
        %v2913 = vrot.slane %v2890, %v2912
        %v2914 = vlaneseq
        %v2915 = vshrl.u32 %v2914, 7
        %v2916 = vsub.s32 1, %v2915
        %v2917 = vrot.slane %v2890, %v2916
        %v2918 = vlaneseq
        %v2919 = vshrl.u32 %v2918, 7
        %v2920 = vsub.s32 0, %v2919
        %v2921 = vrot.slane %v2898, %v2920
        %v2922 = vlaneseq
        %v2923 = vshrl.u32 %v2922, 7
        %v2924 = vsub.s32 1, %v2923
        %v2925 = vrot.slane %v2898, %v2924
        %v2926 = vlaneseq
        %v2927 = vshrl.u32 %v2926, 7
        %v2928 = vsub.s32 0, %v2927
        %v2929 = vrot.slane %v2900, %v2928
        %v2930 = vlaneseq
        %v2931 = vshrl.u32 %v2930, 7
        %v2932 = vsub.s32 1, %v2931
        %v2933 = vrot.slane %v2900, %v2932
        %v2934 = vlaneseq
        %v2935 = vshrl.u32 %v2934, 7
        %v2936 = vsub.s32 0, %v2935
        %v2937 = vrot.slane %v2883, %v2936
        %v2938 = vlaneseq
        %v2939 = vshrl.u32 %v2938, 7
        %v2940 = vsub.s32 1, %v2939
        %v2941 = vrot.slane %v2883, %v2940
        %v2942 = vlaneseq
        %v2943 = vshrl.u32 %v2942, 7
        %v2944 = vsub.s32 0, %v2943
        %v2945 = vrot.slane %v2897, %v2944
        %v2946 = vlaneseq
        %v2947 = vshrl.u32 %v2946, 7
        %v2948 = vsub.s32 1, %v2947
        %v2949 = vrot.slane %v2897, %v2948
        %v2950 = vlaneseq
        %v2951 = vshrl.u32 %v2950, 7
        %v2952 = vsub.s32 0, %v2951
        %v2953 = vrot.slane %v2899, %v2952
        %v2954 = vlaneseq
        %v2955 = vshrl.u32 %v2954, 7
        %v2956 = vsub.s32 1, %v2955
        %v2957 = vrot.slane %v2899, %v2956
        %v2958 = vlaneseq
        %v2959 = vshrl.u32 %v2958, 7
        %v2960 = vsub.s32 0, %v2959
        %v2961 = vrot.slane %v2901, %v2960
        %v2962 = vlaneseq
        %v2963 = vshrl.u32 %v2962, 7
        %v2964 = vsub.s32 1, %v2963
        %v2965 = vrot.slane %v2901, %v2964
        %v2982 = vmul.f32 %v2905, %v1118
        %v2983 = vmul.f32 %v2909, %v1119
        %v2984 = vmul.f32 %v2913, %v1118
        %v2985 = vmul.f32 %v2917, %v1119
        %v2986 = vmul.f32 %v2921, %v1118
        %v2987 = vmul.f32 %v2925, %v1119
        %v2988 = vmul.f32 %v2929, %v1118
        %v2989 = vmul.f32 %v2933, %v1119
        %v2990 = vmul.f32 %v2937, %v1118
        %v2991 = vmul.f32 %v2941, %v1119
        %v2992 = vmul.f32 %v2945, %v1118
        %v2993 = vmul.f32 %v2949, %v1119
        %v2994 = vmul.f32 %v2953, %v1118
        %v2995 = vmul.f32 %v2957, %v1119
        %v2996 = vmul.f32 %v2961, %v1118
        %v2997 = vmul.f32 %v2965, %v1119
        %v2998 = vadd.f32 %v2834, %v2982
        %v2999 = vadd.f32 %v2835, %v2983
        %v3000 = vadd.f32 %v2836, %v2984
        %v3001 = vadd.f32 %v2837, %v2985
        %v3002 = vadd.f32 %v2838, %v2986
        %v3003 = vadd.f32 %v2839, %v2987
        %v3004 = vadd.f32 %v2840, %v2988
        %v3005 = vadd.f32 %v2841, %v2989
        %v3006 = vadd.f32 %v2842, %v2990
        %v3007 = vadd.f32 %v2843, %v2991
        %v3008 = vadd.f32 %v2844, %v2992
        %v3009 = vadd.f32 %v2845, %v2993
        %v3010 = vadd.f32 %v2846, %v2994
        %v3011 = vadd.f32 %v2847, %v2995
        %v3012 = vadd.f32 %v2848, %v2996
        %v3013 = vadd.f32 %v2849, %v2997
        %v3014 = vmax.f32 %v2998, %v3002
        %v3015 = vmax.f32 %v3000, %v3004
        %v3016 = vmax.f32 %v3014, %v3006
        %v3017 = vmax.f32 %v3015, %v3008
        %v3018 = vmax.f32 %v3016, %v3010
        %v3019 = vmax.f32 %v3017, %v3012
        %v3020 = vmax.f32 %v3018, %v3019
        %v3021 = vmax.f32 %v2999, %v3003
        %v3022 = vmax.f32 %v3001, %v3005
        %v3023 = vmax.f32 %v3021, %v3007
        %v3024 = vmax.f32 %v3022, %v3009
        %v3025 = vmax.f32 %v3023, %v3011
        %v3026 = vmax.f32 %v3024, %v3013
        %v3027 = vmax.f32 %v3025, %v3026
        %v3028 = vsub.f32 %v2998, %v3020
        %v3029 = vsub.f32 %v2999, %v3027
        %v3030 = vsub.f32 %v3000, %v3020
        %v3031 = vsub.f32 %v3001, %v3027
        %v3032 = vsub.f32 %v3002, %v3020
        %v3033 = vsub.f32 %v3003, %v3027
        %v3034 = vsub.f32 %v3004, %v3020
        %v3035 = vsub.f32 %v3005, %v3027
        %v3036 = vsub.f32 %v3006, %v3020
        %v3037 = vsub.f32 %v3007, %v3027
        %v3038 = vsub.f32 %v3008, %v3020
        %v3039 = vsub.f32 %v3009, %v3027
        %v3040 = vsub.f32 %v3010, %v3020
        %v3041 = vsub.f32 %v3011, %v3027
        %v3042 = vsub.f32 %v3012, %v3020
        %v3043 = vsub.f32 %v3013, %v3027
        %v3044 = vmul.f32 %v3028, 1.442695
        %v3045 = vpow.pop %v3044
        %v3046 = vmul.f32 %v3029, 1.442695
        %v3047 = vpow.pop %v3046
        %v3048 = vmul.f32 %v3030, 1.442695
        %v3049 = vpow.pop %v3048
        %v3050 = vmul.f32 %v3031, 1.442695
        %v3051 = vpow.pop %v3050
        %v3052 = vmul.f32 %v3032, 1.442695
        %v3053 = vpow.pop %v3052
        %v3054 = vmul.f32 %v3033, 1.442695
        %v3055 = vpow.pop %v3054
        %v3056 = vmul.f32 %v3034, 1.442695
        %v3057 = vpow.pop %v3056
        %v3058 = vmul.f32 %v3035, 1.442695
        %v3059 = vpow.pop %v3058
        %v3060 = vmul.f32 %v3036, 1.442695
        %v3061 = vpow.pop %v3060
        %v3062 = vmul.f32 %v3037, 1.442695
        %v3063 = vpow.pop %v3062
        %v3064 = vmul.f32 %v3038, 1.442695
        %v3065 = vpow.pop %v3064
        %v3066 = vmul.f32 %v3039, 1.442695
        %v3067 = vpow.pop %v3066
        %v3068 = vmul.f32 %v3040, 1.442695
        %v3069 = vpow.pop %v3068
        %v3070 = vmul.f32 %v3041, 1.442695
        %v3071 = vpow.pop %v3070
        %v3072 = vmul.f32 %v3042, 1.442695
        %v3073 = vpow.pop %v3072
        %v3074 = vmul.f32 %v3043, 1.442695
        %v3075 = vpow.pop %v3074
        %v3076 = vadd.f32 %v3045, %v3049
        %v3077 = vadd.f32 %v3076, %v3053
        %v3078 = vadd.f32 %v3077, %v3057
        %v3079 = vadd.f32 %v3078, %v3061
        %v3080 = vadd.f32 %v3079, %v3065
        %v3081 = vadd.f32 %v3080, %v3069
        %v3082 = vadd.f32 %v3081, %v3073
        %v3083 = vadd.f32 %v3047, %v3051
        %v3084 = vadd.f32 %v3083, %v3055
        %v3085 = vadd.f32 %v3084, %v3059
        %v3086 = vadd.f32 %v3085, %v3063
        %v3087 = vadd.f32 %v3086, %v3067
        %v3088 = vadd.f32 %v3087, %v3071
        %v3089 = vadd.f32 %v3088, %v3075
        %v3090 = vrcp.pop %v3082
        %v3091 = vrcp.pop %v3089
        %v3092 = vlaneseq
        %v3093 = vshrl.u32 %v3092, 7
        %v3094 = vsub.s32 0, %v3093
        %v3095 = vrot.slane %v1868, %v3094
        %v3096 = vlaneseq
        %v3097 = vshrl.u32 %v3096, 7
        %v3098 = vsub.s32 0, %v3097
        %v3099 = vrot.slane %v1869, %v3098
        %v3100 = vmul.f32 %v3045, %v3095
        %v3101 = vmul.f32 %v3047, %v3099
        %v3102 = vlaneseq
        %v3103 = vshrl.u32 %v3102, 7
        %v3104 = vsub.s32 1, %v3103
        %v3105 = vrot.slane %v1868, %v3104
        %v3106 = vlaneseq
        %v3107 = vshrl.u32 %v3106, 7
        %v3108 = vsub.s32 1, %v3107
        %v3109 = vrot.slane %v1869, %v3108
        %v3110 = vmul.f32 %v3049, %v3105
        %v3111 = vmul.f32 %v3051, %v3109
        %v3112 = vadd.f32 %v3100, %v3110
        %v3113 = vadd.f32 %v3101, %v3111
        %v3114 = vlaneseq
        %v3115 = vshrl.u32 %v3114, 7
        %v3116 = vsub.s32 2, %v3115
        %v3117 = vrot.slane %v1868, %v3116
        %v3118 = vlaneseq
        %v3119 = vshrl.u32 %v3118, 7
        %v3120 = vsub.s32 2, %v3119
        %v3121 = vrot.slane %v1869, %v3120
        %v3122 = vmul.f32 %v3053, %v3117
        %v3123 = vmul.f32 %v3055, %v3121
        %v3124 = vadd.f32 %v3112, %v3122
        %v3125 = vadd.f32 %v3113, %v3123
        %v3126 = vlaneseq
        %v3127 = vshrl.u32 %v3126, 7
        %v3128 = vsub.s32 3, %v3127
        %v3129 = vrot.slane %v1868, %v3128
        %v3130 = vlaneseq
        %v3131 = vshrl.u32 %v3130, 7
        %v3132 = vsub.s32 3, %v3131
        %v3133 = vrot.slane %v1869, %v3132
        %v3134 = vmul.f32 %v3057, %v3129
        %v3135 = vmul.f32 %v3059, %v3133
        %v3136 = vadd.f32 %v3124, %v3134
        %v3137 = vadd.f32 %v3125, %v3135
        %v3138 = vlaneseq
        %v3139 = vshrl.u32 %v3138, 7
        %v3140 = vsub.s32 4, %v3139
        %v3141 = vrot.slane %v1868, %v3140
        %v3142 = vlaneseq
        %v3143 = vshrl.u32 %v3142, 7
        %v3144 = vsub.s32 4, %v3143
        %v3145 = vrot.slane %v1869, %v3144
        %v3146 = vmul.f32 %v3061, %v3141
        %v3147 = vmul.f32 %v3063, %v3145
        %v3148 = vadd.f32 %v3136, %v3146
        %v3149 = vadd.f32 %v3137, %v3147
        %v3150 = vlaneseq
        %v3151 = vshrl.u32 %v3150, 7
        %v3152 = vsub.s32 5, %v3151
        %v3153 = vrot.slane %v1868, %v3152
        %v3154 = vlaneseq
        %v3155 = vshrl.u32 %v3154, 7
        %v3156 = vsub.s32 5, %v3155
        %v3157 = vrot.slane %v1869, %v3156
        %v3158 = vmul.f32 %v3065, %v3153
        %v3159 = vmul.f32 %v3067, %v3157
        %v3160 = vadd.f32 %v3148, %v3158
        %v3161 = vadd.f32 %v3149, %v3159
        %v3162 = vlaneseq
        %v3163 = vshrl.u32 %v3162, 7
        %v3164 = vsub.s32 6, %v3163
        %v3165 = vrot.slane %v1868, %v3164
        %v3166 = vlaneseq
        %v3167 = vshrl.u32 %v3166, 7
        %v3168 = vsub.s32 6, %v3167
        %v3169 = vrot.slane %v1869, %v3168
        %v3170 = vmul.f32 %v3069, %v3165
        %v3171 = vmul.f32 %v3071, %v3169
        %v3172 = vadd.f32 %v3160, %v3170
        %v3173 = vadd.f32 %v3161, %v3171
        %v3174 = vlaneseq
        %v3175 = vshrl.u32 %v3174, 7
        %v3176 = vsub.s32 7, %v3175
        %v3177 = vrot.slane %v1868, %v3176
        %v3178 = vlaneseq
        %v3179 = vshrl.u32 %v3178, 7
        %v3180 = vsub.s32 7, %v3179
        %v3181 = vrot.slane %v1869, %v3180
        %v3182 = vmul.f32 %v3073, %v3177
        %v3183 = vmul.f32 %v3075, %v3181
        %v3184 = vadd.f32 %v3172, %v3182
        %v3185 = vadd.f32 %v3173, %v3183
        %v3186 = vmul.f32 %v3184, %v3090
        %v3187 = vmul.f32 %v3185, %v3091
        %v3188 = vlaneseq
        %v3189 = vshrl.u32 %v3188, 7
        %v3190 = vsub.s32 0, %v3189
        %v3191 = vrot.slane %v1918, %v3190
        %v3192 = vlaneseq
        %v3193 = vshrl.u32 %v3192, 7
        %v3194 = vsub.s32 0, %v3193
        %v3195 = vrot.slane %v1919, %v3194
        %v3196 = vmul.f32 %v3045, %v3191
        %v3197 = vmul.f32 %v3047, %v3195
        %v3198 = vlaneseq
        %v3199 = vshrl.u32 %v3198, 7
        %v3200 = vsub.s32 1, %v3199
        %v3201 = vrot.slane %v1918, %v3200
        %v3202 = vlaneseq
        %v3203 = vshrl.u32 %v3202, 7
        %v3204 = vsub.s32 1, %v3203
        %v3205 = vrot.slane %v1919, %v3204
        %v3206 = vmul.f32 %v3049, %v3201
        %v3207 = vmul.f32 %v3051, %v3205
        %v3208 = vadd.f32 %v3196, %v3206
        %v3209 = vadd.f32 %v3197, %v3207
        %v3210 = vlaneseq
        %v3211 = vshrl.u32 %v3210, 7
        %v3212 = vsub.s32 2, %v3211
        %v3213 = vrot.slane %v1918, %v3212
        %v3214 = vlaneseq
        %v3215 = vshrl.u32 %v3214, 7
        %v3216 = vsub.s32 2, %v3215
        %v3217 = vrot.slane %v1919, %v3216
        %v3218 = vmul.f32 %v3053, %v3213
        %v3219 = vmul.f32 %v3055, %v3217
        %v3220 = vadd.f32 %v3208, %v3218
        %v3221 = vadd.f32 %v3209, %v3219
        %v3222 = vlaneseq
        %v3223 = vshrl.u32 %v3222, 7
        %v3224 = vsub.s32 3, %v3223
        %v3225 = vrot.slane %v1918, %v3224
        %v3226 = vlaneseq
        %v3227 = vshrl.u32 %v3226, 7
        %v3228 = vsub.s32 3, %v3227
        %v3229 = vrot.slane %v1919, %v3228
        %v3230 = vmul.f32 %v3057, %v3225
        %v3231 = vmul.f32 %v3059, %v3229
        %v3232 = vadd.f32 %v3220, %v3230
        %v3233 = vadd.f32 %v3221, %v3231
        %v3234 = vlaneseq
        %v3235 = vshrl.u32 %v3234, 7
        %v3236 = vsub.s32 4, %v3235
        %v3237 = vrot.slane %v1918, %v3236
        %v3238 = vlaneseq
        %v3239 = vshrl.u32 %v3238, 7
        %v3240 = vsub.s32 4, %v3239
        %v3241 = vrot.slane %v1919, %v3240
        %v3242 = vmul.f32 %v3061, %v3237
        %v3243 = vmul.f32 %v3063, %v3241
        %v3244 = vadd.f32 %v3232, %v3242
        %v3245 = vadd.f32 %v3233, %v3243
        %v3246 = vlaneseq
        %v3247 = vshrl.u32 %v3246, 7
        %v3248 = vsub.s32 5, %v3247
        %v3249 = vrot.slane %v1918, %v3248
        %v3250 = vlaneseq
        %v3251 = vshrl.u32 %v3250, 7
        %v3252 = vsub.s32 5, %v3251
        %v3253 = vrot.slane %v1919, %v3252
        %v3254 = vmul.f32 %v3065, %v3249
        %v3255 = vmul.f32 %v3067, %v3253
        %v3256 = vadd.f32 %v3244, %v3254
        %v3257 = vadd.f32 %v3245, %v3255
        %v3258 = vlaneseq
        %v3259 = vshrl.u32 %v3258, 7
        %v3260 = vsub.s32 6, %v3259
        %v3261 = vrot.slane %v1918, %v3260
        %v3262 = vlaneseq
        %v3263 = vshrl.u32 %v3262, 7
        %v3264 = vsub.s32 6, %v3263
        %v3265 = vrot.slane %v1919, %v3264
        %v3266 = vmul.f32 %v3069, %v3261
        %v3267 = vmul.f32 %v3071, %v3265
        %v3268 = vadd.f32 %v3256, %v3266
        %v3269 = vadd.f32 %v3257, %v3267
        %v3270 = vlaneseq
        %v3271 = vshrl.u32 %v3270, 7
        %v3272 = vsub.s32 7, %v3271
        %v3273 = vrot.slane %v1918, %v3272
        %v3274 = vlaneseq
        %v3275 = vshrl.u32 %v3274, 7
        %v3276 = vsub.s32 7, %v3275
        %v3277 = vrot.slane %v1919, %v3276
        %v3278 = vmul.f32 %v3073, %v3273
        %v3279 = vmul.f32 %v3075, %v3277
        %v3280 = vadd.f32 %v3268, %v3278
        %v3281 = vadd.f32 %v3269, %v3279
        %v3282 = vmul.f32 %v3280, %v3090
        %v3283 = vmul.f32 %v3281, %v3091
        %v3286 = vcombine.low %v1568, %v1569
        %v3287 = vcombine.high %v1568, %v1569
        %v3289 = vunpack.c.l.s4 1966171168
        %v3290 = vunpack.c.0.s8 %v3289
        %v3291 = vlaneseq
        %v3292 = vshrl.u32 %v3291, 7
        %v3293 = vsub.s32 %v3290, %v3292
        %v3294 = vrot.slane %v3286, %v3293
        %v3296 = vunpack.c.l.s4 1966171168
        %v3297 = vunpack.c.0.s8 %v3296
        %v3298 = vlaneseq
        %v3299 = vshrl.u32 %v3298, 7
        %v3300 = vsub.s32 %v3297, %v3299
        %v3301 = vrot.slane %v3287, %v3300
        %v3302 = vcombine.high %v3294, %v3294
        %v3303 = vcombine.high %v3301, %v3301
        %v3305 = vunpack.c.l.s4 1966171168
        %v3306 = vunpack.c.0.s8 %v3305
        %v3307 = vlaneseq
        %v3308 = vshrl.u32 %v3307, 7
        %v3309 = vsub.s32 %v3306, %v3308
        %v3310 = vrot.slane %v3294, %v3309
        %v3312 = vunpack.c.l.s4 1966171168
        %v3313 = vunpack.c.0.s8 %v3312
        %v3314 = vlaneseq
        %v3315 = vshrl.u32 %v3314, 7
        %v3316 = vsub.s32 %v3313, %v3315
        %v3317 = vrot.slane %v3301, %v3316
        %v3319 = vunpack.c.l.s4 1966171168
        %v3320 = vunpack.c.0.s8 %v3319
        %v3321 = vlaneseq
        %v3322 = vshrl.u32 %v3321, 7
        %v3323 = vsub.s32 %v3320, %v3322
        %v3324 = vrot.slane %v3302, %v3323
        %v3326 = vunpack.c.l.s4 1966171168
        %v3327 = vunpack.c.0.s8 %v3326
        %v3328 = vlaneseq
        %v3329 = vshrl.u32 %v3328, 7
        %v3330 = vsub.s32 %v3327, %v3329
        %v3331 = vrot.slane %v3303, %v3330
        %v3332 = vcombine.high %v3310, %v3310
        %v3333 = vcombine.high %v3317, %v3317
        %v3334 = vcombine.high %v3324, %v3324
        %v3335 = vcombine.high %v3331, %v3331
        %v3336 = vlaneseq
        %v3337 = vshrl.u32 %v3336, 7
        %v3338 = vsub.s32 0, %v3337
        %v3339 = vrot.slane %v3310, %v3338
        %v3340 = vlaneseq
        %v3341 = vshrl.u32 %v3340, 7
        %v3342 = vsub.s32 1, %v3341
        %v3343 = vrot.slane %v3310, %v3342
        %v3344 = vlaneseq
        %v3345 = vshrl.u32 %v3344, 7
        %v3346 = vsub.s32 0, %v3345
        %v3347 = vrot.slane %v3324, %v3346
        %v3348 = vlaneseq
        %v3349 = vshrl.u32 %v3348, 7
        %v3350 = vsub.s32 1, %v3349
        %v3351 = vrot.slane %v3324, %v3350
        %v3352 = vlaneseq
        %v3353 = vshrl.u32 %v3352, 7
        %v3354 = vsub.s32 0, %v3353
        %v3355 = vrot.slane %v3332, %v3354
        %v3356 = vlaneseq
        %v3357 = vshrl.u32 %v3356, 7
        %v3358 = vsub.s32 1, %v3357
        %v3359 = vrot.slane %v3332, %v3358
        %v3360 = vlaneseq
        %v3361 = vshrl.u32 %v3360, 7
        %v3362 = vsub.s32 0, %v3361
        %v3363 = vrot.slane %v3334, %v3362
        %v3364 = vlaneseq
        %v3365 = vshrl.u32 %v3364, 7
        %v3366 = vsub.s32 1, %v3365
        %v3367 = vrot.slane %v3334, %v3366
        %v3368 = vlaneseq
        %v3369 = vshrl.u32 %v3368, 7
        %v3370 = vsub.s32 0, %v3369
        %v3371 = vrot.slane %v3317, %v3370
        %v3372 = vlaneseq
        %v3373 = vshrl.u32 %v3372, 7
        %v3374 = vsub.s32 1, %v3373
        %v3375 = vrot.slane %v3317, %v3374
        %v3376 = vlaneseq
        %v3377 = vshrl.u32 %v3376, 7
        %v3378 = vsub.s32 0, %v3377
        %v3379 = vrot.slane %v3331, %v3378
        %v3380 = vlaneseq
        %v3381 = vshrl.u32 %v3380, 7
        %v3382 = vsub.s32 1, %v3381
        %v3383 = vrot.slane %v3331, %v3382
        %v3384 = vlaneseq
        %v3385 = vshrl.u32 %v3384, 7
        %v3386 = vsub.s32 0, %v3385
        %v3387 = vrot.slane %v3333, %v3386
        %v3388 = vlaneseq
        %v3389 = vshrl.u32 %v3388, 7
        %v3390 = vsub.s32 1, %v3389
        %v3391 = vrot.slane %v3333, %v3390
        %v3392 = vlaneseq
        %v3393 = vshrl.u32 %v3392, 7
        %v3394 = vsub.s32 0, %v3393
        %v3395 = vrot.slane %v3335, %v3394
        %v3396 = vlaneseq
        %v3397 = vshrl.u32 %v3396, 7
        %v3398 = vsub.s32 1, %v3397
        %v3399 = vrot.slane %v3335, %v3398
        %v3416 = vmul.f32 %v3339, %v1168
        %v3417 = vmul.f32 %v3343, %v1169
        %v3418 = vmul.f32 %v3347, %v1168
        %v3419 = vmul.f32 %v3351, %v1169
        %v3420 = vmul.f32 %v3355, %v1168
        %v3421 = vmul.f32 %v3359, %v1169
        %v3422 = vmul.f32 %v3363, %v1168
        %v3423 = vmul.f32 %v3367, %v1169
        %v3424 = vmul.f32 %v3371, %v1168
        %v3425 = vmul.f32 %v3375, %v1169
        %v3426 = vmul.f32 %v3379, %v1168
        %v3427 = vmul.f32 %v3383, %v1169
        %v3428 = vmul.f32 %v3387, %v1168
        %v3429 = vmul.f32 %v3391, %v1169
        %v3430 = vmul.f32 %v3395, %v1168
        %v3431 = vmul.f32 %v3399, %v1169
        %v3434 = vcombine.low %v1618, %v1619
        %v3435 = vcombine.high %v1618, %v1619
        %v3437 = vunpack.c.l.s4 1966171168
        %v3438 = vunpack.c.0.s8 %v3437
        %v3439 = vlaneseq
        %v3440 = vshrl.u32 %v3439, 7
        %v3441 = vsub.s32 %v3438, %v3440
        %v3442 = vrot.slane %v3434, %v3441
        %v3444 = vunpack.c.l.s4 1966171168
        %v3445 = vunpack.c.0.s8 %v3444
        %v3446 = vlaneseq
        %v3447 = vshrl.u32 %v3446, 7
        %v3448 = vsub.s32 %v3445, %v3447
        %v3449 = vrot.slane %v3435, %v3448
        %v3450 = vcombine.high %v3442, %v3442
        %v3451 = vcombine.high %v3449, %v3449
        %v3453 = vunpack.c.l.s4 1966171168
        %v3454 = vunpack.c.0.s8 %v3453
        %v3455 = vlaneseq
        %v3456 = vshrl.u32 %v3455, 7
        %v3457 = vsub.s32 %v3454, %v3456
        %v3458 = vrot.slane %v3442, %v3457
        %v3460 = vunpack.c.l.s4 1966171168
        %v3461 = vunpack.c.0.s8 %v3460
        %v3462 = vlaneseq
        %v3463 = vshrl.u32 %v3462, 7
        %v3464 = vsub.s32 %v3461, %v3463
        %v3465 = vrot.slane %v3449, %v3464
        %v3467 = vunpack.c.l.s4 1966171168
        %v3468 = vunpack.c.0.s8 %v3467
        %v3469 = vlaneseq
        %v3470 = vshrl.u32 %v3469, 7
        %v3471 = vsub.s32 %v3468, %v3470
        %v3472 = vrot.slane %v3450, %v3471
        %v3474 = vunpack.c.l.s4 1966171168
        %v3475 = vunpack.c.0.s8 %v3474
        %v3476 = vlaneseq
        %v3477 = vshrl.u32 %v3476, 7
        %v3478 = vsub.s32 %v3475, %v3477
        %v3479 = vrot.slane %v3451, %v3478
        %v3480 = vcombine.high %v3458, %v3458
        %v3481 = vcombine.high %v3465, %v3465
        %v3482 = vcombine.high %v3472, %v3472
        %v3483 = vcombine.high %v3479, %v3479
        %v3484 = vlaneseq
        %v3485 = vshrl.u32 %v3484, 7
        %v3486 = vsub.s32 0, %v3485
        %v3487 = vrot.slane %v3458, %v3486
        %v3488 = vlaneseq
        %v3489 = vshrl.u32 %v3488, 7
        %v3490 = vsub.s32 1, %v3489
        %v3491 = vrot.slane %v3458, %v3490
        %v3492 = vlaneseq
        %v3493 = vshrl.u32 %v3492, 7
        %v3494 = vsub.s32 0, %v3493
        %v3495 = vrot.slane %v3472, %v3494
        %v3496 = vlaneseq
        %v3497 = vshrl.u32 %v3496, 7
        %v3498 = vsub.s32 1, %v3497
        %v3499 = vrot.slane %v3472, %v3498
        %v3500 = vlaneseq
        %v3501 = vshrl.u32 %v3500, 7
        %v3502 = vsub.s32 0, %v3501
        %v3503 = vrot.slane %v3480, %v3502
        %v3504 = vlaneseq
        %v3505 = vshrl.u32 %v3504, 7
        %v3506 = vsub.s32 1, %v3505
        %v3507 = vrot.slane %v3480, %v3506
        %v3508 = vlaneseq
        %v3509 = vshrl.u32 %v3508, 7
        %v3510 = vsub.s32 0, %v3509
        %v3511 = vrot.slane %v3482, %v3510
        %v3512 = vlaneseq
        %v3513 = vshrl.u32 %v3512, 7
        %v3514 = vsub.s32 1, %v3513
        %v3515 = vrot.slane %v3482, %v3514
        %v3516 = vlaneseq
        %v3517 = vshrl.u32 %v3516, 7
        %v3518 = vsub.s32 0, %v3517
        %v3519 = vrot.slane %v3465, %v3518
        %v3520 = vlaneseq
        %v3521 = vshrl.u32 %v3520, 7
        %v3522 = vsub.s32 1, %v3521
        %v3523 = vrot.slane %v3465, %v3522
        %v3524 = vlaneseq
        %v3525 = vshrl.u32 %v3524, 7
        %v3526 = vsub.s32 0, %v3525
        %v3527 = vrot.slane %v3479, %v3526
        %v3528 = vlaneseq
        %v3529 = vshrl.u32 %v3528, 7
        %v3530 = vsub.s32 1, %v3529
        %v3531 = vrot.slane %v3479, %v3530
        %v3532 = vlaneseq
        %v3533 = vshrl.u32 %v3532, 7
        %v3534 = vsub.s32 0, %v3533
        %v3535 = vrot.slane %v3481, %v3534
        %v3536 = vlaneseq
        %v3537 = vshrl.u32 %v3536, 7
        %v3538 = vsub.s32 1, %v3537
        %v3539 = vrot.slane %v3481, %v3538
        %v3540 = vlaneseq
        %v3541 = vshrl.u32 %v3540, 7
        %v3542 = vsub.s32 0, %v3541
        %v3543 = vrot.slane %v3483, %v3542
        %v3544 = vlaneseq
        %v3545 = vshrl.u32 %v3544, 7
        %v3546 = vsub.s32 1, %v3545
        %v3547 = vrot.slane %v3483, %v3546
        %v3564 = vmul.f32 %v3487, %v1218
        %v3565 = vmul.f32 %v3491, %v1219
        %v3566 = vmul.f32 %v3495, %v1218
        %v3567 = vmul.f32 %v3499, %v1219
        %v3568 = vmul.f32 %v3503, %v1218
        %v3569 = vmul.f32 %v3507, %v1219
        %v3570 = vmul.f32 %v3511, %v1218
        %v3571 = vmul.f32 %v3515, %v1219
        %v3572 = vmul.f32 %v3519, %v1218
        %v3573 = vmul.f32 %v3523, %v1219
        %v3574 = vmul.f32 %v3527, %v1218
        %v3575 = vmul.f32 %v3531, %v1219
        %v3576 = vmul.f32 %v3535, %v1218
        %v3577 = vmul.f32 %v3539, %v1219
        %v3578 = vmul.f32 %v3543, %v1218
        %v3579 = vmul.f32 %v3547, %v1219
        %v3580 = vadd.f32 %v3416, %v3564
        %v3581 = vadd.f32 %v3417, %v3565
        %v3582 = vadd.f32 %v3418, %v3566
        %v3583 = vadd.f32 %v3419, %v3567
        %v3584 = vadd.f32 %v3420, %v3568
        %v3585 = vadd.f32 %v3421, %v3569
        %v3586 = vadd.f32 %v3422, %v3570
        %v3587 = vadd.f32 %v3423, %v3571
        %v3588 = vadd.f32 %v3424, %v3572
        %v3589 = vadd.f32 %v3425, %v3573
        %v3590 = vadd.f32 %v3426, %v3574
        %v3591 = vadd.f32 %v3427, %v3575
        %v3592 = vadd.f32 %v3428, %v3576
        %v3593 = vadd.f32 %v3429, %v3577
        %v3594 = vadd.f32 %v3430, %v3578
        %v3595 = vadd.f32 %v3431, %v3579
        %v3596 = vmax.f32 %v3580, %v3584
        %v3597 = vmax.f32 %v3582, %v3586
        %v3598 = vmax.f32 %v3596, %v3588
        %v3599 = vmax.f32 %v3597, %v3590
        %v3600 = vmax.f32 %v3598, %v3592
        %v3601 = vmax.f32 %v3599, %v3594
        %v3602 = vmax.f32 %v3600, %v3601
        %v3603 = vmax.f32 %v3581, %v3585
        %v3604 = vmax.f32 %v3583, %v3587
        %v3605 = vmax.f32 %v3603, %v3589
        %v3606 = vmax.f32 %v3604, %v3591
        %v3607 = vmax.f32 %v3605, %v3593
        %v3608 = vmax.f32 %v3606, %v3595
        %v3609 = vmax.f32 %v3607, %v3608
        %v3610 = vsub.f32 %v3580, %v3602
        %v3611 = vsub.f32 %v3581, %v3609
        %v3612 = vsub.f32 %v3582, %v3602
        %v3613 = vsub.f32 %v3583, %v3609
        %v3614 = vsub.f32 %v3584, %v3602
        %v3615 = vsub.f32 %v3585, %v3609
        %v3616 = vsub.f32 %v3586, %v3602
        %v3617 = vsub.f32 %v3587, %v3609
        %v3618 = vsub.f32 %v3588, %v3602
        %v3619 = vsub.f32 %v3589, %v3609
        %v3620 = vsub.f32 %v3590, %v3602
        %v3621 = vsub.f32 %v3591, %v3609
        %v3622 = vsub.f32 %v3592, %v3602
        %v3623 = vsub.f32 %v3593, %v3609
        %v3624 = vsub.f32 %v3594, %v3602
        %v3625 = vsub.f32 %v3595, %v3609
        %v3626 = vmul.f32 %v3610, 1.442695
        %v3627 = vpow.pop %v3626
        %v3628 = vmul.f32 %v3611, 1.442695
        %v3629 = vpow.pop %v3628
        %v3630 = vmul.f32 %v3612, 1.442695
        %v3631 = vpow.pop %v3630
        %v3632 = vmul.f32 %v3613, 1.442695
        %v3633 = vpow.pop %v3632
        %v3634 = vmul.f32 %v3614, 1.442695
        %v3635 = vpow.pop %v3634
        %v3636 = vmul.f32 %v3615, 1.442695
        %v3637 = vpow.pop %v3636
        %v3638 = vmul.f32 %v3616, 1.442695
        %v3639 = vpow.pop %v3638
        %v3640 = vmul.f32 %v3617, 1.442695
        %v3641 = vpow.pop %v3640
        %v3642 = vmul.f32 %v3618, 1.442695
        %v3643 = vpow.pop %v3642
        %v3644 = vmul.f32 %v3619, 1.442695
        %v3645 = vpow.pop %v3644
        %v3646 = vmul.f32 %v3620, 1.442695
        %v3647 = vpow.pop %v3646
        %v3648 = vmul.f32 %v3621, 1.442695
        %v3649 = vpow.pop %v3648
        %v3650 = vmul.f32 %v3622, 1.442695
        %v3651 = vpow.pop %v3650
        %v3652 = vmul.f32 %v3623, 1.442695
        %v3653 = vpow.pop %v3652
        %v3654 = vmul.f32 %v3624, 1.442695
        %v3655 = vpow.pop %v3654
        %v3656 = vmul.f32 %v3625, 1.442695
        %v3657 = vpow.pop %v3656
        %v3658 = vadd.f32 %v3627, %v3631
        %v3659 = vadd.f32 %v3658, %v3635
        %v3660 = vadd.f32 %v3659, %v3639
        %v3661 = vadd.f32 %v3660, %v3643
        %v3662 = vadd.f32 %v3661, %v3647
        %v3663 = vadd.f32 %v3662, %v3651
        %v3664 = vadd.f32 %v3663, %v3655
        %v3665 = vadd.f32 %v3629, %v3633
        %v3666 = vadd.f32 %v3665, %v3637
        %v3667 = vadd.f32 %v3666, %v3641
        %v3668 = vadd.f32 %v3667, %v3645
        %v3669 = vadd.f32 %v3668, %v3649
        %v3670 = vadd.f32 %v3669, %v3653
        %v3671 = vadd.f32 %v3670, %v3657
        %v3672 = vrcp.pop %v3664
        %v3673 = vrcp.pop %v3671
        %v3674 = vlaneseq
        %v3675 = vshrl.u32 %v3674, 7
        %v3676 = vsub.s32 0, %v3675
        %v3677 = vrot.slane %v1968, %v3676
        %v3678 = vlaneseq
        %v3679 = vshrl.u32 %v3678, 7
        %v3680 = vsub.s32 0, %v3679
        %v3681 = vrot.slane %v1969, %v3680
        %v3682 = vmul.f32 %v3627, %v3677
        %v3683 = vmul.f32 %v3629, %v3681
        %v3684 = vlaneseq
        %v3685 = vshrl.u32 %v3684, 7
        %v3686 = vsub.s32 1, %v3685
        %v3687 = vrot.slane %v1968, %v3686
        %v3688 = vlaneseq
        %v3689 = vshrl.u32 %v3688, 7
        %v3690 = vsub.s32 1, %v3689
        %v3691 = vrot.slane %v1969, %v3690
        %v3692 = vmul.f32 %v3631, %v3687
        %v3693 = vmul.f32 %v3633, %v3691
        %v3694 = vadd.f32 %v3682, %v3692
        %v3695 = vadd.f32 %v3683, %v3693
        %v3696 = vlaneseq
        %v3697 = vshrl.u32 %v3696, 7
        %v3698 = vsub.s32 2, %v3697
        %v3699 = vrot.slane %v1968, %v3698
        %v3700 = vlaneseq
        %v3701 = vshrl.u32 %v3700, 7
        %v3702 = vsub.s32 2, %v3701
        %v3703 = vrot.slane %v1969, %v3702
        %v3704 = vmul.f32 %v3635, %v3699
        %v3705 = vmul.f32 %v3637, %v3703
        %v3706 = vadd.f32 %v3694, %v3704
        %v3707 = vadd.f32 %v3695, %v3705
        %v3708 = vlaneseq
        %v3709 = vshrl.u32 %v3708, 7
        %v3710 = vsub.s32 3, %v3709
        %v3711 = vrot.slane %v1968, %v3710
        %v3712 = vlaneseq
        %v3713 = vshrl.u32 %v3712, 7
        %v3714 = vsub.s32 3, %v3713
        %v3715 = vrot.slane %v1969, %v3714
        %v3716 = vmul.f32 %v3639, %v3711
        %v3717 = vmul.f32 %v3641, %v3715
        %v3718 = vadd.f32 %v3706, %v3716
        %v3719 = vadd.f32 %v3707, %v3717
        %v3720 = vlaneseq
        %v3721 = vshrl.u32 %v3720, 7
        %v3722 = vsub.s32 4, %v3721
        %v3723 = vrot.slane %v1968, %v3722
        %v3724 = vlaneseq
        %v3725 = vshrl.u32 %v3724, 7
        %v3726 = vsub.s32 4, %v3725
        %v3727 = vrot.slane %v1969, %v3726
        %v3728 = vmul.f32 %v3643, %v3723
        %v3729 = vmul.f32 %v3645, %v3727
        %v3730 = vadd.f32 %v3718, %v3728
        %v3731 = vadd.f32 %v3719, %v3729
        %v3732 = vlaneseq
        %v3733 = vshrl.u32 %v3732, 7
        %v3734 = vsub.s32 5, %v3733
        %v3735 = vrot.slane %v1968, %v3734
        %v3736 = vlaneseq
        %v3737 = vshrl.u32 %v3736, 7
        %v3738 = vsub.s32 5, %v3737
        %v3739 = vrot.slane %v1969, %v3738
        %v3740 = vmul.f32 %v3647, %v3735
        %v3741 = vmul.f32 %v3649, %v3739
        %v3742 = vadd.f32 %v3730, %v3740
        %v3743 = vadd.f32 %v3731, %v3741
        %v3744 = vlaneseq
        %v3745 = vshrl.u32 %v3744, 7
        %v3746 = vsub.s32 6, %v3745
        %v3747 = vrot.slane %v1968, %v3746
        %v3748 = vlaneseq
        %v3749 = vshrl.u32 %v3748, 7
        %v3750 = vsub.s32 6, %v3749
        %v3751 = vrot.slane %v1969, %v3750
        %v3752 = vmul.f32 %v3651, %v3747
        %v3753 = vmul.f32 %v3653, %v3751
        %v3754 = vadd.f32 %v3742, %v3752
        %v3755 = vadd.f32 %v3743, %v3753
        %v3756 = vlaneseq
        %v3757 = vshrl.u32 %v3756, 7
        %v3758 = vsub.s32 7, %v3757
        %v3759 = vrot.slane %v1968, %v3758
        %v3760 = vlaneseq
        %v3761 = vshrl.u32 %v3760, 7
        %v3762 = vsub.s32 7, %v3761
        %v3763 = vrot.slane %v1969, %v3762
        %v3764 = vmul.f32 %v3655, %v3759
        %v3765 = vmul.f32 %v3657, %v3763
        %v3766 = vadd.f32 %v3754, %v3764
        %v3767 = vadd.f32 %v3755, %v3765
        %v3768 = vmul.f32 %v3766, %v3672
        %v3769 = vmul.f32 %v3767, %v3673
        %v3770 = vlaneseq
        %v3771 = vshrl.u32 %v3770, 7
        %v3772 = vsub.s32 0, %v3771
        %v3773 = vrot.slane %v2018, %v3772
        %v3774 = vlaneseq
        %v3775 = vshrl.u32 %v3774, 7
        %v3776 = vsub.s32 0, %v3775
        %v3777 = vrot.slane %v2019, %v3776
        %v3778 = vmul.f32 %v3627, %v3773
        %v3779 = vmul.f32 %v3629, %v3777
        %v3780 = vlaneseq
        %v3781 = vshrl.u32 %v3780, 7
        %v3782 = vsub.s32 1, %v3781
        %v3783 = vrot.slane %v2018, %v3782
        %v3784 = vlaneseq
        %v3785 = vshrl.u32 %v3784, 7
        %v3786 = vsub.s32 1, %v3785
        %v3787 = vrot.slane %v2019, %v3786
        %v3788 = vmul.f32 %v3631, %v3783
        %v3789 = vmul.f32 %v3633, %v3787
        %v3790 = vadd.f32 %v3778, %v3788
        %v3791 = vadd.f32 %v3779, %v3789
        %v3792 = vlaneseq
        %v3793 = vshrl.u32 %v3792, 7
        %v3794 = vsub.s32 2, %v3793
        %v3795 = vrot.slane %v2018, %v3794
        %v3796 = vlaneseq
        %v3797 = vshrl.u32 %v3796, 7
        %v3798 = vsub.s32 2, %v3797
        %v3799 = vrot.slane %v2019, %v3798
        %v3800 = vmul.f32 %v3635, %v3795
        %v3801 = vmul.f32 %v3637, %v3799
        %v3802 = vadd.f32 %v3790, %v3800
        %v3803 = vadd.f32 %v3791, %v3801
        %v3804 = vlaneseq
        %v3805 = vshrl.u32 %v3804, 7
        %v3806 = vsub.s32 3, %v3805
        %v3807 = vrot.slane %v2018, %v3806
        %v3808 = vlaneseq
        %v3809 = vshrl.u32 %v3808, 7
        %v3810 = vsub.s32 3, %v3809
        %v3811 = vrot.slane %v2019, %v3810
        %v3812 = vmul.f32 %v3639, %v3807
        %v3813 = vmul.f32 %v3641, %v3811
        %v3814 = vadd.f32 %v3802, %v3812
        %v3815 = vadd.f32 %v3803, %v3813
        %v3816 = vlaneseq
        %v3817 = vshrl.u32 %v3816, 7
        %v3818 = vsub.s32 4, %v3817
        %v3819 = vrot.slane %v2018, %v3818
        %v3820 = vlaneseq
        %v3821 = vshrl.u32 %v3820, 7
        %v3822 = vsub.s32 4, %v3821
        %v3823 = vrot.slane %v2019, %v3822
        %v3824 = vmul.f32 %v3643, %v3819
        %v3825 = vmul.f32 %v3645, %v3823
        %v3826 = vadd.f32 %v3814, %v3824
        %v3827 = vadd.f32 %v3815, %v3825
        %v3828 = vlaneseq
        %v3829 = vshrl.u32 %v3828, 7
        %v3830 = vsub.s32 5, %v3829
        %v3831 = vrot.slane %v2018, %v3830
        %v3832 = vlaneseq
        %v3833 = vshrl.u32 %v3832, 7
        %v3834 = vsub.s32 5, %v3833
        %v3835 = vrot.slane %v2019, %v3834
        %v3836 = vmul.f32 %v3647, %v3831
        %v3837 = vmul.f32 %v3649, %v3835
        %v3838 = vadd.f32 %v3826, %v3836
        %v3839 = vadd.f32 %v3827, %v3837
        %v3840 = vlaneseq
        %v3841 = vshrl.u32 %v3840, 7
        %v3842 = vsub.s32 6, %v3841
        %v3843 = vrot.slane %v2018, %v3842
        %v3844 = vlaneseq
        %v3845 = vshrl.u32 %v3844, 7
        %v3846 = vsub.s32 6, %v3845
        %v3847 = vrot.slane %v2019, %v3846
        %v3848 = vmul.f32 %v3651, %v3843
        %v3849 = vmul.f32 %v3653, %v3847
        %v3850 = vadd.f32 %v3838, %v3848
        %v3851 = vadd.f32 %v3839, %v3849
        %v3852 = vlaneseq
        %v3853 = vshrl.u32 %v3852, 7
        %v3854 = vsub.s32 7, %v3853
        %v3855 = vrot.slane %v2018, %v3854
        %v3856 = vlaneseq
        %v3857 = vshrl.u32 %v3856, 7
        %v3858 = vsub.s32 7, %v3857
        %v3859 = vrot.slane %v2019, %v3858
        %v3860 = vmul.f32 %v3655, %v3855
        %v3861 = vmul.f32 %v3657, %v3859
        %v3862 = vadd.f32 %v3850, %v3860
        %v3863 = vadd.f32 %v3851, %v3861
        %v3864 = vmul.f32 %v3862, %v3672
        %v3865 = vmul.f32 %v3863, %v3673
        %v3868 = vcombine.low %v1668, %v1669
        %v3869 = vcombine.high %v1668, %v1669
        %v3871 = vunpack.c.l.s4 1966171168
        %v3872 = vunpack.c.0.s8 %v3871
        %v3873 = vlaneseq
        %v3874 = vshrl.u32 %v3873, 7
        %v3875 = vsub.s32 %v3872, %v3874
        %v3876 = vrot.slane %v3868, %v3875
        %v3878 = vunpack.c.l.s4 1966171168
        %v3879 = vunpack.c.0.s8 %v3878
        %v3880 = vlaneseq
        %v3881 = vshrl.u32 %v3880, 7
        %v3882 = vsub.s32 %v3879, %v3881
        %v3883 = vrot.slane %v3869, %v3882
        %v3884 = vcombine.high %v3876, %v3876
        %v3885 = vcombine.high %v3883, %v3883
        %v3887 = vunpack.c.l.s4 1966171168
        %v3888 = vunpack.c.0.s8 %v3887
        %v3889 = vlaneseq
        %v3890 = vshrl.u32 %v3889, 7
        %v3891 = vsub.s32 %v3888, %v3890
        %v3892 = vrot.slane %v3876, %v3891
        %v3894 = vunpack.c.l.s4 1966171168
        %v3895 = vunpack.c.0.s8 %v3894
        %v3896 = vlaneseq
        %v3897 = vshrl.u32 %v3896, 7
        %v3898 = vsub.s32 %v3895, %v3897
        %v3899 = vrot.slane %v3883, %v3898
        %v3901 = vunpack.c.l.s4 1966171168
        %v3902 = vunpack.c.0.s8 %v3901
        %v3903 = vlaneseq
        %v3904 = vshrl.u32 %v3903, 7
        %v3905 = vsub.s32 %v3902, %v3904
        %v3906 = vrot.slane %v3884, %v3905
        %v3908 = vunpack.c.l.s4 1966171168
        %v3909 = vunpack.c.0.s8 %v3908
        %v3910 = vlaneseq
        %v3911 = vshrl.u32 %v3910, 7
        %v3912 = vsub.s32 %v3909, %v3911
        %v3913 = vrot.slane %v3885, %v3912
        %v3914 = vcombine.high %v3892, %v3892
        %v3915 = vcombine.high %v3899, %v3899
        %v3916 = vcombine.high %v3906, %v3906
        %v3917 = vcombine.high %v3913, %v3913
        %v3918 = vlaneseq
        %v3919 = vshrl.u32 %v3918, 7
        %v3920 = vsub.s32 0, %v3919
        %v3921 = vrot.slane %v3892, %v3920
        %v3922 = vlaneseq
        %v3923 = vshrl.u32 %v3922, 7
        %v3924 = vsub.s32 1, %v3923
        %v3925 = vrot.slane %v3892, %v3924
        %v3926 = vlaneseq
        %v3927 = vshrl.u32 %v3926, 7
        %v3928 = vsub.s32 0, %v3927
        %v3929 = vrot.slane %v3906, %v3928
        %v3930 = vlaneseq
        %v3931 = vshrl.u32 %v3930, 7
        %v3932 = vsub.s32 1, %v3931
        %v3933 = vrot.slane %v3906, %v3932
        %v3934 = vlaneseq
        %v3935 = vshrl.u32 %v3934, 7
        %v3936 = vsub.s32 0, %v3935
        %v3937 = vrot.slane %v3914, %v3936
        %v3938 = vlaneseq
        %v3939 = vshrl.u32 %v3938, 7
        %v3940 = vsub.s32 1, %v3939
        %v3941 = vrot.slane %v3914, %v3940
        %v3942 = vlaneseq
        %v3943 = vshrl.u32 %v3942, 7
        %v3944 = vsub.s32 0, %v3943
        %v3945 = vrot.slane %v3916, %v3944
        %v3946 = vlaneseq
        %v3947 = vshrl.u32 %v3946, 7
        %v3948 = vsub.s32 1, %v3947
        %v3949 = vrot.slane %v3916, %v3948
        %v3950 = vlaneseq
        %v3951 = vshrl.u32 %v3950, 7
        %v3952 = vsub.s32 0, %v3951
        %v3953 = vrot.slane %v3899, %v3952
        %v3954 = vlaneseq
        %v3955 = vshrl.u32 %v3954, 7
        %v3956 = vsub.s32 1, %v3955
        %v3957 = vrot.slane %v3899, %v3956
        %v3958 = vlaneseq
        %v3959 = vshrl.u32 %v3958, 7
        %v3960 = vsub.s32 0, %v3959
        %v3961 = vrot.slane %v3913, %v3960
        %v3962 = vlaneseq
        %v3963 = vshrl.u32 %v3962, 7
        %v3964 = vsub.s32 1, %v3963
        %v3965 = vrot.slane %v3913, %v3964
        %v3966 = vlaneseq
        %v3967 = vshrl.u32 %v3966, 7
        %v3968 = vsub.s32 0, %v3967
        %v3969 = vrot.slane %v3915, %v3968
        %v3970 = vlaneseq
        %v3971 = vshrl.u32 %v3970, 7
        %v3972 = vsub.s32 1, %v3971
        %v3973 = vrot.slane %v3915, %v3972
        %v3974 = vlaneseq
        %v3975 = vshrl.u32 %v3974, 7
        %v3976 = vsub.s32 0, %v3975
        %v3977 = vrot.slane %v3917, %v3976
        %v3978 = vlaneseq
        %v3979 = vshrl.u32 %v3978, 7
        %v3980 = vsub.s32 1, %v3979
        %v3981 = vrot.slane %v3917, %v3980
        %v3998 = vmul.f32 %v3921, %v1268
        %v3999 = vmul.f32 %v3925, %v1269
        %v4000 = vmul.f32 %v3929, %v1268
        %v4001 = vmul.f32 %v3933, %v1269
        %v4002 = vmul.f32 %v3937, %v1268
        %v4003 = vmul.f32 %v3941, %v1269
        %v4004 = vmul.f32 %v3945, %v1268
        %v4005 = vmul.f32 %v3949, %v1269
        %v4006 = vmul.f32 %v3953, %v1268
        %v4007 = vmul.f32 %v3957, %v1269
        %v4008 = vmul.f32 %v3961, %v1268
        %v4009 = vmul.f32 %v3965, %v1269
        %v4010 = vmul.f32 %v3969, %v1268
        %v4011 = vmul.f32 %v3973, %v1269
        %v4012 = vmul.f32 %v3977, %v1268
        %v4013 = vmul.f32 %v3981, %v1269
        %v4016 = vcombine.low %v1718, %v1719
        %v4017 = vcombine.high %v1718, %v1719
        %v4019 = vunpack.c.l.s4 1966171168
        %v4020 = vunpack.c.0.s8 %v4019
        %v4021 = vlaneseq
        %v4022 = vshrl.u32 %v4021, 7
        %v4023 = vsub.s32 %v4020, %v4022
        %v4024 = vrot.slane %v4016, %v4023
        %v4026 = vunpack.c.l.s4 1966171168
        %v4027 = vunpack.c.0.s8 %v4026
        %v4028 = vlaneseq
        %v4029 = vshrl.u32 %v4028, 7
        %v4030 = vsub.s32 %v4027, %v4029
        %v4031 = vrot.slane %v4017, %v4030
        %v4032 = vcombine.high %v4024, %v4024
        %v4033 = vcombine.high %v4031, %v4031
        %v4035 = vunpack.c.l.s4 1966171168
        %v4036 = vunpack.c.0.s8 %v4035
        %v4037 = vlaneseq
        %v4038 = vshrl.u32 %v4037, 7
        %v4039 = vsub.s32 %v4036, %v4038
        %v4040 = vrot.slane %v4024, %v4039
        %v4042 = vunpack.c.l.s4 1966171168
        %v4043 = vunpack.c.0.s8 %v4042
        %v4044 = vlaneseq
        %v4045 = vshrl.u32 %v4044, 7
        %v4046 = vsub.s32 %v4043, %v4045
        %v4047 = vrot.slane %v4031, %v4046
        %v4049 = vunpack.c.l.s4 1966171168
        %v4050 = vunpack.c.0.s8 %v4049
        %v4051 = vlaneseq
        %v4052 = vshrl.u32 %v4051, 7
        %v4053 = vsub.s32 %v4050, %v4052
        %v4054 = vrot.slane %v4032, %v4053
        %v4056 = vunpack.c.l.s4 1966171168
        %v4057 = vunpack.c.0.s8 %v4056
        %v4058 = vlaneseq
        %v4059 = vshrl.u32 %v4058, 7
        %v4060 = vsub.s32 %v4057, %v4059
        %v4061 = vrot.slane %v4033, %v4060
        %v4062 = vcombine.high %v4040, %v4040
        %v4063 = vcombine.high %v4047, %v4047
        %v4064 = vcombine.high %v4054, %v4054
        %v4065 = vcombine.high %v4061, %v4061
        %v4066 = vlaneseq
        %v4067 = vshrl.u32 %v4066, 7
        %v4068 = vsub.s32 0, %v4067
        %v4069 = vrot.slane %v4040, %v4068
        %v4070 = vlaneseq
        %v4071 = vshrl.u32 %v4070, 7
        %v4072 = vsub.s32 1, %v4071
        %v4073 = vrot.slane %v4040, %v4072
        %v4074 = vlaneseq
        %v4075 = vshrl.u32 %v4074, 7
        %v4076 = vsub.s32 0, %v4075
        %v4077 = vrot.slane %v4054, %v4076
        %v4078 = vlaneseq
        %v4079 = vshrl.u32 %v4078, 7
        %v4080 = vsub.s32 1, %v4079
        %v4081 = vrot.slane %v4054, %v4080
        %v4082 = vlaneseq
        %v4083 = vshrl.u32 %v4082, 7
        %v4084 = vsub.s32 0, %v4083
        %v4085 = vrot.slane %v4062, %v4084
        %v4086 = vlaneseq
        %v4087 = vshrl.u32 %v4086, 7
        %v4088 = vsub.s32 1, %v4087
        %v4089 = vrot.slane %v4062, %v4088
        %v4090 = vlaneseq
        %v4091 = vshrl.u32 %v4090, 7
        %v4092 = vsub.s32 0, %v4091
        %v4093 = vrot.slane %v4064, %v4092
        %v4094 = vlaneseq
        %v4095 = vshrl.u32 %v4094, 7
        %v4096 = vsub.s32 1, %v4095
        %v4097 = vrot.slane %v4064, %v4096
        %v4098 = vlaneseq
        %v4099 = vshrl.u32 %v4098, 7
        %v4100 = vsub.s32 0, %v4099
        %v4101 = vrot.slane %v4047, %v4100
        %v4102 = vlaneseq
        %v4103 = vshrl.u32 %v4102, 7
        %v4104 = vsub.s32 1, %v4103
        %v4105 = vrot.slane %v4047, %v4104
        %v4106 = vlaneseq
        %v4107 = vshrl.u32 %v4106, 7
        %v4108 = vsub.s32 0, %v4107
        %v4109 = vrot.slane %v4061, %v4108
        %v4110 = vlaneseq
        %v4111 = vshrl.u32 %v4110, 7
        %v4112 = vsub.s32 1, %v4111
        %v4113 = vrot.slane %v4061, %v4112
        %v4114 = vlaneseq
        %v4115 = vshrl.u32 %v4114, 7
        %v4116 = vsub.s32 0, %v4115
        %v4117 = vrot.slane %v4063, %v4116
        %v4118 = vlaneseq
        %v4119 = vshrl.u32 %v4118, 7
        %v4120 = vsub.s32 1, %v4119
        %v4121 = vrot.slane %v4063, %v4120
        %v4122 = vlaneseq
        %v4123 = vshrl.u32 %v4122, 7
        %v4124 = vsub.s32 0, %v4123
        %v4125 = vrot.slane %v4065, %v4124
        %v4126 = vlaneseq
        %v4127 = vshrl.u32 %v4126, 7
        %v4128 = vsub.s32 1, %v4127
        %v4129 = vrot.slane %v4065, %v4128
        %v4146 = vmul.f32 %v4069, %v1318
        %v4147 = vmul.f32 %v4073, %v1319
        %v4148 = vmul.f32 %v4077, %v1318
        %v4149 = vmul.f32 %v4081, %v1319
        %v4150 = vmul.f32 %v4085, %v1318
        %v4151 = vmul.f32 %v4089, %v1319
        %v4152 = vmul.f32 %v4093, %v1318
        %v4153 = vmul.f32 %v4097, %v1319
        %v4154 = vmul.f32 %v4101, %v1318
        %v4155 = vmul.f32 %v4105, %v1319
        %v4156 = vmul.f32 %v4109, %v1318
        %v4157 = vmul.f32 %v4113, %v1319
        %v4158 = vmul.f32 %v4117, %v1318
        %v4159 = vmul.f32 %v4121, %v1319
        %v4160 = vmul.f32 %v4125, %v1318
        %v4161 = vmul.f32 %v4129, %v1319
        %v4162 = vadd.f32 %v3998, %v4146
        %v4163 = vadd.f32 %v3999, %v4147
        %v4164 = vadd.f32 %v4000, %v4148
        %v4165 = vadd.f32 %v4001, %v4149
        %v4166 = vadd.f32 %v4002, %v4150
        %v4167 = vadd.f32 %v4003, %v4151
        %v4168 = vadd.f32 %v4004, %v4152
        %v4169 = vadd.f32 %v4005, %v4153
        %v4170 = vadd.f32 %v4006, %v4154
        %v4171 = vadd.f32 %v4007, %v4155
        %v4172 = vadd.f32 %v4008, %v4156
        %v4173 = vadd.f32 %v4009, %v4157
        %v4174 = vadd.f32 %v4010, %v4158
        %v4175 = vadd.f32 %v4011, %v4159
        %v4176 = vadd.f32 %v4012, %v4160
        %v4177 = vadd.f32 %v4013, %v4161
        %v4178 = vmax.f32 %v4162, %v4166
        %v4179 = vmax.f32 %v4164, %v4168
        %v4180 = vmax.f32 %v4178, %v4170
        %v4181 = vmax.f32 %v4179, %v4172
        %v4182 = vmax.f32 %v4180, %v4174
        %v4183 = vmax.f32 %v4181, %v4176
        %v4184 = vmax.f32 %v4182, %v4183
        %v4185 = vmax.f32 %v4163, %v4167
        %v4186 = vmax.f32 %v4165, %v4169
        %v4187 = vmax.f32 %v4185, %v4171
        %v4188 = vmax.f32 %v4186, %v4173
        %v4189 = vmax.f32 %v4187, %v4175
        %v4190 = vmax.f32 %v4188, %v4177
        %v4191 = vmax.f32 %v4189, %v4190
        %v4192 = vsub.f32 %v4162, %v4184
        %v4193 = vsub.f32 %v4163, %v4191
        %v4194 = vsub.f32 %v4164, %v4184
        %v4195 = vsub.f32 %v4165, %v4191
        %v4196 = vsub.f32 %v4166, %v4184
        %v4197 = vsub.f32 %v4167, %v4191
        %v4198 = vsub.f32 %v4168, %v4184
        %v4199 = vsub.f32 %v4169, %v4191
        %v4200 = vsub.f32 %v4170, %v4184
        %v4201 = vsub.f32 %v4171, %v4191
        %v4202 = vsub.f32 %v4172, %v4184
        %v4203 = vsub.f32 %v4173, %v4191
        %v4204 = vsub.f32 %v4174, %v4184
        %v4205 = vsub.f32 %v4175, %v4191
        %v4206 = vsub.f32 %v4176, %v4184
        %v4207 = vsub.f32 %v4177, %v4191
        %v4208 = vmul.f32 %v4192, 1.442695
        %v4209 = vpow.pop %v4208
        %v4210 = vmul.f32 %v4193, 1.442695
        %v4211 = vpow.pop %v4210
        %v4212 = vmul.f32 %v4194, 1.442695
        %v4213 = vpow.pop %v4212
        %v4214 = vmul.f32 %v4195, 1.442695
        %v4215 = vpow.pop %v4214
        %v4216 = vmul.f32 %v4196, 1.442695
        %v4217 = vpow.pop %v4216
        %v4218 = vmul.f32 %v4197, 1.442695
        %v4219 = vpow.pop %v4218
        %v4220 = vmul.f32 %v4198, 1.442695
        %v4221 = vpow.pop %v4220
        %v4222 = vmul.f32 %v4199, 1.442695
        %v4223 = vpow.pop %v4222
        %v4224 = vmul.f32 %v4200, 1.442695
        %v4225 = vpow.pop %v4224
        %v4226 = vmul.f32 %v4201, 1.442695
        %v4227 = vpow.pop %v4226
        %v4228 = vmul.f32 %v4202, 1.442695
        %v4229 = vpow.pop %v4228
        %v4230 = vmul.f32 %v4203, 1.442695
        %v4231 = vpow.pop %v4230
        %v4232 = vmul.f32 %v4204, 1.442695
        %v4233 = vpow.pop %v4232
        %v4234 = vmul.f32 %v4205, 1.442695
        %v4235 = vpow.pop %v4234
        %v4236 = vmul.f32 %v4206, 1.442695
        %v4237 = vpow.pop %v4236
        %v4238 = vmul.f32 %v4207, 1.442695
        %v4239 = vpow.pop %v4238
        %v4240 = vadd.f32 %v4209, %v4213
        %v4241 = vadd.f32 %v4240, %v4217
        %v4242 = vadd.f32 %v4241, %v4221
        %v4243 = vadd.f32 %v4242, %v4225
        %v4244 = vadd.f32 %v4243, %v4229
        %v4245 = vadd.f32 %v4244, %v4233
        %v4246 = vadd.f32 %v4245, %v4237
        %v4247 = vadd.f32 %v4211, %v4215
        %v4248 = vadd.f32 %v4247, %v4219
        %v4249 = vadd.f32 %v4248, %v4223
        %v4250 = vadd.f32 %v4249, %v4227
        %v4251 = vadd.f32 %v4250, %v4231
        %v4252 = vadd.f32 %v4251, %v4235
        %v4253 = vadd.f32 %v4252, %v4239
        %v4254 = vrcp.pop %v4246
        %v4255 = vrcp.pop %v4253
        %v4256 = vlaneseq
        %v4257 = vshrl.u32 %v4256, 7
        %v4258 = vsub.s32 0, %v4257
        %v4259 = vrot.slane %v2068, %v4258
        %v4260 = vlaneseq
        %v4261 = vshrl.u32 %v4260, 7
        %v4262 = vsub.s32 0, %v4261
        %v4263 = vrot.slane %v2069, %v4262
        %v4264 = vmul.f32 %v4209, %v4259
        %v4265 = vmul.f32 %v4211, %v4263
        %v4266 = vlaneseq
        %v4267 = vshrl.u32 %v4266, 7
        %v4268 = vsub.s32 1, %v4267
        %v4269 = vrot.slane %v2068, %v4268
        %v4270 = vlaneseq
        %v4271 = vshrl.u32 %v4270, 7
        %v4272 = vsub.s32 1, %v4271
        %v4273 = vrot.slane %v2069, %v4272
        %v4274 = vmul.f32 %v4213, %v4269
        %v4275 = vmul.f32 %v4215, %v4273
        %v4276 = vadd.f32 %v4264, %v4274
        %v4277 = vadd.f32 %v4265, %v4275
        %v4278 = vlaneseq
        %v4279 = vshrl.u32 %v4278, 7
        %v4280 = vsub.s32 2, %v4279
        %v4281 = vrot.slane %v2068, %v4280
        %v4282 = vlaneseq
        %v4283 = vshrl.u32 %v4282, 7
        %v4284 = vsub.s32 2, %v4283
        %v4285 = vrot.slane %v2069, %v4284
        %v4286 = vmul.f32 %v4217, %v4281
        %v4287 = vmul.f32 %v4219, %v4285
        %v4288 = vadd.f32 %v4276, %v4286
        %v4289 = vadd.f32 %v4277, %v4287
        %v4290 = vlaneseq
        %v4291 = vshrl.u32 %v4290, 7
        %v4292 = vsub.s32 3, %v4291
        %v4293 = vrot.slane %v2068, %v4292
        %v4294 = vlaneseq
        %v4295 = vshrl.u32 %v4294, 7
        %v4296 = vsub.s32 3, %v4295
        %v4297 = vrot.slane %v2069, %v4296
        %v4298 = vmul.f32 %v4221, %v4293
        %v4299 = vmul.f32 %v4223, %v4297
        %v4300 = vadd.f32 %v4288, %v4298
        %v4301 = vadd.f32 %v4289, %v4299
        %v4302 = vlaneseq
        %v4303 = vshrl.u32 %v4302, 7
        %v4304 = vsub.s32 4, %v4303
        %v4305 = vrot.slane %v2068, %v4304
        %v4306 = vlaneseq
        %v4307 = vshrl.u32 %v4306, 7
        %v4308 = vsub.s32 4, %v4307
        %v4309 = vrot.slane %v2069, %v4308
        %v4310 = vmul.f32 %v4225, %v4305
        %v4311 = vmul.f32 %v4227, %v4309
        %v4312 = vadd.f32 %v4300, %v4310
        %v4313 = vadd.f32 %v4301, %v4311
        %v4314 = vlaneseq
        %v4315 = vshrl.u32 %v4314, 7
        %v4316 = vsub.s32 5, %v4315
        %v4317 = vrot.slane %v2068, %v4316
        %v4318 = vlaneseq
        %v4319 = vshrl.u32 %v4318, 7
        %v4320 = vsub.s32 5, %v4319
        %v4321 = vrot.slane %v2069, %v4320
        %v4322 = vmul.f32 %v4229, %v4317
        %v4323 = vmul.f32 %v4231, %v4321
        %v4324 = vadd.f32 %v4312, %v4322
        %v4325 = vadd.f32 %v4313, %v4323
        %v4326 = vlaneseq
        %v4327 = vshrl.u32 %v4326, 7
        %v4328 = vsub.s32 6, %v4327
        %v4329 = vrot.slane %v2068, %v4328
        %v4330 = vlaneseq
        %v4331 = vshrl.u32 %v4330, 7
        %v4332 = vsub.s32 6, %v4331
        %v4333 = vrot.slane %v2069, %v4332
        %v4334 = vmul.f32 %v4233, %v4329
        %v4335 = vmul.f32 %v4235, %v4333
        %v4336 = vadd.f32 %v4324, %v4334
        %v4337 = vadd.f32 %v4325, %v4335
        %v4338 = vlaneseq
        %v4339 = vshrl.u32 %v4338, 7
        %v4340 = vsub.s32 7, %v4339
        %v4341 = vrot.slane %v2068, %v4340
        %v4342 = vlaneseq
        %v4343 = vshrl.u32 %v4342, 7
        %v4344 = vsub.s32 7, %v4343
        %v4345 = vrot.slane %v2069, %v4344
        %v4346 = vmul.f32 %v4237, %v4341
        %v4347 = vmul.f32 %v4239, %v4345
        %v4348 = vadd.f32 %v4336, %v4346
        %v4349 = vadd.f32 %v4337, %v4347
        %v4350 = vmul.f32 %v4348, %v4254
        %v4351 = vmul.f32 %v4349, %v4255
        %v4352 = vlaneseq
        %v4353 = vshrl.u32 %v4352, 7
        %v4354 = vsub.s32 0, %v4353
        %v4355 = vrot.slane %v2118, %v4354
        %v4356 = vlaneseq
        %v4357 = vshrl.u32 %v4356, 7
        %v4358 = vsub.s32 0, %v4357
        %v4359 = vrot.slane %v2119, %v4358
        %v4360 = vmul.f32 %v4209, %v4355
        %v4361 = vmul.f32 %v4211, %v4359
        %v4362 = vlaneseq
        %v4363 = vshrl.u32 %v4362, 7
        %v4364 = vsub.s32 1, %v4363
        %v4365 = vrot.slane %v2118, %v4364
        %v4366 = vlaneseq
        %v4367 = vshrl.u32 %v4366, 7
        %v4368 = vsub.s32 1, %v4367
        %v4369 = vrot.slane %v2119, %v4368
        %v4370 = vmul.f32 %v4213, %v4365
        %v4371 = vmul.f32 %v4215, %v4369
        %v4372 = vadd.f32 %v4360, %v4370
        %v4373 = vadd.f32 %v4361, %v4371
        %v4374 = vlaneseq
        %v4375 = vshrl.u32 %v4374, 7
        %v4376 = vsub.s32 2, %v4375
        %v4377 = vrot.slane %v2118, %v4376
        %v4378 = vlaneseq
        %v4379 = vshrl.u32 %v4378, 7
        %v4380 = vsub.s32 2, %v4379
        %v4381 = vrot.slane %v2119, %v4380
        %v4382 = vmul.f32 %v4217, %v4377
        %v4383 = vmul.f32 %v4219, %v4381
        %v4384 = vadd.f32 %v4372, %v4382
        %v4385 = vadd.f32 %v4373, %v4383
        %v4386 = vlaneseq
        %v4387 = vshrl.u32 %v4386, 7
        %v4388 = vsub.s32 3, %v4387
        %v4389 = vrot.slane %v2118, %v4388
        %v4390 = vlaneseq
        %v4391 = vshrl.u32 %v4390, 7
        %v4392 = vsub.s32 3, %v4391
        %v4393 = vrot.slane %v2119, %v4392
        %v4394 = vmul.f32 %v4221, %v4389
        %v4395 = vmul.f32 %v4223, %v4393
        %v4396 = vadd.f32 %v4384, %v4394
        %v4397 = vadd.f32 %v4385, %v4395
        %v4398 = vlaneseq
        %v4399 = vshrl.u32 %v4398, 7
        %v4400 = vsub.s32 4, %v4399
        %v4401 = vrot.slane %v2118, %v4400
        %v4402 = vlaneseq
        %v4403 = vshrl.u32 %v4402, 7
        %v4404 = vsub.s32 4, %v4403
        %v4405 = vrot.slane %v2119, %v4404
        %v4406 = vmul.f32 %v4225, %v4401
        %v4407 = vmul.f32 %v4227, %v4405
        %v4408 = vadd.f32 %v4396, %v4406
        %v4409 = vadd.f32 %v4397, %v4407
        %v4410 = vlaneseq
        %v4411 = vshrl.u32 %v4410, 7
        %v4412 = vsub.s32 5, %v4411
        %v4413 = vrot.slane %v2118, %v4412
        %v4414 = vlaneseq
        %v4415 = vshrl.u32 %v4414, 7
        %v4416 = vsub.s32 5, %v4415
        %v4417 = vrot.slane %v2119, %v4416
        %v4418 = vmul.f32 %v4229, %v4413
        %v4419 = vmul.f32 %v4231, %v4417
        %v4420 = vadd.f32 %v4408, %v4418
        %v4421 = vadd.f32 %v4409, %v4419
        %v4422 = vlaneseq
        %v4423 = vshrl.u32 %v4422, 7
        %v4424 = vsub.s32 6, %v4423
        %v4425 = vrot.slane %v2118, %v4424
        %v4426 = vlaneseq
        %v4427 = vshrl.u32 %v4426, 7
        %v4428 = vsub.s32 6, %v4427
        %v4429 = vrot.slane %v2119, %v4428
        %v4430 = vmul.f32 %v4233, %v4425
        %v4431 = vmul.f32 %v4235, %v4429
        %v4432 = vadd.f32 %v4420, %v4430
        %v4433 = vadd.f32 %v4421, %v4431
        %v4434 = vlaneseq
        %v4435 = vshrl.u32 %v4434, 7
        %v4436 = vsub.s32 7, %v4435
        %v4437 = vrot.slane %v2118, %v4436
        %v4438 = vlaneseq
        %v4439 = vshrl.u32 %v4438, 7
        %v4440 = vsub.s32 7, %v4439
        %v4441 = vrot.slane %v2119, %v4440
        %v4442 = vmul.f32 %v4237, %v4437
        %v4443 = vmul.f32 %v4239, %v4441
        %v4444 = vadd.f32 %v4432, %v4442
        %v4445 = vadd.f32 %v4433, %v4443
        %v4446 = vmul.f32 %v4444, %v4254
        %v4447 = vmul.f32 %v4445, %v4255
        %s4448 = sld [smem:[#allocation8]]
        %v4449 = vstv %s4448
        %v4450 = vmul.f32 %v2604, %v4449
        %v4451 = vmul.f32 %v2605, %v4449
        %s4452 = sld [smem:[#allocation8 + $0x1]]
        %v4453 = vstv %s4452
        %v4454 = vmul.f32 %v2700, %v4453
        %v4455 = vmul.f32 %v2701, %v4453
        %v4456 = vadd.f32 %v4450, %v4454
        %v4457 = vadd.f32 %v4451, %v4455
        %s4458 = sld [smem:[#allocation8 + $0x2]]
        %v4459 = vstv %s4458
        %v4460 = vmul.f32 %v3186, %v4459
        %v4461 = vmul.f32 %v3187, %v4459
        %v4462 = vadd.f32 %v4456, %v4460
        %v4463 = vadd.f32 %v4457, %v4461
        %s4464 = sld [smem:[#allocation8 + $0x3]]
        %v4465 = vstv %s4464
        %v4466 = vmul.f32 %v3282, %v4465
        %v4467 = vmul.f32 %v3283, %v4465
        %v4468 = vadd.f32 %v4462, %v4466
        %v4469 = vadd.f32 %v4463, %v4467
        %s4470 = sld [smem:[#allocation8 + $0x4]]
        %v4471 = vstv %s4470
        %v4472 = vmul.f32 %v3768, %v4471
        %v4473 = vmul.f32 %v3769, %v4471
        %v4474 = vadd.f32 %v4468, %v4472
        %v4475 = vadd.f32 %v4469, %v4473
        %s4476 = sld [smem:[#allocation8 + $0x5]]
        %v4477 = vstv %s4476
        %v4478 = vmul.f32 %v3864, %v4477
        %v4479 = vmul.f32 %v3865, %v4477
        %v4480 = vadd.f32 %v4474, %v4478
        %v4481 = vadd.f32 %v4475, %v4479
        %s4482 = sld [smem:[#allocation8 + $0x6]]
        %v4483 = vstv %s4482
        %v4484 = vmul.f32 %v4350, %v4483
        %v4485 = vmul.f32 %v4351, %v4483
        %v4486 = vadd.f32 %v4480, %v4484
        %v4487 = vadd.f32 %v4481, %v4485
        %s4488 = sld [smem:[#allocation8 + $0x7]]
        %v4489 = vstv %s4488
        %v4490 = vmul.f32 %v4446, %v4489
        %v4491 = vmul.f32 %v4447, %v4489
        %v4492 = vadd.f32 %v4486, %v4490
        %v4493 = vadd.f32 %v4487, %v4491
        %v4494 = vadd.f32 %v820, %v4492
        %v4495 = vadd.f32 %v821, %v4493
        %s4496 = sld [smem:[#allocation10]]
        %v4497 = vstv %s4496
        %v4498 = vadd.f32 %v4494, %v4497
        %v4499 = vadd.f32 %v4495, %v4497
        %s4500 = sld [smem:[#allocation8 + $0x8]]
        %v4501 = vstv %s4500
        %v4502 = vmul.f32 %v2604, %v4501
        %v4503 = vmul.f32 %v2605, %v4501
        %s4504 = sld [smem:[#allocation8 + $0x9]]
        %v4505 = vstv %s4504
        %v4506 = vmul.f32 %v2700, %v4505
        %v4507 = vmul.f32 %v2701, %v4505
        %v4508 = vadd.f32 %v4502, %v4506
        %v4509 = vadd.f32 %v4503, %v4507
        %s4510 = sld [smem:[#allocation8 + $0xa]]
        %v4511 = vstv %s4510
        %v4512 = vmul.f32 %v3186, %v4511
        %v4513 = vmul.f32 %v3187, %v4511
        %v4514 = vadd.f32 %v4508, %v4512
        %v4515 = vadd.f32 %v4509, %v4513
        %s4516 = sld [smem:[#allocation8 + $0xb]]
        %v4517 = vstv %s4516
        %v4518 = vmul.f32 %v3282, %v4517
        %v4519 = vmul.f32 %v3283, %v4517
        %v4520 = vadd.f32 %v4514, %v4518
        %v4521 = vadd.f32 %v4515, %v4519
        %s4522 = sld [smem:[#allocation8 + $0xc]]
        %v4523 = vstv %s4522
        %v4524 = vmul.f32 %v3768, %v4523
        %v4525 = vmul.f32 %v3769, %v4523
        %v4526 = vadd.f32 %v4520, %v4524
        %v4527 = vadd.f32 %v4521, %v4525
        %s4528 = sld [smem:[#allocation8 + $0xd]]
        %v4529 = vstv %s4528
        %v4530 = vmul.f32 %v3864, %v4529
        %v4531 = vmul.f32 %v3865, %v4529
        %v4532 = vadd.f32 %v4526, %v4530
        %v4533 = vadd.f32 %v4527, %v4531
        %s4534 = sld [smem:[#allocation8 + $0xe]]
        %v4535 = vstv %s4534
        %v4536 = vmul.f32 %v4350, %v4535
        %v4537 = vmul.f32 %v4351, %v4535
        %v4538 = vadd.f32 %v4532, %v4536
        %v4539 = vadd.f32 %v4533, %v4537
        %s4540 = sld [smem:[#allocation8 + $0xf]]
        %v4541 = vstv %s4540
        %v4542 = vmul.f32 %v4446, %v4541
        %v4543 = vmul.f32 %v4447, %v4541
        %v4544 = vadd.f32 %v4538, %v4542
        %v4545 = vadd.f32 %v4539, %v4543
        %v4546 = vadd.f32 %v822, %v4544
        %v4547 = vadd.f32 %v823, %v4545
        %s4548 = sld [smem:[#allocation10 + $0x1]]
        %v4549 = vstv %s4548
        %v4550 = vadd.f32 %v4546, %v4549
        %v4551 = vadd.f32 %v4547, %v4549
        %s4552 = sld [smem:[#allocation8 + $0x10]]
        %v4553 = vstv %s4552
        %v4554 = vmul.f32 %v2604, %v4553
        %v4555 = vmul.f32 %v2605, %v4553
        %s4556 = sld [smem:[#allocation8 + $0x11]]
        %v4557 = vstv %s4556
        %v4558 = vmul.f32 %v2700, %v4557
        %v4559 = vmul.f32 %v2701, %v4557
        %v4560 = vadd.f32 %v4554, %v4558
        %v4561 = vadd.f32 %v4555, %v4559
        %s4562 = sld [smem:[#allocation8 + $0x12]]
        %v4563 = vstv %s4562
        %v4564 = vmul.f32 %v3186, %v4563
        %v4565 = vmul.f32 %v3187, %v4563
        %v4566 = vadd.f32 %v4560, %v4564
        %v4567 = vadd.f32 %v4561, %v4565
        %s4568 = sld [smem:[#allocation8 + $0x13]]
        %v4569 = vstv %s4568
        %v4570 = vmul.f32 %v3282, %v4569
        %v4571 = vmul.f32 %v3283, %v4569
        %v4572 = vadd.f32 %v4566, %v4570
        %v4573 = vadd.f32 %v4567, %v4571
        %s4574 = sld [smem:[#allocation8 + $0x14]]
        %v4575 = vstv %s4574
        %v4576 = vmul.f32 %v3768, %v4575
        %v4577 = vmul.f32 %v3769, %v4575
        %v4578 = vadd.f32 %v4572, %v4576
        %v4579 = vadd.f32 %v4573, %v4577
        %s4580 = sld [smem:[#allocation8 + $0x15]]
        %v4581 = vstv %s4580
        %v4582 = vmul.f32 %v3864, %v4581
        %v4583 = vmul.f32 %v3865, %v4581
        %v4584 = vadd.f32 %v4578, %v4582
        %v4585 = vadd.f32 %v4579, %v4583
        %s4586 = sld [smem:[#allocation8 + $0x16]]
        %v4587 = vstv %s4586
        %v4588 = vmul.f32 %v4350, %v4587
        %v4589 = vmul.f32 %v4351, %v4587
        %v4590 = vadd.f32 %v4584, %v4588
        %v4591 = vadd.f32 %v4585, %v4589
        %s4592 = sld [smem:[#allocation8 + $0x17]]
        %v4593 = vstv %s4592
        %v4594 = vmul.f32 %v4446, %v4593
        %v4595 = vmul.f32 %v4447, %v4593
        %v4596 = vadd.f32 %v4590, %v4594
        %v4597 = vadd.f32 %v4591, %v4595
        %v4598 = vadd.f32 %v824, %v4596
        %v4599 = vadd.f32 %v825, %v4597
        %s4600 = sld [smem:[#allocation10 + $0x2]]
        %v4601 = vstv %s4600
        %v4602 = vadd.f32 %v4598, %v4601
        %v4603 = vadd.f32 %v4599, %v4601
        %s4604 = sld [smem:[#allocation8 + $0x18]]
        %v4605 = vstv %s4604
        %v4606 = vmul.f32 %v2604, %v4605
        %v4607 = vmul.f32 %v2605, %v4605
        %s4608 = sld [smem:[#allocation8 + $0x19]]
        %v4609 = vstv %s4608
        %v4610 = vmul.f32 %v2700, %v4609
        %v4611 = vmul.f32 %v2701, %v4609
        %v4612 = vadd.f32 %v4606, %v4610
        %v4613 = vadd.f32 %v4607, %v4611
        %s4614 = sld [smem:[#allocation8 + $0x1a]]
        %v4615 = vstv %s4614
        %v4616 = vmul.f32 %v3186, %v4615
        %v4617 = vmul.f32 %v3187, %v4615
        %v4618 = vadd.f32 %v4612, %v4616
        %v4619 = vadd.f32 %v4613, %v4617
        %s4620 = sld [smem:[#allocation8 + $0x1b]]
        %v4621 = vstv %s4620
        %v4622 = vmul.f32 %v3282, %v4621
        %v4623 = vmul.f32 %v3283, %v4621
        %v4624 = vadd.f32 %v4618, %v4622
        %v4625 = vadd.f32 %v4619, %v4623
        %s4626 = sld [smem:[#allocation8 + $0x1c]]
        %v4627 = vstv %s4626
        %v4628 = vmul.f32 %v3768, %v4627
        %v4629 = vmul.f32 %v3769, %v4627
        %v4630 = vadd.f32 %v4624, %v4628
        %v4631 = vadd.f32 %v4625, %v4629
        %s4632 = sld [smem:[#allocation8 + $0x1d]]
        %v4633 = vstv %s4632
        %v4634 = vmul.f32 %v3864, %v4633
        %v4635 = vmul.f32 %v3865, %v4633
        %v4636 = vadd.f32 %v4630, %v4634
        %v4637 = vadd.f32 %v4631, %v4635
        %s4638 = sld [smem:[#allocation8 + $0x1e]]
        %v4639 = vstv %s4638
        %v4640 = vmul.f32 %v4350, %v4639
        %v4641 = vmul.f32 %v4351, %v4639
        %v4642 = vadd.f32 %v4636, %v4640
        %v4643 = vadd.f32 %v4637, %v4641
        %s4644 = sld [smem:[#allocation8 + $0x1f]]
        %v4645 = vstv %s4644
        %v4646 = vmul.f32 %v4446, %v4645
        %v4647 = vmul.f32 %v4447, %v4645
        %v4648 = vadd.f32 %v4642, %v4646
        %v4649 = vadd.f32 %v4643, %v4647
        %v4650 = vadd.f32 %v826, %v4648
        %v4651 = vadd.f32 %v827, %v4649
        %s4652 = sld [smem:[#allocation10 + $0x3]]
        %v4653 = vstv %s4652
        %v4654 = vadd.f32 %v4650, %v4653
        %v4655 = vadd.f32 %v4651, %v4653
        %s4656 = sld [smem:[#allocation8 + $0x20]]
        %v4657 = vstv %s4656
        %v4658 = vmul.f32 %v2604, %v4657
        %v4659 = vmul.f32 %v2605, %v4657
        %s4660 = sld [smem:[#allocation8 + $0x21]]
        %v4661 = vstv %s4660
        %v4662 = vmul.f32 %v2700, %v4661
        %v4663 = vmul.f32 %v2701, %v4661
        %v4664 = vadd.f32 %v4658, %v4662
        %v4665 = vadd.f32 %v4659, %v4663
        %s4666 = sld [smem:[#allocation8 + $0x22]]
        %v4667 = vstv %s4666
        %v4668 = vmul.f32 %v3186, %v4667
        %v4669 = vmul.f32 %v3187, %v4667
        %v4670 = vadd.f32 %v4664, %v4668
        %v4671 = vadd.f32 %v4665, %v4669
        %s4672 = sld [smem:[#allocation8 + $0x23]]
        %v4673 = vstv %s4672
        %v4674 = vmul.f32 %v3282, %v4673
        %v4675 = vmul.f32 %v3283, %v4673
        %v4676 = vadd.f32 %v4670, %v4674
        %v4677 = vadd.f32 %v4671, %v4675
        %s4678 = sld [smem:[#allocation8 + $0x24]]
        %v4679 = vstv %s4678
        %v4680 = vmul.f32 %v3768, %v4679
        %v4681 = vmul.f32 %v3769, %v4679
        %v4682 = vadd.f32 %v4676, %v4680
        %v4683 = vadd.f32 %v4677, %v4681
        %s4684 = sld [smem:[#allocation8 + $0x25]]
        %v4685 = vstv %s4684
        %v4686 = vmul.f32 %v3864, %v4685
        %v4687 = vmul.f32 %v3865, %v4685
        %v4688 = vadd.f32 %v4682, %v4686
        %v4689 = vadd.f32 %v4683, %v4687
        %s4690 = sld [smem:[#allocation8 + $0x26]]
        %v4691 = vstv %s4690
        %v4692 = vmul.f32 %v4350, %v4691
        %v4693 = vmul.f32 %v4351, %v4691
        %v4694 = vadd.f32 %v4688, %v4692
        %v4695 = vadd.f32 %v4689, %v4693
        %s4696 = sld [smem:[#allocation8 + $0x27]]
        %v4697 = vstv %s4696
        %v4698 = vmul.f32 %v4446, %v4697
        %v4699 = vmul.f32 %v4447, %v4697
        %v4700 = vadd.f32 %v4694, %v4698
        %v4701 = vadd.f32 %v4695, %v4699
        %v4702 = vadd.f32 %v828, %v4700
        %v4703 = vadd.f32 %v829, %v4701
        %s4704 = sld [smem:[#allocation10 + $0x4]]
        %v4705 = vstv %s4704
        %v4706 = vadd.f32 %v4702, %v4705
        %v4707 = vadd.f32 %v4703, %v4705
        %s4708 = sld [smem:[#allocation8 + $0x28]]
        %v4709 = vstv %s4708
        %v4710 = vmul.f32 %v2604, %v4709
        %v4711 = vmul.f32 %v2605, %v4709
        %s4712 = sld [smem:[#allocation8 + $0x29]]
        %v4713 = vstv %s4712
        %v4714 = vmul.f32 %v2700, %v4713
        %v4715 = vmul.f32 %v2701, %v4713
        %v4716 = vadd.f32 %v4710, %v4714
        %v4717 = vadd.f32 %v4711, %v4715
        %s4718 = sld [smem:[#allocation8 + $0x2a]]
        %v4719 = vstv %s4718
        %v4720 = vmul.f32 %v3186, %v4719
        %v4721 = vmul.f32 %v3187, %v4719
        %v4722 = vadd.f32 %v4716, %v4720
        %v4723 = vadd.f32 %v4717, %v4721
        %s4724 = sld [smem:[#allocation8 + $0x2b]]
        %v4725 = vstv %s4724
        %v4726 = vmul.f32 %v3282, %v4725
        %v4727 = vmul.f32 %v3283, %v4725
        %v4728 = vadd.f32 %v4722, %v4726
        %v4729 = vadd.f32 %v4723, %v4727
        %s4730 = sld [smem:[#allocation8 + $0x2c]]
        %v4731 = vstv %s4730
        %v4732 = vmul.f32 %v3768, %v4731
        %v4733 = vmul.f32 %v3769, %v4731
        %v4734 = vadd.f32 %v4728, %v4732
        %v4735 = vadd.f32 %v4729, %v4733
        %s4736 = sld [smem:[#allocation8 + $0x2d]]
        %v4737 = vstv %s4736
        %v4738 = vmul.f32 %v3864, %v4737
        %v4739 = vmul.f32 %v3865, %v4737
        %v4740 = vadd.f32 %v4734, %v4738
        %v4741 = vadd.f32 %v4735, %v4739
        %s4742 = sld [smem:[#allocation8 + $0x2e]]
        %v4743 = vstv %s4742
        %v4744 = vmul.f32 %v4350, %v4743
        %v4745 = vmul.f32 %v4351, %v4743
        %v4746 = vadd.f32 %v4740, %v4744
        %v4747 = vadd.f32 %v4741, %v4745
        %s4748 = sld [smem:[#allocation8 + $0x2f]]
        %v4749 = vstv %s4748
        %v4750 = vmul.f32 %v4446, %v4749
        %v4751 = vmul.f32 %v4447, %v4749
        %v4752 = vadd.f32 %v4746, %v4750
        %v4753 = vadd.f32 %v4747, %v4751
        %v4754 = vadd.f32 %v830, %v4752
        %v4755 = vadd.f32 %v831, %v4753
        %s4756 = sld [smem:[#allocation10 + $0x5]]
        %v4757 = vstv %s4756
        %v4758 = vadd.f32 %v4754, %v4757
        %v4759 = vadd.f32 %v4755, %v4757
        %s4760 = sld [smem:[#allocation8 + $0x30]]
        %v4761 = vstv %s4760
        %v4762 = vmul.f32 %v2604, %v4761
        %v4763 = vmul.f32 %v2605, %v4761
        %s4764 = sld [smem:[#allocation8 + $0x31]]
        %v4765 = vstv %s4764
        %v4766 = vmul.f32 %v2700, %v4765
        %v4767 = vmul.f32 %v2701, %v4765
        %v4768 = vadd.f32 %v4762, %v4766
        %v4769 = vadd.f32 %v4763, %v4767
        %s4770 = sld [smem:[#allocation8 + $0x32]]
        %v4771 = vstv %s4770
        %v4772 = vmul.f32 %v3186, %v4771
        %v4773 = vmul.f32 %v3187, %v4771
        %v4774 = vadd.f32 %v4768, %v4772
        %v4775 = vadd.f32 %v4769, %v4773
        %s4776 = sld [smem:[#allocation8 + $0x33]]
        %v4777 = vstv %s4776
        %v4778 = vmul.f32 %v3282, %v4777
        %v4779 = vmul.f32 %v3283, %v4777
        %v4780 = vadd.f32 %v4774, %v4778
        %v4781 = vadd.f32 %v4775, %v4779
        %s4782 = sld [smem:[#allocation8 + $0x34]]
        %v4783 = vstv %s4782
        %v4784 = vmul.f32 %v3768, %v4783
        %v4785 = vmul.f32 %v3769, %v4783
        %v4786 = vadd.f32 %v4780, %v4784
        %v4787 = vadd.f32 %v4781, %v4785
        %s4788 = sld [smem:[#allocation8 + $0x35]]
        %v4789 = vstv %s4788
        %v4790 = vmul.f32 %v3864, %v4789
        %v4791 = vmul.f32 %v3865, %v4789
        %v4792 = vadd.f32 %v4786, %v4790
        %v4793 = vadd.f32 %v4787, %v4791
        %s4794 = sld [smem:[#allocation8 + $0x36]]
        %v4795 = vstv %s4794
        %v4796 = vmul.f32 %v4350, %v4795
        %v4797 = vmul.f32 %v4351, %v4795
        %v4798 = vadd.f32 %v4792, %v4796
        %v4799 = vadd.f32 %v4793, %v4797
        %s4800 = sld [smem:[#allocation8 + $0x37]]
        %v4801 = vstv %s4800
        %v4802 = vmul.f32 %v4446, %v4801
        %v4803 = vmul.f32 %v4447, %v4801
        %v4804 = vadd.f32 %v4798, %v4802
        %v4805 = vadd.f32 %v4799, %v4803
        %v4806 = vadd.f32 %v832, %v4804
        %v4807 = vadd.f32 %v833, %v4805
        %s4808 = sld [smem:[#allocation10 + $0x6]]
        %v4809 = vstv %s4808
        %v4810 = vadd.f32 %v4806, %v4809
        %v4811 = vadd.f32 %v4807, %v4809
        %s4812 = sld [smem:[#allocation8 + $0x38]]
        %v4813 = vstv %s4812
        %v4814 = vmul.f32 %v2604, %v4813
        %v4815 = vmul.f32 %v2605, %v4813
        %s4816 = sld [smem:[#allocation8 + $0x39]]
        %v4817 = vstv %s4816
        %v4818 = vmul.f32 %v2700, %v4817
        %v4819 = vmul.f32 %v2701, %v4817
        %v4820 = vadd.f32 %v4814, %v4818
        %v4821 = vadd.f32 %v4815, %v4819
        %s4822 = sld [smem:[#allocation8 + $0x3a]]
        %v4823 = vstv %s4822
        %v4824 = vmul.f32 %v3186, %v4823
        %v4825 = vmul.f32 %v3187, %v4823
        %v4826 = vadd.f32 %v4820, %v4824
        %v4827 = vadd.f32 %v4821, %v4825
        %s4828 = sld [smem:[#allocation8 + $0x3b]]
        %v4829 = vstv %s4828
        %v4830 = vmul.f32 %v3282, %v4829
        %v4831 = vmul.f32 %v3283, %v4829
        %v4832 = vadd.f32 %v4826, %v4830
        %v4833 = vadd.f32 %v4827, %v4831
        %s4834 = sld [smem:[#allocation8 + $0x3c]]
        %v4835 = vstv %s4834
        %v4836 = vmul.f32 %v3768, %v4835
        %v4837 = vmul.f32 %v3769, %v4835
        %v4838 = vadd.f32 %v4832, %v4836
        %v4839 = vadd.f32 %v4833, %v4837
        %s4840 = sld [smem:[#allocation8 + $0x3d]]
        %v4841 = vstv %s4840
        %v4842 = vmul.f32 %v3864, %v4841
        %v4843 = vmul.f32 %v3865, %v4841
        %v4844 = vadd.f32 %v4838, %v4842
        %v4845 = vadd.f32 %v4839, %v4843
        %s4846 = sld [smem:[#allocation8 + $0x3e]]
        %v4847 = vstv %s4846
        %v4848 = vmul.f32 %v4350, %v4847
        %v4849 = vmul.f32 %v4351, %v4847
        %v4850 = vadd.f32 %v4844, %v4848
        %v4851 = vadd.f32 %v4845, %v4849
        %s4852 = sld [smem:[#allocation8 + $0x3f]]
        %v4853 = vstv %s4852
        %v4854 = vmul.f32 %v4446, %v4853
        %v4855 = vmul.f32 %v4447, %v4853
        %v4856 = vadd.f32 %v4850, %v4854
        %v4857 = vadd.f32 %v4851, %v4855
        %v4858 = vadd.f32 %v834, %v4856
        %v4859 = vadd.f32 %v835, %v4857
        %s4860 = sld [smem:[#allocation10 + $0x7]]
        %v4861 = vstv %s4860
        %v4862 = vadd.f32 %v4858, %v4861
        %v4863 = vadd.f32 %v4859, %v4861
        %v4866 = vcombine.low %v4498, %v4499
        %v4867 = vcombine.high %v4498, %v4499
        %v4869 = vunpack.c.l.s4 1966171168
        %v4870 = vunpack.c.0.s8 %v4869
        %v4871 = vlaneseq
        %v4872 = vshrl.u32 %v4871, 7
        %v4873 = vsub.s32 %v4870, %v4872
        %v4874 = vrot.slane %v4866, %v4873
        %v4876 = vunpack.c.l.s4 1966171168
        %v4877 = vunpack.c.0.s8 %v4876
        %v4878 = vlaneseq
        %v4879 = vshrl.u32 %v4878, 7
        %v4880 = vsub.s32 %v4877, %v4879
        %v4881 = vrot.slane %v4867, %v4880
        %v4882 = vcombine.high %v4874, %v4874
        %v4883 = vcombine.high %v4881, %v4881
        %v4885 = vunpack.c.l.s4 1966171168
        %v4886 = vunpack.c.0.s8 %v4885
        %v4887 = vlaneseq
        %v4888 = vshrl.u32 %v4887, 7
        %v4889 = vsub.s32 %v4886, %v4888
        %v4890 = vrot.slane %v4874, %v4889
        %v4892 = vunpack.c.l.s4 1966171168
        %v4893 = vunpack.c.0.s8 %v4892
        %v4894 = vlaneseq
        %v4895 = vshrl.u32 %v4894, 7
        %v4896 = vsub.s32 %v4893, %v4895
        %v4897 = vrot.slane %v4881, %v4896
        %v4899 = vunpack.c.l.s4 1966171168
        %v4900 = vunpack.c.0.s8 %v4899
        %v4901 = vlaneseq
        %v4902 = vshrl.u32 %v4901, 7
        %v4903 = vsub.s32 %v4900, %v4902
        %v4904 = vrot.slane %v4882, %v4903
        %v4906 = vunpack.c.l.s4 1966171168
        %v4907 = vunpack.c.0.s8 %v4906
        %v4908 = vlaneseq
        %v4909 = vshrl.u32 %v4908, 7
        %v4910 = vsub.s32 %v4907, %v4909
        %v4911 = vrot.slane %v4883, %v4910
        %v4912 = vcombine.high %v4890, %v4890
        %v4913 = vcombine.high %v4897, %v4897
        %v4914 = vcombine.high %v4904, %v4904
        %v4915 = vcombine.high %v4911, %v4911
        %v4918 = vcombine.low %v4550, %v4551
        %v4919 = vcombine.high %v4550, %v4551
        %v4921 = vunpack.c.l.s4 1966171168
        %v4922 = vunpack.c.0.s8 %v4921
        %v4923 = vlaneseq
        %v4924 = vshrl.u32 %v4923, 7
        %v4925 = vsub.s32 %v4922, %v4924
        %v4926 = vrot.slane %v4918, %v4925
        %v4928 = vunpack.c.l.s4 1966171168
        %v4929 = vunpack.c.0.s8 %v4928
        %v4930 = vlaneseq
        %v4931 = vshrl.u32 %v4930, 7
        %v4932 = vsub.s32 %v4929, %v4931
        %v4933 = vrot.slane %v4919, %v4932
        %v4934 = vcombine.high %v4926, %v4926
        %v4935 = vcombine.high %v4933, %v4933
        %v4937 = vunpack.c.l.s4 1966171168
        %v4938 = vunpack.c.0.s8 %v4937
        %v4939 = vlaneseq
        %v4940 = vshrl.u32 %v4939, 7
        %v4941 = vsub.s32 %v4938, %v4940
        %v4942 = vrot.slane %v4926, %v4941
        %v4944 = vunpack.c.l.s4 1966171168
        %v4945 = vunpack.c.0.s8 %v4944
        %v4946 = vlaneseq
        %v4947 = vshrl.u32 %v4946, 7
        %v4948 = vsub.s32 %v4945, %v4947
        %v4949 = vrot.slane %v4933, %v4948
        %v4951 = vunpack.c.l.s4 1966171168
        %v4952 = vunpack.c.0.s8 %v4951
        %v4953 = vlaneseq
        %v4954 = vshrl.u32 %v4953, 7
        %v4955 = vsub.s32 %v4952, %v4954
        %v4956 = vrot.slane %v4934, %v4955
        %v4958 = vunpack.c.l.s4 1966171168
        %v4959 = vunpack.c.0.s8 %v4958
        %v4960 = vlaneseq
        %v4961 = vshrl.u32 %v4960, 7
        %v4962 = vsub.s32 %v4959, %v4961
        %v4963 = vrot.slane %v4935, %v4962
        %v4964 = vcombine.high %v4942, %v4942
        %v4965 = vcombine.high %v4949, %v4949
        %v4966 = vcombine.high %v4956, %v4956
        %v4967 = vcombine.high %v4963, %v4963
        %v4970 = vcombine.low %v4602, %v4603
        %v4971 = vcombine.high %v4602, %v4603
        %v4973 = vunpack.c.l.s4 1966171168
        %v4974 = vunpack.c.0.s8 %v4973
        %v4975 = vlaneseq
        %v4976 = vshrl.u32 %v4975, 7
        %v4977 = vsub.s32 %v4974, %v4976
        %v4978 = vrot.slane %v4970, %v4977
        %v4980 = vunpack.c.l.s4 1966171168
        %v4981 = vunpack.c.0.s8 %v4980
        %v4982 = vlaneseq
        %v4983 = vshrl.u32 %v4982, 7
        %v4984 = vsub.s32 %v4981, %v4983
        %v4985 = vrot.slane %v4971, %v4984
        %v4986 = vcombine.high %v4978, %v4978
        %v4987 = vcombine.high %v4985, %v4985
        %v4989 = vunpack.c.l.s4 1966171168
        %v4990 = vunpack.c.0.s8 %v4989
        %v4991 = vlaneseq
        %v4992 = vshrl.u32 %v4991, 7
        %v4993 = vsub.s32 %v4990, %v4992
        %v4994 = vrot.slane %v4978, %v4993
        %v4996 = vunpack.c.l.s4 1966171168
        %v4997 = vunpack.c.0.s8 %v4996
        %v4998 = vlaneseq
        %v4999 = vshrl.u32 %v4998, 7
        %v5000 = vsub.s32 %v4997, %v4999
        %v5001 = vrot.slane %v4985, %v5000
        %v5003 = vunpack.c.l.s4 1966171168
        %v5004 = vunpack.c.0.s8 %v5003
        %v5005 = vlaneseq
        %v5006 = vshrl.u32 %v5005, 7
        %v5007 = vsub.s32 %v5004, %v5006
        %v5008 = vrot.slane %v4986, %v5007
        %v5010 = vunpack.c.l.s4 1966171168
        %v5011 = vunpack.c.0.s8 %v5010
        %v5012 = vlaneseq
        %v5013 = vshrl.u32 %v5012, 7
        %v5014 = vsub.s32 %v5011, %v5013
        %v5015 = vrot.slane %v4987, %v5014
        %v5016 = vcombine.high %v4994, %v4994
        %v5017 = vcombine.high %v5001, %v5001
        %v5018 = vcombine.high %v5008, %v5008
        %v5019 = vcombine.high %v5015, %v5015
        %v5022 = vcombine.low %v4654, %v4655
        %v5023 = vcombine.high %v4654, %v4655
        %v5025 = vunpack.c.l.s4 1966171168
        %v5026 = vunpack.c.0.s8 %v5025
        %v5027 = vlaneseq
        %v5028 = vshrl.u32 %v5027, 7
        %v5029 = vsub.s32 %v5026, %v5028
        %v5030 = vrot.slane %v5022, %v5029
        %v5032 = vunpack.c.l.s4 1966171168
        %v5033 = vunpack.c.0.s8 %v5032
        %v5034 = vlaneseq
        %v5035 = vshrl.u32 %v5034, 7
        %v5036 = vsub.s32 %v5033, %v5035
        %v5037 = vrot.slane %v5023, %v5036
        %v5038 = vcombine.high %v5030, %v5030
        %v5039 = vcombine.high %v5037, %v5037
        %v5041 = vunpack.c.l.s4 1966171168
        %v5042 = vunpack.c.0.s8 %v5041
        %v5043 = vlaneseq
        %v5044 = vshrl.u32 %v5043, 7
        %v5045 = vsub.s32 %v5042, %v5044
        %v5046 = vrot.slane %v5030, %v5045
        %v5048 = vunpack.c.l.s4 1966171168
        %v5049 = vunpack.c.0.s8 %v5048
        %v5050 = vlaneseq
        %v5051 = vshrl.u32 %v5050, 7
        %v5052 = vsub.s32 %v5049, %v5051
        %v5053 = vrot.slane %v5037, %v5052
        %v5055 = vunpack.c.l.s4 1966171168
        %v5056 = vunpack.c.0.s8 %v5055
        %v5057 = vlaneseq
        %v5058 = vshrl.u32 %v5057, 7
        %v5059 = vsub.s32 %v5056, %v5058
        %v5060 = vrot.slane %v5038, %v5059
        %v5062 = vunpack.c.l.s4 1966171168
        %v5063 = vunpack.c.0.s8 %v5062
        %v5064 = vlaneseq
        %v5065 = vshrl.u32 %v5064, 7
        %v5066 = vsub.s32 %v5063, %v5065
        %v5067 = vrot.slane %v5039, %v5066
        %v5068 = vcombine.high %v5046, %v5046
        %v5069 = vcombine.high %v5053, %v5053
        %v5070 = vcombine.high %v5060, %v5060
        %v5071 = vcombine.high %v5067, %v5067
        %v5074 = vcombine.low %v4706, %v4707
        %v5075 = vcombine.high %v4706, %v4707
        %v5077 = vunpack.c.l.s4 1966171168
        %v5078 = vunpack.c.0.s8 %v5077
        %v5079 = vlaneseq
        %v5080 = vshrl.u32 %v5079, 7
        %v5081 = vsub.s32 %v5078, %v5080
        %v5082 = vrot.slane %v5074, %v5081
        %v5084 = vunpack.c.l.s4 1966171168
        %v5085 = vunpack.c.0.s8 %v5084
        %v5086 = vlaneseq
        %v5087 = vshrl.u32 %v5086, 7
        %v5088 = vsub.s32 %v5085, %v5087
        %v5089 = vrot.slane %v5075, %v5088
        %v5090 = vcombine.high %v5082, %v5082
        %v5091 = vcombine.high %v5089, %v5089
        %v5093 = vunpack.c.l.s4 1966171168
        %v5094 = vunpack.c.0.s8 %v5093
        %v5095 = vlaneseq
        %v5096 = vshrl.u32 %v5095, 7
        %v5097 = vsub.s32 %v5094, %v5096
        %v5098 = vrot.slane %v5082, %v5097
        %v5100 = vunpack.c.l.s4 1966171168
        %v5101 = vunpack.c.0.s8 %v5100
        %v5102 = vlaneseq
        %v5103 = vshrl.u32 %v5102, 7
        %v5104 = vsub.s32 %v5101, %v5103
        %v5105 = vrot.slane %v5089, %v5104
        %v5107 = vunpack.c.l.s4 1966171168
        %v5108 = vunpack.c.0.s8 %v5107
        %v5109 = vlaneseq
        %v5110 = vshrl.u32 %v5109, 7
        %v5111 = vsub.s32 %v5108, %v5110
        %v5112 = vrot.slane %v5090, %v5111
        %v5114 = vunpack.c.l.s4 1966171168
        %v5115 = vunpack.c.0.s8 %v5114
        %v5116 = vlaneseq
        %v5117 = vshrl.u32 %v5116, 7
        %v5118 = vsub.s32 %v5115, %v5117
        %v5119 = vrot.slane %v5091, %v5118
        %v5120 = vcombine.high %v5098, %v5098
        %v5121 = vcombine.high %v5105, %v5105
        %v5122 = vcombine.high %v5112, %v5112
        %v5123 = vcombine.high %v5119, %v5119
        %v5126 = vcombine.low %v4758, %v4759
        %v5127 = vcombine.high %v4758, %v4759
        %v5129 = vunpack.c.l.s4 1966171168
        %v5130 = vunpack.c.0.s8 %v5129
        %v5131 = vlaneseq
        %v5132 = vshrl.u32 %v5131, 7
        %v5133 = vsub.s32 %v5130, %v5132
        %v5134 = vrot.slane %v5126, %v5133
        %v5136 = vunpack.c.l.s4 1966171168
        %v5137 = vunpack.c.0.s8 %v5136
        %v5138 = vlaneseq
        %v5139 = vshrl.u32 %v5138, 7
        %v5140 = vsub.s32 %v5137, %v5139
        %v5141 = vrot.slane %v5127, %v5140
        %v5142 = vcombine.high %v5134, %v5134
        %v5143 = vcombine.high %v5141, %v5141
        %v5145 = vunpack.c.l.s4 1966171168
        %v5146 = vunpack.c.0.s8 %v5145
        %v5147 = vlaneseq
        %v5148 = vshrl.u32 %v5147, 7
        %v5149 = vsub.s32 %v5146, %v5148
        %v5150 = vrot.slane %v5134, %v5149
        %v5152 = vunpack.c.l.s4 1966171168
        %v5153 = vunpack.c.0.s8 %v5152
        %v5154 = vlaneseq
        %v5155 = vshrl.u32 %v5154, 7
        %v5156 = vsub.s32 %v5153, %v5155
        %v5157 = vrot.slane %v5141, %v5156
        %v5159 = vunpack.c.l.s4 1966171168
        %v5160 = vunpack.c.0.s8 %v5159
        %v5161 = vlaneseq
        %v5162 = vshrl.u32 %v5161, 7
        %v5163 = vsub.s32 %v5160, %v5162
        %v5164 = vrot.slane %v5142, %v5163
        %v5166 = vunpack.c.l.s4 1966171168
        %v5167 = vunpack.c.0.s8 %v5166
        %v5168 = vlaneseq
        %v5169 = vshrl.u32 %v5168, 7
        %v5170 = vsub.s32 %v5167, %v5169
        %v5171 = vrot.slane %v5143, %v5170
        %v5172 = vcombine.high %v5150, %v5150
        %v5173 = vcombine.high %v5157, %v5157
        %v5174 = vcombine.high %v5164, %v5164
        %v5175 = vcombine.high %v5171, %v5171
        %v5178 = vcombine.low %v4810, %v4811
        %v5179 = vcombine.high %v4810, %v4811
        %v5181 = vunpack.c.l.s4 1966171168
        %v5182 = vunpack.c.0.s8 %v5181
        %v5183 = vlaneseq
        %v5184 = vshrl.u32 %v5183, 7
        %v5185 = vsub.s32 %v5182, %v5184
        %v5186 = vrot.slane %v5178, %v5185
        %v5188 = vunpack.c.l.s4 1966171168
        %v5189 = vunpack.c.0.s8 %v5188
        %v5190 = vlaneseq
        %v5191 = vshrl.u32 %v5190, 7
        %v5192 = vsub.s32 %v5189, %v5191
        %v5193 = vrot.slane %v5179, %v5192
        %v5194 = vcombine.high %v5186, %v5186
        %v5195 = vcombine.high %v5193, %v5193
        %v5197 = vunpack.c.l.s4 1966171168
        %v5198 = vunpack.c.0.s8 %v5197
        %v5199 = vlaneseq
        %v5200 = vshrl.u32 %v5199, 7
        %v5201 = vsub.s32 %v5198, %v5200
        %v5202 = vrot.slane %v5186, %v5201
        %v5204 = vunpack.c.l.s4 1966171168
        %v5205 = vunpack.c.0.s8 %v5204
        %v5206 = vlaneseq
        %v5207 = vshrl.u32 %v5206, 7
        %v5208 = vsub.s32 %v5205, %v5207
        %v5209 = vrot.slane %v5193, %v5208
        %v5211 = vunpack.c.l.s4 1966171168
        %v5212 = vunpack.c.0.s8 %v5211
        %v5213 = vlaneseq
        %v5214 = vshrl.u32 %v5213, 7
        %v5215 = vsub.s32 %v5212, %v5214
        %v5216 = vrot.slane %v5194, %v5215
        %v5218 = vunpack.c.l.s4 1966171168
        %v5219 = vunpack.c.0.s8 %v5218
        %v5220 = vlaneseq
        %v5221 = vshrl.u32 %v5220, 7
        %v5222 = vsub.s32 %v5219, %v5221
        %v5223 = vrot.slane %v5195, %v5222
        %v5224 = vcombine.high %v5202, %v5202
        %v5225 = vcombine.high %v5209, %v5209
        %v5226 = vcombine.high %v5216, %v5216
        %v5227 = vcombine.high %v5223, %v5223
        %v5230 = vcombine.low %v4862, %v4863
        %v5231 = vcombine.high %v4862, %v4863
        %v5233 = vunpack.c.l.s4 1966171168
        %v5234 = vunpack.c.0.s8 %v5233
        %v5235 = vlaneseq
        %v5236 = vshrl.u32 %v5235, 7
        %v5237 = vsub.s32 %v5234, %v5236
        %v5238 = vrot.slane %v5230, %v5237
        %v5240 = vunpack.c.l.s4 1966171168
        %v5241 = vunpack.c.0.s8 %v5240
        %v5242 = vlaneseq
        %v5243 = vshrl.u32 %v5242, 7
        %v5244 = vsub.s32 %v5241, %v5243
        %v5245 = vrot.slane %v5231, %v5244
        %v5246 = vcombine.high %v5238, %v5238
        %v5247 = vcombine.high %v5245, %v5245
        %v5249 = vunpack.c.l.s4 1966171168
        %v5250 = vunpack.c.0.s8 %v5249
        %v5251 = vlaneseq
        %v5252 = vshrl.u32 %v5251, 7
        %v5253 = vsub.s32 %v5250, %v5252
        %v5254 = vrot.slane %v5238, %v5253
        %v5256 = vunpack.c.l.s4 1966171168
        %v5257 = vunpack.c.0.s8 %v5256
        %v5258 = vlaneseq
        %v5259 = vshrl.u32 %v5258, 7
        %v5260 = vsub.s32 %v5257, %v5259
        %v5261 = vrot.slane %v5245, %v5260
        %v5263 = vunpack.c.l.s4 1966171168
        %v5264 = vunpack.c.0.s8 %v5263
        %v5265 = vlaneseq
        %v5266 = vshrl.u32 %v5265, 7
        %v5267 = vsub.s32 %v5264, %v5266
        %v5268 = vrot.slane %v5246, %v5267
        %v5270 = vunpack.c.l.s4 1966171168
        %v5271 = vunpack.c.0.s8 %v5270
        %v5272 = vlaneseq
        %v5273 = vshrl.u32 %v5272, 7
        %v5274 = vsub.s32 %v5271, %v5273
        %v5275 = vrot.slane %v5247, %v5274
        %v5276 = vcombine.high %v5254, %v5254
        %v5277 = vcombine.high %v5261, %v5261
        %v5278 = vcombine.high %v5268, %v5268
        %v5279 = vcombine.high %v5275, %v5275
        %v5280 = vlaneseq
        %v5281 = vshrl.u32 %v5280, 7
        %v5282 = vsub.s32 0, %v5281
        %v5283 = vrot.slane %v4890, %v5282
        %v5284 = vlaneseq
        %v5285 = vshrl.u32 %v5284, 7
        %v5286 = vsub.s32 1, %v5285
        %v5287 = vrot.slane %v4890, %v5286
        %v5288 = vlaneseq
        %v5289 = vshrl.u32 %v5288, 7
        %v5290 = vsub.s32 0, %v5289
        %v5291 = vrot.slane %v4904, %v5290
        %v5292 = vlaneseq
        %v5293 = vshrl.u32 %v5292, 7
        %v5294 = vsub.s32 1, %v5293
        %v5295 = vrot.slane %v4904, %v5294
        %v5296 = vlaneseq
        %v5297 = vshrl.u32 %v5296, 7
        %v5298 = vsub.s32 0, %v5297
        %v5299 = vrot.slane %v4912, %v5298
        %v5300 = vlaneseq
        %v5301 = vshrl.u32 %v5300, 7
        %v5302 = vsub.s32 1, %v5301
        %v5303 = vrot.slane %v4912, %v5302
        %v5304 = vlaneseq
        %v5305 = vshrl.u32 %v5304, 7
        %v5306 = vsub.s32 0, %v5305
        %v5307 = vrot.slane %v4914, %v5306
        %v5308 = vlaneseq
        %v5309 = vshrl.u32 %v5308, 7
        %v5310 = vsub.s32 1, %v5309
        %v5311 = vrot.slane %v4914, %v5310
        %v5312 = vlaneseq
        %v5313 = vshrl.u32 %v5312, 7
        %v5314 = vsub.s32 0, %v5313
        %v5315 = vrot.slane %v4897, %v5314
        %v5316 = vlaneseq
        %v5317 = vshrl.u32 %v5316, 7
        %v5318 = vsub.s32 1, %v5317
        %v5319 = vrot.slane %v4897, %v5318
        %v5320 = vlaneseq
        %v5321 = vshrl.u32 %v5320, 7
        %v5322 = vsub.s32 0, %v5321
        %v5323 = vrot.slane %v4911, %v5322
        %v5324 = vlaneseq
        %v5325 = vshrl.u32 %v5324, 7
        %v5326 = vsub.s32 1, %v5325
        %v5327 = vrot.slane %v4911, %v5326
        %v5328 = vlaneseq
        %v5329 = vshrl.u32 %v5328, 7
        %v5330 = vsub.s32 0, %v5329
        %v5331 = vrot.slane %v4913, %v5330
        %v5332 = vlaneseq
        %v5333 = vshrl.u32 %v5332, 7
        %v5334 = vsub.s32 1, %v5333
        %v5335 = vrot.slane %v4913, %v5334
        %v5336 = vlaneseq
        %v5337 = vshrl.u32 %v5336, 7
        %v5338 = vsub.s32 0, %v5337
        %v5339 = vrot.slane %v4915, %v5338
        %v5340 = vlaneseq
        %v5341 = vshrl.u32 %v5340, 7
        %v5342 = vsub.s32 1, %v5341
        %v5343 = vrot.slane %v4915, %v5342
        %v5360 = vlaneseq
        %v5361 = vshrl.u32 %v5360, 7
        %v5362 = vsub.s32 0, %v5361
        %v5363 = vrot.slane %v4942, %v5362
        %v5364 = vlaneseq
        %v5365 = vshrl.u32 %v5364, 7
        %v5366 = vsub.s32 1, %v5365
        %v5367 = vrot.slane %v4942, %v5366
        %v5368 = vlaneseq
        %v5369 = vshrl.u32 %v5368, 7
        %v5370 = vsub.s32 0, %v5369
        %v5371 = vrot.slane %v4956, %v5370
        %v5372 = vlaneseq
        %v5373 = vshrl.u32 %v5372, 7
        %v5374 = vsub.s32 1, %v5373
        %v5375 = vrot.slane %v4956, %v5374
        %v5376 = vlaneseq
        %v5377 = vshrl.u32 %v5376, 7
        %v5378 = vsub.s32 0, %v5377
        %v5379 = vrot.slane %v4964, %v5378
        %v5380 = vlaneseq
        %v5381 = vshrl.u32 %v5380, 7
        %v5382 = vsub.s32 1, %v5381
        %v5383 = vrot.slane %v4964, %v5382
        %v5384 = vlaneseq
        %v5385 = vshrl.u32 %v5384, 7
        %v5386 = vsub.s32 0, %v5385
        %v5387 = vrot.slane %v4966, %v5386
        %v5388 = vlaneseq
        %v5389 = vshrl.u32 %v5388, 7
        %v5390 = vsub.s32 1, %v5389
        %v5391 = vrot.slane %v4966, %v5390
        %v5392 = vlaneseq
        %v5393 = vshrl.u32 %v5392, 7
        %v5394 = vsub.s32 0, %v5393
        %v5395 = vrot.slane %v4949, %v5394
        %v5396 = vlaneseq
        %v5397 = vshrl.u32 %v5396, 7
        %v5398 = vsub.s32 1, %v5397
        %v5399 = vrot.slane %v4949, %v5398
        %v5400 = vlaneseq
        %v5401 = vshrl.u32 %v5400, 7
        %v5402 = vsub.s32 0, %v5401
        %v5403 = vrot.slane %v4963, %v5402
        %v5404 = vlaneseq
        %v5405 = vshrl.u32 %v5404, 7
        %v5406 = vsub.s32 1, %v5405
        %v5407 = vrot.slane %v4963, %v5406
        %v5408 = vlaneseq
        %v5409 = vshrl.u32 %v5408, 7
        %v5410 = vsub.s32 0, %v5409
        %v5411 = vrot.slane %v4965, %v5410
        %v5412 = vlaneseq
        %v5413 = vshrl.u32 %v5412, 7
        %v5414 = vsub.s32 1, %v5413
        %v5415 = vrot.slane %v4965, %v5414
        %v5416 = vlaneseq
        %v5417 = vshrl.u32 %v5416, 7
        %v5418 = vsub.s32 0, %v5417
        %v5419 = vrot.slane %v4967, %v5418
        %v5420 = vlaneseq
        %v5421 = vshrl.u32 %v5420, 7
        %v5422 = vsub.s32 1, %v5421
        %v5423 = vrot.slane %v4967, %v5422
        %v5440 = vlaneseq
        %v5441 = vshrl.u32 %v5440, 7
        %v5442 = vsub.s32 0, %v5441
        %v5443 = vrot.slane %v4994, %v5442
        %v5444 = vlaneseq
        %v5445 = vshrl.u32 %v5444, 7
        %v5446 = vsub.s32 1, %v5445
        %v5447 = vrot.slane %v4994, %v5446
        %v5448 = vlaneseq
        %v5449 = vshrl.u32 %v5448, 7
        %v5450 = vsub.s32 0, %v5449
        %v5451 = vrot.slane %v5008, %v5450
        %v5452 = vlaneseq
        %v5453 = vshrl.u32 %v5452, 7
        %v5454 = vsub.s32 1, %v5453
        %v5455 = vrot.slane %v5008, %v5454
        %v5456 = vlaneseq
        %v5457 = vshrl.u32 %v5456, 7
        %v5458 = vsub.s32 0, %v5457
        %v5459 = vrot.slane %v5016, %v5458
        %v5460 = vlaneseq
        %v5461 = vshrl.u32 %v5460, 7
        %v5462 = vsub.s32 1, %v5461
        %v5463 = vrot.slane %v5016, %v5462
        %v5464 = vlaneseq
        %v5465 = vshrl.u32 %v5464, 7
        %v5466 = vsub.s32 0, %v5465
        %v5467 = vrot.slane %v5018, %v5466
        %v5468 = vlaneseq
        %v5469 = vshrl.u32 %v5468, 7
        %v5470 = vsub.s32 1, %v5469
        %v5471 = vrot.slane %v5018, %v5470
        %v5472 = vlaneseq
        %v5473 = vshrl.u32 %v5472, 7
        %v5474 = vsub.s32 0, %v5473
        %v5475 = vrot.slane %v5001, %v5474
        %v5476 = vlaneseq
        %v5477 = vshrl.u32 %v5476, 7
        %v5478 = vsub.s32 1, %v5477
        %v5479 = vrot.slane %v5001, %v5478
        %v5480 = vlaneseq
        %v5481 = vshrl.u32 %v5480, 7
        %v5482 = vsub.s32 0, %v5481
        %v5483 = vrot.slane %v5015, %v5482
        %v5484 = vlaneseq
        %v5485 = vshrl.u32 %v5484, 7
        %v5486 = vsub.s32 1, %v5485
        %v5487 = vrot.slane %v5015, %v5486
        %v5488 = vlaneseq
        %v5489 = vshrl.u32 %v5488, 7
        %v5490 = vsub.s32 0, %v5489
        %v5491 = vrot.slane %v5017, %v5490
        %v5492 = vlaneseq
        %v5493 = vshrl.u32 %v5492, 7
        %v5494 = vsub.s32 1, %v5493
        %v5495 = vrot.slane %v5017, %v5494
        %v5496 = vlaneseq
        %v5497 = vshrl.u32 %v5496, 7
        %v5498 = vsub.s32 0, %v5497
        %v5499 = vrot.slane %v5019, %v5498
        %v5500 = vlaneseq
        %v5501 = vshrl.u32 %v5500, 7
        %v5502 = vsub.s32 1, %v5501
        %v5503 = vrot.slane %v5019, %v5502
        %v5520 = vlaneseq
        %v5521 = vshrl.u32 %v5520, 7
        %v5522 = vsub.s32 0, %v5521
        %v5523 = vrot.slane %v5046, %v5522
        %v5524 = vlaneseq
        %v5525 = vshrl.u32 %v5524, 7
        %v5526 = vsub.s32 1, %v5525
        %v5527 = vrot.slane %v5046, %v5526
        %v5528 = vlaneseq
        %v5529 = vshrl.u32 %v5528, 7
        %v5530 = vsub.s32 0, %v5529
        %v5531 = vrot.slane %v5060, %v5530
        %v5532 = vlaneseq
        %v5533 = vshrl.u32 %v5532, 7
        %v5534 = vsub.s32 1, %v5533
        %v5535 = vrot.slane %v5060, %v5534
        %v5536 = vlaneseq
        %v5537 = vshrl.u32 %v5536, 7
        %v5538 = vsub.s32 0, %v5537
        %v5539 = vrot.slane %v5068, %v5538
        %v5540 = vlaneseq
        %v5541 = vshrl.u32 %v5540, 7
        %v5542 = vsub.s32 1, %v5541
        %v5543 = vrot.slane %v5068, %v5542
        %v5544 = vlaneseq
        %v5545 = vshrl.u32 %v5544, 7
        %v5546 = vsub.s32 0, %v5545
        %v5547 = vrot.slane %v5070, %v5546
        %v5548 = vlaneseq
        %v5549 = vshrl.u32 %v5548, 7
        %v5550 = vsub.s32 1, %v5549
        %v5551 = vrot.slane %v5070, %v5550
        %v5552 = vlaneseq
        %v5553 = vshrl.u32 %v5552, 7
        %v5554 = vsub.s32 0, %v5553
        %v5555 = vrot.slane %v5053, %v5554
        %v5556 = vlaneseq
        %v5557 = vshrl.u32 %v5556, 7
        %v5558 = vsub.s32 1, %v5557
        %v5559 = vrot.slane %v5053, %v5558
        %v5560 = vlaneseq
        %v5561 = vshrl.u32 %v5560, 7
        %v5562 = vsub.s32 0, %v5561
        %v5563 = vrot.slane %v5067, %v5562
        %v5564 = vlaneseq
        %v5565 = vshrl.u32 %v5564, 7
        %v5566 = vsub.s32 1, %v5565
        %v5567 = vrot.slane %v5067, %v5566
        %v5568 = vlaneseq
        %v5569 = vshrl.u32 %v5568, 7
        %v5570 = vsub.s32 0, %v5569
        %v5571 = vrot.slane %v5069, %v5570
        %v5572 = vlaneseq
        %v5573 = vshrl.u32 %v5572, 7
        %v5574 = vsub.s32 1, %v5573
        %v5575 = vrot.slane %v5069, %v5574
        %v5576 = vlaneseq
        %v5577 = vshrl.u32 %v5576, 7
        %v5578 = vsub.s32 0, %v5577
        %v5579 = vrot.slane %v5071, %v5578
        %v5580 = vlaneseq
        %v5581 = vshrl.u32 %v5580, 7
        %v5582 = vsub.s32 1, %v5581
        %v5583 = vrot.slane %v5071, %v5582
        %v5600 = vlaneseq
        %v5601 = vshrl.u32 %v5600, 7
        %v5602 = vsub.s32 0, %v5601
        %v5603 = vrot.slane %v5098, %v5602
        %v5604 = vlaneseq
        %v5605 = vshrl.u32 %v5604, 7
        %v5606 = vsub.s32 1, %v5605
        %v5607 = vrot.slane %v5098, %v5606
        %v5608 = vlaneseq
        %v5609 = vshrl.u32 %v5608, 7
        %v5610 = vsub.s32 0, %v5609
        %v5611 = vrot.slane %v5112, %v5610
        %v5612 = vlaneseq
        %v5613 = vshrl.u32 %v5612, 7
        %v5614 = vsub.s32 1, %v5613
        %v5615 = vrot.slane %v5112, %v5614
        %v5616 = vlaneseq
        %v5617 = vshrl.u32 %v5616, 7
        %v5618 = vsub.s32 0, %v5617
        %v5619 = vrot.slane %v5120, %v5618
        %v5620 = vlaneseq
        %v5621 = vshrl.u32 %v5620, 7
        %v5622 = vsub.s32 1, %v5621
        %v5623 = vrot.slane %v5120, %v5622
        %v5624 = vlaneseq
        %v5625 = vshrl.u32 %v5624, 7
        %v5626 = vsub.s32 0, %v5625
        %v5627 = vrot.slane %v5122, %v5626
        %v5628 = vlaneseq
        %v5629 = vshrl.u32 %v5628, 7
        %v5630 = vsub.s32 1, %v5629
        %v5631 = vrot.slane %v5122, %v5630
        %v5632 = vlaneseq
        %v5633 = vshrl.u32 %v5632, 7
        %v5634 = vsub.s32 0, %v5633
        %v5635 = vrot.slane %v5105, %v5634
        %v5636 = vlaneseq
        %v5637 = vshrl.u32 %v5636, 7
        %v5638 = vsub.s32 1, %v5637
        %v5639 = vrot.slane %v5105, %v5638
        %v5640 = vlaneseq
        %v5641 = vshrl.u32 %v5640, 7
        %v5642 = vsub.s32 0, %v5641
        %v5643 = vrot.slane %v5119, %v5642
        %v5644 = vlaneseq
        %v5645 = vshrl.u32 %v5644, 7
        %v5646 = vsub.s32 1, %v5645
        %v5647 = vrot.slane %v5119, %v5646
        %v5648 = vlaneseq
        %v5649 = vshrl.u32 %v5648, 7
        %v5650 = vsub.s32 0, %v5649
        %v5651 = vrot.slane %v5121, %v5650
        %v5652 = vlaneseq
        %v5653 = vshrl.u32 %v5652, 7
        %v5654 = vsub.s32 1, %v5653
        %v5655 = vrot.slane %v5121, %v5654
        %v5656 = vlaneseq
        %v5657 = vshrl.u32 %v5656, 7
        %v5658 = vsub.s32 0, %v5657
        %v5659 = vrot.slane %v5123, %v5658
        %v5660 = vlaneseq
        %v5661 = vshrl.u32 %v5660, 7
        %v5662 = vsub.s32 1, %v5661
        %v5663 = vrot.slane %v5123, %v5662
        %v5680 = vlaneseq
        %v5681 = vshrl.u32 %v5680, 7
        %v5682 = vsub.s32 0, %v5681
        %v5683 = vrot.slane %v5150, %v5682
        %v5684 = vlaneseq
        %v5685 = vshrl.u32 %v5684, 7
        %v5686 = vsub.s32 1, %v5685
        %v5687 = vrot.slane %v5150, %v5686
        %v5688 = vlaneseq
        %v5689 = vshrl.u32 %v5688, 7
        %v5690 = vsub.s32 0, %v5689
        %v5691 = vrot.slane %v5164, %v5690
        %v5692 = vlaneseq
        %v5693 = vshrl.u32 %v5692, 7
        %v5694 = vsub.s32 1, %v5693
        %v5695 = vrot.slane %v5164, %v5694
        %v5696 = vlaneseq
        %v5697 = vshrl.u32 %v5696, 7
        %v5698 = vsub.s32 0, %v5697
        %v5699 = vrot.slane %v5172, %v5698
        %v5700 = vlaneseq
        %v5701 = vshrl.u32 %v5700, 7
        %v5702 = vsub.s32 1, %v5701
        %v5703 = vrot.slane %v5172, %v5702
        %v5704 = vlaneseq
        %v5705 = vshrl.u32 %v5704, 7
        %v5706 = vsub.s32 0, %v5705
        %v5707 = vrot.slane %v5174, %v5706
        %v5708 = vlaneseq
        %v5709 = vshrl.u32 %v5708, 7
        %v5710 = vsub.s32 1, %v5709
        %v5711 = vrot.slane %v5174, %v5710
        %v5712 = vlaneseq
        %v5713 = vshrl.u32 %v5712, 7
        %v5714 = vsub.s32 0, %v5713
        %v5715 = vrot.slane %v5157, %v5714
        %v5716 = vlaneseq
        %v5717 = vshrl.u32 %v5716, 7
        %v5718 = vsub.s32 1, %v5717
        %v5719 = vrot.slane %v5157, %v5718
        %v5720 = vlaneseq
        %v5721 = vshrl.u32 %v5720, 7
        %v5722 = vsub.s32 0, %v5721
        %v5723 = vrot.slane %v5171, %v5722
        %v5724 = vlaneseq
        %v5725 = vshrl.u32 %v5724, 7
        %v5726 = vsub.s32 1, %v5725
        %v5727 = vrot.slane %v5171, %v5726
        %v5728 = vlaneseq
        %v5729 = vshrl.u32 %v5728, 7
        %v5730 = vsub.s32 0, %v5729
        %v5731 = vrot.slane %v5173, %v5730
        %v5732 = vlaneseq
        %v5733 = vshrl.u32 %v5732, 7
        %v5734 = vsub.s32 1, %v5733
        %v5735 = vrot.slane %v5173, %v5734
        %v5736 = vlaneseq
        %v5737 = vshrl.u32 %v5736, 7
        %v5738 = vsub.s32 0, %v5737
        %v5739 = vrot.slane %v5175, %v5738
        %v5740 = vlaneseq
        %v5741 = vshrl.u32 %v5740, 7
        %v5742 = vsub.s32 1, %v5741
        %v5743 = vrot.slane %v5175, %v5742
        %v5760 = vlaneseq
        %v5761 = vshrl.u32 %v5760, 7
        %v5762 = vsub.s32 0, %v5761
        %v5763 = vrot.slane %v5202, %v5762
        %v5764 = vlaneseq
        %v5765 = vshrl.u32 %v5764, 7
        %v5766 = vsub.s32 1, %v5765
        %v5767 = vrot.slane %v5202, %v5766
        %v5768 = vlaneseq
        %v5769 = vshrl.u32 %v5768, 7
        %v5770 = vsub.s32 0, %v5769
        %v5771 = vrot.slane %v5216, %v5770
        %v5772 = vlaneseq
        %v5773 = vshrl.u32 %v5772, 7
        %v5774 = vsub.s32 1, %v5773
        %v5775 = vrot.slane %v5216, %v5774
        %v5776 = vlaneseq
        %v5777 = vshrl.u32 %v5776, 7
        %v5778 = vsub.s32 0, %v5777
        %v5779 = vrot.slane %v5224, %v5778
        %v5780 = vlaneseq
        %v5781 = vshrl.u32 %v5780, 7
        %v5782 = vsub.s32 1, %v5781
        %v5783 = vrot.slane %v5224, %v5782
        %v5784 = vlaneseq
        %v5785 = vshrl.u32 %v5784, 7
        %v5786 = vsub.s32 0, %v5785
        %v5787 = vrot.slane %v5226, %v5786
        %v5788 = vlaneseq
        %v5789 = vshrl.u32 %v5788, 7
        %v5790 = vsub.s32 1, %v5789
        %v5791 = vrot.slane %v5226, %v5790
        %v5792 = vlaneseq
        %v5793 = vshrl.u32 %v5792, 7
        %v5794 = vsub.s32 0, %v5793
        %v5795 = vrot.slane %v5209, %v5794
        %v5796 = vlaneseq
        %v5797 = vshrl.u32 %v5796, 7
        %v5798 = vsub.s32 1, %v5797
        %v5799 = vrot.slane %v5209, %v5798
        %v5800 = vlaneseq
        %v5801 = vshrl.u32 %v5800, 7
        %v5802 = vsub.s32 0, %v5801
        %v5803 = vrot.slane %v5223, %v5802
        %v5804 = vlaneseq
        %v5805 = vshrl.u32 %v5804, 7
        %v5806 = vsub.s32 1, %v5805
        %v5807 = vrot.slane %v5223, %v5806
        %v5808 = vlaneseq
        %v5809 = vshrl.u32 %v5808, 7
        %v5810 = vsub.s32 0, %v5809
        %v5811 = vrot.slane %v5225, %v5810
        %v5812 = vlaneseq
        %v5813 = vshrl.u32 %v5812, 7
        %v5814 = vsub.s32 1, %v5813
        %v5815 = vrot.slane %v5225, %v5814
        %v5816 = vlaneseq
        %v5817 = vshrl.u32 %v5816, 7
        %v5818 = vsub.s32 0, %v5817
        %v5819 = vrot.slane %v5227, %v5818
        %v5820 = vlaneseq
        %v5821 = vshrl.u32 %v5820, 7
        %v5822 = vsub.s32 1, %v5821
        %v5823 = vrot.slane %v5227, %v5822
        %v5840 = vlaneseq
        %v5841 = vshrl.u32 %v5840, 7
        %v5842 = vsub.s32 0, %v5841
        %v5843 = vrot.slane %v5254, %v5842
        %v5844 = vlaneseq
        %v5845 = vshrl.u32 %v5844, 7
        %v5846 = vsub.s32 1, %v5845
        %v5847 = vrot.slane %v5254, %v5846
        %v5848 = vlaneseq
        %v5849 = vshrl.u32 %v5848, 7
        %v5850 = vsub.s32 0, %v5849
        %v5851 = vrot.slane %v5268, %v5850
        %v5852 = vlaneseq
        %v5853 = vshrl.u32 %v5852, 7
        %v5854 = vsub.s32 1, %v5853
        %v5855 = vrot.slane %v5268, %v5854
        %v5856 = vlaneseq
        %v5857 = vshrl.u32 %v5856, 7
        %v5858 = vsub.s32 0, %v5857
        %v5859 = vrot.slane %v5276, %v5858
        %v5860 = vlaneseq
        %v5861 = vshrl.u32 %v5860, 7
        %v5862 = vsub.s32 1, %v5861
        %v5863 = vrot.slane %v5276, %v5862
        %v5864 = vlaneseq
        %v5865 = vshrl.u32 %v5864, 7
        %v5866 = vsub.s32 0, %v5865
        %v5867 = vrot.slane %v5278, %v5866
        %v5868 = vlaneseq
        %v5869 = vshrl.u32 %v5868, 7
        %v5870 = vsub.s32 1, %v5869
        %v5871 = vrot.slane %v5278, %v5870
        %v5872 = vlaneseq
        %v5873 = vshrl.u32 %v5872, 7
        %v5874 = vsub.s32 0, %v5873
        %v5875 = vrot.slane %v5261, %v5874
        %v5876 = vlaneseq
        %v5877 = vshrl.u32 %v5876, 7
        %v5878 = vsub.s32 1, %v5877
        %v5879 = vrot.slane %v5261, %v5878
        %v5880 = vlaneseq
        %v5881 = vshrl.u32 %v5880, 7
        %v5882 = vsub.s32 0, %v5881
        %v5883 = vrot.slane %v5275, %v5882
        %v5884 = vlaneseq
        %v5885 = vshrl.u32 %v5884, 7
        %v5886 = vsub.s32 1, %v5885
        %v5887 = vrot.slane %v5275, %v5886
        %v5888 = vlaneseq
        %v5889 = vshrl.u32 %v5888, 7
        %v5890 = vsub.s32 0, %v5889
        %v5891 = vrot.slane %v5277, %v5890
        %v5892 = vlaneseq
        %v5893 = vshrl.u32 %v5892, 7
        %v5894 = vsub.s32 1, %v5893
        %v5895 = vrot.slane %v5277, %v5894
        %v5896 = vlaneseq
        %v5897 = vshrl.u32 %v5896, 7
        %v5898 = vsub.s32 0, %v5897
        %v5899 = vrot.slane %v5279, %v5898
        %v5900 = vlaneseq
        %v5901 = vshrl.u32 %v5900, 7
        %v5902 = vsub.s32 1, %v5901
        %v5903 = vrot.slane %v5279, %v5902
        %vm5920 = vcmask 1040384
        %v5921 = vsel %vm5920, %v5283, %v5363
        %v5922 = vsel %vm5920, %v5287, %v5367
        %v5923 = vsel %vm5920, %v5291, %v5371
        %v5924 = vsel %vm5920, %v5295, %v5375
        %v5925 = vsel %vm5920, %v5299, %v5379
        %v5926 = vsel %vm5920, %v5303, %v5383
        %v5927 = vsel %vm5920, %v5307, %v5387
        %v5928 = vsel %vm5920, %v5311, %v5391
        %v5929 = vsel %vm5920, %v5315, %v5395
        %v5930 = vsel %vm5920, %v5319, %v5399
        %v5931 = vsel %vm5920, %v5323, %v5403
        %v5932 = vsel %vm5920, %v5327, %v5407
        %v5933 = vsel %vm5920, %v5331, %v5411
        %v5934 = vsel %vm5920, %v5335, %v5415
        %v5935 = vsel %vm5920, %v5339, %v5419
        %v5936 = vsel %vm5920, %v5343, %v5423
        %vm5937 = vcmask 1041408
        %v5938 = vsel %vm5937, %v5921, %v5443
        %v5939 = vsel %vm5937, %v5922, %v5447
        %v5940 = vsel %vm5937, %v5923, %v5451
        %v5941 = vsel %vm5937, %v5924, %v5455
        %v5942 = vsel %vm5937, %v5925, %v5459
        %v5943 = vsel %vm5937, %v5926, %v5463
        %v5944 = vsel %vm5937, %v5927, %v5467
        %v5945 = vsel %vm5937, %v5928, %v5471
        %v5946 = vsel %vm5937, %v5929, %v5475
        %v5947 = vsel %vm5937, %v5930, %v5479
        %v5948 = vsel %vm5937, %v5931, %v5483
        %v5949 = vsel %vm5937, %v5932, %v5487
        %v5950 = vsel %vm5937, %v5933, %v5491
        %v5951 = vsel %vm5937, %v5934, %v5495
        %v5952 = vsel %vm5937, %v5935, %v5499
        %v5953 = vsel %vm5937, %v5936, %v5503
        %vm5954 = vcmask 1042432
        %v5955 = vsel %vm5954, %v5938, %v5523
        %v5956 = vsel %vm5954, %v5939, %v5527
        %v5957 = vsel %vm5954, %v5940, %v5531
        %v5958 = vsel %vm5954, %v5941, %v5535
        %v5959 = vsel %vm5954, %v5942, %v5539
        %v5960 = vsel %vm5954, %v5943, %v5543
        %v5961 = vsel %vm5954, %v5944, %v5547
        %v5962 = vsel %vm5954, %v5945, %v5551
        %v5963 = vsel %vm5954, %v5946, %v5555
        %v5964 = vsel %vm5954, %v5947, %v5559
        %v5965 = vsel %vm5954, %v5948, %v5563
        %v5966 = vsel %vm5954, %v5949, %v5567
        %v5967 = vsel %vm5954, %v5950, %v5571
        %v5968 = vsel %vm5954, %v5951, %v5575
        %v5969 = vsel %vm5954, %v5952, %v5579
        %v5970 = vsel %vm5954, %v5953, %v5583
        %vm5971 = vcmask 1043456
        %v5972 = vsel %vm5971, %v5955, %v5603
        %v5973 = vsel %vm5971, %v5956, %v5607
        %v5974 = vsel %vm5971, %v5957, %v5611
        %v5975 = vsel %vm5971, %v5958, %v5615
        %v5976 = vsel %vm5971, %v5959, %v5619
        %v5977 = vsel %vm5971, %v5960, %v5623
        %v5978 = vsel %vm5971, %v5961, %v5627
        %v5979 = vsel %vm5971, %v5962, %v5631
        %v5980 = vsel %vm5971, %v5963, %v5635
        %v5981 = vsel %vm5971, %v5964, %v5639
        %v5982 = vsel %vm5971, %v5965, %v5643
        %v5983 = vsel %vm5971, %v5966, %v5647
        %v5984 = vsel %vm5971, %v5967, %v5651
        %v5985 = vsel %vm5971, %v5968, %v5655
        %v5986 = vsel %vm5971, %v5969, %v5659
        %v5987 = vsel %vm5971, %v5970, %v5663
        %vm5988 = vcmask 1044480
        %v5989 = vsel %vm5988, %v5972, %v5683
        %v5990 = vsel %vm5988, %v5973, %v5687
        %v5991 = vsel %vm5988, %v5974, %v5691
        %v5992 = vsel %vm5988, %v5975, %v5695
        %v5993 = vsel %vm5988, %v5976, %v5699
        %v5994 = vsel %vm5988, %v5977, %v5703
        %v5995 = vsel %vm5988, %v5978, %v5707
        %v5996 = vsel %vm5988, %v5979, %v5711
        %v5997 = vsel %vm5988, %v5980, %v5715
        %v5998 = vsel %vm5988, %v5981, %v5719
        %v5999 = vsel %vm5988, %v5982, %v5723
        %v6000 = vsel %vm5988, %v5983, %v5727
        %v6001 = vsel %vm5988, %v5984, %v5731
        %v6002 = vsel %vm5988, %v5985, %v5735
        %v6003 = vsel %vm5988, %v5986, %v5739
        %v6004 = vsel %vm5988, %v5987, %v5743
        %vm6005 = vcmask 1045504
        %v6006 = vsel %vm6005, %v5989, %v5763
        %v6007 = vsel %vm6005, %v5990, %v5767
        %v6008 = vsel %vm6005, %v5991, %v5771
        %v6009 = vsel %vm6005, %v5992, %v5775
        %v6010 = vsel %vm6005, %v5993, %v5779
        %v6011 = vsel %vm6005, %v5994, %v5783
        %v6012 = vsel %vm6005, %v5995, %v5787
        %v6013 = vsel %vm6005, %v5996, %v5791
        %v6014 = vsel %vm6005, %v5997, %v5795
        %v6015 = vsel %vm6005, %v5998, %v5799
        %v6016 = vsel %vm6005, %v5999, %v5803
        %v6017 = vsel %vm6005, %v6000, %v5807
        %v6018 = vsel %vm6005, %v6001, %v5811
        %v6019 = vsel %vm6005, %v6002, %v5815
        %v6020 = vsel %vm6005, %v6003, %v5819
        %v6021 = vsel %vm6005, %v6004, %v5823
        %vm6022 = vcmask 1046528
        %v6023 = vsel %vm6022, %v6006, %v5843
        %v6024 = vsel %vm6022, %v6007, %v5847
        %v6025 = vsel %vm6022, %v6008, %v5851
        %v6026 = vsel %vm6022, %v6009, %v5855
        %v6027 = vsel %vm6022, %v6010, %v5859
        %v6028 = vsel %vm6022, %v6011, %v5863
        %v6029 = vsel %vm6022, %v6012, %v5867
        %v6030 = vsel %vm6022, %v6013, %v5871
        %v6031 = vsel %vm6022, %v6014, %v5875
        %v6032 = vsel %vm6022, %v6015, %v5879
        %v6033 = vsel %vm6022, %v6016, %v5883
        %v6034 = vsel %vm6022, %v6017, %v5887
        %v6035 = vsel %vm6022, %v6018, %v5891
        %v6036 = vsel %vm6022, %v6019, %v5895
        %v6037 = vsel %vm6022, %v6020, %v5899
        %v6038 = vsel %vm6022, %v6021, %v5903
        %6039 = vst [vmem:[%s803] sm:$0xff] %v6023
        %6040 = vst [vmem:[%s803 + $0x8] sm:$0xff] %v6024
        %6041 = vst [vmem:[%s803 + $0x10] sm:$0xff] %v6025
        %6042 = vst [vmem:[%s803 + $0x18] sm:$0xff] %v6026
        %6043 = vst [vmem:[%s803 + $0x20] sm:$0xff] %v6027
        %6044 = vst [vmem:[%s803 + $0x28] sm:$0xff] %v6028
        %6045 = vst [vmem:[%s803 + $0x30] sm:$0xff] %v6029
        %6046 = vst [vmem:[%s803 + $0x38] sm:$0xff] %v6030
        %6047 = vst [vmem:[%s803 + $0x40] sm:$0xff] %v6031
        %6048 = vst [vmem:[%s803 + $0x48] sm:$0xff] %v6032
        %6049 = vst [vmem:[%s803 + $0x50] sm:$0xff] %v6033
        %6050 = vst [vmem:[%s803 + $0x58] sm:$0xff] %v6034
        %6051 = vst [vmem:[%s803 + $0x60] sm:$0xff] %v6035
        %6052 = vst [vmem:[%s803 + $0x68] sm:$0xff] %v6036
        %6053 = vst [vmem:[%s803 + $0x70] sm:$0xff] %v6037
        %6054 = vst [vmem:[%s803 + $0x78] sm:$0xff] %v6038
        %s6055 = sand.u32 %s388, 1
        %s6056 = scalar_lea.sflag [#allocation4], %s6055
        %s6057 = sand.u32 %s388, 1
        %s6058 = smul.addr %s6057, 128
        %s6059 = scalar_lea.vmem [#allocation23], %s6058
        // Predicated region
        $region117: #{tpu_custom_call.1} parent=67 // pred_check
          %p6060 = pneg %p398
        $region118: #{tpu_custom_call.1} parent=67 // pred_check_branch
          %6062 = sbr.rel (%p6060) target = $region120
        $region119: #{tpu_custom_call.1} parent=67 // pred_region
          %s6063 = smul.u32 2, %s49
          %s6065 = ssub.s32 2048, 2048
          %6066 = vsyncadd %s6056, %s6065
          %s6067 = smul.addr %s48, 16
          %s6068 = sadd.s32 %s6063, %s6067
          %s6069 = smul.addr %s6068, 128
          %s6070 = scalar_lea.hbm %s12, %s6069
          %s6071 = sshll.u32 %s6059, 4
          %s6072 = int_to_ptr.vmem [resolvable:$true] %s6071
          %6077 = dma.vmem_to_hbm [thread:$0]  %s6072, 2048, %s6070, %s6056, 256, 256, 16
        $region120: #{tpu_custom_call.1} parent=67 // pred_fallthru
          _
      $region68: #{tpu_custom_call.1} parent=5 // pred_fallthru
        _
      %p6078 = scmp.le.s32.totalorder 2, %s39
      // Predicated region
      $region121: #{tpu_custom_call.1} parent=5 // pred_check
        %p6079 = pneg %p6078
      $region122: #{tpu_custom_call.1} parent=5 // pred_check_branch
        %6081 = sbr.rel (%p6079) target = $region124
      $region123: #{tpu_custom_call.1} parent=5 // pred_region
        %s6082 = ssub.s32 %s39, 2
        // Predicated region
        $region125: #{tpu_custom_call.1} parent=123 // pred_check
          %p6083 = pneg %p404
        $region126: #{tpu_custom_call.1} parent=123 // pred_check_branch
          %6085 = sbr.rel (%p6083) target = $region128
        $region127: #{tpu_custom_call.1} parent=123 // pred_region
          %s6086 = sand.u32 %s389, 1
          %s6087 = scalar_lea.sflag [#allocation4], %s6086
          %s6088 = sand.u32 %s389, 1
          %s6089 = smul.addr %s6088, 128
          %s6090 = scalar_lea.vmem [#allocation23], %s6089
          %6091 = dma.done %s6087, 2048
        $region128: #{tpu_custom_call.1} parent=123 // pred_fallthru
          _
      $region124: #{tpu_custom_call.1} parent=5 // pred_fallthru
        _
    $region6: #{tpu_custom_call.1} parent=1 // loop_footer
      %s43 = sadd.s32 1, %s39
    $region7: #{tpu_custom_call.1} parent=1 // loop_footer_branch
      %38 = sbr.rel target = $region3
    $region8: #{tpu_custom_call.1} parent=1 // loop_exit
      _
    %6092 = vsyncpa [#allocation3], 1
    %s6093 = scalar_lea.sflag [#allocation3], 1
    %6094 = vsyncpa %s6093, 1
    %6095 = vsyncpa [#allocation13], 1
    %s6096 = scalar_lea.sflag [#allocation13], 1
    %6097 = vsyncpa %s6096, 1
    %6098 = vsyncpa [#allocation16], 1
    %s6099 = scalar_lea.sflag [#allocation16], 1
    %6100 = vsyncpa %s6099, 1
    %6101 = vsyncpa [#allocation19], 1
    %s6102 = scalar_lea.sflag [#allocation19], 1
    %6103 = vsyncpa %s6102, 1
    %6104 = vsyncpa [#allocation22], 1
    %s6105 = scalar_lea.sflag [#allocation22], 1
    %6106 = vsyncpa %s6105, 1
    %6107 = vsyncpa [#allocation4], 1
    %s6108 = scalar_lea.sflag [#allocation4], 1
    %6109 = vsyncpa %s6108, 1
    %6110 = vsyncpa [#allocation5], 1
    %s6111 = scalar_lea.sflag [#allocation5], 1
    %6112 = vsyncpa %s6111, 1
    %6113 = vsyncpa [#allocation6], 1
    %s6114 = scalar_lea.sflag [#allocation6], 1
    %6115 = vsyncpa %s6114, 1
    %6116 = vsyncpa [#allocation9], 1

</llo_original>
